<compile_context>
chip_gen: v7x
topology: tpu7x:2x2x1
jax: 0.10.0
libtpu: 0.0.40
codegen_flags: <defaults>
</compile_context>

<pallas_src>
import functools
import math

import jax
import jax.numpy as jnp
from jax.experimental import pallas as pl
from jax.experimental.pallas import tpu as pltpu

NEG_SLOPE = 0.01   # nn.LeakyReLU default
BN_EPS = 1e-5      # nn.BatchNorm2d default


# ----------------------------------------------------------------------------
# Pallas kernels
# ----------------------------------------------------------------------------
def _conv1_lrelu_kernel(x_ref, w_ref, b_ref, o_ref, *, neg_slope):
    # Cin=1, K=9: degenerate for the MXU -> 9 broadcast-MACs on the VPU (f32).
    x = x_ref[...]                              # (M, 9)   f32
    w = w_ref[...]                              # (9, 64)  f32
    acc = x[:, 0:1] * w[0:1, :]
    for k in range(1, 9):
        acc = acc + x[:, k:k + 1] * w[k:k + 1, :]
    y = acc + b_ref[...]
    y = jnp.where(y >= 0.0, y, neg_slope * y)
    o_ref[...] = y.astype(o_ref.dtype)


def _conv_bn_lrelu_kernel(x_ref, w_ref, b_ref, g_ref, be_ref, o_ref, *,
                          neg_slope, eps):
    # bf16 MXU matmul, f32 accumulation + f32 epilogue.
    y = jnp.dot(x_ref[...], w_ref[...], preferred_element_type=jnp.float32)
    y = y + b_ref[...]
    # Training-mode BatchNorm over all (N*H*W) rows of this (whole-M) block,
    # single pass: biased var = E[y^2] - E[y]^2.
    inv_m = 1.0 / y.shape[0]
    mean = jnp.sum(y, axis=0, keepdims=True) * inv_m
    msq = jnp.sum(y * y, axis=0, keepdims=True) * inv_m
    var = msq - mean * mean
    scale = g_ref[...] * jax.lax.rsqrt(var + eps)
    shift = be_ref[...] - mean * scale
    y = y * scale + shift
    y = jnp.where(y >= 0.0, y, neg_slope * y)
    o_ref[...] = y.astype(o_ref.dtype)


def _conv_bn_lrelu_linear_sigmoid_kernel(x_ref, w_ref, b_ref, g_ref, be_ref,
                                         wl_ref, sel_ref, bl_ref, o_ref, *,
                                         neg_slope, eps):
    # conv4 (bf16 MXU) + BN3 + LeakyReLU + fused Linear(8192,1) + sigmoid.
    y = jnp.dot(x_ref[...], w_ref[...], preferred_element_type=jnp.float32)
    y = y + b_ref[...]
    inv_m = 1.0 / y.shape[0]
    mean = jnp.sum(y, axis=0, keepdims=True) * inv_m
    msq = jnp.sum(y * y, axis=0, keepdims=True) * inv_m
    var = msq - mean * mean
    scale = g_ref[...] * jax.lax.rsqrt(var + eps)
    shift = be_ref[...] - mean * scale
    y = y * scale + shift
    y = jnp.where(y >= 0.0, y, neg_slope * y)            # (N*Ho*Wo, 512) f32

    # Lane-dense linear: wl_ref already carries the NCHW-flatten permutation
    # and is tiled per image to (N*Ho*Wo, 512).  sel_ref (N, N*Ho*Wo) sums the
    # rows belonging to each image.
    prod = y * wl_ref[...]                               # VPU, f32
    z = jnp.dot(sel_ref[...], prod,                      # per-image group sum
                preferred_element_type=jnp.float32)      # (N, 512)
    z = jnp.sum(z, axis=1, keepdims=True) + bl_ref[...]  # (N, 1)
    p = pl.reciprocal(1.0 + jnp.exp(-z), approx=True)    # EUP exp + rcp
    o_ref[...] = jnp.clip(p, 0.0, 1.0)


# ----------------------------------------------------------------------------
# pallas_call wrappers (whole-array blocks; BN needs full-batch stats)
# ----------------------------------------------------------------------------
def _whole_block_call(kernel, inputs, out_shape, out_dtype, *, flops,
                      transcendentals=0):
    out_sd = jax.ShapeDtypeStruct(out_shape, out_dtype)
    nbytes = sum(int(a.size) * a.dtype.itemsize for a in inputs)
    nbytes += math.prod(out_shape) * jnp.dtype(out_dtype).itemsize
    return pl.pallas_call(
        kernel,
        out_shape=out_sd,
        grid=(1,),
        in_specs=[pl.BlockSpec(a.shape, lambda i: (0, 0)) for a in inputs],
        out_specs=pl.BlockSpec(out_shape, lambda i: (0, 0)),
        compiler_params=pltpu.CompilerParams(
            dimension_semantics=("arbitrary",)),
        cost_estimate=pl.CostEstimate(flops=int(flops),
                                      transcendentals=int(transcendentals),
                                      bytes_accessed=int(nbytes)),
    )(*inputs)


def conv1_block(patches, w, b):
    M, K = patches.shape
    cout = w.shape[1]
    kernel = functools.partial(_conv1_lrelu_kernel, neg_slope=NEG_SLOPE)
    return _whole_block_call(kernel, (patches, w, b), (M, cout), jnp.bfloat16,
                             flops=2 * M * K * cout)


def conv_bn_block(patches, w, b, gamma, beta):
    M, K = patches.shape
    cout = w.shape[1]
    kernel = functools.partial(_conv_bn_lrelu_kernel,
                               neg_slope=NEG_SLOPE, eps=BN_EPS)
    return _whole_block_call(kernel, (patches, w, b, gamma, beta),
                             (M, cout), jnp.bfloat16,
                             flops=2 * M * K * cout + 8 * M * cout,
                             transcendentals=cout)


def conv_bn_linear_sigmoid_block(patches, w, b, gamma, beta, wl_big, sel, bl):
    M, K = patches.shape
    cout = w.shape[1]
    n = sel.shape[0]
    kernel = functools.partial(_conv_bn_lrelu_linear_sigmoid_kernel,
                               neg_slope=NEG_SLOPE, eps=BN_EPS)
    return _whole_block_call(
        kernel, (patches, w, b, gamma, beta, wl_big, sel, bl),
        (n, 1), jnp.float32,
        flops=2 * M * K * cout + 2 * n * M * cout + 10 * M * cout,
        transcendentals=cout + n)


# ----------------------------------------------------------------------------
# Plain-JAX glue: im2col patch extraction (pure indexing / reshape, bf16)
# ----------------------------------------------------------------------------
def im2col(x_nhwc, ksize, stride, pad):
    xp = jnp.pad(x_nhwc, ((0, 0), (pad, pad), (pad, pad), (0, 0)))
    N, H, W, C = xp.shape
    Ho = (H - ksize) // stride + 1
    Wo = (W - ksize) // stride + 1
    cols = []
    for dh in range(ksize):
        for dw in range(ksize):
            sl = xp[:, dh::stride, dw::stride, :][:, :Ho, :Wo, :]
            cols.append(sl)
    # (N, Ho, Wo, K*K, C) -> rows ordered (n, ho, wo), cols ordered (kh, kw, cin)
    patches = jnp.stack(cols, axis=3)
    return patches.reshape(N * Ho * Wo, ksize * ksize * C), (N, Ho, Wo)


# ----------------------------------------------------------------------------
# Parameters (deterministic synthetic init, PyTorch shapes -> matmul layout)
# ----------------------------------------------------------------------------
def init_params(key):
    keys = jax.random.split(key, 10)

    def conv_w(k, cout, cin, dtype):
        # PyTorch (Cout, Cin, 3, 3) -> (kh, kw, cin, cout) -> (9*Cin, Cout)
        w = 0.05 * jax.random.normal(k, (cout, cin, 3, 3), jnp.float32)
        return jnp.transpose(w, (2, 3, 1, 0)).reshape(9 * cin, cout).astype(dtype)

    def bias(k, cout):
        return 0.05 * jax.random.normal(k, (1, cout), jnp.float32)

    p = {
        # conv1 stays f32 (VPU path); conv2-4 weights are bf16 MXU operands.
        "w1": conv_w(keys[0], 64, 1, jnp.float32),     "b1": bias(keys[1], 64),
        "w2": conv_w(keys[2], 128, 64, jnp.bfloat16),  "b2": bias(keys[3], 128),
        "w3": conv_w(keys[4], 256, 128, jnp.bfloat16), "b3": bias(keys[5], 256),
        "w4": conv_w(keys[6], 512, 256, jnp.bfloat16), "b4": bias(keys[7], 512),
        # BatchNorm default init: weight=1, bias=0 (f32 epilogue math).
        "g1": jnp.ones((1, 128), jnp.float32), "be1": jnp.zeros((1, 128), jnp.float32),
        "g2": jnp.ones((1, 256), jnp.float32), "be2": jnp.zeros((1, 256), jnp.float32),
        "g3": jnp.ones((1, 512), jnp.float32), "be3": jnp.zeros((1, 512), jnp.float32),
        # Linear(8192, 1) with the torch.flatten (c, h, w) permutation folded
        # in: wl2[h*4 + w, c] == W_torch[0, c*16 + h*4 + w].  Lane-dense.
        "wl2": 0.01 * jax.random.normal(keys[8], (16, 512), jnp.float32),
        "bl": 0.01 * jax.random.normal(keys[9], (1, 1), jnp.float32),
    }
    return p


# ----------------------------------------------------------------------------
# Forward pass
# ----------------------------------------------------------------------------
def dnet_forward(params, x_nchw):
    x = jnp.transpose(x_nchw, (0, 2, 3, 1)).astype(jnp.float32)  # NCHW -> NHWC

    # conv1: 1 -> 64, stride 2, pad 1, LeakyReLU (no BN) -- VPU path.
    patches, (N, H, W) = im2col(x, 3, 2, 1)                  # (392, 9) f32
    x = conv1_block(patches, params["w1"], params["b1"]).reshape(N, H, W, 64)

    # conv2: 64 -> 128, stride 2, pad 1, BN + LeakyReLU.
    patches, (N, H, W) = im2col(x, 3, 2, 1)                  # (98, 576) bf16
    x = conv_bn_block(patches, params["w2"], params["b2"],
                      params["g1"], params["be1"]).reshape(N, H, W, 128)

    # conv3: 128 -> 256, stride 2, pad 1, BN + LeakyReLU.
    patches, (N, H, W) = im2col(x, 3, 2, 1)                  # (32, 1152) bf16
    x = conv_bn_block(patches, params["w3"], params["b3"],
                      params["g2"], params["be2"]).reshape(N, H, W, 256)

    # conv4: 256 -> 512, stride 1, pad 1, BN + LeakyReLU,
    # fused with flatten + Linear(8192, 1) + sigmoid (permutation in wl2).
    patches, (N, H, W) = im2col(x, 3, 1, 1)                  # (32, 2304) bf16
    hw = H * W                                               # 16 -> 512*16 = 8192
    assert params["wl2"].shape[0] == hw, (params["wl2"].shape, hw)
    wl_big = jnp.tile(params["wl2"], (N, 1))                 # (N*16, 512) f32
    sel = jnp.repeat(jnp.eye(N, dtype=jnp.float32), hw, axis=1)  # (N, N*16)
    return conv_bn_linear_sigmoid_block(
        patches, params["w4"], params["b4"], params["g3"], params["be3"],
        wl_big, sel, params["bl"])


if __name__ == "__main__":
    key = jax.random.PRNGKey(0)
    kx, kp = jax.random.split(key)

    # MNIST-shaped input: Linear(8192, 1) requires 28x28x1 inputs
    # (28 -> 14 -> 7 -> 4 -> 4 spatial; 512*4*4 = 8192).  Batch = 2.
    x = jax.random.normal(kx, (2, 1, 28, 28), jnp.float32)
    params = init_params(kp)

    fwd = jax.jit(dnet_forward)
    out = jax.block_until_ready(fwd(params, x))
    assert out.shape == (2, 1), out.shape
    assert bool(jnp.all(jnp.isfinite(out)))
    assert bool(jnp.all((out >= 0.0) & (out <= 1.0)))
    print("KERNEL_OK")
</pallas_src>

<mosaic_0001>
module attributes {stable_mosaic.version = 11 : i64} {
  func.func @_conv1_lrelu_kernel(%arg0: i32, %arg1: memref<392x9xf32, #tpu.memory_space<vmem>>, %arg2: memref<9x64xf32, #tpu.memory_space<vmem>>, %arg3: memref<1x64xf32, #tpu.memory_space<vmem>>, %arg4: memref<392x64xbf16, #tpu.memory_space<vmem>>) attributes {dimension_semantics = [#tpu.dimension_semantics<arbitrary>], iteration_bounds = array<i64: 1>, scalar_prefetch = 0 : i64, scratch_operands = 0 : i64, tpu.core_type = #tpu.core_type<tc>, window_params = [{pipeline_mode = #tpu.pipeline_mode<synchronous>, transform_indices = @transform_0, window_bounds = array<i64: 392, 9>}, {pipeline_mode = #tpu.pipeline_mode<synchronous>, transform_indices = @transform_1, window_bounds = array<i64: 9, 64>}, {pipeline_mode = #tpu.pipeline_mode<synchronous>, transform_indices = @transform_2, window_bounds = array<i64: 1, 64>}, {pipeline_mode = #tpu.pipeline_mode<synchronous>, transform_indices = @transform_3, window_bounds = array<i64: 392, 64>}]} {
    %c0 = arith.constant 0 : index
    %c0_0 = arith.constant 0 : index
    %0 = vector.load %arg1[%c0, %c0_0] : memref<392x9xf32, #tpu.memory_space<vmem>>, vector<392x9xf32>
    %c0_1 = arith.constant 0 : index
    %c0_2 = arith.constant 0 : index
    %1 = vector.load %arg2[%c0_1, %c0_2] : memref<9x64xf32, #tpu.memory_space<vmem>>, vector<9x64xf32>
    %2 = vector.extract_strided_slice %0 {offsets = [0, 0], sizes = [392, 1], strides = [1, 1]} : vector<392x9xf32> to vector<392x1xf32>
    %3 = vector.extract_strided_slice %1 {offsets = [0, 0], sizes = [1, 64], strides = [1, 1]} : vector<9x64xf32> to vector<1x64xf32>
    %4 = vector.broadcast %2 : vector<392x1xf32> to vector<392x64xf32>
    %5 = vector.broadcast %3 : vector<1x64xf32> to vector<392x64xf32>
    %6 = arith.mulf %4, %5 : vector<392x64xf32>
    %7 = vector.extract_strided_slice %0 {offsets = [0, 1], sizes = [392, 1], strides = [1, 1]} : vector<392x9xf32> to vector<392x1xf32>
    %8 = vector.extract_strided_slice %1 {offsets = [1, 0], sizes = [1, 64], strides = [1, 1]} : vector<9x64xf32> to vector<1x64xf32>
    %9 = vector.broadcast %7 : vector<392x1xf32> to vector<392x64xf32>
    %10 = vector.broadcast %8 : vector<1x64xf32> to vector<392x64xf32>
    %11 = arith.mulf %9, %10 : vector<392x64xf32>
    %12 = arith.addf %6, %11 : vector<392x64xf32>
    %13 = vector.extract_strided_slice %0 {offsets = [0, 2], sizes = [392, 1], strides = [1, 1]} : vector<392x9xf32> to vector<392x1xf32>
    %14 = vector.extract_strided_slice %1 {offsets = [2, 0], sizes = [1, 64], strides = [1, 1]} : vector<9x64xf32> to vector<1x64xf32>
    %15 = vector.broadcast %13 : vector<392x1xf32> to vector<392x64xf32>
    %16 = vector.broadcast %14 : vector<1x64xf32> to vector<392x64xf32>
    %17 = arith.mulf %15, %16 : vector<392x64xf32>
    %18 = arith.addf %12, %17 : vector<392x64xf32>
    %19 = vector.extract_strided_slice %0 {offsets = [0, 3], sizes = [392, 1], strides = [1, 1]} : vector<392x9xf32> to vector<392x1xf32>
    %20 = vector.extract_strided_slice %1 {offsets = [3, 0], sizes = [1, 64], strides = [1, 1]} : vector<9x64xf32> to vector<1x64xf32>
    %21 = vector.broadcast %19 : vector<392x1xf32> to vector<392x64xf32>
    %22 = vector.broadcast %20 : vector<1x64xf32> to vector<392x64xf32>
    %23 = arith.mulf %21, %22 : vector<392x64xf32>
    %24 = arith.addf %18, %23 : vector<392x64xf32>
    %25 = vector.extract_strided_slice %0 {offsets = [0, 4], sizes = [392, 1], strides = [1, 1]} : vector<392x9xf32> to vector<392x1xf32>
    %26 = vector.extract_strided_slice %1 {offsets = [4, 0], sizes = [1, 64], strides = [1, 1]} : vector<9x64xf32> to vector<1x64xf32>
    %27 = vector.broadcast %25 : vector<392x1xf32> to vector<392x64xf32>
    %28 = vector.broadcast %26 : vector<1x64xf32> to vector<392x64xf32>
    %29 = arith.mulf %27, %28 : vector<392x64xf32>
    %30 = arith.addf %24, %29 : vector<392x64xf32>
    %31 = vector.extract_strided_slice %0 {offsets = [0, 5], sizes = [392, 1], strides = [1, 1]} : vector<392x9xf32> to vector<392x1xf32>
    %32 = vector.extract_strided_slice %1 {offsets = [5, 0], sizes = [1, 64], strides = [1, 1]} : vector<9x64xf32> to vector<1x64xf32>
    %33 = vector.broadcast %31 : vector<392x1xf32> to vector<392x64xf32>
    %34 = vector.broadcast %32 : vector<1x64xf32> to vector<392x64xf32>
    %35 = arith.mulf %33, %34 : vector<392x64xf32>
    %36 = arith.addf %30, %35 : vector<392x64xf32>
    %37 = vector.extract_strided_slice %0 {offsets = [0, 6], sizes = [392, 1], strides = [1, 1]} : vector<392x9xf32> to vector<392x1xf32>
    %38 = vector.extract_strided_slice %1 {offsets = [6, 0], sizes = [1, 64], strides = [1, 1]} : vector<9x64xf32> to vector<1x64xf32>
    %39 = vector.broadcast %37 : vector<392x1xf32> to vector<392x64xf32>
    %40 = vector.broadcast %38 : vector<1x64xf32> to vector<392x64xf32>
    %41 = arith.mulf %39, %40 : vector<392x64xf32>
    %42 = arith.addf %36, %41 : vector<392x64xf32>
    %43 = vector.extract_strided_slice %0 {offsets = [0, 7], sizes = [392, 1], strides = [1, 1]} : vector<392x9xf32> to vector<392x1xf32>
    %44 = vector.extract_strided_slice %1 {offsets = [7, 0], sizes = [1, 64], strides = [1, 1]} : vector<9x64xf32> to vector<1x64xf32>
    %45 = vector.broadcast %43 : vector<392x1xf32> to vector<392x64xf32>
    %46 = vector.broadcast %44 : vector<1x64xf32> to vector<392x64xf32>
    %47 = arith.mulf %45, %46 : vector<392x64xf32>
    %48 = arith.addf %42, %47 : vector<392x64xf32>
    %49 = vector.extract_strided_slice %0 {offsets = [0, 8], sizes = [392, 1], strides = [1, 1]} : vector<392x9xf32> to vector<392x1xf32>
    %50 = vector.extract_strided_slice %1 {offsets = [8, 0], sizes = [1, 64], strides = [1, 1]} : vector<9x64xf32> to vector<1x64xf32>
    %51 = vector.broadcast %49 : vector<392x1xf32> to vector<392x64xf32>
    %52 = vector.broadcast %50 : vector<1x64xf32> to vector<392x64xf32>
    %53 = arith.mulf %51, %52 : vector<392x64xf32>
    %54 = arith.addf %48, %53 : vector<392x64xf32>
    %c0_3 = arith.constant 0 : index
    %c0_4 = arith.constant 0 : index
    %55 = vector.load %arg3[%c0_3, %c0_4] : memref<1x64xf32, #tpu.memory_space<vmem>>, vector<1x64xf32>
    %56 = vector.broadcast %55 : vector<1x64xf32> to vector<392x64xf32>
    %57 = arith.addf %54, %56 : vector<392x64xf32>
    %cst = arith.constant 0.000000e+00 : f32
    %58 = vector.broadcast %cst : f32 to vector<392x64xf32>
    %59 = arith.cmpf oge, %57, %58 : vector<392x64xf32>
    %cst_5 = arith.constant 0.00999999977 : f32
    %60 = vector.broadcast %cst_5 : f32 to vector<392x64xf32>
    %61 = arith.mulf %60, %57 : vector<392x64xf32>
    %62 = arith.select %59, %57, %61 : vector<392x64xi1>, vector<392x64xf32>
    %63 = arith.truncf %62 : vector<392x64xf32> to vector<392x64xbf16>
    %c0_6 = arith.constant 0 : index
    %c0_7 = arith.constant 0 : index
    %64 = vector.load %arg4[%c0_6, %c0_7] : memref<392x64xbf16, #tpu.memory_space<vmem>>, vector<392x64xbf16>
    tpu.vector_store %arg4[%c0_6, %c0_7], %63 {strides = array<i32>} : memref<392x64xbf16, #tpu.memory_space<vmem>>, vector<392x64xbf16>,
    return
  }
  func.func @transform_0(%arg0: i32) -> (i32, i32) {
    %c0_i32 = arith.constant 0 : i32
    %c0_i32_0 = arith.constant 0 : i32
    %c0_i32_1 = arith.constant 0 : i32
    return %c0_i32, %c0_i32_0 : i32, i32
  }
  func.func @transform_1(%arg0: i32) -> (i32, i32) {
    %c0_i32 = arith.constant 0 : i32
    %c0_i32_0 = arith.constant 0 : i32
    %c0_i32_1 = arith.constant 0 : i32
    return %c0_i32, %c0_i32_0 : i32, i32
  }
  func.func @transform_2(%arg0: i32) -> (i32, i32) {
    %c0_i32 = arith.constant 0 : i32
    %c0_i32_0 = arith.constant 0 : i32
    %c0_i32_1 = arith.constant 0 : i32
    return %c0_i32, %c0_i32_0 : i32, i32
  }
  func.func @transform_3(%arg0: i32) -> (i32, i32) {
    %c0_i32 = arith.constant 0 : i32
    %c0_i32_0 = arith.constant 0 : i32
    %c0_i32_1 = arith.constant 0 : i32
    return %c0_i32, %c0_i32_0 : i32, i32
  }
}

module attributes {stable_mosaic.version = 11 : i64} {
  func.func @_conv_bn_lrelu_kernel(%arg0: i32, %arg1: memref<98x576xbf16, #tpu.memory_space<vmem>>, %arg2: memref<576x128xbf16, #tpu.memory_space<vmem>>, %arg3: memref<1x128xf32, #tpu.memory_space<vmem>>, %arg4: memref<1x128xf32, #tpu.memory_space<vmem>>, %arg5: memref<1x128xf32, #tpu.memory_space<vmem>>, %arg6: memref<98x128xbf16, #tpu.memory_space<vmem>>) attributes {dimension_semantics = [#tpu.dimension_semantics<arbitrary>], iteration_bounds = array<i64: 1>, scalar_prefetch = 0 : i64, scratch_operands = 0 : i64, tpu.core_type = #tpu.core_type<tc>, window_params = [{pipeline_mode = #tpu.pipeline_mode<synchronous>, transform_indices = @transform_0, window_bounds = array<i64: 98, 576>}, {pipeline_mode = #tpu.pipeline_mode<synchronous>, transform_indices = @transform_1, window_bounds = array<i64: 576, 128>}, {pipeline_mode = #tpu.pipeline_mode<synchronous>, transform_indices = @transform_2, window_bounds = array<i64: 1, 128>}, {pipeline_mode = #tpu.pipeline_mode<synchronous>, transform_indices = @transform_3, window_bounds = array<i64: 1, 128>}, {pipeline_mode = #tpu.pipeline_mode<synchronous>, transform_indices = @transform_4, window_bounds = array<i64: 1, 128>}, {pipeline_mode = #tpu.pipeline_mode<synchronous>, transform_indices = @transform_5, window_bounds = array<i64: 98, 128>}]} {
    %c0 = arith.constant 0 : index
    %c0_0 = arith.constant 0 : index
    %0 = vector.load %arg1[%c0, %c0_0] : memref<98x576xbf16, #tpu.memory_space<vmem>>, vector<98x576xbf16>
    %c0_1 = arith.constant 0 : index
    %c0_2 = arith.constant 0 : index
    %1 = vector.load %arg2[%c0_1, %c0_2] : memref<576x128xbf16, #tpu.memory_space<vmem>>, vector<576x128xbf16>
    %cst = arith.constant dense<0.000000e+00> : vector<98x128xf32>
    %2 = tpu.matmul %0, %1, %cst {dimension_numbers = #tpu.dot_dimension_numbers<[1], [0], [0], [1], [0, 0, 1, 1], [], []>} : vector<98x576xbf16>, vector<576x128xbf16>, vector<98x128xf32> -> vector<98x128xf32>
    %c0_3 = arith.constant 0 : index
    %c0_4 = arith.constant 0 : index
    %3 = vector.load %arg3[%c0_3, %c0_4] : memref<1x128xf32, #tpu.memory_space<vmem>>, vector<1x128xf32>
    %4 = vector.broadcast %3 : vector<1x128xf32> to vector<98x128xf32>
    %5 = arith.addf %2, %4 : vector<98x128xf32>
    %cst_5 = arith.constant dense<0.000000e+00> : vector<128xf32>
    %6 = vector.multi_reduction <add>, %5, %cst_5 [0] : vector<98x128xf32> to vector<128xf32>
    %7 = vector.shape_cast %6 : vector<128xf32> to vector<1x128xf32>
    %cst_6 = arith.constant 0.0102040814 : f32
    %8 = vector.broadcast %cst_6 : f32 to vector<1x128xf32>
    %9 = arith.mulf %7, %8 : vector<1x128xf32>
    %10 = arith.mulf %5, %5 : vector<98x128xf32>
    %cst_7 = arith.constant dense<0.000000e+00> : vector<128xf32>
    %11 = vector.multi_reduction <add>, %10, %cst_7 [0] : vector<98x128xf32> to vector<128xf32>
    %12 = vector.shape_cast %11 : vector<128xf32> to vector<1x128xf32>
    %cst_8 = arith.constant 0.0102040814 : f32
    %13 = vector.broadcast %cst_8 : f32 to vector<1x128xf32>
    %14 = arith.mulf %12, %13 : vector<1x128xf32>
    %15 = arith.mulf %9, %9 : vector<1x128xf32>
    %16 = arith.subf %14, %15 : vector<1x128xf32>
    %c0_9 = arith.constant 0 : index
    %c0_10 = arith.constant 0 : index
    %17 = vector.load %arg4[%c0_9, %c0_10] : memref<1x128xf32, #tpu.memory_space<vmem>>, vector<1x128xf32>
    %cst_11 = arith.constant 9.99999974E-6 : f32
    %18 = vector.broadcast %cst_11 : f32 to vector<1x128xf32>
    %19 = arith.addf %16, %18 : vector<1x128xf32>
    %20 = math.rsqrt %19 : vector<1x128xf32>
    %21 = arith.mulf %17, %20 : vector<1x128xf32>
    %c0_12 = arith.constant 0 : index
    %c0_13 = arith.constant 0 : index
    %22 = vector.load %arg5[%c0_12, %c0_13] : memref<1x128xf32, #tpu.memory_space<vmem>>, vector<1x128xf32>
    %23 = arith.mulf %9, %21 : vector<1x128xf32>
    %24 = arith.subf %22, %23 : vector<1x128xf32>
    %25 = vector.broadcast %21 : vector<1x128xf32> to vector<98x128xf32>
    %26 = arith.mulf %5, %25 : vector<98x128xf32>
    %27 = vector.broadcast %24 : vector<1x128xf32> to vector<98x128xf32>
    %28 = arith.addf %26, %27 : vector<98x128xf32>
    %cst_14 = arith.constant 0.000000e+00 : f32
    %29 = vector.broadcast %cst_14 : f32 to vector<98x128xf32>
    %30 = arith.cmpf oge, %28, %29 : vector<98x128xf32>
    %cst_15 = arith.constant 0.00999999977 : f32
    %31 = vector.broadcast %cst_15 : f32 to vector<98x128xf32>
    %32 = arith.mulf %31, %28 : vector<98x128xf32>
    %33 = arith.select %30, %28, %32 : vector<98x128xi1>, vector<98x128xf32>
    %34 = arith.truncf %33 : vector<98x128xf32> to vector<98x128xbf16>
    %c0_16 = arith.constant 0 : index
    %c0_17 = arith.constant 0 : index
    %35 = vector.load %arg6[%c0_16, %c0_17] : memref<98x128xbf16, #tpu.memory_space<vmem>>, vector<98x128xbf16>
    tpu.vector_store %arg6[%c0_16, %c0_17], %34 {strides = array<i32>} : memref<98x128xbf16, #tpu.memory_space<vmem>>, vector<98x128xbf16>,
    return
  }
  func.func @transform_0(%arg0: i32) -> (i32, i32) {
    %c0_i32 = arith.constant 0 : i32
    %c0_i32_0 = arith.constant 0 : i32
    %c0_i32_1 = arith.constant 0 : i32
    return %c0_i32, %c0_i32_0 : i32, i32
  }
  func.func @transform_1(%arg0: i32) -> (i32, i32) {
    %c0_i32 = arith.constant 0 : i32
    %c0_i32_0 = arith.constant 0 : i32
    %c0_i32_1 = arith.constant 0 : i32
    return %c0_i32, %c0_i32_0 : i32, i32
  }
  func.func @transform_2(%arg0: i32) -> (i32, i32) {
    %c0_i32 = arith.constant 0 : i32
    %c0_i32_0 = arith.constant 0 : i32
    %c0_i32_1 = arith.constant 0 : i32
    return %c0_i32, %c0_i32_0 : i32, i32
  }
  func.func @transform_3(%arg0: i32) -> (i32, i32) {
    %c0_i32 = arith.constant 0 : i32
    %c0_i32_0 = arith.constant 0 : i32
    %c0_i32_1 = arith.constant 0 : i32
    return %c0_i32, %c0_i32_0 : i32, i32
  }
  func.func @transform_4(%arg0: i32) -> (i32, i32) {
    %c0_i32 = arith.constant 0 : i32
    %c0_i32_0 = arith.constant 0 : i32
    %c0_i32_1 = arith.constant 0 : i32
    return %c0_i32, %c0_i32_0 : i32, i32
  }
  func.func @transform_5(%arg0: i32) -> (i32, i32) {
    %c0_i32 = arith.constant 0 : i32
    %c0_i32_0 = arith.constant 0 : i32
    %c0_i32_1 = arith.constant 0 : i32
    return %c0_i32, %c0_i32_0 : i32, i32
  }
}

module attributes {stable_mosaic.version = 11 : i64} {
  func.func @_conv_bn_lrelu_kernel(%arg0: i32, %arg1: memref<32x1152xbf16, #tpu.memory_space<vmem>>, %arg2: memref<1152x256xbf16, #tpu.memory_space<vmem>>, %arg3: memref<1x256xf32, #tpu.memory_space<vmem>>, %arg4: memref<1x256xf32, #tpu.memory_space<vmem>>, %arg5: memref<1x256xf32, #tpu.memory_space<vmem>>, %arg6: memref<32x256xbf16, #tpu.memory_space<vmem>>) attributes {dimension_semantics = [#tpu.dimension_semantics<arbitrary>], iteration_bounds = array<i64: 1>, scalar_prefetch = 0 : i64, scratch_operands = 0 : i64, tpu.core_type = #tpu.core_type<tc>, window_params = [{pipeline_mode = #tpu.pipeline_mode<synchronous>, transform_indices = @transform_0, window_bounds = array<i64: 32, 1152>}, {pipeline_mode = #tpu.pipeline_mode<synchronous>, transform_indices = @transform_1, window_bounds = array<i64: 1152, 256>}, {pipeline_mode = #tpu.pipeline_mode<synchronous>, transform_indices = @transform_2, window_bounds = array<i64: 1, 256>}, {pipeline_mode = #tpu.pipeline_mode<synchronous>, transform_indices = @transform_3, window_bounds = array<i64: 1, 256>}, {pipeline_mode = #tpu.pipeline_mode<synchronous>, transform_indices = @transform_4, window_bounds = array<i64: 1, 256>}, {pipeline_mode = #tpu.pipeline_mode<synchronous>, transform_indices = @transform_5, window_bounds = array<i64: 32, 256>}]} {
    %c0 = arith.constant 0 : index
    %c0_0 = arith.constant 0 : index
    %0 = vector.load %arg1[%c0, %c0_0] : memref<32x1152xbf16, #tpu.memory_space<vmem>>, vector<32x1152xbf16>
    %c0_1 = arith.constant 0 : index
    %c0_2 = arith.constant 0 : index
    %1 = vector.load %arg2[%c0_1, %c0_2] : memref<1152x256xbf16, #tpu.memory_space<vmem>>, vector<1152x256xbf16>
    %cst = arith.constant dense<0.000000e+00> : vector<32x256xf32>
    %2 = tpu.matmul %0, %1, %cst {dimension_numbers = #tpu.dot_dimension_numbers<[1], [0], [0], [1], [0, 0, 1, 1], [], []>} : vector<32x1152xbf16>, vector<1152x256xbf16>, vector<32x256xf32> -> vector<32x256xf32>
    %c0_3 = arith.constant 0 : index
    %c0_4 = arith.constant 0 : index
    %3 = vector.load %arg3[%c0_3, %c0_4] : memref<1x256xf32, #tpu.memory_space<vmem>>, vector<1x256xf32>
    %4 = vector.broadcast %3 : vector<1x256xf32> to vector<32x256xf32>
    %5 = arith.addf %2, %4 : vector<32x256xf32>
    %cst_5 = arith.constant dense<0.000000e+00> : vector<256xf32>
    %6 = vector.multi_reduction <add>, %5, %cst_5 [0] : vector<32x256xf32> to vector<256xf32>
    %7 = vector.shape_cast %6 : vector<256xf32> to vector<1x256xf32>
    %cst_6 = arith.constant 3.125000e-02 : f32
    %8 = vector.broadcast %cst_6 : f32 to vector<1x256xf32>
    %9 = arith.mulf %7, %8 : vector<1x256xf32>
    %10 = arith.mulf %5, %5 : vector<32x256xf32>
    %cst_7 = arith.constant dense<0.000000e+00> : vector<256xf32>
    %11 = vector.multi_reduction <add>, %10, %cst_7 [0] : vector<32x256xf32> to vector<256xf32>
    %12 = vector.shape_cast %11 : vector<256xf32> to vector<1x256xf32>
    %cst_8 = arith.constant 3.125000e-02 : f32
    %13 = vector.broadcast %cst_8 : f32 to vector<1x256xf32>
    %14 = arith.mulf %12, %13 : vector<1x256xf32>
    %15 = arith.mulf %9, %9 : vector<1x256xf32>
    %16 = arith.subf %14, %15 : vector<1x256xf32>
    %c0_9 = arith.constant 0 : index
    %c0_10 = arith.constant 0 : index
    %17 = vector.load %arg4[%c0_9, %c0_10] : memref<1x256xf32, #tpu.memory_space<vmem>>, vector<1x256xf32>
    %cst_11 = arith.constant 9.99999974E-6 : f32
    %18 = vector.broadcast %cst_11 : f32 to vector<1x256xf32>
    %19 = arith.addf %16, %18 : vector<1x256xf32>
    %20 = math.rsqrt %19 : vector<1x256xf32>
    %21 = arith.mulf %17, %20 : vector<1x256xf32>
    %c0_12 = arith.constant 0 : index
    %c0_13 = arith.constant 0 : index
    %22 = vector.load %arg5[%c0_12, %c0_13] : memref<1x256xf32, #tpu.memory_space<vmem>>, vector<1x256xf32>
    %23 = arith.mulf %9, %21 : vector<1x256xf32>
    %24 = arith.subf %22, %23 : vector<1x256xf32>
    %25 = vector.broadcast %21 : vector<1x256xf32> to vector<32x256xf32>
    %26 = arith.mulf %5, %25 : vector<32x256xf32>
    %27 = vector.broadcast %24 : vector<1x256xf32> to vector<32x256xf32>
    %28 = arith.addf %26, %27 : vector<32x256xf32>
    %cst_14 = arith.constant 0.000000e+00 : f32
    %29 = vector.broadcast %cst_14 : f32 to vector<32x256xf32>
    %30 = arith.cmpf oge, %28, %29 : vector<32x256xf32>
    %cst_15 = arith.constant 0.00999999977 : f32
    %31 = vector.broadcast %cst_15 : f32 to vector<32x256xf32>
    %32 = arith.mulf %31, %28 : vector<32x256xf32>
    %33 = arith.select %30, %28, %32 : vector<32x256xi1>, vector<32x256xf32>
    %34 = arith.truncf %33 : vector<32x256xf32> to vector<32x256xbf16>
    %c0_16 = arith.constant 0 : index
    %c0_17 = arith.constant 0 : index
    %35 = vector.load %arg6[%c0_16, %c0_17] : memref<32x256xbf16, #tpu.memory_space<vmem>>, vector<32x256xbf16>
    tpu.vector_store %arg6[%c0_16, %c0_17], %34 {strides = array<i32>} : memref<32x256xbf16, #tpu.memory_space<vmem>>, vector<32x256xbf16>,
    return
  }
  func.func @transform_0(%arg0: i32) -> (i32, i32) {
    %c0_i32 = arith.constant 0 : i32
    %c0_i32_0 = arith.constant 0 : i32
    %c0_i32_1 = arith.constant 0 : i32
    return %c0_i32, %c0_i32_0 : i32, i32
  }
  func.func @transform_1(%arg0: i32) -> (i32, i32) {
    %c0_i32 = arith.constant 0 : i32
    %c0_i32_0 = arith.constant 0 : i32
    %c0_i32_1 = arith.constant 0 : i32
    return %c0_i32, %c0_i32_0 : i32, i32
  }
  func.func @transform_2(%arg0: i32) -> (i32, i32) {
    %c0_i32 = arith.constant 0 : i32
    %c0_i32_0 = arith.constant 0 : i32
    %c0_i32_1 = arith.constant 0 : i32
    return %c0_i32, %c0_i32_0 : i32, i32
  }
  func.func @transform_3(%arg0: i32) -> (i32, i32) {
    %c0_i32 = arith.constant 0 : i32
    %c0_i32_0 = arith.constant 0 : i32
    %c0_i32_1 = arith.constant 0 : i32
    return %c0_i32, %c0_i32_0 : i32, i32
  }
  func.func @transform_4(%arg0: i32) -> (i32, i32) {
    %c0_i32 = arith.constant 0 : i32
    %c0_i32_0 = arith.constant 0 : i32
    %c0_i32_1 = arith.constant 0 : i32
    return %c0_i32, %c0_i32_0 : i32, i32
  }
  func.func @transform_5(%arg0: i32) -> (i32, i32) {
    %c0_i32 = arith.constant 0 : i32
    %c0_i32_0 = arith.constant 0 : i32
    %c0_i32_1 = arith.constant 0 : i32
    return %c0_i32, %c0_i32_0 : i32, i32
  }
}

module attributes {stable_mosaic.version = 11 : i64} {
  func.func @_conv_bn_lrelu_linear_sigmoid_kernel(%arg0: i32, %arg1: memref<32x2304xbf16, #tpu.memory_space<vmem>>, %arg2: memref<2304x512xbf16, #tpu.memory_space<vmem>>, %arg3: memref<1x512xf32, #tpu.memory_space<vmem>>, %arg4: memref<1x512xf32, #tpu.memory_space<vmem>>, %arg5: memref<1x512xf32, #tpu.memory_space<vmem>>, %arg6: memref<32x512xf32, #tpu.memory_space<vmem>>, %arg7: memref<2x32xf32, #tpu.memory_space<vmem>>, %arg8: memref<1x1xf32, #tpu.memory_space<vmem>>, %arg9: memref<2x1xf32, #tpu.memory_space<vmem>>) attributes {dimension_semantics = [#tpu.dimension_semantics<arbitrary>], iteration_bounds = array<i64: 1>, scalar_prefetch = 0 : i64, scratch_operands = 0 : i64, tpu.core_type = #tpu.core_type<tc>, window_params = [{pipeline_mode = #tpu.pipeline_mode<synchronous>, transform_indices = @transform_0, window_bounds = array<i64: 32, 2304>}, {pipeline_mode = #tpu.pipeline_mode<synchronous>, transform_indices = @transform_1, window_bounds = array<i64: 2304, 512>}, {pipeline_mode = #tpu.pipeline_mode<synchronous>, transform_indices = @transform_2, window_bounds = array<i64: 1, 512>}, {pipeline_mode = #tpu.pipeline_mode<synchronous>, transform_indices = @transform_3, window_bounds = array<i64: 1, 512>}, {pipeline_mode = #tpu.pipeline_mode<synchronous>, transform_indices = @transform_4, window_bounds = array<i64: 1, 512>}, {pipeline_mode = #tpu.pipeline_mode<synchronous>, transform_indices = @transform_5, window_bounds = array<i64: 32, 512>}, {pipeline_mode = #tpu.pipeline_mode<synchronous>, transform_indices = @transform_6, window_bounds = array<i64: 2, 32>}, {pipeline_mode = #tpu.pipeline_mode<synchronous>, transform_indices = @transform_7, window_bounds = array<i64: 1, 1>}, {pipeline_mode = #tpu.pipeline_mode<synchronous>, transform_indices = @transform_8, window_bounds = array<i64: 2, 1>}]} {
    %c0 = arith.constant 0 : index
    %c0_0 = arith.constant 0 : index
    %0 = vector.load %arg1[%c0, %c0_0] : memref<32x2304xbf16, #tpu.memory_space<vmem>>, vector<32x2304xbf16>
    %c0_1 = arith.constant 0 : index
    %c0_2 = arith.constant 0 : index
    %1 = vector.load %arg2[%c0_1, %c0_2] : memref<2304x512xbf16, #tpu.memory_space<vmem>>, vector<2304x512xbf16>
    %cst = arith.constant dense<0.000000e+00> : vector<32x512xf32>
    %2 = tpu.matmul %0, %1, %cst {dimension_numbers = #tpu.dot_dimension_numbers<[1], [0], [0], [1], [0, 0, 1, 1], [], []>} : vector<32x2304xbf16>, vector<2304x512xbf16>, vector<32x512xf32> -> vector<32x512xf32>
    %c0_3 = arith.constant 0 : index
    %c0_4 = arith.constant 0 : index
    %3 = vector.load %arg3[%c0_3, %c0_4] : memref<1x512xf32, #tpu.memory_space<vmem>>, vector<1x512xf32>
    %4 = vector.broadcast %3 : vector<1x512xf32> to vector<32x512xf32>
    %5 = arith.addf %2, %4 : vector<32x512xf32>
    %cst_5 = arith.constant dense<0.000000e+00> : vector<512xf32>
    %6 = vector.multi_reduction <add>, %5, %cst_5 [0] : vector<32x512xf32> to vector<512xf32>
    %7 = vector.shape_cast %6 : vector<512xf32> to vector<1x512xf32>
    %cst_6 = arith.constant 3.125000e-02 : f32
    %8 = vector.broadcast %cst_6 : f32 to vector<1x512xf32>
    %9 = arith.mulf %7, %8 : vector<1x512xf32>
    %10 = arith.mulf %5, %5 : vector<32x512xf32>
    %cst_7 = arith.constant dense<0.000000e+00> : vector<512xf32>
    %11 = vector.multi_reduction <add>, %10, %cst_7 [0] : vector<32x512xf32> to vector<512xf32>
    %12 = vector.shape_cast %11 : vector<512xf32> to vector<1x512xf32>
    %cst_8 = arith.constant 3.125000e-02 : f32
    %13 = vector.broadcast %cst_8 : f32 to vector<1x512xf32>
    %14 = arith.mulf %12, %13 : vector<1x512xf32>
    %15 = arith.mulf %9, %9 : vector<1x512xf32>
    %16 = arith.subf %14, %15 : vector<1x512xf32>
    %c0_9 = arith.constant 0 : index
    %c0_10 = arith.constant 0 : index
    %17 = vector.load %arg4[%c0_9, %c0_10] : memref<1x512xf32, #tpu.memory_space<vmem>>, vector<1x512xf32>
    %cst_11 = arith.constant 9.99999974E-6 : f32
    %18 = vector.broadcast %cst_11 : f32 to vector<1x512xf32>
    %19 = arith.addf %16, %18 : vector<1x512xf32>
    %20 = math.rsqrt %19 : vector<1x512xf32>
    %21 = arith.mulf %17, %20 : vector<1x512xf32>
    %c0_12 = arith.constant 0 : index
    %c0_13 = arith.constant 0 : index
    %22 = vector.load %arg5[%c0_12, %c0_13] : memref<1x512xf32, #tpu.memory_space<vmem>>, vector<1x512xf32>
    %23 = arith.mulf %9, %21 : vector<1x512xf32>
    %24 = arith.subf %22, %23 : vector<1x512xf32>
    %25 = vector.broadcast %21 : vector<1x512xf32> to vector<32x512xf32>
    %26 = arith.mulf %5, %25 : vector<32x512xf32>
    %27 = vector.broadcast %24 : vector<1x512xf32> to vector<32x512xf32>
    %28 = arith.addf %26, %27 : vector<32x512xf32>
    %cst_14 = arith.constant 0.000000e+00 : f32
    %29 = vector.broadcast %cst_14 : f32 to vector<32x512xf32>
    %30 = arith.cmpf oge, %28, %29 : vector<32x512xf32>
    %cst_15 = arith.constant 0.00999999977 : f32
    %31 = vector.broadcast %cst_15 : f32 to vector<32x512xf32>
    %32 = arith.mulf %31, %28 : vector<32x512xf32>
    %33 = arith.select %30, %28, %32 : vector<32x512xi1>, vector<32x512xf32>
    %c0_16 = arith.constant 0 : index
    %c0_17 = arith.constant 0 : index
    %34 = vector.load %arg6[%c0_16, %c0_17] : memref<32x512xf32, #tpu.memory_space<vmem>>, vector<32x512xf32>
    %35 = arith.mulf %33, %34 : vector<32x512xf32>
    %c0_18 = arith.constant 0 : index
    %c0_19 = arith.constant 0 : index
    %36 = vector.load %arg7[%c0_18, %c0_19] : memref<2x32xf32, #tpu.memory_space<vmem>>, vector<2x32xf32>
    %cst_20 = arith.constant dense<0.000000e+00> : vector<2x512xf32>
    %37 = tpu.matmul %36, %35, %cst_20 {dimension_numbers = #tpu.dot_dimension_numbers<[1], [0], [0], [1], [0, 0, 1, 1], [], []>} : vector<2x32xf32>, vector<32x512xf32>, vector<2x512xf32> -> vector<2x512xf32>
    %cst_21 = arith.constant dense<0.000000e+00> : vector<2xf32>
    %38 = vector.multi_reduction <add>, %37, %cst_21 [1] : vector<2x512xf32> to vector<2xf32>
    %39 = vector.shape_cast %38 : vector<2xf32> to vector<2x1xf32>
    %c0_22 = arith.constant 0 : index
    %c0_23 = arith.constant 0 : index
    %40 = vector.load %arg8[%c0_22, %c0_23] : memref<1x1xf32, #tpu.memory_space<vmem>>, vector<1x1xf32>
    %41 = vector.broadcast %40 : vector<1x1xf32> to vector<2x1xf32>
    %42 = arith.addf %39, %41 : vector<2x1xf32>
    %cst_24 = arith.constant 0.000000e+00 : f32
    %43 = vector.broadcast %cst_24 : f32 to vector<2x1xf32>
    %44 = arith.subf %43, %42 : vector<2x1xf32>
    %45 = math.exp %44 : vector<2x1xf32>
    %cst_25 = arith.constant 1.000000e+00 : f32
    %46 = vector.broadcast %cst_25 : f32 to vector<2x1xf32>
    %47 = arith.addf %46, %45 : vector<2x1xf32>
    %48 = tpu.reciprocal %47 {approx = true} : vector<2x1xf32> -> vector<2x1xf32>
    %cst_26 = arith.constant 0.000000e+00 : f32
    %cst_27 = arith.constant 1.000000e+00 : f32
    %49 = vector.broadcast %cst_26 : f32 to vector<2x1xf32>
    %50 = arith.maximumf %49, %48 : vector<2x1xf32>
    %51 = vector.broadcast %cst_27 : f32 to vector<2x1xf32>
    %52 = arith.minimumf %51, %50 : vector<2x1xf32>
    %c0_28 = arith.constant 0 : index
    %c0_29 = arith.constant 0 : index
    %53 = vector.load %arg9[%c0_28, %c0_29] : memref<2x1xf32, #tpu.memory_space<vmem>>, vector<2x1xf32>
    tpu.vector_store %arg9[%c0_28, %c0_29], %52 {strides = array<i32>} : memref<2x1xf32, #tpu.memory_space<vmem>>, vector<2x1xf32>,
    return
  }
  func.func @transform_0(%arg0: i32) -> (i32, i32) {
    %c0_i32 = arith.constant 0 : i32
    %c0_i32_0 = arith.constant 0 : i32
    %c0_i32_1 = arith.constant 0 : i32
    return %c0_i32, %c0_i32_0 : i32, i32
  }
  func.func @transform_1(%arg0: i32) -> (i32, i32) {
    %c0_i32 = arith.constant 0 : i32
    %c0_i32_0 = arith.constant 0 : i32
    %c0_i32_1 = arith.constant 0 : i32
    return %c0_i32, %c0_i32_0 : i32, i32
  }
  func.func @transform_2(%arg0: i32) -> (i32, i32) {
    %c0_i32 = arith.constant 0 : i32
    %c0_i32_0 = arith.constant 0 : i32
    %c0_i32_1 = arith.constant 0 : i32
    return %c0_i32, %c0_i32_0 : i32, i32
  }
  func.func @transform_3(%arg0: i32) -> (i32, i32) {
    %c0_i32 = arith.constant 0 : i32
    %c0_i32_0 = arith.constant 0 : i32
    %c0_i32_1 = arith.constant 0 : i32
    return %c0_i32, %c0_i32_0 : i32, i32
  }
  func.func @transform_4(%arg0: i32) -> (i32, i32) {
    %c0_i32 = arith.constant 0 : i32
    %c0_i32_0 = arith.constant 0 : i32
    %c0_i32_1 = arith.constant 0 : i32
    return %c0_i32, %c0_i32_0 : i32, i32
  }
  func.func @transform_5(%arg0: i32) -> (i32, i32) {
    %c0_i32 = arith.constant 0 : i32
    %c0_i32_0 = arith.constant 0 : i32
    %c0_i32_1 = arith.constant 0 : i32
    return %c0_i32, %c0_i32_0 : i32, i32
  }
  func.func @transform_6(%arg0: i32) -> (i32, i32) {
    %c0_i32 = arith.constant 0 : i32
    %c0_i32_0 = arith.constant 0 : i32
    %c0_i32_1 = arith.constant 0 : i32
    return %c0_i32, %c0_i32_0 : i32, i32
  }
  func.func @transform_7(%arg0: i32) -> (i32, i32) {
    %c0_i32 = arith.constant 0 : i32
    %c0_i32_0 = arith.constant 0 : i32
    %c0_i32_1 = arith.constant 0 : i32
    return %c0_i32, %c0_i32_0 : i32, i32
  }
  func.func @transform_8(%arg0: i32) -> (i32, i32) {
    %c0_i32 = arith.constant 0 : i32
    %c0_i32_0 = arith.constant 0 : i32
    %c0_i32_1 = arith.constant 0 : i32
    return %c0_i32, %c0_i32_0 : i32, i32
  }
}

</mosaic_0001>

<llo_original>
// kernel: dnet_forward.5
$region0: #{dnet_forward.5}
  #allocation0 [shape = 'u32[]', space=smem, size = 0x4, offset = 0x4, fixed_abs, tag = 'smem constant byte address 0x4 - core index']
  #allocation1 [shape = 'u32[144,128]{1,0:T(1,128)}', space=vmem, size = 0x12000, scoped, tag = 'internal scratch']
  %s0 = inlined_call_operand.vmem [shape: bf16[98,576], index: 0, kind: input, shape index: {}]
  %s1 = inlined_call_operand.vmem [shape: bf16[576,128], index: 1, kind: input, shape index: {}]
  %s2 = inlined_call_operand.vmem [shape: f32[1,128], index: 2, kind: input, shape index: {}]
  %s3 = inlined_call_operand.vmem [shape: f32[1,128], index: 3, kind: input, shape index: {}]
  %s4 = inlined_call_operand.vmem [shape: f32[1,128], index: 4, kind: input, shape index: {}]
  %s5 = inlined_call_operand.vmem [shape: bf16[98,128], index: 5, kind: output, shape index: {}]
  %s6 = sld [smem:[#allocation0]]
  $region30: #{dnet_forward.5} parent=0
    _
  %s8 = ssub.s32 1, %s6
  %s9 = scalar_select 0, %s8, %s6
  // Predicated region
  $region2: #{dnet_forward.5} parent=0 // pred_check
    _
  $region3: #{dnet_forward.5} parent=0 // pred_check_branch
    %11 = sbr.rel (0) target = $region5
  $region4: #{dnet_forward.5} parent=0 // pred_region
    _
  $region5: #{dnet_forward.5} parent=0 // pred_fallthru
    _
  // Predicated region
  $region6: #{dnet_forward.5} parent=0 // pred_check
    _
  $region7: #{dnet_forward.5} parent=0 // pred_check_branch
    %13 = sbr.rel (0) target = $region9
  $region8: #{dnet_forward.5} parent=0 // pred_region
    _
  $region9: #{dnet_forward.5} parent=0 // pred_fallthru
    _
  // Predicated region
  $region10: #{dnet_forward.5} parent=0 // pred_check
    _
  $region11: #{dnet_forward.5} parent=0 // pred_check_branch
    %15 = sbr.rel (0) target = $region13
  $region12: #{dnet_forward.5} parent=0 // pred_region
    _
  $region13: #{dnet_forward.5} parent=0 // pred_fallthru
    _
  // Predicated region
  $region14: #{dnet_forward.5} parent=0 // pred_check
    _
  $region15: #{dnet_forward.5} parent=0 // pred_check_branch
    %17 = sbr.rel (0) target = $region17
  $region16: #{dnet_forward.5} parent=0 // pred_region
    _
  $region17: #{dnet_forward.5} parent=0 // pred_fallthru
    _
  // Predicated region
  $region18: #{dnet_forward.5} parent=0 // pred_check
    _
  $region19: #{dnet_forward.5} parent=0 // pred_check_branch
    %19 = sbr.rel (0) target = $region21
  $region20: #{dnet_forward.5} parent=0 // pred_region
    _
  $region21: #{dnet_forward.5} parent=0 // pred_fallthru
    _
  %v21 = vld [vmem:[%s0] sm:$0xff]
  %v22 = vld [vmem:[%s0 + $0x8] sm:$0xff]
  %v23 = vld [vmem:[%s0 + $0x10] sm:$0xf]
  %v24 = vld [vmem:[%s0 + $0x14] sm:$0xff]
  %v25 = vld [vmem:[%s0 + $0x1c] sm:$0xff]
  %v26 = vld [vmem:[%s0 + $0x24] sm:$0xf]
  %v27 = vld [vmem:[%s0 + $0x28] sm:$0xff]
  %v28 = vld [vmem:[%s0 + $0x30] sm:$0xff]
  %v29 = vld [vmem:[%s0 + $0x38] sm:$0xf]
  %v30 = vld [vmem:[%s0 + $0x3c] sm:$0xff]
  %v31 = vld [vmem:[%s0 + $0x44] sm:$0xff]
  %v32 = vld [vmem:[%s0 + $0x4c] sm:$0xf]
  %v33 = vld [vmem:[%s0 + $0x50] sm:$0xff]
  %v34 = vld [vmem:[%s0 + $0x58] sm:$0xff]
  %v35 = vld [vmem:[%s0 + $0x60] sm:$0xf]
  %v36 = vld [vmem:[%s0 + $0x64] sm:$0xff]
  %v37 = vld [vmem:[%s0 + $0x6c] sm:$0xff]
  %v38 = vld [vmem:[%s0 + $0x74] sm:$0xf]
  %v39 = vld [vmem:[%s0 + $0x78] sm:$0xff]
  %v40 = vld [vmem:[%s0 + $0x80] sm:$0xff]
  %v41 = vld [vmem:[%s0 + $0x88] sm:$0xf]
  %v42 = vld [vmem:[%s0 + $0x8c] sm:$0xff]
  %v43 = vld [vmem:[%s0 + $0x94] sm:$0xff]
  %v44 = vld [vmem:[%s0 + $0x9c] sm:$0xf]
  %v45 = vld [vmem:[%s0 + $0xa0] sm:$0xff]
  %v46 = vld [vmem:[%s0 + $0xa8] sm:$0xff]
  %v47 = vld [vmem:[%s0 + $0xb0] sm:$0xf]
  %v48 = vld [vmem:[%s0 + $0xb4] sm:$0xff]
  %v49 = vld [vmem:[%s0 + $0xbc] sm:$0xff]
  %v50 = vld [vmem:[%s0 + $0xc4] sm:$0xf]
  %v51 = vld [vmem:[%s0 + $0xc8] sm:$0xff]
  %v52 = vld [vmem:[%s0 + $0xd0] sm:$0xff]
  %v53 = vld [vmem:[%s0 + $0xd8] sm:$0xf]
  %v54 = vld [vmem:[%s0 + $0xdc] sm:$0xff]
  %v55 = vld [vmem:[%s0 + $0xe4] sm:$0xff]
  %v56 = vld [vmem:[%s0 + $0xec] sm:$0xf]
  %v57 = vld [vmem:[%s0 + $0xf0] sm:$0x11]
  %v58 = vld [vmem:[%s0 + $0xf8] sm:$0x11]
  %v59 = vld [vmem:[%s0 + $0x100] sm:$0x1]
  %v60 = vld [vmem:[%s1] sm:$0xf]
  %v61 = vld [vmem:[%s1 + $0x4] sm:$0xf]
  %v62 = vld [vmem:[%s1 + $0x8] sm:$0xf]
  %v63 = vld [vmem:[%s1 + $0xc] sm:$0xf]
  %v64 = vld [vmem:[%s1 + $0x10] sm:$0xf]
  %v65 = vld [vmem:[%s1 + $0x14] sm:$0xf]
  %v66 = vld [vmem:[%s1 + $0x18] sm:$0xf]
  %v67 = vld [vmem:[%s1 + $0x1c] sm:$0xf]
  %v68 = vld [vmem:[%s1 + $0x20] sm:$0xf]
  %v69 = vld [vmem:[%s1 + $0x24] sm:$0xf]
  %v70 = vld [vmem:[%s1 + $0x28] sm:$0xf]
  %v71 = vld [vmem:[%s1 + $0x2c] sm:$0xf]
  %v72 = vld [vmem:[%s1 + $0x30] sm:$0xf]
  %v73 = vld [vmem:[%s1 + $0x34] sm:$0xf]
  %v74 = vld [vmem:[%s1 + $0x38] sm:$0xf]
  %v75 = vld [vmem:[%s1 + $0x3c] sm:$0xf]
  %v76 = vld [vmem:[%s1 + $0x40] sm:$0xf]
  %v77 = vld [vmem:[%s1 + $0x44] sm:$0xf]
  %v78 = vld [vmem:[%s1 + $0x48] sm:$0xf]
  %v79 = vld [vmem:[%s1 + $0x4c] sm:$0xf]
  %v80 = vld [vmem:[%s1 + $0x50] sm:$0xf]
  %v81 = vld [vmem:[%s1 + $0x54] sm:$0xf]
  %v82 = vld [vmem:[%s1 + $0x58] sm:$0xf]
  %v83 = vld [vmem:[%s1 + $0x5c] sm:$0xf]
  %v84 = vld [vmem:[%s1 + $0x60] sm:$0xf]
  %v85 = vld [vmem:[%s1 + $0x64] sm:$0xf]
  %v86 = vld [vmem:[%s1 + $0x68] sm:$0xf]
  %v87 = vld [vmem:[%s1 + $0x6c] sm:$0xf]
  %v88 = vld [vmem:[%s1 + $0x70] sm:$0xf]
  %v89 = vld [vmem:[%s1 + $0x74] sm:$0xf]
  %v90 = vld [vmem:[%s1 + $0x78] sm:$0xf]
  %v91 = vld [vmem:[%s1 + $0x7c] sm:$0xf]
  %v92 = vld [vmem:[%s1 + $0x80] sm:$0xf]
  %v93 = vld [vmem:[%s1 + $0x84] sm:$0xf]
  %v94 = vld [vmem:[%s1 + $0x88] sm:$0xf]
  %v95 = vld [vmem:[%s1 + $0x8c] sm:$0xf]
  %v96 = vld [vmem:[%s1 + $0x90] sm:$0xf]
  %v97 = vld [vmem:[%s1 + $0x94] sm:$0xf]
  %v98 = vld [vmem:[%s1 + $0x98] sm:$0xf]
  %v99 = vld [vmem:[%s1 + $0x9c] sm:$0xf]
  %v100 = vld [vmem:[%s1 + $0xa0] sm:$0xf]
  %v101 = vld [vmem:[%s1 + $0xa4] sm:$0xf]
  %v102 = vld [vmem:[%s1 + $0xa8] sm:$0xf]
  %v103 = vld [vmem:[%s1 + $0xac] sm:$0xf]
  %v104 = vld [vmem:[%s1 + $0xb0] sm:$0xf]
  %v105 = vld [vmem:[%s1 + $0xb4] sm:$0xf]
  %v106 = vld [vmem:[%s1 + $0xb8] sm:$0xf]
  %v107 = vld [vmem:[%s1 + $0xbc] sm:$0xf]
  %v108 = vld [vmem:[%s1 + $0xc0] sm:$0xf]
  %v109 = vld [vmem:[%s1 + $0xc4] sm:$0xf]
  %v110 = vld [vmem:[%s1 + $0xc8] sm:$0xf]
  %v111 = vld [vmem:[%s1 + $0xcc] sm:$0xf]
  %v112 = vld [vmem:[%s1 + $0xd0] sm:$0xf]
  %v113 = vld [vmem:[%s1 + $0xd4] sm:$0xf]
  %v114 = vld [vmem:[%s1 + $0xd8] sm:$0xf]
  %v115 = vld [vmem:[%s1 + $0xdc] sm:$0xf]
  %v116 = vld [vmem:[%s1 + $0xe0] sm:$0xf]
  %v117 = vld [vmem:[%s1 + $0xe4] sm:$0xf]
  %v118 = vld [vmem:[%s1 + $0xe8] sm:$0xf]
  %v119 = vld [vmem:[%s1 + $0xec] sm:$0xf]
  %v120 = vld [vmem:[%s1 + $0xf0] sm:$0xf]
  %v121 = vld [vmem:[%s1 + $0xf4] sm:$0xf]
  %v122 = vld [vmem:[%s1 + $0xf8] sm:$0xf]
  %v123 = vld [vmem:[%s1 + $0xfc] sm:$0xf]
  %v124 = vld [vmem:[%s1 + $0x100] sm:$0xf]
  %v125 = vld [vmem:[%s1 + $0x104] sm:$0xf]
  %v126 = vld [vmem:[%s1 + $0x108] sm:$0xf]
  %v127 = vld [vmem:[%s1 + $0x10c] sm:$0xf]
  %v128 = vld [vmem:[%s1 + $0x110] sm:$0xf]
  %v129 = vld [vmem:[%s1 + $0x114] sm:$0xf]
  %v130 = vld [vmem:[%s1 + $0x118] sm:$0xf]
  %v131 = vld [vmem:[%s1 + $0x11c] sm:$0xf]
  %v132 = vld [vmem:[%s2] sm:$0x1]
  %v134 = vlaneseq
  %v135 = vshrl.u32 %v134, 7
  %v136 = vsub.s32 0, %v135
  %v137 = vrot.slane %v132, %v136
  %v178 = vunpack.c.l.b16 %v21
  %v179 = vunpack.c.h.b16 %v21
  %v180 = vunpack.c.l.b16 %v22
  %v181 = vunpack.c.h.b16 %v22
  %v182 = vunpack.c.l.b16 %v23
  %v183 = vunpack.c.l.b16 %v24
  %v184 = vunpack.c.h.b16 %v24
  %v185 = vunpack.c.l.b16 %v25
  %v186 = vunpack.c.h.b16 %v25
  %v187 = vunpack.c.l.b16 %v26
  %v188 = vunpack.c.l.b16 %v27
  %v189 = vunpack.c.h.b16 %v27
  %v190 = vunpack.c.l.b16 %v28
  %v191 = vunpack.c.h.b16 %v28
  %v192 = vunpack.c.l.b16 %v29
  %v193 = vunpack.c.l.b16 %v30
  %v194 = vunpack.c.h.b16 %v30
  %v195 = vunpack.c.l.b16 %v31
  %v196 = vunpack.c.h.b16 %v31
  %v197 = vunpack.c.l.b16 %v32
  %v198 = vunpack.c.l.b16 %v33
  %v199 = vunpack.c.h.b16 %v33
  %v200 = vunpack.c.l.b16 %v34
  %v201 = vunpack.c.h.b16 %v34
  %v202 = vunpack.c.l.b16 %v35
  %v203 = vunpack.c.l.b16 %v36
  %v204 = vunpack.c.h.b16 %v36
  %v205 = vunpack.c.l.b16 %v37
  %v206 = vunpack.c.h.b16 %v37
  %v207 = vunpack.c.l.b16 %v38
  %v208 = vunpack.c.l.b16 %v39
  %v209 = vunpack.c.h.b16 %v39
  %v210 = vunpack.c.l.b16 %v40
  %v211 = vunpack.c.h.b16 %v40
  %v212 = vunpack.c.l.b16 %v41
  %v213 = vunpack.c.l.b16 %v42
  %v214 = vunpack.c.h.b16 %v42
  %v215 = vunpack.c.l.b16 %v43
  %v216 = vunpack.c.h.b16 %v43
  %v217 = vunpack.c.l.b16 %v44
  %v218 = vunpack.c.l.b16 %v45
  %v219 = vunpack.c.h.b16 %v45
  %v220 = vunpack.c.l.b16 %v46
  %v221 = vunpack.c.h.b16 %v46
  %v222 = vunpack.c.l.b16 %v47
  %v223 = vunpack.c.l.b16 %v48
  %v224 = vunpack.c.h.b16 %v48
  %v225 = vunpack.c.l.b16 %v49
  %v226 = vunpack.c.h.b16 %v49
  %v227 = vunpack.c.l.b16 %v50
  %v228 = vunpack.c.l.b16 %v51
  %v229 = vunpack.c.h.b16 %v51
  %v230 = vunpack.c.l.b16 %v52
  %v231 = vunpack.c.h.b16 %v52
  %v232 = vunpack.c.l.b16 %v53
  %v233 = vunpack.c.l.b16 %v54
  %v234 = vunpack.c.h.b16 %v54
  %v235 = vunpack.c.l.b16 %v55
  %v236 = vunpack.c.h.b16 %v55
  %v237 = vunpack.c.l.b16 %v56
  %v238 = vunpack.c.l.b16 %v57
  %v239 = vunpack.c.h.b16 %v57
  %v240 = vunpack.c.l.b16 %v58
  %v241 = vunpack.c.h.b16 %v58
  %v242 = vunpack.c.l.b16 %v59
  %v243 = vpack.c.b16 %v183, %v178
  %v244 = vpack.c.b16 %v184, %v179
  %v245 = vpack.c.b16 %v185, %v180
  %v246 = vpack.c.b16 %v186, %v181
  %v247 = vpack.c.b16 %v187, %v182
  %v248 = vpack.c.b16 %v193, %v188
  %v249 = vpack.c.b16 %v194, %v189
  %v250 = vpack.c.b16 %v195, %v190
  %v251 = vpack.c.b16 %v196, %v191
  %v252 = vpack.c.b16 %v197, %v192
  %v253 = vpack.c.b16 %v203, %v198
  %v254 = vpack.c.b16 %v204, %v199
  %v255 = vpack.c.b16 %v205, %v200
  %v256 = vpack.c.b16 %v206, %v201
  %v257 = vpack.c.b16 %v207, %v202
  %v258 = vpack.c.b16 %v213, %v208
  %v259 = vpack.c.b16 %v214, %v209
  %v260 = vpack.c.b16 %v215, %v210
  %v261 = vpack.c.b16 %v216, %v211
  %v262 = vpack.c.b16 %v217, %v212
  %v263 = vpack.c.b16 %v223, %v218
  %v264 = vpack.c.b16 %v224, %v219
  %v265 = vpack.c.b16 %v225, %v220
  %v266 = vpack.c.b16 %v226, %v221
  %v267 = vpack.c.b16 %v227, %v222
  %v268 = vpack.c.b16 %v233, %v228
  %v269 = vpack.c.b16 %v234, %v229
  %v270 = vpack.c.b16 %v235, %v230
  %v271 = vpack.c.b16 %v236, %v231
  %v272 = vpack.c.b16 %v237, %v232
  %v273 = vpack.c.b16 %v238, %v238
  %v274 = vpack.c.b16 %v239, %v239
  %v275 = vpack.c.b16 %v240, %v240
  %v276 = vpack.c.b16 %v241, %v241
  %v277 = vpack.c.b16 %v242, %v242
  %v378 = vunpack.c.l.b16 %v60
  %v379 = vunpack.c.l.b16 %v61
  %v380 = vunpack.c.l.b16 %v62
  %v381 = vunpack.c.l.b16 %v63
  %v382 = vunpack.c.l.b16 %v64
  %v383 = vunpack.c.l.b16 %v65
  %v384 = vunpack.c.l.b16 %v66
  %v385 = vunpack.c.l.b16 %v67
  %v386 = vunpack.c.l.b16 %v68
  %v387 = vunpack.c.l.b16 %v69
  %v388 = vunpack.c.l.b16 %v70
  %v389 = vunpack.c.l.b16 %v71
  %v390 = vunpack.c.l.b16 %v72
  %v391 = vunpack.c.l.b16 %v73
  %v392 = vunpack.c.l.b16 %v74
  %v393 = vunpack.c.l.b16 %v75
  %v394 = vunpack.c.l.b16 %v76
  %v395 = vunpack.c.l.b16 %v77
  %v396 = vunpack.c.l.b16 %v78
  %v397 = vunpack.c.l.b16 %v79
  %v398 = vunpack.c.l.b16 %v80
  %v399 = vunpack.c.l.b16 %v81
  %v400 = vunpack.c.l.b16 %v82
  %v401 = vunpack.c.l.b16 %v83
  %v402 = vunpack.c.l.b16 %v84
  %v403 = vunpack.c.l.b16 %v85
  %v404 = vunpack.c.l.b16 %v86
  %v405 = vunpack.c.l.b16 %v87
  %v406 = vunpack.c.l.b16 %v88
  %v407 = vunpack.c.l.b16 %v89
  %v408 = vunpack.c.l.b16 %v90
  %v409 = vunpack.c.l.b16 %v91
  %v410 = vunpack.c.l.b16 %v92
  %v411 = vunpack.c.l.b16 %v93
  %v412 = vunpack.c.l.b16 %v94
  %v413 = vunpack.c.l.b16 %v95
  %v414 = vunpack.c.l.b16 %v96
  %v415 = vunpack.c.l.b16 %v97
  %v416 = vunpack.c.l.b16 %v98
  %v417 = vunpack.c.l.b16 %v99
  %v418 = vunpack.c.l.b16 %v100
  %v419 = vunpack.c.l.b16 %v101
  %v420 = vunpack.c.l.b16 %v102
  %v421 = vunpack.c.l.b16 %v103
  %v422 = vunpack.c.l.b16 %v104
  %v423 = vunpack.c.l.b16 %v105
  %v424 = vunpack.c.l.b16 %v106
  %v425 = vunpack.c.l.b16 %v107
  %v426 = vunpack.c.l.b16 %v108
  %v427 = vunpack.c.l.b16 %v109
  %v428 = vunpack.c.l.b16 %v110
  %v429 = vunpack.c.l.b16 %v111
  %v430 = vunpack.c.l.b16 %v112
  %v431 = vunpack.c.l.b16 %v113
  %v432 = vunpack.c.l.b16 %v114
  %v433 = vunpack.c.l.b16 %v115
  %v434 = vunpack.c.l.b16 %v116
  %v435 = vunpack.c.l.b16 %v117
  %v436 = vunpack.c.l.b16 %v118
  %v437 = vunpack.c.l.b16 %v119
  %v438 = vunpack.c.l.b16 %v120
  %v439 = vunpack.c.l.b16 %v121
  %v440 = vunpack.c.l.b16 %v122
  %v441 = vunpack.c.l.b16 %v123
  %v442 = vunpack.c.l.b16 %v124
  %v443 = vunpack.c.l.b16 %v125
  %v444 = vunpack.c.l.b16 %v126
  %v445 = vunpack.c.l.b16 %v127
  %v446 = vunpack.c.l.b16 %v128
  %v447 = vunpack.c.l.b16 %v129
  %v448 = vunpack.c.l.b16 %v130
  %v449 = vunpack.c.l.b16 %v131
  %v450 = vpack.c.b16 %v379, %v378
  %v451 = vpack.c.b16 %v381, %v380
  %v452 = vpack.c.b16 %v383, %v382
  %v453 = vpack.c.b16 %v385, %v384
  %v454 = vpack.c.b16 %v387, %v386
  %v455 = vpack.c.b16 %v389, %v388
  %v456 = vpack.c.b16 %v391, %v390
  %v457 = vpack.c.b16 %v393, %v392
  %v458 = vpack.c.b16 %v395, %v394
  %v459 = vpack.c.b16 %v397, %v396
  %v460 = vpack.c.b16 %v399, %v398
  %v461 = vpack.c.b16 %v401, %v400
  %v462 = vpack.c.b16 %v403, %v402
  %v463 = vpack.c.b16 %v405, %v404
  %v464 = vpack.c.b16 %v407, %v406
  %v465 = vpack.c.b16 %v409, %v408
  %v466 = vpack.c.b16 %v411, %v410
  %v467 = vpack.c.b16 %v413, %v412
  %v468 = vpack.c.b16 %v415, %v414
  %v469 = vpack.c.b16 %v417, %v416
  %v470 = vpack.c.b16 %v419, %v418
  %v471 = vpack.c.b16 %v421, %v420
  %v472 = vpack.c.b16 %v423, %v422
  %v473 = vpack.c.b16 %v425, %v424
  %v474 = vpack.c.b16 %v427, %v426
  %v475 = vpack.c.b16 %v429, %v428
  %v476 = vpack.c.b16 %v431, %v430
  %v477 = vpack.c.b16 %v433, %v432
  %v478 = vpack.c.b16 %v435, %v434
  %v479 = vpack.c.b16 %v437, %v436
  %v480 = vpack.c.b16 %v439, %v438
  %v481 = vpack.c.b16 %v441, %v440
  %v482 = vpack.c.b16 %v443, %v442
  %v483 = vpack.c.b16 %v445, %v444
  %v484 = vpack.c.b16 %v447, %v446
  %v485 = vpack.c.b16 %v449, %v448
  %vm522 = vcmask 523264
  %v524 = vsel %vm522, %v247, 0
  %v527 = vsel %vm522, %v252, 0
  %v530 = vsel %vm522, %v257, 0
  %v533 = vsel %vm522, %v262, 0
  %v536 = vsel %vm522, %v267, 0
  %v539 = vsel %vm522, %v272, 0
  %v542 = vsel %vm522, %v277, 0
  %544 = vmatprep.subr.bf16.mxu0 0
  %545 = vmatpush1.bf16.msra.mxu0 %v450
  %546 = vmatprep.subr.bf16.mxu0 0
  %547 = vmatpush1.bf16.msra.mxu0 %v451
  %548 = vmatprep.subr.bf16.mxu0 0
  %549 = vmatpush1.bf16.msra.mxu0 %v452
  %550 = vmatprep.subr.bf16.mxu0 0
  %551 = vmatpush1.bf16.msra.mxu0 %v453
  %552 = vmatprep.subr.bf16.mxu0 0
  %553 = vmatpush1.bf16.msra.mxu0 %v454
  %554 = vmatprep.subr.bf16.mxu0 0
  %555 = vmatpush1.bf16.msra.mxu0 %v455
  %556 = vmatprep.subr.bf16.mxu0 0
  %557 = vmatpush1.bf16.msra.mxu0 %v456
  %558 = vmatprep.subr.bf16.mxu0 0
  %559 = vmatpush1.bf16.msra.mxu0 %v457
  %560 = vmatprep.subr.bf16.mxu0 0
  %561 = vmatpush1.bf16.msra.mxu0 %v458
  %562 = vmatprep.subr.bf16.mxu0 0
  %563 = vmatpush1.bf16.msra.mxu0 %v459
  %564 = vmatprep.subr.bf16.mxu0 0
  %565 = vmatpush1.bf16.msra.mxu0 %v460
  %566 = vmatprep.subr.bf16.mxu0 0
  %567 = vmatpush1.bf16.msra.mxu0 %v461
  %568 = vmatprep.subr.bf16.mxu0 0
  %569 = vmatpush1.bf16.msra.mxu0 %v462
  %570 = vmatprep.subr.bf16.mxu0 0
  %571 = vmatpush1.bf16.msra.mxu0 %v463
  %572 = vmatprep.subr.bf16.mxu0 0
  %573 = vmatpush1.bf16.msra.mxu0 %v464
  %574 = vmatprep.subr.bf16.mxu0 0
  %575 = vmatpush1.bf16.msra.mxu0 %v465
  %576 = vmatprep.mubr.bf16.mxu0 %v244
  %577 = vmatmul.mubr.bf16.gmra.mrb[0].mxu0 %v243
  %v578 = vpop.f32.mrb[0].mxu0
  %v579 = vadd.f32 %v137, %v578
  %v580 = vpop.f32.mrb[0].mxu0
  %v581 = vpop.f32.mrb[0].mxu0
  %v582 = vadd.f32 %v137, %v581
  %v583 = vpop.f32.mrb[0].mxu0
  %584 = vmatprep.mubr.bf16.mxu0 %v249
  %585 = vmatmul.mubr.bf16.gmra.mrb[0].mxu0 %v248
  %v586 = vpop.f32.mrb[0].mxu0
  %v587 = vadd.f32 %v137, %v586
  %v588 = vpop.f32.mrb[0].mxu0
  %v589 = vpop.f32.mrb[0].mxu0
  %v590 = vadd.f32 %v137, %v589
  %v591 = vpop.f32.mrb[0].mxu0
  %592 = vmatprep.mubr.bf16.mxu0 %v254
  %593 = vmatmul.mubr.bf16.gmra.mrb[0].mxu0 %v253
  %v594 = vpop.f32.mrb[0].mxu0
  %v595 = vadd.f32 %v137, %v594
  %v596 = vpop.f32.mrb[0].mxu0
  %v597 = vpop.f32.mrb[0].mxu0
  %v598 = vadd.f32 %v137, %v597
  %v599 = vpop.f32.mrb[0].mxu0
  %600 = vmatprep.mubr.bf16.mxu0 %v259
  %601 = vmatmul.mubr.bf16.gmra.mrb[0].mxu0 %v258
  %v602 = vpop.f32.mrb[0].mxu0
  %v603 = vadd.f32 %v137, %v602
  %v604 = vpop.f32.mrb[0].mxu0
  %v605 = vpop.f32.mrb[0].mxu0
  %v606 = vadd.f32 %v137, %v605
  %v607 = vpop.f32.mrb[0].mxu0
  %608 = vmatprep.mubr.bf16.mxu0 %v264
  %609 = vmatmul.mubr.bf16.gmra.mrb[0].mxu0 %v263
  %v610 = vpop.f32.mrb[0].mxu0
  %v611 = vadd.f32 %v137, %v610
  %v612 = vpop.f32.mrb[0].mxu0
  %v613 = vpop.f32.mrb[0].mxu0
  %v614 = vadd.f32 %v137, %v613
  %v615 = vpop.f32.mrb[0].mxu0
  %616 = vmatprep.mubr.bf16.mxu0 %v269
  %617 = vmatmul.mubr.bf16.gmra.mrb[0].mxu0 %v268
  %v618 = vpop.f32.mrb[0].mxu0
  %v619 = vadd.f32 %v137, %v618
  %v620 = vpop.f32.mrb[0].mxu0
  %v621 = vpop.f32.mrb[0].mxu0
  %v622 = vadd.f32 %v137, %v621
  %v623 = vpop.f32.mrb[0].mxu0
  %624 = vmatprep.mubr.bf16.mxu0 %v274
  %625 = vmatmul.mubr.bf16.gmra.mrb[0].mxu0 %v273
  %v626 = vpop.f32.mrb[0].mxu0
  %v627 = vadd.f32 %v137, %v626
  %v628 = vpop.f32.mrb[0].mxu0
  %v629 = vpop.f32.mrb[0].mxu0
  %v630 = vpop.f32.mrb[0].mxu0
  %631 = vdwg.mxu0
  %632 = vmatprep.subr.bf16.mxu0 0
  %633 = vmatpush1.bf16.msra.mxu0 %v466
  %634 = vmatprep.subr.bf16.mxu0 0
  %635 = vmatpush1.bf16.msra.mxu0 %v467
  %636 = vmatprep.subr.bf16.mxu0 0
  %637 = vmatpush1.bf16.msra.mxu0 %v468
  %638 = vmatprep.subr.bf16.mxu0 0
  %639 = vmatpush1.bf16.msra.mxu0 %v469
  %640 = vmatprep.subr.bf16.mxu0 0
  %641 = vmatpush1.bf16.msra.mxu0 %v470
  %642 = vmatprep.subr.bf16.mxu0 0
  %643 = vmatpush1.bf16.msra.mxu0 %v471
  %644 = vmatprep.subr.bf16.mxu0 0
  %645 = vmatpush1.bf16.msra.mxu0 %v472
  %646 = vmatprep.subr.bf16.mxu0 0
  %647 = vmatpush1.bf16.msra.mxu0 %v473
  %648 = vmatprep.subr.bf16.mxu0 0
  %649 = vmatpush1.bf16.msra.mxu0 %v474
  %650 = vmatprep.subr.bf16.mxu0 0
  %651 = vmatpush1.bf16.msra.mxu0 %v475
  %652 = vmatprep.subr.bf16.mxu0 0
  %653 = vmatpush1.bf16.msra.mxu0 %v476
  %654 = vmatprep.subr.bf16.mxu0 0
  %655 = vmatpush1.bf16.msra.mxu0 %v477
  %656 = vmatprep.subr.bf16.mxu0 0
  %657 = vmatpush1.bf16.msra.mxu0 %v478
  %658 = vmatprep.subr.bf16.mxu0 0
  %659 = vmatpush1.bf16.msra.mxu0 %v479
  %660 = vmatprep.subr.bf16.mxu0 0
  %661 = vmatpush1.bf16.msra.mxu0 %v480
  %662 = vmatprep.subr.bf16.mxu0 0
  %663 = vmatpush1.bf16.msra.mxu0 %v481
  %664 = vmatprep.mubr.bf16.mxu0 %v246
  %665 = vmatmul.mubr.bf16.gmra.mrb[0].mxu0 %v245
  %v666 = vpop.f32.mrb[0].mxu0
  %v667 = vadd.f32 %v579, %v666
  %v668 = vpop.f32.mrb[0].mxu0
  %v669 = vpop.f32.mrb[0].mxu0
  %v670 = vadd.f32 %v582, %v669
  %v671 = vpop.f32.mrb[0].mxu0
  %672 = vmatprep.mubr.bf16.mxu0 %v251
  %673 = vmatmul.mubr.bf16.gmra.mrb[0].mxu0 %v250
  %v674 = vpop.f32.mrb[0].mxu0
  %v675 = vadd.f32 %v587, %v674
  %v676 = vpop.f32.mrb[0].mxu0
  %v677 = vpop.f32.mrb[0].mxu0
  %v678 = vadd.f32 %v590, %v677
  %v679 = vpop.f32.mrb[0].mxu0
  %680 = vmatprep.mubr.bf16.mxu0 %v256
  %681 = vmatmul.mubr.bf16.gmra.mrb[0].mxu0 %v255
  %v682 = vpop.f32.mrb[0].mxu0
  %v683 = vadd.f32 %v595, %v682
  %v684 = vpop.f32.mrb[0].mxu0
  %v685 = vpop.f32.mrb[0].mxu0
  %v686 = vadd.f32 %v598, %v685
  %v687 = vpop.f32.mrb[0].mxu0
  %688 = vmatprep.mubr.bf16.mxu0 %v261
  %689 = vmatmul.mubr.bf16.gmra.mrb[0].mxu0 %v260
  %v690 = vpop.f32.mrb[0].mxu0
  %v691 = vadd.f32 %v603, %v690
  %v692 = vpop.f32.mrb[0].mxu0
  %v693 = vpop.f32.mrb[0].mxu0
  %v694 = vadd.f32 %v606, %v693
  %v695 = vpop.f32.mrb[0].mxu0
  %696 = vmatprep.mubr.bf16.mxu0 %v266
  %697 = vmatmul.mubr.bf16.gmra.mrb[0].mxu0 %v265
  %v698 = vpop.f32.mrb[0].mxu0
  %v699 = vadd.f32 %v611, %v698
  %v700 = vpop.f32.mrb[0].mxu0
  %v701 = vpop.f32.mrb[0].mxu0
  %v702 = vadd.f32 %v614, %v701
  %v703 = vpop.f32.mrb[0].mxu0
  %704 = vmatprep.mubr.bf16.mxu0 %v271
  %705 = vmatmul.mubr.bf16.gmra.mrb[0].mxu0 %v270
  %v706 = vpop.f32.mrb[0].mxu0
  %v707 = vadd.f32 %v619, %v706
  %v708 = vpop.f32.mrb[0].mxu0
  %v709 = vpop.f32.mrb[0].mxu0
  %v710 = vadd.f32 %v622, %v709
  %v711 = vpop.f32.mrb[0].mxu0
  %712 = vmatprep.mubr.bf16.mxu0 %v276
  %713 = vmatmul.mubr.bf16.gmra.mrb[0].mxu0 %v275
  %v714 = vpop.f32.mrb[0].mxu0
  %v715 = vadd.f32 %v627, %v714
  %v716 = vpop.f32.mrb[0].mxu0
  %v717 = vpop.f32.mrb[0].mxu0
  %v718 = vpop.f32.mrb[0].mxu0
  %719 = vdwg.mxu0
  %720 = vmatprep.subr.bf16.mxu0 0
  %721 = vmatpush1.bf16.msra.mxu0 %v482
  %722 = vmatprep.subr.bf16.mxu0 0
  %723 = vmatpush1.bf16.msra.mxu0 %v483
  %724 = vmatprep.subr.bf16.mxu0 0
  %725 = vmatpush1.bf16.msra.mxu0 %v484
  %726 = vmatprep.subr.bf16.mxu0 0
  %727 = vmatpush1.bf16.msra.mxu0 %v485
  %728 = vmatprep.subr.bf16.mxu0 0
  %729 = vmatpush1.bf16.msra.mxu0 0
  %730 = vmatprep.subr.bf16.mxu0 0
  %731 = vmatpush1.bf16.msra.mxu0 0
  %732 = vmatprep.subr.bf16.mxu0 0
  %733 = vmatpush1.bf16.msra.mxu0 0
  %734 = vmatprep.subr.bf16.mxu0 0
  %735 = vmatpush1.bf16.msra.mxu0 0
  %736 = vmatprep.subr.bf16.mxu0 0
  %737 = vmatpush1.bf16.msra.mxu0 0
  %738 = vmatprep.subr.bf16.mxu0 0
  %739 = vmatpush1.bf16.msra.mxu0 0
  %740 = vmatprep.subr.bf16.mxu0 0
  %741 = vmatpush1.bf16.msra.mxu0 0
  %742 = vmatprep.subr.bf16.mxu0 0
  %743 = vmatpush1.bf16.msra.mxu0 0
  %744 = vmatprep.subr.bf16.mxu0 0
  %745 = vmatpush1.bf16.msra.mxu0 0
  %746 = vmatprep.subr.bf16.mxu0 0
  %747 = vmatpush1.bf16.msra.mxu0 0
  %748 = vmatprep.subr.bf16.mxu0 0
  %749 = vmatpush1.bf16.msra.mxu0 0
  %750 = vmatprep.subr.bf16.mxu0 0
  %751 = vmatpush1.bf16.msra.mxu0 0
  %752 = vmatprep.mubr.bf16.mxu0 0
  %753 = vmatmul.mubr.bf16.gmra.mrb[0].mxu0 %v524
  %v754 = vpop.f32.mrb[0].mxu0
  %v755 = vadd.f32 %v667, %v754
  %v756 = vpop.f32.mrb[0].mxu0
  %v757 = vpop.f32.mrb[0].mxu0
  %v758 = vadd.f32 %v670, %v757
  %v759 = vpop.f32.mrb[0].mxu0
  %760 = vmatprep.mubr.bf16.mxu0 0
  %761 = vmatmul.mubr.bf16.gmra.mrb[0].mxu0 %v527
  %v762 = vpop.f32.mrb[0].mxu0
  %v763 = vadd.f32 %v675, %v762
  %v764 = vpop.f32.mrb[0].mxu0
  %v765 = vpop.f32.mrb[0].mxu0
  %v766 = vadd.f32 %v678, %v765
  %v767 = vpop.f32.mrb[0].mxu0
  %768 = vmatprep.mubr.bf16.mxu0 0
  %769 = vmatmul.mubr.bf16.gmra.mrb[0].mxu0 %v530
  %v770 = vpop.f32.mrb[0].mxu0
  %v771 = vadd.f32 %v683, %v770
  %v772 = vpop.f32.mrb[0].mxu0
  %v773 = vpop.f32.mrb[0].mxu0
  %v774 = vadd.f32 %v686, %v773
  %v775 = vpop.f32.mrb[0].mxu0
  %776 = vmatprep.mubr.bf16.mxu0 0
  %777 = vmatmul.mubr.bf16.gmra.mrb[0].mxu0 %v533
  %v778 = vpop.f32.mrb[0].mxu0
  %v779 = vadd.f32 %v691, %v778
  %v780 = vpop.f32.mrb[0].mxu0
  %v781 = vpop.f32.mrb[0].mxu0
  %v782 = vadd.f32 %v694, %v781
  %v783 = vpop.f32.mrb[0].mxu0
  %784 = vmatprep.mubr.bf16.mxu0 0
  %785 = vmatmul.mubr.bf16.gmra.mrb[0].mxu0 %v536
  %v786 = vpop.f32.mrb[0].mxu0
  %v787 = vadd.f32 %v699, %v786
  %v788 = vpop.f32.mrb[0].mxu0
  %v789 = vpop.f32.mrb[0].mxu0
  %v790 = vadd.f32 %v702, %v789
  %v791 = vpop.f32.mrb[0].mxu0
  %792 = vmatprep.mubr.bf16.mxu0 0
  %793 = vmatmul.mubr.bf16.gmra.mrb[0].mxu0 %v539
  %v794 = vpop.f32.mrb[0].mxu0
  %v795 = vadd.f32 %v707, %v794
  %v796 = vpop.f32.mrb[0].mxu0
  %v797 = vpop.f32.mrb[0].mxu0
  %v798 = vadd.f32 %v710, %v797
  %v799 = vpop.f32.mrb[0].mxu0
  %800 = vmatprep.mubr.bf16.mxu0 0
  %801 = vmatmul.mubr.bf16.gmra.mrb[0].mxu0 %v542
  %v802 = vpop.f32.mrb[0].mxu0
  %v803 = vadd.f32 %v715, %v802
  %v804 = vpop.f32.mrb[0].mxu0
  %v805 = vpop.f32.mrb[0].mxu0
  %v806 = vpop.f32.mrb[0].mxu0
  %807 = vdwg.mxu0
  %v808 = vadd.f32 %v755, %v758
  %v809 = vadd.f32 %v808, %v763
  %v810 = vadd.f32 %v809, %v766
  %v811 = vadd.f32 %v810, %v771
  %v812 = vadd.f32 %v811, %v774
  %v813 = vadd.f32 %v812, %v779
  %v814 = vadd.f32 %v813, %v782
  %v815 = vadd.f32 %v814, %v787
  %v816 = vadd.f32 %v815, %v790
  %v817 = vadd.f32 %v816, %v795
  %v818 = vadd.f32 %v817, %v798
  %vm819 = vcmask 1041408
  %v820 = vsel %vm819, %v803, 0.0
  %v821 = vadd.f32 %v818, %v820
  %v822 = vrot.slane %v821, 4
  %v823 = vadd.f32 %v821, %v822
  %v824 = vrot.slane %v823, 2
  %v825 = vadd.f32 %v823, %v824
  %v826 = vrot.slane %v825, 1
  %v827 = vadd.f32 %v825, %v826
  %v828 = vmul.f32 %v827, 0.010204081
  %v829 = vmul.f32 %v755, %v755
  %v830 = vmul.f32 %v758, %v758
  %v831 = vmul.f32 %v763, %v763
  %v832 = vmul.f32 %v766, %v766
  %v833 = vmul.f32 %v771, %v771
  %v834 = vmul.f32 %v774, %v774
  %v835 = vmul.f32 %v779, %v779
  %v836 = vmul.f32 %v782, %v782
  %v837 = vmul.f32 %v787, %v787
  %v838 = vmul.f32 %v790, %v790
  %v839 = vmul.f32 %v795, %v795
  %v840 = vmul.f32 %v798, %v798
  %v841 = vmul.f32 %v803, %v803
  %v842 = vadd.f32 %v829, %v830
  %v843 = vadd.f32 %v842, %v831
  %v844 = vadd.f32 %v843, %v832
  %v845 = vadd.f32 %v844, %v833
  %v846 = vadd.f32 %v845, %v834
  %v847 = vadd.f32 %v846, %v835
  %v848 = vadd.f32 %v847, %v836
  %v849 = vadd.f32 %v848, %v837
  %v850 = vadd.f32 %v849, %v838
  %v851 = vadd.f32 %v850, %v839
  %v852 = vadd.f32 %v851, %v840
  %v853 = vsel %vm819, %v841, 0.0
  %v854 = vadd.f32 %v852, %v853
  %v855 = vrot.slane %v854, 4
  %v856 = vadd.f32 %v854, %v855
  %v857 = vrot.slane %v856, 2
  %v858 = vadd.f32 %v856, %v857
  %v859 = vrot.slane %v858, 1
  %v860 = vadd.f32 %v858, %v859
  %v861 = vmul.f32 %v860, 0.010204081
  %v862 = vmul.f32 %v828, %v828
  %v863 = vsub.f32 %v861, %v862
  %v864 = vld [vmem:[%s3] sm:$0x1]
  %v865 = vadd.f32 %v863, 1e-05
  %v866 = vrsqrt.pop %v865
  %v867 = vmul.f32 %v864, %v866
  %v868 = vld [vmem:[%s4] sm:$0x1]
  %v869 = vmul.f32 %v828, %v867
  %v870 = vsub.f32 %v868, %v869
  %v872 = vlaneseq
  %v873 = vshrl.u32 %v872, 7
  %v874 = vsub.s32 0, %v873
  %v875 = vrot.slane %v867, %v874
  %v877 = vmul.f32 %v755, %v875
  %v878 = vmul.f32 %v758, %v875
  %v879 = vmul.f32 %v763, %v875
  %v880 = vmul.f32 %v766, %v875
  %v881 = vmul.f32 %v771, %v875
  %v882 = vmul.f32 %v774, %v875
  %v883 = vmul.f32 %v779, %v875
  %v884 = vmul.f32 %v782, %v875
  %v885 = vmul.f32 %v787, %v875
  %v886 = vmul.f32 %v790, %v875
  %v887 = vmul.f32 %v795, %v875
  %v888 = vmul.f32 %v798, %v875
  %v889 = vmul.f32 %v803, %v875
  %v891 = vlaneseq
  %v892 = vshrl.u32 %v891, 7
  %v893 = vsub.s32 0, %v892
  %v894 = vrot.slane %v870, %v893
  %v896 = vadd.f32 %v877, %v894
  %v897 = vadd.f32 %v878, %v894
  %v898 = vadd.f32 %v879, %v894
  %v899 = vadd.f32 %v880, %v894
  %v900 = vadd.f32 %v881, %v894
  %v901 = vadd.f32 %v882, %v894
  %v902 = vadd.f32 %v883, %v894
  %v903 = vadd.f32 %v884, %v894
  %v904 = vadd.f32 %v885, %v894
  %v905 = vadd.f32 %v886, %v894
  %v906 = vadd.f32 %v887, %v894
  %v907 = vadd.f32 %v888, %v894
  %v908 = vadd.f32 %v889, %v894
  %vm909 = vcmp.ge.f32.partialorder %v896, 0.0
  %vm910 = vcmp.ge.f32.partialorder %v897, 0.0
  %vm911 = vcmp.ge.f32.partialorder %v898, 0.0
  %vm912 = vcmp.ge.f32.partialorder %v899, 0.0
  %vm913 = vcmp.ge.f32.partialorder %v900, 0.0
  %vm914 = vcmp.ge.f32.partialorder %v901, 0.0
  %vm915 = vcmp.ge.f32.partialorder %v902, 0.0
  %vm916 = vcmp.ge.f32.partialorder %v903, 0.0
  %vm917 = vcmp.ge.f32.partialorder %v904, 0.0
  %vm918 = vcmp.ge.f32.partialorder %v905, 0.0
  %vm919 = vcmp.ge.f32.partialorder %v906, 0.0
  %vm920 = vcmp.ge.f32.partialorder %v907, 0.0
  %vm921 = vcmp.ge.f32.partialorder %v908, 0.0
  %v922 = vmul.f32 %v896, 0.01
  %v923 = vmul.f32 %v897, 0.01
  %v924 = vmul.f32 %v898, 0.01
  %v925 = vmul.f32 %v899, 0.01
  %v926 = vmul.f32 %v900, 0.01
  %v927 = vmul.f32 %v901, 0.01
  %v928 = vmul.f32 %v902, 0.01
  %v929 = vmul.f32 %v903, 0.01
  %v930 = vmul.f32 %v904, 0.01
  %v931 = vmul.f32 %v905, 0.01
  %v932 = vmul.f32 %v906, 0.01
  %v933 = vmul.f32 %v907, 0.01
  %v934 = vmul.f32 %v908, 0.01
  %v935 = vsel %vm909, %v896, %v922
  %v936 = vsel %vm910, %v897, %v923
  %v937 = vsel %vm911, %v898, %v924
  %v938 = vsel %vm912, %v899, %v925
  %v939 = vsel %vm913, %v900, %v926
  %v940 = vsel %vm914, %v901, %v927
  %v941 = vsel %vm915, %v902, %v928
  %v942 = vsel %vm916, %v903, %v929
  %v943 = vsel %vm917, %v904, %v930
  %v944 = vsel %vm918, %v905, %v931
  %v945 = vsel %vm919, %v906, %v932
  %v946 = vsel %vm920, %v907, %v933
  %v947 = vsel %vm921, %v908, %v934
  %v948 = vpack.c.bf16 %v936, %v935
  %v949 = vpack.c.bf16 %v938, %v937
  %v950 = vpack.c.bf16 %v940, %v939
  %v951 = vpack.c.bf16 %v942, %v941
  %v952 = vpack.c.bf16 %v944, %v943
  %v953 = vpack.c.bf16 %v946, %v945
  %v954 = vpack.c.bf16 %v947, %v947
  %v962 = vunpack.c.l.b16 %v948
  %v963 = vunpack.c.h.b16 %v948
  %v964 = vunpack.c.l.b16 %v949
  %v965 = vunpack.c.h.b16 %v949
  %v966 = vunpack.c.l.b16 %v950
  %v967 = vunpack.c.h.b16 %v950
  %v968 = vunpack.c.l.b16 %v951
  %v969 = vunpack.c.h.b16 %v951
  %v970 = vunpack.c.l.b16 %v952
  %v971 = vunpack.c.h.b16 %v952
  %v972 = vunpack.c.l.b16 %v953
  %v973 = vunpack.c.h.b16 %v953
  %v974 = vunpack.c.l.b16 %v954
  %v975 = vpack.c.b16 %v962, %v962
  %v976 = vpack.c.b16 %v963, %v963
  %v977 = vpack.c.b16 %v964, %v964
  %v978 = vpack.c.b16 %v965, %v965
  %v979 = vpack.c.b16 %v966, %v966
  %v980 = vpack.c.b16 %v967, %v967
  %v981 = vpack.c.b16 %v968, %v968
  %v982 = vpack.c.b16 %v969, %v969
  %v983 = vpack.c.b16 %v970, %v970
  %v984 = vpack.c.b16 %v971, %v971
  %v985 = vpack.c.b16 %v972, %v972
  %v986 = vpack.c.b16 %v973, %v973
  %v987 = vpack.c.b16 %v974, %v974
  %1001 = vst [vmem:[%s5] sm:$0xf] %v975
  %1002 = vst [vmem:[%s5 + $0x4] sm:$0xf] %v976
  %1003 = vst [vmem:[%s5 + $0x8] sm:$0xf] %v977
  %1004 = vst [vmem:[%s5 + $0xc] sm:$0xf] %v978
  %1005 = vst [vmem:[%s5 + $0x10] sm:$0xf] %v979
  %1006 = vst [vmem:[%s5 + $0x14] sm:$0xf] %v980
  %1007 = vst [vmem:[%s5 + $0x18] sm:$0xf] %v981
  %1008 = vst [vmem:[%s5 + $0x1c] sm:$0xf] %v982
  %1009 = vst [vmem:[%s5 + $0x20] sm:$0xf] %v983
  %1010 = vst [vmem:[%s5 + $0x24] sm:$0xf] %v984
  %1011 = vst [vmem:[%s5 + $0x28] sm:$0xf] %v985
  %1012 = vst [vmem:[%s5 + $0x2c] sm:$0xf] %v986
  %1013 = vst [vmem:[%s5 + $0x30] sm:$0x1] %v987
  // Predicated region
  $region22: #{dnet_forward.5} parent=0 // pred_check
    _
  $region23: #{dnet_forward.5} parent=0 // pred_check_branch
    %1015 = sbr.rel (0) target = $region25
  $region24: #{dnet_forward.5} parent=0 // pred_region
    _
  $region25: #{dnet_forward.5} parent=0 // pred_fallthru
    _
  // Predicated region
  $region26: #{dnet_forward.5} parent=0 // pred_check
    _
  $region27: #{dnet_forward.5} parent=0 // pred_check_branch
    %1017 = sbr.rel (0) target = $region29
  $region28: #{dnet_forward.5} parent=0 // pred_region
    _
  $region29: #{dnet_forward.5} parent=0 // pred_fallthru
    _

// kernel: dnet_forward.4
$region0: #{dnet_forward.4}
  #allocation0 [shape = 'u32[]', space=smem, size = 0x4, offset = 0x4, fixed_abs, tag = 'smem constant byte address 0x4 - core index']
  #allocation1 [shape = 'u32[144,128]{1,0:T(1,128)}', space=vmem, size = 0x12000, scoped, tag = 'internal scratch']
  %s0 = inlined_call_operand.vmem [shape: f32[392,9], index: 0, kind: input, shape index: {}]
  %s1 = inlined_call_operand.hbm [shape: f32[9,64], index: 1, kind: input, shape index: {}]
  %s2 = inlined_call_operand.hbm [shape: f32[1,64], index: 2, kind: input, shape index: {}]
  %s3 = inlined_call_operand.vmem [shape: bf16[392,64], index: 3, kind: output, shape index: {}]
  %s4 = sld [smem:[#allocation0]]
  $region30: #{dnet_forward.4} parent=0
    _
  %s6 = ssub.s32 1, %s4
  %s7 = scalar_select 0, %s6, %s4
  $region1: #{dnet_forward.4} parent=0
    #allocation2 [shape = 'u8[8192]{0}', space=vmem, size = 0x2000, scoped, tag = 'input window, operand 1, single buffered']
    #allocation3 [shape = 's32[1]{0}', space=sflag, size = 0x4, scoped, tag = 'scoped memory for dnet_forward.4']
    #allocation4 [shape = 'u8[512]{0}', space=vmem, size = 0x400, scoped, tag = 'input window, operand 2, single buffered']
    #allocation5 [shape = 's32[1]{0}', space=sflag, size = 0x4, scoped, tag = 'scoped memory for dnet_forward.4']
    %8 = vsyncpa [#allocation3], 0
    %9 = vsyncpa [#allocation5], 0
    // Predicated region
    $region2: #{dnet_forward.4} parent=1 // pred_check
      _
    $region3: #{dnet_forward.4} parent=1 // pred_check_branch
      %11 = sbr.rel (0) target = $region5
    $region4: #{dnet_forward.4} parent=1 // pred_region
      _
    $region5: #{dnet_forward.4} parent=1 // pred_fallthru
      _
    // Predicated region
    $region6: #{dnet_forward.4} parent=1 // pred_check
      _
    $region7: #{dnet_forward.4} parent=1 // pred_check_branch
      %13 = sbr.rel (0) target = $region9
    $region8: #{dnet_forward.4} parent=1 // pred_region
      %s15 = ssub.s32 256, 256
      %16 = vsyncadd [#allocation3], %s15
      %s17 = sshll.u32 [#allocation2], 4
      %s18 = int_to_ptr.vmem [resolvable:$true] %s17
      %23 = dma.hbm_to_vmem [thread:$0]  %s1, 256, %s18, [#allocation3], 128, 128, 8
    $region9: #{dnet_forward.4} parent=1 // pred_fallthru
      _
    // Predicated region
    $region10: #{dnet_forward.4} parent=1 // pred_check
      _
    $region11: #{dnet_forward.4} parent=1 // pred_check_branch
      %25 = sbr.rel (0) target = $region13
    $region12: #{dnet_forward.4} parent=1 // pred_region
      %s27 = ssub.s32 16, 16
      %28 = vsyncadd [#allocation5], %s27
      %s30 = sshll.u32 [#allocation4], 4
      %s31 = int_to_ptr.vmem [resolvable:$true] %s30
      %33 = dma.hbm_to_vmem [thread:$0]  %s2, 16, %s31, [#allocation5]
    $region13: #{dnet_forward.4} parent=1 // pred_fallthru
      _
    // Predicated region
    $region14: #{dnet_forward.4} parent=1 // pred_check
      _
    $region15: #{dnet_forward.4} parent=1 // pred_check_branch
      %35 = sbr.rel (0) target = $region17
    $region16: #{dnet_forward.4} parent=1 // pred_region
      %36 = dma.done [#allocation3], 256
    $region17: #{dnet_forward.4} parent=1 // pred_fallthru
      _
    // Predicated region
    $region18: #{dnet_forward.4} parent=1 // pred_check
      _
    $region19: #{dnet_forward.4} parent=1 // pred_check_branch
      %38 = sbr.rel (0) target = $region21
    $region20: #{dnet_forward.4} parent=1 // pred_region
      %39 = dma.done [#allocation5], 16
    $region21: #{dnet_forward.4} parent=1 // pred_fallthru
      _
    %v40 = vld [vmem:[%s0] sm:$0xff]
    %v41 = vld [vmem:[%s0 + $0x8] sm:$0xff]
    %v42 = vld [vmem:[%s0 + $0x10] sm:$0xff]
    %v43 = vld [vmem:[%s0 + $0x18] sm:$0xff]
    %v44 = vld [vmem:[%s0 + $0x20] sm:$0xff]
    %v45 = vld [vmem:[%s0 + $0x28] sm:$0xff]
    %v46 = vld [vmem:[%s0 + $0x30] sm:$0xff]
    %v47 = vld [vmem:[%s0 + $0x38] sm:$0xff]
    %v48 = vld [vmem:[%s0 + $0x40] sm:$0xff]
    %v49 = vld [vmem:[%s0 + $0x48] sm:$0xff]
    %v50 = vld [vmem:[%s0 + $0x50] sm:$0xff]
    %v51 = vld [vmem:[%s0 + $0x58] sm:$0xff]
    %v52 = vld [vmem:[%s0 + $0x60] sm:$0xff]
    %v53 = vld [vmem:[%s0 + $0x68] sm:$0xff]
    %v54 = vld [vmem:[%s0 + $0x70] sm:$0xff]
    %v55 = vld [vmem:[%s0 + $0x78] sm:$0xff]
    %v56 = vld [vmem:[%s0 + $0x80] sm:$0xff]
    %v57 = vld [vmem:[%s0 + $0x88] sm:$0xff]
    %v58 = vld [vmem:[%s0 + $0x90] sm:$0xff]
    %v59 = vld [vmem:[%s0 + $0x98] sm:$0xff]
    %v60 = vld [vmem:[%s0 + $0xa0] sm:$0xff]
    %v61 = vld [vmem:[%s0 + $0xa8] sm:$0xff]
    %v62 = vld [vmem:[%s0 + $0xb0] sm:$0xff]
    %v63 = vld [vmem:[%s0 + $0xb8] sm:$0xff]
    %v64 = vld [vmem:[%s0 + $0xc0] sm:$0xff]
    %v65 = vld [vmem:[%s0 + $0xc8] sm:$0xff]
    %v66 = vld [vmem:[%s0 + $0xd0] sm:$0xff]
    %v67 = vld [vmem:[%s0 + $0xd8] sm:$0xff]
    %v68 = vld [vmem:[%s0 + $0xe0] sm:$0xff]
    %v69 = vld [vmem:[%s0 + $0xe8] sm:$0xff]
    %v70 = vld [vmem:[%s0 + $0xf0] sm:$0xff]
    %v71 = vld [vmem:[%s0 + $0xf8] sm:$0xff]
    %v72 = vld [vmem:[%s0 + $0x100] sm:$0xff]
    %v73 = vld [vmem:[%s0 + $0x108] sm:$0xff]
    %v74 = vld [vmem:[%s0 + $0x110] sm:$0xff]
    %v75 = vld [vmem:[%s0 + $0x118] sm:$0xff]
    %v76 = vld [vmem:[%s0 + $0x120] sm:$0xff]
    %v77 = vld [vmem:[%s0 + $0x128] sm:$0xff]
    %v78 = vld [vmem:[%s0 + $0x130] sm:$0xff]
    %v79 = vld [vmem:[%s0 + $0x138] sm:$0xff]
    %v80 = vld [vmem:[%s0 + $0x140] sm:$0xff]
    %v81 = vld [vmem:[%s0 + $0x148] sm:$0xff]
    %v82 = vld [vmem:[%s0 + $0x150] sm:$0xff]
    %v83 = vld [vmem:[%s0 + $0x158] sm:$0xff]
    %v84 = vld [vmem:[%s0 + $0x160] sm:$0xff]
    %v85 = vld [vmem:[%s0 + $0x168] sm:$0xff]
    %v86 = vld [vmem:[%s0 + $0x170] sm:$0xff]
    %v87 = vld [vmem:[%s0 + $0x178] sm:$0xff]
    %v88 = vld [vmem:[%s0 + $0x180] sm:$0xff]
    %v89 = vld [vmem:[#allocation2] sm:$0xff]
    %v90 = vld [vmem:[#allocation2 + $0x8] sm:$0x1]
    %92 = vset.pattern.permute.xlu0 0
    %93 = vperm.xlu0 %92, %v40
    %v94 = vpop.permute.xlu0 %93
    %97 = vset.pattern.permute.xlu0 0
    %98 = vperm.xlu0 %97, %v41
    %v99 = vpop.permute.xlu0 %98
    %102 = vset.pattern.permute.xlu0 0
    %103 = vperm.xlu0 %102, %v42
    %v104 = vpop.permute.xlu0 %103
    %107 = vset.pattern.permute.xlu0 0
    %108 = vperm.xlu0 %107, %v43
    %v109 = vpop.permute.xlu0 %108
    %112 = vset.pattern.permute.xlu0 0
    %113 = vperm.xlu0 %112, %v44
    %v114 = vpop.permute.xlu0 %113
    %117 = vset.pattern.permute.xlu0 0
    %118 = vperm.xlu0 %117, %v45
    %v119 = vpop.permute.xlu0 %118
    %122 = vset.pattern.permute.xlu0 0
    %123 = vperm.xlu0 %122, %v46
    %v124 = vpop.permute.xlu0 %123
    %127 = vset.pattern.permute.xlu0 0
    %128 = vperm.xlu0 %127, %v47
    %v129 = vpop.permute.xlu0 %128
    %132 = vset.pattern.permute.xlu0 0
    %133 = vperm.xlu0 %132, %v48
    %v134 = vpop.permute.xlu0 %133
    %137 = vset.pattern.permute.xlu0 0
    %138 = vperm.xlu0 %137, %v49
    %v139 = vpop.permute.xlu0 %138
    %142 = vset.pattern.permute.xlu0 0
    %143 = vperm.xlu0 %142, %v50
    %v144 = vpop.permute.xlu0 %143
    %147 = vset.pattern.permute.xlu0 0
    %148 = vperm.xlu0 %147, %v51
    %v149 = vpop.permute.xlu0 %148
    %152 = vset.pattern.permute.xlu0 0
    %153 = vperm.xlu0 %152, %v52
    %v154 = vpop.permute.xlu0 %153
    %157 = vset.pattern.permute.xlu0 0
    %158 = vperm.xlu0 %157, %v53
    %v159 = vpop.permute.xlu0 %158
    %162 = vset.pattern.permute.xlu0 0
    %163 = vperm.xlu0 %162, %v54
    %v164 = vpop.permute.xlu0 %163
    %167 = vset.pattern.permute.xlu0 0
    %168 = vperm.xlu0 %167, %v55
    %v169 = vpop.permute.xlu0 %168
    %172 = vset.pattern.permute.xlu0 0
    %173 = vperm.xlu0 %172, %v56
    %v174 = vpop.permute.xlu0 %173
    %177 = vset.pattern.permute.xlu0 0
    %178 = vperm.xlu0 %177, %v57
    %v179 = vpop.permute.xlu0 %178
    %182 = vset.pattern.permute.xlu0 0
    %183 = vperm.xlu0 %182, %v58
    %v184 = vpop.permute.xlu0 %183
    %187 = vset.pattern.permute.xlu0 0
    %188 = vperm.xlu0 %187, %v59
    %v189 = vpop.permute.xlu0 %188
    %192 = vset.pattern.permute.xlu0 0
    %193 = vperm.xlu0 %192, %v60
    %v194 = vpop.permute.xlu0 %193
    %197 = vset.pattern.permute.xlu0 0
    %198 = vperm.xlu0 %197, %v61
    %v199 = vpop.permute.xlu0 %198
    %202 = vset.pattern.permute.xlu0 0
    %203 = vperm.xlu0 %202, %v62
    %v204 = vpop.permute.xlu0 %203
    %207 = vset.pattern.permute.xlu0 0
    %208 = vperm.xlu0 %207, %v63
    %v209 = vpop.permute.xlu0 %208
    %212 = vset.pattern.permute.xlu0 0
    %213 = vperm.xlu0 %212, %v64
    %v214 = vpop.permute.xlu0 %213
    %217 = vset.pattern.permute.xlu0 0
    %218 = vperm.xlu0 %217, %v65
    %v219 = vpop.permute.xlu0 %218
    %222 = vset.pattern.permute.xlu0 0
    %223 = vperm.xlu0 %222, %v66
    %v224 = vpop.permute.xlu0 %223
    %227 = vset.pattern.permute.xlu0 0
    %228 = vperm.xlu0 %227, %v67
    %v229 = vpop.permute.xlu0 %228
    %232 = vset.pattern.permute.xlu0 0
    %233 = vperm.xlu0 %232, %v68
    %v234 = vpop.permute.xlu0 %233
    %237 = vset.pattern.permute.xlu0 0
    %238 = vperm.xlu0 %237, %v69
    %v239 = vpop.permute.xlu0 %238
    %242 = vset.pattern.permute.xlu0 0
    %243 = vperm.xlu0 %242, %v70
    %v244 = vpop.permute.xlu0 %243
    %247 = vset.pattern.permute.xlu0 0
    %248 = vperm.xlu0 %247, %v71
    %v249 = vpop.permute.xlu0 %248
    %252 = vset.pattern.permute.xlu0 0
    %253 = vperm.xlu0 %252, %v72
    %v254 = vpop.permute.xlu0 %253
    %257 = vset.pattern.permute.xlu0 0
    %258 = vperm.xlu0 %257, %v73
    %v259 = vpop.permute.xlu0 %258
    %262 = vset.pattern.permute.xlu0 0
    %263 = vperm.xlu0 %262, %v74
    %v264 = vpop.permute.xlu0 %263
    %267 = vset.pattern.permute.xlu0 0
    %268 = vperm.xlu0 %267, %v75
    %v269 = vpop.permute.xlu0 %268
    %272 = vset.pattern.permute.xlu0 0
    %273 = vperm.xlu0 %272, %v76
    %v274 = vpop.permute.xlu0 %273
    %277 = vset.pattern.permute.xlu0 0
    %278 = vperm.xlu0 %277, %v77
    %v279 = vpop.permute.xlu0 %278
    %282 = vset.pattern.permute.xlu0 0
    %283 = vperm.xlu0 %282, %v78
    %v284 = vpop.permute.xlu0 %283
    %287 = vset.pattern.permute.xlu0 0
    %288 = vperm.xlu0 %287, %v79
    %v289 = vpop.permute.xlu0 %288
    %292 = vset.pattern.permute.xlu0 0
    %293 = vperm.xlu0 %292, %v80
    %v294 = vpop.permute.xlu0 %293
    %297 = vset.pattern.permute.xlu0 0
    %298 = vperm.xlu0 %297, %v81
    %v299 = vpop.permute.xlu0 %298
    %302 = vset.pattern.permute.xlu0 0
    %303 = vperm.xlu0 %302, %v82
    %v304 = vpop.permute.xlu0 %303
    %307 = vset.pattern.permute.xlu0 0
    %308 = vperm.xlu0 %307, %v83
    %v309 = vpop.permute.xlu0 %308
    %312 = vset.pattern.permute.xlu0 0
    %313 = vperm.xlu0 %312, %v84
    %v314 = vpop.permute.xlu0 %313
    %317 = vset.pattern.permute.xlu0 0
    %318 = vperm.xlu0 %317, %v85
    %v319 = vpop.permute.xlu0 %318
    %322 = vset.pattern.permute.xlu0 0
    %323 = vperm.xlu0 %322, %v86
    %v324 = vpop.permute.xlu0 %323
    %327 = vset.pattern.permute.xlu0 0
    %328 = vperm.xlu0 %327, %v87
    %v329 = vpop.permute.xlu0 %328
    %332 = vset.pattern.permute.xlu0 0
    %333 = vperm.xlu0 %332, %v88
    %v334 = vpop.permute.xlu0 %333
    %v336 = vlaneseq
    %v337 = vshrl.u32 %v336, 7
    %v338 = vsub.s32 0, %v337
    %v339 = vrot.slane %v89, %v338
    %v340 = vmul.f32 %v94, %v339
    %v341 = vmul.f32 %v99, %v339
    %v342 = vmul.f32 %v104, %v339
    %v343 = vmul.f32 %v109, %v339
    %v344 = vmul.f32 %v114, %v339
    %v345 = vmul.f32 %v119, %v339
    %v346 = vmul.f32 %v124, %v339
    %v347 = vmul.f32 %v129, %v339
    %v348 = vmul.f32 %v134, %v339
    %v349 = vmul.f32 %v139, %v339
    %v350 = vmul.f32 %v144, %v339
    %v351 = vmul.f32 %v149, %v339
    %v352 = vmul.f32 %v154, %v339
    %v353 = vmul.f32 %v159, %v339
    %v354 = vmul.f32 %v164, %v339
    %v355 = vmul.f32 %v169, %v339
    %v356 = vmul.f32 %v174, %v339
    %v357 = vmul.f32 %v179, %v339
    %v358 = vmul.f32 %v184, %v339
    %v359 = vmul.f32 %v189, %v339
    %v360 = vmul.f32 %v194, %v339
    %v361 = vmul.f32 %v199, %v339
    %v362 = vmul.f32 %v204, %v339
    %v363 = vmul.f32 %v209, %v339
    %v364 = vmul.f32 %v214, %v339
    %v365 = vmul.f32 %v219, %v339
    %v366 = vmul.f32 %v224, %v339
    %v367 = vmul.f32 %v229, %v339
    %v368 = vmul.f32 %v234, %v339
    %v369 = vmul.f32 %v239, %v339
    %v370 = vmul.f32 %v244, %v339
    %v371 = vmul.f32 %v249, %v339
    %v372 = vmul.f32 %v254, %v339
    %v373 = vmul.f32 %v259, %v339
    %v374 = vmul.f32 %v264, %v339
    %v375 = vmul.f32 %v269, %v339
    %v376 = vmul.f32 %v274, %v339
    %v377 = vmul.f32 %v279, %v339
    %v378 = vmul.f32 %v284, %v339
    %v379 = vmul.f32 %v289, %v339
    %v380 = vmul.f32 %v294, %v339
    %v381 = vmul.f32 %v299, %v339
    %v382 = vmul.f32 %v304, %v339
    %v383 = vmul.f32 %v309, %v339
    %v384 = vmul.f32 %v314, %v339
    %v385 = vmul.f32 %v319, %v339
    %v386 = vmul.f32 %v324, %v339
    %v387 = vmul.f32 %v329, %v339
    %v388 = vmul.f32 %v334, %v339
    %389 = vset.pattern.permute.xlu0 1
    %390 = vperm.xlu0 %389, %v40
    %v391 = vpop.permute.xlu0 %390
    %393 = vset.pattern.permute.xlu0 1
    %394 = vperm.xlu0 %393, %v41
    %v395 = vpop.permute.xlu0 %394
    %397 = vset.pattern.permute.xlu0 1
    %398 = vperm.xlu0 %397, %v42
    %v399 = vpop.permute.xlu0 %398
    %401 = vset.pattern.permute.xlu0 1
    %402 = vperm.xlu0 %401, %v43
    %v403 = vpop.permute.xlu0 %402
    %405 = vset.pattern.permute.xlu0 1
    %406 = vperm.xlu0 %405, %v44
    %v407 = vpop.permute.xlu0 %406
    %409 = vset.pattern.permute.xlu0 1
    %410 = vperm.xlu0 %409, %v45
    %v411 = vpop.permute.xlu0 %410
    %413 = vset.pattern.permute.xlu0 1
    %414 = vperm.xlu0 %413, %v46
    %v415 = vpop.permute.xlu0 %414
    %417 = vset.pattern.permute.xlu0 1
    %418 = vperm.xlu0 %417, %v47
    %v419 = vpop.permute.xlu0 %418
    %421 = vset.pattern.permute.xlu0 1
    %422 = vperm.xlu0 %421, %v48
    %v423 = vpop.permute.xlu0 %422
    %425 = vset.pattern.permute.xlu0 1
    %426 = vperm.xlu0 %425, %v49
    %v427 = vpop.permute.xlu0 %426
    %429 = vset.pattern.permute.xlu0 1
    %430 = vperm.xlu0 %429, %v50
    %v431 = vpop.permute.xlu0 %430
    %433 = vset.pattern.permute.xlu0 1
    %434 = vperm.xlu0 %433, %v51
    %v435 = vpop.permute.xlu0 %434
    %437 = vset.pattern.permute.xlu0 1
    %438 = vperm.xlu0 %437, %v52
    %v439 = vpop.permute.xlu0 %438
    %441 = vset.pattern.permute.xlu0 1
    %442 = vperm.xlu0 %441, %v53
    %v443 = vpop.permute.xlu0 %442
    %445 = vset.pattern.permute.xlu0 1
    %446 = vperm.xlu0 %445, %v54
    %v447 = vpop.permute.xlu0 %446
    %449 = vset.pattern.permute.xlu0 1
    %450 = vperm.xlu0 %449, %v55
    %v451 = vpop.permute.xlu0 %450
    %453 = vset.pattern.permute.xlu0 1
    %454 = vperm.xlu0 %453, %v56
    %v455 = vpop.permute.xlu0 %454
    %457 = vset.pattern.permute.xlu0 1
    %458 = vperm.xlu0 %457, %v57
    %v459 = vpop.permute.xlu0 %458
    %461 = vset.pattern.permute.xlu0 1
    %462 = vperm.xlu0 %461, %v58
    %v463 = vpop.permute.xlu0 %462
    %465 = vset.pattern.permute.xlu0 1
    %466 = vperm.xlu0 %465, %v59
    %v467 = vpop.permute.xlu0 %466
    %469 = vset.pattern.permute.xlu0 1
    %470 = vperm.xlu0 %469, %v60
    %v471 = vpop.permute.xlu0 %470
    %473 = vset.pattern.permute.xlu0 1
    %474 = vperm.xlu0 %473, %v61
    %v475 = vpop.permute.xlu0 %474
    %477 = vset.pattern.permute.xlu0 1
    %478 = vperm.xlu0 %477, %v62
    %v479 = vpop.permute.xlu0 %478
    %481 = vset.pattern.permute.xlu0 1
    %482 = vperm.xlu0 %481, %v63
    %v483 = vpop.permute.xlu0 %482
    %485 = vset.pattern.permute.xlu0 1
    %486 = vperm.xlu0 %485, %v64
    %v487 = vpop.permute.xlu0 %486
    %489 = vset.pattern.permute.xlu0 1
    %490 = vperm.xlu0 %489, %v65
    %v491 = vpop.permute.xlu0 %490
    %493 = vset.pattern.permute.xlu0 1
    %494 = vperm.xlu0 %493, %v66
    %v495 = vpop.permute.xlu0 %494
    %497 = vset.pattern.permute.xlu0 1
    %498 = vperm.xlu0 %497, %v67
    %v499 = vpop.permute.xlu0 %498
    %501 = vset.pattern.permute.xlu0 1
    %502 = vperm.xlu0 %501, %v68
    %v503 = vpop.permute.xlu0 %502
    %505 = vset.pattern.permute.xlu0 1
    %506 = vperm.xlu0 %505, %v69
    %v507 = vpop.permute.xlu0 %506
    %509 = vset.pattern.permute.xlu0 1
    %510 = vperm.xlu0 %509, %v70
    %v511 = vpop.permute.xlu0 %510
    %513 = vset.pattern.permute.xlu0 1
    %514 = vperm.xlu0 %513, %v71
    %v515 = vpop.permute.xlu0 %514
    %517 = vset.pattern.permute.xlu0 1
    %518 = vperm.xlu0 %517, %v72
    %v519 = vpop.permute.xlu0 %518
    %521 = vset.pattern.permute.xlu0 1
    %522 = vperm.xlu0 %521, %v73
    %v523 = vpop.permute.xlu0 %522
    %525 = vset.pattern.permute.xlu0 1
    %526 = vperm.xlu0 %525, %v74
    %v527 = vpop.permute.xlu0 %526
    %529 = vset.pattern.permute.xlu0 1
    %530 = vperm.xlu0 %529, %v75
    %v531 = vpop.permute.xlu0 %530
    %533 = vset.pattern.permute.xlu0 1
    %534 = vperm.xlu0 %533, %v76
    %v535 = vpop.permute.xlu0 %534
    %537 = vset.pattern.permute.xlu0 1
    %538 = vperm.xlu0 %537, %v77
    %v539 = vpop.permute.xlu0 %538
    %541 = vset.pattern.permute.xlu0 1
    %542 = vperm.xlu0 %541, %v78
    %v543 = vpop.permute.xlu0 %542
    %545 = vset.pattern.permute.xlu0 1
    %546 = vperm.xlu0 %545, %v79
    %v547 = vpop.permute.xlu0 %546
    %549 = vset.pattern.permute.xlu0 1
    %550 = vperm.xlu0 %549, %v80
    %v551 = vpop.permute.xlu0 %550
    %553 = vset.pattern.permute.xlu0 1
    %554 = vperm.xlu0 %553, %v81
    %v555 = vpop.permute.xlu0 %554
    %557 = vset.pattern.permute.xlu0 1
    %558 = vperm.xlu0 %557, %v82
    %v559 = vpop.permute.xlu0 %558
    %561 = vset.pattern.permute.xlu0 1
    %562 = vperm.xlu0 %561, %v83
    %v563 = vpop.permute.xlu0 %562
    %565 = vset.pattern.permute.xlu0 1
    %566 = vperm.xlu0 %565, %v84
    %v567 = vpop.permute.xlu0 %566
    %569 = vset.pattern.permute.xlu0 1
    %570 = vperm.xlu0 %569, %v85
    %v571 = vpop.permute.xlu0 %570
    %573 = vset.pattern.permute.xlu0 1
    %574 = vperm.xlu0 %573, %v86
    %v575 = vpop.permute.xlu0 %574
    %577 = vset.pattern.permute.xlu0 1
    %578 = vperm.xlu0 %577, %v87
    %v579 = vpop.permute.xlu0 %578
    %581 = vset.pattern.permute.xlu0 1
    %582 = vperm.xlu0 %581, %v88
    %v583 = vpop.permute.xlu0 %582
    %v585 = vlaneseq
    %v586 = vshrl.u32 %v585, 7
    %v587 = vsub.s32 1, %v586
    %v588 = vrot.slane %v89, %v587
    %v589 = vmul.f32 %v391, %v588
    %v590 = vmul.f32 %v395, %v588
    %v591 = vmul.f32 %v399, %v588
    %v592 = vmul.f32 %v403, %v588
    %v593 = vmul.f32 %v407, %v588
    %v594 = vmul.f32 %v411, %v588
    %v595 = vmul.f32 %v415, %v588
    %v596 = vmul.f32 %v419, %v588
    %v597 = vmul.f32 %v423, %v588
    %v598 = vmul.f32 %v427, %v588
    %v599 = vmul.f32 %v431, %v588
    %v600 = vmul.f32 %v435, %v588
    %v601 = vmul.f32 %v439, %v588
    %v602 = vmul.f32 %v443, %v588
    %v603 = vmul.f32 %v447, %v588
    %v604 = vmul.f32 %v451, %v588
    %v605 = vmul.f32 %v455, %v588
    %v606 = vmul.f32 %v459, %v588
    %v607 = vmul.f32 %v463, %v588
    %v608 = vmul.f32 %v467, %v588
    %v609 = vmul.f32 %v471, %v588
    %v610 = vmul.f32 %v475, %v588
    %v611 = vmul.f32 %v479, %v588
    %v612 = vmul.f32 %v483, %v588
    %v613 = vmul.f32 %v487, %v588
    %v614 = vmul.f32 %v491, %v588
    %v615 = vmul.f32 %v495, %v588
    %v616 = vmul.f32 %v499, %v588
    %v617 = vmul.f32 %v503, %v588
    %v618 = vmul.f32 %v507, %v588
    %v619 = vmul.f32 %v511, %v588
    %v620 = vmul.f32 %v515, %v588
    %v621 = vmul.f32 %v519, %v588
    %v622 = vmul.f32 %v523, %v588
    %v623 = vmul.f32 %v527, %v588
    %v624 = vmul.f32 %v531, %v588
    %v625 = vmul.f32 %v535, %v588
    %v626 = vmul.f32 %v539, %v588
    %v627 = vmul.f32 %v543, %v588
    %v628 = vmul.f32 %v547, %v588
    %v629 = vmul.f32 %v551, %v588
    %v630 = vmul.f32 %v555, %v588
    %v631 = vmul.f32 %v559, %v588
    %v632 = vmul.f32 %v563, %v588
    %v633 = vmul.f32 %v567, %v588
    %v634 = vmul.f32 %v571, %v588
    %v635 = vmul.f32 %v575, %v588
    %v636 = vmul.f32 %v579, %v588
    %v637 = vmul.f32 %v583, %v588
    %v638 = vadd.f32 %v340, %v589
    %v639 = vadd.f32 %v341, %v590
    %v640 = vadd.f32 %v342, %v591
    %v641 = vadd.f32 %v343, %v592
    %v642 = vadd.f32 %v344, %v593
    %v643 = vadd.f32 %v345, %v594
    %v644 = vadd.f32 %v346, %v595
    %v645 = vadd.f32 %v347, %v596
    %v646 = vadd.f32 %v348, %v597
    %v647 = vadd.f32 %v349, %v598
    %v648 = vadd.f32 %v350, %v599
    %v649 = vadd.f32 %v351, %v600
    %v650 = vadd.f32 %v352, %v601
    %v651 = vadd.f32 %v353, %v602
    %v652 = vadd.f32 %v354, %v603
    %v653 = vadd.f32 %v355, %v604
    %v654 = vadd.f32 %v356, %v605
    %v655 = vadd.f32 %v357, %v606
    %v656 = vadd.f32 %v358, %v607
    %v657 = vadd.f32 %v359, %v608
    %v658 = vadd.f32 %v360, %v609
    %v659 = vadd.f32 %v361, %v610
    %v660 = vadd.f32 %v362, %v611
    %v661 = vadd.f32 %v363, %v612
    %v662 = vadd.f32 %v364, %v613
    %v663 = vadd.f32 %v365, %v614
    %v664 = vadd.f32 %v366, %v615
    %v665 = vadd.f32 %v367, %v616
    %v666 = vadd.f32 %v368, %v617
    %v667 = vadd.f32 %v369, %v618
    %v668 = vadd.f32 %v370, %v619
    %v669 = vadd.f32 %v371, %v620
    %v670 = vadd.f32 %v372, %v621
    %v671 = vadd.f32 %v373, %v622
    %v672 = vadd.f32 %v374, %v623
    %v673 = vadd.f32 %v375, %v624
    %v674 = vadd.f32 %v376, %v625
    %v675 = vadd.f32 %v377, %v626
    %v676 = vadd.f32 %v378, %v627
    %v677 = vadd.f32 %v379, %v628
    %v678 = vadd.f32 %v380, %v629
    %v679 = vadd.f32 %v381, %v630
    %v680 = vadd.f32 %v382, %v631
    %v681 = vadd.f32 %v383, %v632
    %v682 = vadd.f32 %v384, %v633
    %v683 = vadd.f32 %v385, %v634
    %v684 = vadd.f32 %v386, %v635
    %v685 = vadd.f32 %v387, %v636
    %v686 = vadd.f32 %v388, %v637
    %687 = vset.pattern.permute.xlu0 2
    %688 = vperm.xlu0 %687, %v40
    %v689 = vpop.permute.xlu0 %688
    %691 = vset.pattern.permute.xlu0 2
    %692 = vperm.xlu0 %691, %v41
    %v693 = vpop.permute.xlu0 %692
    %695 = vset.pattern.permute.xlu0 2
    %696 = vperm.xlu0 %695, %v42
    %v697 = vpop.permute.xlu0 %696
    %699 = vset.pattern.permute.xlu0 2
    %700 = vperm.xlu0 %699, %v43
    %v701 = vpop.permute.xlu0 %700
    %703 = vset.pattern.permute.xlu0 2
    %704 = vperm.xlu0 %703, %v44
    %v705 = vpop.permute.xlu0 %704
    %707 = vset.pattern.permute.xlu0 2
    %708 = vperm.xlu0 %707, %v45
    %v709 = vpop.permute.xlu0 %708
    %711 = vset.pattern.permute.xlu0 2
    %712 = vperm.xlu0 %711, %v46
    %v713 = vpop.permute.xlu0 %712
    %715 = vset.pattern.permute.xlu0 2
    %716 = vperm.xlu0 %715, %v47
    %v717 = vpop.permute.xlu0 %716
    %719 = vset.pattern.permute.xlu0 2
    %720 = vperm.xlu0 %719, %v48
    %v721 = vpop.permute.xlu0 %720
    %723 = vset.pattern.permute.xlu0 2
    %724 = vperm.xlu0 %723, %v49
    %v725 = vpop.permute.xlu0 %724
    %727 = vset.pattern.permute.xlu0 2
    %728 = vperm.xlu0 %727, %v50
    %v729 = vpop.permute.xlu0 %728
    %731 = vset.pattern.permute.xlu0 2
    %732 = vperm.xlu0 %731, %v51
    %v733 = vpop.permute.xlu0 %732
    %735 = vset.pattern.permute.xlu0 2
    %736 = vperm.xlu0 %735, %v52
    %v737 = vpop.permute.xlu0 %736
    %739 = vset.pattern.permute.xlu0 2
    %740 = vperm.xlu0 %739, %v53
    %v741 = vpop.permute.xlu0 %740
    %743 = vset.pattern.permute.xlu0 2
    %744 = vperm.xlu0 %743, %v54
    %v745 = vpop.permute.xlu0 %744
    %747 = vset.pattern.permute.xlu0 2
    %748 = vperm.xlu0 %747, %v55
    %v749 = vpop.permute.xlu0 %748
    %751 = vset.pattern.permute.xlu0 2
    %752 = vperm.xlu0 %751, %v56
    %v753 = vpop.permute.xlu0 %752
    %755 = vset.pattern.permute.xlu0 2
    %756 = vperm.xlu0 %755, %v57
    %v757 = vpop.permute.xlu0 %756
    %759 = vset.pattern.permute.xlu0 2
    %760 = vperm.xlu0 %759, %v58
    %v761 = vpop.permute.xlu0 %760
    %763 = vset.pattern.permute.xlu0 2
    %764 = vperm.xlu0 %763, %v59
    %v765 = vpop.permute.xlu0 %764
    %767 = vset.pattern.permute.xlu0 2
    %768 = vperm.xlu0 %767, %v60
    %v769 = vpop.permute.xlu0 %768
    %771 = vset.pattern.permute.xlu0 2
    %772 = vperm.xlu0 %771, %v61
    %v773 = vpop.permute.xlu0 %772
    %775 = vset.pattern.permute.xlu0 2
    %776 = vperm.xlu0 %775, %v62
    %v777 = vpop.permute.xlu0 %776
    %779 = vset.pattern.permute.xlu0 2
    %780 = vperm.xlu0 %779, %v63
    %v781 = vpop.permute.xlu0 %780
    %783 = vset.pattern.permute.xlu0 2
    %784 = vperm.xlu0 %783, %v64
    %v785 = vpop.permute.xlu0 %784
    %787 = vset.pattern.permute.xlu0 2
    %788 = vperm.xlu0 %787, %v65
    %v789 = vpop.permute.xlu0 %788
    %791 = vset.pattern.permute.xlu0 2
    %792 = vperm.xlu0 %791, %v66
    %v793 = vpop.permute.xlu0 %792
    %795 = vset.pattern.permute.xlu0 2
    %796 = vperm.xlu0 %795, %v67
    %v797 = vpop.permute.xlu0 %796
    %799 = vset.pattern.permute.xlu0 2
    %800 = vperm.xlu0 %799, %v68
    %v801 = vpop.permute.xlu0 %800
    %803 = vset.pattern.permute.xlu0 2
    %804 = vperm.xlu0 %803, %v69
    %v805 = vpop.permute.xlu0 %804
    %807 = vset.pattern.permute.xlu0 2
    %808 = vperm.xlu0 %807, %v70
    %v809 = vpop.permute.xlu0 %808
    %811 = vset.pattern.permute.xlu0 2
    %812 = vperm.xlu0 %811, %v71
    %v813 = vpop.permute.xlu0 %812
    %815 = vset.pattern.permute.xlu0 2
    %816 = vperm.xlu0 %815, %v72
    %v817 = vpop.permute.xlu0 %816
    %819 = vset.pattern.permute.xlu0 2
    %820 = vperm.xlu0 %819, %v73
    %v821 = vpop.permute.xlu0 %820
    %823 = vset.pattern.permute.xlu0 2
    %824 = vperm.xlu0 %823, %v74
    %v825 = vpop.permute.xlu0 %824
    %827 = vset.pattern.permute.xlu0 2
    %828 = vperm.xlu0 %827, %v75
    %v829 = vpop.permute.xlu0 %828
    %831 = vset.pattern.permute.xlu0 2
    %832 = vperm.xlu0 %831, %v76
    %v833 = vpop.permute.xlu0 %832
    %835 = vset.pattern.permute.xlu0 2
    %836 = vperm.xlu0 %835, %v77
    %v837 = vpop.permute.xlu0 %836
    %839 = vset.pattern.permute.xlu0 2
    %840 = vperm.xlu0 %839, %v78
    %v841 = vpop.permute.xlu0 %840
    %843 = vset.pattern.permute.xlu0 2
    %844 = vperm.xlu0 %843, %v79
    %v845 = vpop.permute.xlu0 %844
    %847 = vset.pattern.permute.xlu0 2
    %848 = vperm.xlu0 %847, %v80
    %v849 = vpop.permute.xlu0 %848
    %851 = vset.pattern.permute.xlu0 2
    %852 = vperm.xlu0 %851, %v81
    %v853 = vpop.permute.xlu0 %852
    %855 = vset.pattern.permute.xlu0 2
    %856 = vperm.xlu0 %855, %v82
    %v857 = vpop.permute.xlu0 %856
    %859 = vset.pattern.permute.xlu0 2
    %860 = vperm.xlu0 %859, %v83
    %v861 = vpop.permute.xlu0 %860
    %863 = vset.pattern.permute.xlu0 2
    %864 = vperm.xlu0 %863, %v84
    %v865 = vpop.permute.xlu0 %864
    %867 = vset.pattern.permute.xlu0 2
    %868 = vperm.xlu0 %867, %v85
    %v869 = vpop.permute.xlu0 %868
    %871 = vset.pattern.permute.xlu0 2
    %872 = vperm.xlu0 %871, %v86
    %v873 = vpop.permute.xlu0 %872
    %875 = vset.pattern.permute.xlu0 2
    %876 = vperm.xlu0 %875, %v87
    %v877 = vpop.permute.xlu0 %876
    %879 = vset.pattern.permute.xlu0 2
    %880 = vperm.xlu0 %879, %v88
    %v881 = vpop.permute.xlu0 %880
    %v883 = vlaneseq
    %v884 = vshrl.u32 %v883, 7
    %v885 = vsub.s32 2, %v884
    %v886 = vrot.slane %v89, %v885
    %v887 = vmul.f32 %v689, %v886
    %v888 = vmul.f32 %v693, %v886
    %v889 = vmul.f32 %v697, %v886
    %v890 = vmul.f32 %v701, %v886
    %v891 = vmul.f32 %v705, %v886
    %v892 = vmul.f32 %v709, %v886
    %v893 = vmul.f32 %v713, %v886
    %v894 = vmul.f32 %v717, %v886
    %v895 = vmul.f32 %v721, %v886
    %v896 = vmul.f32 %v725, %v886
    %v897 = vmul.f32 %v729, %v886
    %v898 = vmul.f32 %v733, %v886
    %v899 = vmul.f32 %v737, %v886
    %v900 = vmul.f32 %v741, %v886
    %v901 = vmul.f32 %v745, %v886
    %v902 = vmul.f32 %v749, %v886
    %v903 = vmul.f32 %v753, %v886
    %v904 = vmul.f32 %v757, %v886
    %v905 = vmul.f32 %v761, %v886
    %v906 = vmul.f32 %v765, %v886
    %v907 = vmul.f32 %v769, %v886
    %v908 = vmul.f32 %v773, %v886
    %v909 = vmul.f32 %v777, %v886
    %v910 = vmul.f32 %v781, %v886
    %v911 = vmul.f32 %v785, %v886
    %v912 = vmul.f32 %v789, %v886
    %v913 = vmul.f32 %v793, %v886
    %v914 = vmul.f32 %v797, %v886
    %v915 = vmul.f32 %v801, %v886
    %v916 = vmul.f32 %v805, %v886
    %v917 = vmul.f32 %v809, %v886
    %v918 = vmul.f32 %v813, %v886
    %v919 = vmul.f32 %v817, %v886
    %v920 = vmul.f32 %v821, %v886
    %v921 = vmul.f32 %v825, %v886
    %v922 = vmul.f32 %v829, %v886
    %v923 = vmul.f32 %v833, %v886
    %v924 = vmul.f32 %v837, %v886
    %v925 = vmul.f32 %v841, %v886
    %v926 = vmul.f32 %v845, %v886
    %v927 = vmul.f32 %v849, %v886
    %v928 = vmul.f32 %v853, %v886
    %v929 = vmul.f32 %v857, %v886
    %v930 = vmul.f32 %v861, %v886
    %v931 = vmul.f32 %v865, %v886
    %v932 = vmul.f32 %v869, %v886
    %v933 = vmul.f32 %v873, %v886
    %v934 = vmul.f32 %v877, %v886
    %v935 = vmul.f32 %v881, %v886
    %v936 = vadd.f32 %v638, %v887
    %v937 = vadd.f32 %v639, %v888
    %v938 = vadd.f32 %v640, %v889
    %v939 = vadd.f32 %v641, %v890
    %v940 = vadd.f32 %v642, %v891
    %v941 = vadd.f32 %v643, %v892
    %v942 = vadd.f32 %v644, %v893
    %v943 = vadd.f32 %v645, %v894
    %v944 = vadd.f32 %v646, %v895
    %v945 = vadd.f32 %v647, %v896
    %v946 = vadd.f32 %v648, %v897
    %v947 = vadd.f32 %v649, %v898
    %v948 = vadd.f32 %v650, %v899
    %v949 = vadd.f32 %v651, %v900
    %v950 = vadd.f32 %v652, %v901
    %v951 = vadd.f32 %v653, %v902
    %v952 = vadd.f32 %v654, %v903
    %v953 = vadd.f32 %v655, %v904
    %v954 = vadd.f32 %v656, %v905
    %v955 = vadd.f32 %v657, %v906
    %v956 = vadd.f32 %v658, %v907
    %v957 = vadd.f32 %v659, %v908
    %v958 = vadd.f32 %v660, %v909
    %v959 = vadd.f32 %v661, %v910
    %v960 = vadd.f32 %v662, %v911
    %v961 = vadd.f32 %v663, %v912
    %v962 = vadd.f32 %v664, %v913
    %v963 = vadd.f32 %v665, %v914
    %v964 = vadd.f32 %v666, %v915
    %v965 = vadd.f32 %v667, %v916
    %v966 = vadd.f32 %v668, %v917
    %v967 = vadd.f32 %v669, %v918
    %v968 = vadd.f32 %v670, %v919
    %v969 = vadd.f32 %v671, %v920
    %v970 = vadd.f32 %v672, %v921
    %v971 = vadd.f32 %v673, %v922
    %v972 = vadd.f32 %v674, %v923
    %v973 = vadd.f32 %v675, %v924
    %v974 = vadd.f32 %v676, %v925
    %v975 = vadd.f32 %v677, %v926
    %v976 = vadd.f32 %v678, %v927
    %v977 = vadd.f32 %v679, %v928
    %v978 = vadd.f32 %v680, %v929
    %v979 = vadd.f32 %v681, %v930
    %v980 = vadd.f32 %v682, %v931
    %v981 = vadd.f32 %v683, %v932
    %v982 = vadd.f32 %v684, %v933
    %v983 = vadd.f32 %v685, %v934
    %v984 = vadd.f32 %v686, %v935
    %985 = vset.pattern.permute.xlu0 3
    %986 = vperm.xlu0 %985, %v40
    %v987 = vpop.permute.xlu0 %986
    %989 = vset.pattern.permute.xlu0 3
    %990 = vperm.xlu0 %989, %v41
    %v991 = vpop.permute.xlu0 %990
    %993 = vset.pattern.permute.xlu0 3
    %994 = vperm.xlu0 %993, %v42
    %v995 = vpop.permute.xlu0 %994
    %997 = vset.pattern.permute.xlu0 3
    %998 = vperm.xlu0 %997, %v43
    %v999 = vpop.permute.xlu0 %998
    %1001 = vset.pattern.permute.xlu0 3
    %1002 = vperm.xlu0 %1001, %v44
    %v1003 = vpop.permute.xlu0 %1002
    %1005 = vset.pattern.permute.xlu0 3
    %1006 = vperm.xlu0 %1005, %v45
    %v1007 = vpop.permute.xlu0 %1006
    %1009 = vset.pattern.permute.xlu0 3
    %1010 = vperm.xlu0 %1009, %v46
    %v1011 = vpop.permute.xlu0 %1010
    %1013 = vset.pattern.permute.xlu0 3
    %1014 = vperm.xlu0 %1013, %v47
    %v1015 = vpop.permute.xlu0 %1014
    %1017 = vset.pattern.permute.xlu0 3
    %1018 = vperm.xlu0 %1017, %v48
    %v1019 = vpop.permute.xlu0 %1018
    %1021 = vset.pattern.permute.xlu0 3
    %1022 = vperm.xlu0 %1021, %v49
    %v1023 = vpop.permute.xlu0 %1022
    %1025 = vset.pattern.permute.xlu0 3
    %1026 = vperm.xlu0 %1025, %v50
    %v1027 = vpop.permute.xlu0 %1026
    %1029 = vset.pattern.permute.xlu0 3
    %1030 = vperm.xlu0 %1029, %v51
    %v1031 = vpop.permute.xlu0 %1030
    %1033 = vset.pattern.permute.xlu0 3
    %1034 = vperm.xlu0 %1033, %v52
    %v1035 = vpop.permute.xlu0 %1034
    %1037 = vset.pattern.permute.xlu0 3
    %1038 = vperm.xlu0 %1037, %v53
    %v1039 = vpop.permute.xlu0 %1038
    %1041 = vset.pattern.permute.xlu0 3
    %1042 = vperm.xlu0 %1041, %v54
    %v1043 = vpop.permute.xlu0 %1042
    %1045 = vset.pattern.permute.xlu0 3
    %1046 = vperm.xlu0 %1045, %v55
    %v1047 = vpop.permute.xlu0 %1046
    %1049 = vset.pattern.permute.xlu0 3
    %1050 = vperm.xlu0 %1049, %v56
    %v1051 = vpop.permute.xlu0 %1050
    %1053 = vset.pattern.permute.xlu0 3
    %1054 = vperm.xlu0 %1053, %v57
    %v1055 = vpop.permute.xlu0 %1054
    %1057 = vset.pattern.permute.xlu0 3
    %1058 = vperm.xlu0 %1057, %v58
    %v1059 = vpop.permute.xlu0 %1058
    %1061 = vset.pattern.permute.xlu0 3
    %1062 = vperm.xlu0 %1061, %v59
    %v1063 = vpop.permute.xlu0 %1062
    %1065 = vset.pattern.permute.xlu0 3
    %1066 = vperm.xlu0 %1065, %v60
    %v1067 = vpop.permute.xlu0 %1066
    %1069 = vset.pattern.permute.xlu0 3
    %1070 = vperm.xlu0 %1069, %v61
    %v1071 = vpop.permute.xlu0 %1070
    %1073 = vset.pattern.permute.xlu0 3
    %1074 = vperm.xlu0 %1073, %v62
    %v1075 = vpop.permute.xlu0 %1074
    %1077 = vset.pattern.permute.xlu0 3
    %1078 = vperm.xlu0 %1077, %v63
    %v1079 = vpop.permute.xlu0 %1078
    %1081 = vset.pattern.permute.xlu0 3
    %1082 = vperm.xlu0 %1081, %v64
    %v1083 = vpop.permute.xlu0 %1082
    %1085 = vset.pattern.permute.xlu0 3
    %1086 = vperm.xlu0 %1085, %v65
    %v1087 = vpop.permute.xlu0 %1086
    %1089 = vset.pattern.permute.xlu0 3
    %1090 = vperm.xlu0 %1089, %v66
    %v1091 = vpop.permute.xlu0 %1090
    %1093 = vset.pattern.permute.xlu0 3
    %1094 = vperm.xlu0 %1093, %v67
    %v1095 = vpop.permute.xlu0 %1094
    %1097 = vset.pattern.permute.xlu0 3
    %1098 = vperm.xlu0 %1097, %v68
    %v1099 = vpop.permute.xlu0 %1098
    %1101 = vset.pattern.permute.xlu0 3
    %1102 = vperm.xlu0 %1101, %v69
    %v1103 = vpop.permute.xlu0 %1102
    %1105 = vset.pattern.permute.xlu0 3
    %1106 = vperm.xlu0 %1105, %v70
    %v1107 = vpop.permute.xlu0 %1106
    %1109 = vset.pattern.permute.xlu0 3
    %1110 = vperm.xlu0 %1109, %v71
    %v1111 = vpop.permute.xlu0 %1110
    %1113 = vset.pattern.permute.xlu0 3
    %1114 = vperm.xlu0 %1113, %v72
    %v1115 = vpop.permute.xlu0 %1114
    %1117 = vset.pattern.permute.xlu0 3
    %1118 = vperm.xlu0 %1117, %v73
    %v1119 = vpop.permute.xlu0 %1118
    %1121 = vset.pattern.permute.xlu0 3
    %1122 = vperm.xlu0 %1121, %v74
    %v1123 = vpop.permute.xlu0 %1122
    %1125 = vset.pattern.permute.xlu0 3
    %1126 = vperm.xlu0 %1125, %v75
    %v1127 = vpop.permute.xlu0 %1126
    %1129 = vset.pattern.permute.xlu0 3
    %1130 = vperm.xlu0 %1129, %v76
    %v1131 = vpop.permute.xlu0 %1130
    %1133 = vset.pattern.permute.xlu0 3
    %1134 = vperm.xlu0 %1133, %v77
    %v1135 = vpop.permute.xlu0 %1134
    %1137 = vset.pattern.permute.xlu0 3
    %1138 = vperm.xlu0 %1137, %v78
    %v1139 = vpop.permute.xlu0 %1138
    %1141 = vset.pattern.permute.xlu0 3
    %1142 = vperm.xlu0 %1141, %v79
    %v1143 = vpop.permute.xlu0 %1142
    %1145 = vset.pattern.permute.xlu0 3
    %1146 = vperm.xlu0 %1145, %v80
    %v1147 = vpop.permute.xlu0 %1146
    %1149 = vset.pattern.permute.xlu0 3
    %1150 = vperm.xlu0 %1149, %v81
    %v1151 = vpop.permute.xlu0 %1150
    %1153 = vset.pattern.permute.xlu0 3
    %1154 = vperm.xlu0 %1153, %v82
    %v1155 = vpop.permute.xlu0 %1154
    %1157 = vset.pattern.permute.xlu0 3
    %1158 = vperm.xlu0 %1157, %v83
    %v1159 = vpop.permute.xlu0 %1158
    %1161 = vset.pattern.permute.xlu0 3
    %1162 = vperm.xlu0 %1161, %v84
    %v1163 = vpop.permute.xlu0 %1162
    %1165 = vset.pattern.permute.xlu0 3
    %1166 = vperm.xlu0 %1165, %v85
    %v1167 = vpop.permute.xlu0 %1166
    %1169 = vset.pattern.permute.xlu0 3
    %1170 = vperm.xlu0 %1169, %v86
    %v1171 = vpop.permute.xlu0 %1170
    %1173 = vset.pattern.permute.xlu0 3
    %1174 = vperm.xlu0 %1173, %v87
    %v1175 = vpop.permute.xlu0 %1174
    %1177 = vset.pattern.permute.xlu0 3
    %1178 = vperm.xlu0 %1177, %v88
    %v1179 = vpop.permute.xlu0 %1178
    %v1181 = vlaneseq
    %v1182 = vshrl.u32 %v1181, 7
    %v1183 = vsub.s32 3, %v1182
    %v1184 = vrot.slane %v89, %v1183
    %v1185 = vmul.f32 %v987, %v1184
    %v1186 = vmul.f32 %v991, %v1184
    %v1187 = vmul.f32 %v995, %v1184
    %v1188 = vmul.f32 %v999, %v1184
    %v1189 = vmul.f32 %v1003, %v1184
    %v1190 = vmul.f32 %v1007, %v1184
    %v1191 = vmul.f32 %v1011, %v1184
    %v1192 = vmul.f32 %v1015, %v1184
    %v1193 = vmul.f32 %v1019, %v1184
    %v1194 = vmul.f32 %v1023, %v1184
    %v1195 = vmul.f32 %v1027, %v1184
    %v1196 = vmul.f32 %v1031, %v1184
    %v1197 = vmul.f32 %v1035, %v1184
    %v1198 = vmul.f32 %v1039, %v1184
    %v1199 = vmul.f32 %v1043, %v1184
    %v1200 = vmul.f32 %v1047, %v1184
    %v1201 = vmul.f32 %v1051, %v1184
    %v1202 = vmul.f32 %v1055, %v1184
    %v1203 = vmul.f32 %v1059, %v1184
    %v1204 = vmul.f32 %v1063, %v1184
    %v1205 = vmul.f32 %v1067, %v1184
    %v1206 = vmul.f32 %v1071, %v1184
    %v1207 = vmul.f32 %v1075, %v1184
    %v1208 = vmul.f32 %v1079, %v1184
    %v1209 = vmul.f32 %v1083, %v1184
    %v1210 = vmul.f32 %v1087, %v1184
    %v1211 = vmul.f32 %v1091, %v1184
    %v1212 = vmul.f32 %v1095, %v1184
    %v1213 = vmul.f32 %v1099, %v1184
    %v1214 = vmul.f32 %v1103, %v1184
    %v1215 = vmul.f32 %v1107, %v1184
    %v1216 = vmul.f32 %v1111, %v1184
    %v1217 = vmul.f32 %v1115, %v1184
    %v1218 = vmul.f32 %v1119, %v1184
    %v1219 = vmul.f32 %v1123, %v1184
    %v1220 = vmul.f32 %v1127, %v1184
    %v1221 = vmul.f32 %v1131, %v1184
    %v1222 = vmul.f32 %v1135, %v1184
    %v1223 = vmul.f32 %v1139, %v1184
    %v1224 = vmul.f32 %v1143, %v1184
    %v1225 = vmul.f32 %v1147, %v1184
    %v1226 = vmul.f32 %v1151, %v1184
    %v1227 = vmul.f32 %v1155, %v1184
    %v1228 = vmul.f32 %v1159, %v1184
    %v1229 = vmul.f32 %v1163, %v1184
    %v1230 = vmul.f32 %v1167, %v1184
    %v1231 = vmul.f32 %v1171, %v1184
    %v1232 = vmul.f32 %v1175, %v1184
    %v1233 = vmul.f32 %v1179, %v1184
    %v1234 = vadd.f32 %v936, %v1185
    %v1235 = vadd.f32 %v937, %v1186
    %v1236 = vadd.f32 %v938, %v1187
    %v1237 = vadd.f32 %v939, %v1188
    %v1238 = vadd.f32 %v940, %v1189
    %v1239 = vadd.f32 %v941, %v1190
    %v1240 = vadd.f32 %v942, %v1191
    %v1241 = vadd.f32 %v943, %v1192
    %v1242 = vadd.f32 %v944, %v1193
    %v1243 = vadd.f32 %v945, %v1194
    %v1244 = vadd.f32 %v946, %v1195
    %v1245 = vadd.f32 %v947, %v1196
    %v1246 = vadd.f32 %v948, %v1197
    %v1247 = vadd.f32 %v949, %v1198
    %v1248 = vadd.f32 %v950, %v1199
    %v1249 = vadd.f32 %v951, %v1200
    %v1250 = vadd.f32 %v952, %v1201
    %v1251 = vadd.f32 %v953, %v1202
    %v1252 = vadd.f32 %v954, %v1203
    %v1253 = vadd.f32 %v955, %v1204
    %v1254 = vadd.f32 %v956, %v1205
    %v1255 = vadd.f32 %v957, %v1206
    %v1256 = vadd.f32 %v958, %v1207
    %v1257 = vadd.f32 %v959, %v1208
    %v1258 = vadd.f32 %v960, %v1209
    %v1259 = vadd.f32 %v961, %v1210
    %v1260 = vadd.f32 %v962, %v1211
    %v1261 = vadd.f32 %v963, %v1212
    %v1262 = vadd.f32 %v964, %v1213
    %v1263 = vadd.f32 %v965, %v1214
    %v1264 = vadd.f32 %v966, %v1215
    %v1265 = vadd.f32 %v967, %v1216
    %v1266 = vadd.f32 %v968, %v1217
    %v1267 = vadd.f32 %v969, %v1218
    %v1268 = vadd.f32 %v970, %v1219
    %v1269 = vadd.f32 %v971, %v1220
    %v1270 = vadd.f32 %v972, %v1221
    %v1271 = vadd.f32 %v973, %v1222
    %v1272 = vadd.f32 %v974, %v1223
    %v1273 = vadd.f32 %v975, %v1224
    %v1274 = vadd.f32 %v976, %v1225
    %v1275 = vadd.f32 %v977, %v1226
    %v1276 = vadd.f32 %v978, %v1227
    %v1277 = vadd.f32 %v979, %v1228
    %v1278 = vadd.f32 %v980, %v1229
    %v1279 = vadd.f32 %v981, %v1230
    %v1280 = vadd.f32 %v982, %v1231
    %v1281 = vadd.f32 %v983, %v1232
    %v1282 = vadd.f32 %v984, %v1233
    %1283 = vset.pattern.permute.xlu0 4
    %1284 = vperm.xlu0 %1283, %v40
    %v1285 = vpop.permute.xlu0 %1284
    %1287 = vset.pattern.permute.xlu0 4
    %1288 = vperm.xlu0 %1287, %v41
    %v1289 = vpop.permute.xlu0 %1288
    %1291 = vset.pattern.permute.xlu0 4
    %1292 = vperm.xlu0 %1291, %v42
    %v1293 = vpop.permute.xlu0 %1292
    %1295 = vset.pattern.permute.xlu0 4
    %1296 = vperm.xlu0 %1295, %v43
    %v1297 = vpop.permute.xlu0 %1296
    %1299 = vset.pattern.permute.xlu0 4
    %1300 = vperm.xlu0 %1299, %v44
    %v1301 = vpop.permute.xlu0 %1300
    %1303 = vset.pattern.permute.xlu0 4
    %1304 = vperm.xlu0 %1303, %v45
    %v1305 = vpop.permute.xlu0 %1304
    %1307 = vset.pattern.permute.xlu0 4
    %1308 = vperm.xlu0 %1307, %v46
    %v1309 = vpop.permute.xlu0 %1308
    %1311 = vset.pattern.permute.xlu0 4
    %1312 = vperm.xlu0 %1311, %v47
    %v1313 = vpop.permute.xlu0 %1312
    %1315 = vset.pattern.permute.xlu0 4
    %1316 = vperm.xlu0 %1315, %v48
    %v1317 = vpop.permute.xlu0 %1316
    %1319 = vset.pattern.permute.xlu0 4
    %1320 = vperm.xlu0 %1319, %v49
    %v1321 = vpop.permute.xlu0 %1320
    %1323 = vset.pattern.permute.xlu0 4
    %1324 = vperm.xlu0 %1323, %v50
    %v1325 = vpop.permute.xlu0 %1324
    %1327 = vset.pattern.permute.xlu0 4
    %1328 = vperm.xlu0 %1327, %v51
    %v1329 = vpop.permute.xlu0 %1328
    %1331 = vset.pattern.permute.xlu0 4
    %1332 = vperm.xlu0 %1331, %v52
    %v1333 = vpop.permute.xlu0 %1332
    %1335 = vset.pattern.permute.xlu0 4
    %1336 = vperm.xlu0 %1335, %v53
    %v1337 = vpop.permute.xlu0 %1336
    %1339 = vset.pattern.permute.xlu0 4
    %1340 = vperm.xlu0 %1339, %v54
    %v1341 = vpop.permute.xlu0 %1340
    %1343 = vset.pattern.permute.xlu0 4
    %1344 = vperm.xlu0 %1343, %v55
    %v1345 = vpop.permute.xlu0 %1344
    %1347 = vset.pattern.permute.xlu0 4
    %1348 = vperm.xlu0 %1347, %v56
    %v1349 = vpop.permute.xlu0 %1348
    %1351 = vset.pattern.permute.xlu0 4
    %1352 = vperm.xlu0 %1351, %v57
    %v1353 = vpop.permute.xlu0 %1352
    %1355 = vset.pattern.permute.xlu0 4
    %1356 = vperm.xlu0 %1355, %v58
    %v1357 = vpop.permute.xlu0 %1356
    %1359 = vset.pattern.permute.xlu0 4
    %1360 = vperm.xlu0 %1359, %v59
    %v1361 = vpop.permute.xlu0 %1360
    %1363 = vset.pattern.permute.xlu0 4
    %1364 = vperm.xlu0 %1363, %v60
    %v1365 = vpop.permute.xlu0 %1364
    %1367 = vset.pattern.permute.xlu0 4
    %1368 = vperm.xlu0 %1367, %v61
    %v1369 = vpop.permute.xlu0 %1368
    %1371 = vset.pattern.permute.xlu0 4
    %1372 = vperm.xlu0 %1371, %v62
    %v1373 = vpop.permute.xlu0 %1372
    %1375 = vset.pattern.permute.xlu0 4
    %1376 = vperm.xlu0 %1375, %v63
    %v1377 = vpop.permute.xlu0 %1376
    %1379 = vset.pattern.permute.xlu0 4
    %1380 = vperm.xlu0 %1379, %v64
    %v1381 = vpop.permute.xlu0 %1380
    %1383 = vset.pattern.permute.xlu0 4
    %1384 = vperm.xlu0 %1383, %v65
    %v1385 = vpop.permute.xlu0 %1384
    %1387 = vset.pattern.permute.xlu0 4
    %1388 = vperm.xlu0 %1387, %v66
    %v1389 = vpop.permute.xlu0 %1388
    %1391 = vset.pattern.permute.xlu0 4
    %1392 = vperm.xlu0 %1391, %v67
    %v1393 = vpop.permute.xlu0 %1392
    %1395 = vset.pattern.permute.xlu0 4
    %1396 = vperm.xlu0 %1395, %v68
    %v1397 = vpop.permute.xlu0 %1396
    %1399 = vset.pattern.permute.xlu0 4
    %1400 = vperm.xlu0 %1399, %v69
    %v1401 = vpop.permute.xlu0 %1400
    %1403 = vset.pattern.permute.xlu0 4
    %1404 = vperm.xlu0 %1403, %v70
    %v1405 = vpop.permute.xlu0 %1404
    %1407 = vset.pattern.permute.xlu0 4
    %1408 = vperm.xlu0 %1407, %v71
    %v1409 = vpop.permute.xlu0 %1408
    %1411 = vset.pattern.permute.xlu0 4
    %1412 = vperm.xlu0 %1411, %v72
    %v1413 = vpop.permute.xlu0 %1412
    %1415 = vset.pattern.permute.xlu0 4
    %1416 = vperm.xlu0 %1415, %v73
    %v1417 = vpop.permute.xlu0 %1416
    %1419 = vset.pattern.permute.xlu0 4
    %1420 = vperm.xlu0 %1419, %v74
    %v1421 = vpop.permute.xlu0 %1420
    %1423 = vset.pattern.permute.xlu0 4
    %1424 = vperm.xlu0 %1423, %v75
    %v1425 = vpop.permute.xlu0 %1424
    %1427 = vset.pattern.permute.xlu0 4
    %1428 = vperm.xlu0 %1427, %v76
    %v1429 = vpop.permute.xlu0 %1428
    %1431 = vset.pattern.permute.xlu0 4
    %1432 = vperm.xlu0 %1431, %v77
    %v1433 = vpop.permute.xlu0 %1432
    %1435 = vset.pattern.permute.xlu0 4
    %1436 = vperm.xlu0 %1435, %v78
    %v1437 = vpop.permute.xlu0 %1436
    %1439 = vset.pattern.permute.xlu0 4
    %1440 = vperm.xlu0 %1439, %v79
    %v1441 = vpop.permute.xlu0 %1440
    %1443 = vset.pattern.permute.xlu0 4
    %1444 = vperm.xlu0 %1443, %v80
    %v1445 = vpop.permute.xlu0 %1444
    %1447 = vset.pattern.permute.xlu0 4
    %1448 = vperm.xlu0 %1447, %v81
    %v1449 = vpop.permute.xlu0 %1448
    %1451 = vset.pattern.permute.xlu0 4
    %1452 = vperm.xlu0 %1451, %v82
    %v1453 = vpop.permute.xlu0 %1452
    %1455 = vset.pattern.permute.xlu0 4
    %1456 = vperm.xlu0 %1455, %v83
    %v1457 = vpop.permute.xlu0 %1456
    %1459 = vset.pattern.permute.xlu0 4
    %1460 = vperm.xlu0 %1459, %v84
    %v1461 = vpop.permute.xlu0 %1460
    %1463 = vset.pattern.permute.xlu0 4
    %1464 = vperm.xlu0 %1463, %v85
    %v1465 = vpop.permute.xlu0 %1464
    %1467 = vset.pattern.permute.xlu0 4
    %1468 = vperm.xlu0 %1467, %v86
    %v1469 = vpop.permute.xlu0 %1468
    %1471 = vset.pattern.permute.xlu0 4
    %1472 = vperm.xlu0 %1471, %v87
    %v1473 = vpop.permute.xlu0 %1472
    %1475 = vset.pattern.permute.xlu0 4
    %1476 = vperm.xlu0 %1475, %v88
    %v1477 = vpop.permute.xlu0 %1476
    %v1479 = vlaneseq
    %v1480 = vshrl.u32 %v1479, 7
    %v1481 = vsub.s32 4, %v1480
    %v1482 = vrot.slane %v89, %v1481
    %v1483 = vmul.f32 %v1285, %v1482
    %v1484 = vmul.f32 %v1289, %v1482
    %v1485 = vmul.f32 %v1293, %v1482
    %v1486 = vmul.f32 %v1297, %v1482
    %v1487 = vmul.f32 %v1301, %v1482
    %v1488 = vmul.f32 %v1305, %v1482
    %v1489 = vmul.f32 %v1309, %v1482
    %v1490 = vmul.f32 %v1313, %v1482
    %v1491 = vmul.f32 %v1317, %v1482
    %v1492 = vmul.f32 %v1321, %v1482
    %v1493 = vmul.f32 %v1325, %v1482
    %v1494 = vmul.f32 %v1329, %v1482
    %v1495 = vmul.f32 %v1333, %v1482
    %v1496 = vmul.f32 %v1337, %v1482
    %v1497 = vmul.f32 %v1341, %v1482
    %v1498 = vmul.f32 %v1345, %v1482
    %v1499 = vmul.f32 %v1349, %v1482
    %v1500 = vmul.f32 %v1353, %v1482
    %v1501 = vmul.f32 %v1357, %v1482
    %v1502 = vmul.f32 %v1361, %v1482
    %v1503 = vmul.f32 %v1365, %v1482
    %v1504 = vmul.f32 %v1369, %v1482
    %v1505 = vmul.f32 %v1373, %v1482
    %v1506 = vmul.f32 %v1377, %v1482
    %v1507 = vmul.f32 %v1381, %v1482
    %v1508 = vmul.f32 %v1385, %v1482
    %v1509 = vmul.f32 %v1389, %v1482
    %v1510 = vmul.f32 %v1393, %v1482
    %v1511 = vmul.f32 %v1397, %v1482
    %v1512 = vmul.f32 %v1401, %v1482
    %v1513 = vmul.f32 %v1405, %v1482
    %v1514 = vmul.f32 %v1409, %v1482
    %v1515 = vmul.f32 %v1413, %v1482
    %v1516 = vmul.f32 %v1417, %v1482
    %v1517 = vmul.f32 %v1421, %v1482
    %v1518 = vmul.f32 %v1425, %v1482
    %v1519 = vmul.f32 %v1429, %v1482
    %v1520 = vmul.f32 %v1433, %v1482
    %v1521 = vmul.f32 %v1437, %v1482
    %v1522 = vmul.f32 %v1441, %v1482
    %v1523 = vmul.f32 %v1445, %v1482
    %v1524 = vmul.f32 %v1449, %v1482
    %v1525 = vmul.f32 %v1453, %v1482
    %v1526 = vmul.f32 %v1457, %v1482
    %v1527 = vmul.f32 %v1461, %v1482
    %v1528 = vmul.f32 %v1465, %v1482
    %v1529 = vmul.f32 %v1469, %v1482
    %v1530 = vmul.f32 %v1473, %v1482
    %v1531 = vmul.f32 %v1477, %v1482
    %v1532 = vadd.f32 %v1234, %v1483
    %v1533 = vadd.f32 %v1235, %v1484
    %v1534 = vadd.f32 %v1236, %v1485
    %v1535 = vadd.f32 %v1237, %v1486
    %v1536 = vadd.f32 %v1238, %v1487
    %v1537 = vadd.f32 %v1239, %v1488
    %v1538 = vadd.f32 %v1240, %v1489
    %v1539 = vadd.f32 %v1241, %v1490
    %v1540 = vadd.f32 %v1242, %v1491
    %v1541 = vadd.f32 %v1243, %v1492
    %v1542 = vadd.f32 %v1244, %v1493
    %v1543 = vadd.f32 %v1245, %v1494
    %v1544 = vadd.f32 %v1246, %v1495
    %v1545 = vadd.f32 %v1247, %v1496
    %v1546 = vadd.f32 %v1248, %v1497
    %v1547 = vadd.f32 %v1249, %v1498
    %v1548 = vadd.f32 %v1250, %v1499
    %v1549 = vadd.f32 %v1251, %v1500
    %v1550 = vadd.f32 %v1252, %v1501
    %v1551 = vadd.f32 %v1253, %v1502
    %v1552 = vadd.f32 %v1254, %v1503
    %v1553 = vadd.f32 %v1255, %v1504
    %v1554 = vadd.f32 %v1256, %v1505
    %v1555 = vadd.f32 %v1257, %v1506
    %v1556 = vadd.f32 %v1258, %v1507
    %v1557 = vadd.f32 %v1259, %v1508
    %v1558 = vadd.f32 %v1260, %v1509
    %v1559 = vadd.f32 %v1261, %v1510
    %v1560 = vadd.f32 %v1262, %v1511
    %v1561 = vadd.f32 %v1263, %v1512
    %v1562 = vadd.f32 %v1264, %v1513
    %v1563 = vadd.f32 %v1265, %v1514
    %v1564 = vadd.f32 %v1266, %v1515
    %v1565 = vadd.f32 %v1267, %v1516
    %v1566 = vadd.f32 %v1268, %v1517
    %v1567 = vadd.f32 %v1269, %v1518
    %v1568 = vadd.f32 %v1270, %v1519
    %v1569 = vadd.f32 %v1271, %v1520
    %v1570 = vadd.f32 %v1272, %v1521
    %v1571 = vadd.f32 %v1273, %v1522
    %v1572 = vadd.f32 %v1274, %v1523
    %v1573 = vadd.f32 %v1275, %v1524
    %v1574 = vadd.f32 %v1276, %v1525
    %v1575 = vadd.f32 %v1277, %v1526
    %v1576 = vadd.f32 %v1278, %v1527
    %v1577 = vadd.f32 %v1279, %v1528
    %v1578 = vadd.f32 %v1280, %v1529
    %v1579 = vadd.f32 %v1281, %v1530
    %v1580 = vadd.f32 %v1282, %v1531
    %1581 = vset.pattern.permute.xlu0 5
    %1582 = vperm.xlu0 %1581, %v40
    %v1583 = vpop.permute.xlu0 %1582
    %1585 = vset.pattern.permute.xlu0 5
    %1586 = vperm.xlu0 %1585, %v41
    %v1587 = vpop.permute.xlu0 %1586
    %1589 = vset.pattern.permute.xlu0 5
    %1590 = vperm.xlu0 %1589, %v42
    %v1591 = vpop.permute.xlu0 %1590
    %1593 = vset.pattern.permute.xlu0 5
    %1594 = vperm.xlu0 %1593, %v43
    %v1595 = vpop.permute.xlu0 %1594
    %1597 = vset.pattern.permute.xlu0 5
    %1598 = vperm.xlu0 %1597, %v44
    %v1599 = vpop.permute.xlu0 %1598
    %1601 = vset.pattern.permute.xlu0 5
    %1602 = vperm.xlu0 %1601, %v45
    %v1603 = vpop.permute.xlu0 %1602
    %1605 = vset.pattern.permute.xlu0 5
    %1606 = vperm.xlu0 %1605, %v46
    %v1607 = vpop.permute.xlu0 %1606
    %1609 = vset.pattern.permute.xlu0 5
    %1610 = vperm.xlu0 %1609, %v47
    %v1611 = vpop.permute.xlu0 %1610
    %1613 = vset.pattern.permute.xlu0 5
    %1614 = vperm.xlu0 %1613, %v48
    %v1615 = vpop.permute.xlu0 %1614
    %1617 = vset.pattern.permute.xlu0 5
    %1618 = vperm.xlu0 %1617, %v49
    %v1619 = vpop.permute.xlu0 %1618
    %1621 = vset.pattern.permute.xlu0 5
    %1622 = vperm.xlu0 %1621, %v50
    %v1623 = vpop.permute.xlu0 %1622
    %1625 = vset.pattern.permute.xlu0 5
    %1626 = vperm.xlu0 %1625, %v51
    %v1627 = vpop.permute.xlu0 %1626
    %1629 = vset.pattern.permute.xlu0 5
    %1630 = vperm.xlu0 %1629, %v52
    %v1631 = vpop.permute.xlu0 %1630
    %1633 = vset.pattern.permute.xlu0 5
    %1634 = vperm.xlu0 %1633, %v53
    %v1635 = vpop.permute.xlu0 %1634
    %1637 = vset.pattern.permute.xlu0 5
    %1638 = vperm.xlu0 %1637, %v54
    %v1639 = vpop.permute.xlu0 %1638
    %1641 = vset.pattern.permute.xlu0 5
    %1642 = vperm.xlu0 %1641, %v55
    %v1643 = vpop.permute.xlu0 %1642
    %1645 = vset.pattern.permute.xlu0 5
    %1646 = vperm.xlu0 %1645, %v56
    %v1647 = vpop.permute.xlu0 %1646
    %1649 = vset.pattern.permute.xlu0 5
    %1650 = vperm.xlu0 %1649, %v57
    %v1651 = vpop.permute.xlu0 %1650
    %1653 = vset.pattern.permute.xlu0 5
    %1654 = vperm.xlu0 %1653, %v58
    %v1655 = vpop.permute.xlu0 %1654
    %1657 = vset.pattern.permute.xlu0 5
    %1658 = vperm.xlu0 %1657, %v59
    %v1659 = vpop.permute.xlu0 %1658
    %1661 = vset.pattern.permute.xlu0 5
    %1662 = vperm.xlu0 %1661, %v60
    %v1663 = vpop.permute.xlu0 %1662
    %1665 = vset.pattern.permute.xlu0 5
    %1666 = vperm.xlu0 %1665, %v61
    %v1667 = vpop.permute.xlu0 %1666
    %1669 = vset.pattern.permute.xlu0 5
    %1670 = vperm.xlu0 %1669, %v62
    %v1671 = vpop.permute.xlu0 %1670
    %1673 = vset.pattern.permute.xlu0 5
    %1674 = vperm.xlu0 %1673, %v63
    %v1675 = vpop.permute.xlu0 %1674
    %1677 = vset.pattern.permute.xlu0 5
    %1678 = vperm.xlu0 %1677, %v64
    %v1679 = vpop.permute.xlu0 %1678
    %1681 = vset.pattern.permute.xlu0 5
    %1682 = vperm.xlu0 %1681, %v65
    %v1683 = vpop.permute.xlu0 %1682
    %1685 = vset.pattern.permute.xlu0 5
    %1686 = vperm.xlu0 %1685, %v66
    %v1687 = vpop.permute.xlu0 %1686
    %1689 = vset.pattern.permute.xlu0 5
    %1690 = vperm.xlu0 %1689, %v67
    %v1691 = vpop.permute.xlu0 %1690
    %1693 = vset.pattern.permute.xlu0 5
    %1694 = vperm.xlu0 %1693, %v68
    %v1695 = vpop.permute.xlu0 %1694
    %1697 = vset.pattern.permute.xlu0 5
    %1698 = vperm.xlu0 %1697, %v69
    %v1699 = vpop.permute.xlu0 %1698
    %1701 = vset.pattern.permute.xlu0 5
    %1702 = vperm.xlu0 %1701, %v70
    %v1703 = vpop.permute.xlu0 %1702
    %1705 = vset.pattern.permute.xlu0 5
    %1706 = vperm.xlu0 %1705, %v71
    %v1707 = vpop.permute.xlu0 %1706
    %1709 = vset.pattern.permute.xlu0 5
    %1710 = vperm.xlu0 %1709, %v72
    %v1711 = vpop.permute.xlu0 %1710
    %1713 = vset.pattern.permute.xlu0 5
    %1714 = vperm.xlu0 %1713, %v73
    %v1715 = vpop.permute.xlu0 %1714
    %1717 = vset.pattern.permute.xlu0 5
    %1718 = vperm.xlu0 %1717, %v74
    %v1719 = vpop.permute.xlu0 %1718
    %1721 = vset.pattern.permute.xlu0 5
    %1722 = vperm.xlu0 %1721, %v75
    %v1723 = vpop.permute.xlu0 %1722
    %1725 = vset.pattern.permute.xlu0 5
    %1726 = vperm.xlu0 %1725, %v76
    %v1727 = vpop.permute.xlu0 %1726
    %1729 = vset.pattern.permute.xlu0 5
    %1730 = vperm.xlu0 %1729, %v77
    %v1731 = vpop.permute.xlu0 %1730
    %1733 = vset.pattern.permute.xlu0 5
    %1734 = vperm.xlu0 %1733, %v78
    %v1735 = vpop.permute.xlu0 %1734
    %1737 = vset.pattern.permute.xlu0 5
    %1738 = vperm.xlu0 %1737, %v79
    %v1739 = vpop.permute.xlu0 %1738
    %1741 = vset.pattern.permute.xlu0 5
    %1742 = vperm.xlu0 %1741, %v80
    %v1743 = vpop.permute.xlu0 %1742
    %1745 = vset.pattern.permute.xlu0 5
    %1746 = vperm.xlu0 %1745, %v81
    %v1747 = vpop.permute.xlu0 %1746
    %1749 = vset.pattern.permute.xlu0 5
    %1750 = vperm.xlu0 %1749, %v82
    %v1751 = vpop.permute.xlu0 %1750
    %1753 = vset.pattern.permute.xlu0 5
    %1754 = vperm.xlu0 %1753, %v83
    %v1755 = vpop.permute.xlu0 %1754
    %1757 = vset.pattern.permute.xlu0 5
    %1758 = vperm.xlu0 %1757, %v84
    %v1759 = vpop.permute.xlu0 %1758
    %1761 = vset.pattern.permute.xlu0 5
    %1762 = vperm.xlu0 %1761, %v85
    %v1763 = vpop.permute.xlu0 %1762
    %1765 = vset.pattern.permute.xlu0 5
    %1766 = vperm.xlu0 %1765, %v86
    %v1767 = vpop.permute.xlu0 %1766
    %1769 = vset.pattern.permute.xlu0 5
    %1770 = vperm.xlu0 %1769, %v87
    %v1771 = vpop.permute.xlu0 %1770
    %1773 = vset.pattern.permute.xlu0 5
    %1774 = vperm.xlu0 %1773, %v88
    %v1775 = vpop.permute.xlu0 %1774
    %v1777 = vlaneseq
    %v1778 = vshrl.u32 %v1777, 7
    %v1779 = vsub.s32 5, %v1778
    %v1780 = vrot.slane %v89, %v1779
    %v1781 = vmul.f32 %v1583, %v1780
    %v1782 = vmul.f32 %v1587, %v1780
    %v1783 = vmul.f32 %v1591, %v1780
    %v1784 = vmul.f32 %v1595, %v1780
    %v1785 = vmul.f32 %v1599, %v1780
    %v1786 = vmul.f32 %v1603, %v1780
    %v1787 = vmul.f32 %v1607, %v1780
    %v1788 = vmul.f32 %v1611, %v1780
    %v1789 = vmul.f32 %v1615, %v1780
    %v1790 = vmul.f32 %v1619, %v1780
    %v1791 = vmul.f32 %v1623, %v1780
    %v1792 = vmul.f32 %v1627, %v1780
    %v1793 = vmul.f32 %v1631, %v1780
    %v1794 = vmul.f32 %v1635, %v1780
    %v1795 = vmul.f32 %v1639, %v1780
    %v1796 = vmul.f32 %v1643, %v1780
    %v1797 = vmul.f32 %v1647, %v1780
    %v1798 = vmul.f32 %v1651, %v1780
    %v1799 = vmul.f32 %v1655, %v1780
    %v1800 = vmul.f32 %v1659, %v1780
    %v1801 = vmul.f32 %v1663, %v1780
    %v1802 = vmul.f32 %v1667, %v1780
    %v1803 = vmul.f32 %v1671, %v1780
    %v1804 = vmul.f32 %v1675, %v1780
    %v1805 = vmul.f32 %v1679, %v1780
    %v1806 = vmul.f32 %v1683, %v1780
    %v1807 = vmul.f32 %v1687, %v1780
    %v1808 = vmul.f32 %v1691, %v1780
    %v1809 = vmul.f32 %v1695, %v1780
    %v1810 = vmul.f32 %v1699, %v1780
    %v1811 = vmul.f32 %v1703, %v1780
    %v1812 = vmul.f32 %v1707, %v1780
    %v1813 = vmul.f32 %v1711, %v1780
    %v1814 = vmul.f32 %v1715, %v1780
    %v1815 = vmul.f32 %v1719, %v1780
    %v1816 = vmul.f32 %v1723, %v1780
    %v1817 = vmul.f32 %v1727, %v1780
    %v1818 = vmul.f32 %v1731, %v1780
    %v1819 = vmul.f32 %v1735, %v1780
    %v1820 = vmul.f32 %v1739, %v1780
    %v1821 = vmul.f32 %v1743, %v1780
    %v1822 = vmul.f32 %v1747, %v1780
    %v1823 = vmul.f32 %v1751, %v1780
    %v1824 = vmul.f32 %v1755, %v1780
    %v1825 = vmul.f32 %v1759, %v1780
    %v1826 = vmul.f32 %v1763, %v1780
    %v1827 = vmul.f32 %v1767, %v1780
    %v1828 = vmul.f32 %v1771, %v1780
    %v1829 = vmul.f32 %v1775, %v1780
    %v1830 = vadd.f32 %v1532, %v1781
    %v1831 = vadd.f32 %v1533, %v1782
    %v1832 = vadd.f32 %v1534, %v1783
    %v1833 = vadd.f32 %v1535, %v1784
    %v1834 = vadd.f32 %v1536, %v1785
    %v1835 = vadd.f32 %v1537, %v1786
    %v1836 = vadd.f32 %v1538, %v1787
    %v1837 = vadd.f32 %v1539, %v1788
    %v1838 = vadd.f32 %v1540, %v1789
    %v1839 = vadd.f32 %v1541, %v1790
    %v1840 = vadd.f32 %v1542, %v1791
    %v1841 = vadd.f32 %v1543, %v1792
    %v1842 = vadd.f32 %v1544, %v1793
    %v1843 = vadd.f32 %v1545, %v1794
    %v1844 = vadd.f32 %v1546, %v1795
    %v1845 = vadd.f32 %v1547, %v1796
    %v1846 = vadd.f32 %v1548, %v1797
    %v1847 = vadd.f32 %v1549, %v1798
    %v1848 = vadd.f32 %v1550, %v1799
    %v1849 = vadd.f32 %v1551, %v1800
    %v1850 = vadd.f32 %v1552, %v1801
    %v1851 = vadd.f32 %v1553, %v1802
    %v1852 = vadd.f32 %v1554, %v1803
    %v1853 = vadd.f32 %v1555, %v1804
    %v1854 = vadd.f32 %v1556, %v1805
    %v1855 = vadd.f32 %v1557, %v1806
    %v1856 = vadd.f32 %v1558, %v1807
    %v1857 = vadd.f32 %v1559, %v1808
    %v1858 = vadd.f32 %v1560, %v1809
    %v1859 = vadd.f32 %v1561, %v1810
    %v1860 = vadd.f32 %v1562, %v1811
    %v1861 = vadd.f32 %v1563, %v1812
    %v1862 = vadd.f32 %v1564, %v1813
    %v1863 = vadd.f32 %v1565, %v1814
    %v1864 = vadd.f32 %v1566, %v1815
    %v1865 = vadd.f32 %v1567, %v1816
    %v1866 = vadd.f32 %v1568, %v1817
    %v1867 = vadd.f32 %v1569, %v1818
    %v1868 = vadd.f32 %v1570, %v1819
    %v1869 = vadd.f32 %v1571, %v1820
    %v1870 = vadd.f32 %v1572, %v1821
    %v1871 = vadd.f32 %v1573, %v1822
    %v1872 = vadd.f32 %v1574, %v1823
    %v1873 = vadd.f32 %v1575, %v1824
    %v1874 = vadd.f32 %v1576, %v1825
    %v1875 = vadd.f32 %v1577, %v1826
    %v1876 = vadd.f32 %v1578, %v1827
    %v1877 = vadd.f32 %v1579, %v1828
    %v1878 = vadd.f32 %v1580, %v1829
    %1879 = vset.pattern.permute.xlu0 6
    %1880 = vperm.xlu0 %1879, %v40
    %v1881 = vpop.permute.xlu0 %1880
    %1883 = vset.pattern.permute.xlu0 6
    %1884 = vperm.xlu0 %1883, %v41
    %v1885 = vpop.permute.xlu0 %1884
    %1887 = vset.pattern.permute.xlu0 6
    %1888 = vperm.xlu0 %1887, %v42
    %v1889 = vpop.permute.xlu0 %1888
    %1891 = vset.pattern.permute.xlu0 6
    %1892 = vperm.xlu0 %1891, %v43
    %v1893 = vpop.permute.xlu0 %1892
    %1895 = vset.pattern.permute.xlu0 6
    %1896 = vperm.xlu0 %1895, %v44
    %v1897 = vpop.permute.xlu0 %1896
    %1899 = vset.pattern.permute.xlu0 6
    %1900 = vperm.xlu0 %1899, %v45
    %v1901 = vpop.permute.xlu0 %1900
    %1903 = vset.pattern.permute.xlu0 6
    %1904 = vperm.xlu0 %1903, %v46
    %v1905 = vpop.permute.xlu0 %1904
    %1907 = vset.pattern.permute.xlu0 6
    %1908 = vperm.xlu0 %1907, %v47
    %v1909 = vpop.permute.xlu0 %1908
    %1911 = vset.pattern.permute.xlu0 6
    %1912 = vperm.xlu0 %1911, %v48
    %v1913 = vpop.permute.xlu0 %1912
    %1915 = vset.pattern.permute.xlu0 6
    %1916 = vperm.xlu0 %1915, %v49
    %v1917 = vpop.permute.xlu0 %1916
    %1919 = vset.pattern.permute.xlu0 6
    %1920 = vperm.xlu0 %1919, %v50
    %v1921 = vpop.permute.xlu0 %1920
    %1923 = vset.pattern.permute.xlu0 6
    %1924 = vperm.xlu0 %1923, %v51
    %v1925 = vpop.permute.xlu0 %1924
    %1927 = vset.pattern.permute.xlu0 6
    %1928 = vperm.xlu0 %1927, %v52
    %v1929 = vpop.permute.xlu0 %1928
    %1931 = vset.pattern.permute.xlu0 6
    %1932 = vperm.xlu0 %1931, %v53
    %v1933 = vpop.permute.xlu0 %1932
    %1935 = vset.pattern.permute.xlu0 6
    %1936 = vperm.xlu0 %1935, %v54
    %v1937 = vpop.permute.xlu0 %1936
    %1939 = vset.pattern.permute.xlu0 6
    %1940 = vperm.xlu0 %1939, %v55
    %v1941 = vpop.permute.xlu0 %1940
    %1943 = vset.pattern.permute.xlu0 6
    %1944 = vperm.xlu0 %1943, %v56
    %v1945 = vpop.permute.xlu0 %1944
    %1947 = vset.pattern.permute.xlu0 6
    %1948 = vperm.xlu0 %1947, %v57
    %v1949 = vpop.permute.xlu0 %1948
    %1951 = vset.pattern.permute.xlu0 6
    %1952 = vperm.xlu0 %1951, %v58
    %v1953 = vpop.permute.xlu0 %1952
    %1955 = vset.pattern.permute.xlu0 6
    %1956 = vperm.xlu0 %1955, %v59
    %v1957 = vpop.permute.xlu0 %1956
    %1959 = vset.pattern.permute.xlu0 6
    %1960 = vperm.xlu0 %1959, %v60
    %v1961 = vpop.permute.xlu0 %1960
    %1963 = vset.pattern.permute.xlu0 6
    %1964 = vperm.xlu0 %1963, %v61
    %v1965 = vpop.permute.xlu0 %1964
    %1967 = vset.pattern.permute.xlu0 6
    %1968 = vperm.xlu0 %1967, %v62
    %v1969 = vpop.permute.xlu0 %1968
    %1971 = vset.pattern.permute.xlu0 6
    %1972 = vperm.xlu0 %1971, %v63
    %v1973 = vpop.permute.xlu0 %1972
    %1975 = vset.pattern.permute.xlu0 6
    %1976 = vperm.xlu0 %1975, %v64
    %v1977 = vpop.permute.xlu0 %1976
    %1979 = vset.pattern.permute.xlu0 6
    %1980 = vperm.xlu0 %1979, %v65
    %v1981 = vpop.permute.xlu0 %1980
    %1983 = vset.pattern.permute.xlu0 6
    %1984 = vperm.xlu0 %1983, %v66
    %v1985 = vpop.permute.xlu0 %1984
    %1987 = vset.pattern.permute.xlu0 6
    %1988 = vperm.xlu0 %1987, %v67
    %v1989 = vpop.permute.xlu0 %1988
    %1991 = vset.pattern.permute.xlu0 6
    %1992 = vperm.xlu0 %1991, %v68
    %v1993 = vpop.permute.xlu0 %1992
    %1995 = vset.pattern.permute.xlu0 6
    %1996 = vperm.xlu0 %1995, %v69
    %v1997 = vpop.permute.xlu0 %1996
    %1999 = vset.pattern.permute.xlu0 6
    %2000 = vperm.xlu0 %1999, %v70
    %v2001 = vpop.permute.xlu0 %2000
    %2003 = vset.pattern.permute.xlu0 6
    %2004 = vperm.xlu0 %2003, %v71
    %v2005 = vpop.permute.xlu0 %2004
    %2007 = vset.pattern.permute.xlu0 6
    %2008 = vperm.xlu0 %2007, %v72
    %v2009 = vpop.permute.xlu0 %2008
    %2011 = vset.pattern.permute.xlu0 6
    %2012 = vperm.xlu0 %2011, %v73
    %v2013 = vpop.permute.xlu0 %2012
    %2015 = vset.pattern.permute.xlu0 6
    %2016 = vperm.xlu0 %2015, %v74
    %v2017 = vpop.permute.xlu0 %2016
    %2019 = vset.pattern.permute.xlu0 6
    %2020 = vperm.xlu0 %2019, %v75
    %v2021 = vpop.permute.xlu0 %2020
    %2023 = vset.pattern.permute.xlu0 6
    %2024 = vperm.xlu0 %2023, %v76
    %v2025 = vpop.permute.xlu0 %2024
    %2027 = vset.pattern.permute.xlu0 6
    %2028 = vperm.xlu0 %2027, %v77
    %v2029 = vpop.permute.xlu0 %2028
    %2031 = vset.pattern.permute.xlu0 6
    %2032 = vperm.xlu0 %2031, %v78
    %v2033 = vpop.permute.xlu0 %2032
    %2035 = vset.pattern.permute.xlu0 6
    %2036 = vperm.xlu0 %2035, %v79
    %v2037 = vpop.permute.xlu0 %2036
    %2039 = vset.pattern.permute.xlu0 6
    %2040 = vperm.xlu0 %2039, %v80
    %v2041 = vpop.permute.xlu0 %2040
    %2043 = vset.pattern.permute.xlu0 6
    %2044 = vperm.xlu0 %2043, %v81
    %v2045 = vpop.permute.xlu0 %2044
    %2047 = vset.pattern.permute.xlu0 6
    %2048 = vperm.xlu0 %2047, %v82
    %v2049 = vpop.permute.xlu0 %2048
    %2051 = vset.pattern.permute.xlu0 6
    %2052 = vperm.xlu0 %2051, %v83
    %v2053 = vpop.permute.xlu0 %2052
    %2055 = vset.pattern.permute.xlu0 6
    %2056 = vperm.xlu0 %2055, %v84
    %v2057 = vpop.permute.xlu0 %2056
    %2059 = vset.pattern.permute.xlu0 6
    %2060 = vperm.xlu0 %2059, %v85
    %v2061 = vpop.permute.xlu0 %2060
    %2063 = vset.pattern.permute.xlu0 6
    %2064 = vperm.xlu0 %2063, %v86
    %v2065 = vpop.permute.xlu0 %2064
    %2067 = vset.pattern.permute.xlu0 6
    %2068 = vperm.xlu0 %2067, %v87
    %v2069 = vpop.permute.xlu0 %2068
    %2071 = vset.pattern.permute.xlu0 6
    %2072 = vperm.xlu0 %2071, %v88
    %v2073 = vpop.permute.xlu0 %2072
    %v2075 = vlaneseq
    %v2076 = vshrl.u32 %v2075, 7
    %v2077 = vsub.s32 6, %v2076
    %v2078 = vrot.slane %v89, %v2077
    %v2079 = vmul.f32 %v1881, %v2078
    %v2080 = vmul.f32 %v1885, %v2078
    %v2081 = vmul.f32 %v1889, %v2078
    %v2082 = vmul.f32 %v1893, %v2078
    %v2083 = vmul.f32 %v1897, %v2078
    %v2084 = vmul.f32 %v1901, %v2078
    %v2085 = vmul.f32 %v1905, %v2078
    %v2086 = vmul.f32 %v1909, %v2078
    %v2087 = vmul.f32 %v1913, %v2078
    %v2088 = vmul.f32 %v1917, %v2078
    %v2089 = vmul.f32 %v1921, %v2078
    %v2090 = vmul.f32 %v1925, %v2078
    %v2091 = vmul.f32 %v1929, %v2078
    %v2092 = vmul.f32 %v1933, %v2078
    %v2093 = vmul.f32 %v1937, %v2078
    %v2094 = vmul.f32 %v1941, %v2078
    %v2095 = vmul.f32 %v1945, %v2078
    %v2096 = vmul.f32 %v1949, %v2078
    %v2097 = vmul.f32 %v1953, %v2078
    %v2098 = vmul.f32 %v1957, %v2078
    %v2099 = vmul.f32 %v1961, %v2078
    %v2100 = vmul.f32 %v1965, %v2078
    %v2101 = vmul.f32 %v1969, %v2078
    %v2102 = vmul.f32 %v1973, %v2078
    %v2103 = vmul.f32 %v1977, %v2078
    %v2104 = vmul.f32 %v1981, %v2078
    %v2105 = vmul.f32 %v1985, %v2078
    %v2106 = vmul.f32 %v1989, %v2078
    %v2107 = vmul.f32 %v1993, %v2078
    %v2108 = vmul.f32 %v1997, %v2078
    %v2109 = vmul.f32 %v2001, %v2078
    %v2110 = vmul.f32 %v2005, %v2078
    %v2111 = vmul.f32 %v2009, %v2078
    %v2112 = vmul.f32 %v2013, %v2078
    %v2113 = vmul.f32 %v2017, %v2078
    %v2114 = vmul.f32 %v2021, %v2078
    %v2115 = vmul.f32 %v2025, %v2078
    %v2116 = vmul.f32 %v2029, %v2078
    %v2117 = vmul.f32 %v2033, %v2078
    %v2118 = vmul.f32 %v2037, %v2078
    %v2119 = vmul.f32 %v2041, %v2078
    %v2120 = vmul.f32 %v2045, %v2078
    %v2121 = vmul.f32 %v2049, %v2078
    %v2122 = vmul.f32 %v2053, %v2078
    %v2123 = vmul.f32 %v2057, %v2078
    %v2124 = vmul.f32 %v2061, %v2078
    %v2125 = vmul.f32 %v2065, %v2078
    %v2126 = vmul.f32 %v2069, %v2078
    %v2127 = vmul.f32 %v2073, %v2078
    %v2128 = vadd.f32 %v1830, %v2079
    %v2129 = vadd.f32 %v1831, %v2080
    %v2130 = vadd.f32 %v1832, %v2081
    %v2131 = vadd.f32 %v1833, %v2082
    %v2132 = vadd.f32 %v1834, %v2083
    %v2133 = vadd.f32 %v1835, %v2084
    %v2134 = vadd.f32 %v1836, %v2085
    %v2135 = vadd.f32 %v1837, %v2086
    %v2136 = vadd.f32 %v1838, %v2087
    %v2137 = vadd.f32 %v1839, %v2088
    %v2138 = vadd.f32 %v1840, %v2089
    %v2139 = vadd.f32 %v1841, %v2090
    %v2140 = vadd.f32 %v1842, %v2091
    %v2141 = vadd.f32 %v1843, %v2092
    %v2142 = vadd.f32 %v1844, %v2093
    %v2143 = vadd.f32 %v1845, %v2094
    %v2144 = vadd.f32 %v1846, %v2095
    %v2145 = vadd.f32 %v1847, %v2096
    %v2146 = vadd.f32 %v1848, %v2097
    %v2147 = vadd.f32 %v1849, %v2098
    %v2148 = vadd.f32 %v1850, %v2099
    %v2149 = vadd.f32 %v1851, %v2100
    %v2150 = vadd.f32 %v1852, %v2101
    %v2151 = vadd.f32 %v1853, %v2102
    %v2152 = vadd.f32 %v1854, %v2103
    %v2153 = vadd.f32 %v1855, %v2104
    %v2154 = vadd.f32 %v1856, %v2105
    %v2155 = vadd.f32 %v1857, %v2106
    %v2156 = vadd.f32 %v1858, %v2107
    %v2157 = vadd.f32 %v1859, %v2108
    %v2158 = vadd.f32 %v1860, %v2109
    %v2159 = vadd.f32 %v1861, %v2110
    %v2160 = vadd.f32 %v1862, %v2111
    %v2161 = vadd.f32 %v1863, %v2112
    %v2162 = vadd.f32 %v1864, %v2113
    %v2163 = vadd.f32 %v1865, %v2114
    %v2164 = vadd.f32 %v1866, %v2115
    %v2165 = vadd.f32 %v1867, %v2116
    %v2166 = vadd.f32 %v1868, %v2117
    %v2167 = vadd.f32 %v1869, %v2118
    %v2168 = vadd.f32 %v1870, %v2119
    %v2169 = vadd.f32 %v1871, %v2120
    %v2170 = vadd.f32 %v1872, %v2121
    %v2171 = vadd.f32 %v1873, %v2122
    %v2172 = vadd.f32 %v1874, %v2123
    %v2173 = vadd.f32 %v1875, %v2124
    %v2174 = vadd.f32 %v1876, %v2125
    %v2175 = vadd.f32 %v1877, %v2126
    %v2176 = vadd.f32 %v1878, %v2127
    %2177 = vset.pattern.permute.xlu0 7
    %2178 = vperm.xlu0 %2177, %v40
    %v2179 = vpop.permute.xlu0 %2178
    %2181 = vset.pattern.permute.xlu0 7
    %2182 = vperm.xlu0 %2181, %v41
    %v2183 = vpop.permute.xlu0 %2182
    %2185 = vset.pattern.permute.xlu0 7
    %2186 = vperm.xlu0 %2185, %v42
    %v2187 = vpop.permute.xlu0 %2186
    %2189 = vset.pattern.permute.xlu0 7
    %2190 = vperm.xlu0 %2189, %v43
    %v2191 = vpop.permute.xlu0 %2190
    %2193 = vset.pattern.permute.xlu0 7
    %2194 = vperm.xlu0 %2193, %v44
    %v2195 = vpop.permute.xlu0 %2194
    %2197 = vset.pattern.permute.xlu0 7
    %2198 = vperm.xlu0 %2197, %v45
    %v2199 = vpop.permute.xlu0 %2198
    %2201 = vset.pattern.permute.xlu0 7
    %2202 = vperm.xlu0 %2201, %v46
    %v2203 = vpop.permute.xlu0 %2202
    %2205 = vset.pattern.permute.xlu0 7
    %2206 = vperm.xlu0 %2205, %v47
    %v2207 = vpop.permute.xlu0 %2206
    %2209 = vset.pattern.permute.xlu0 7
    %2210 = vperm.xlu0 %2209, %v48
    %v2211 = vpop.permute.xlu0 %2210
    %2213 = vset.pattern.permute.xlu0 7
    %2214 = vperm.xlu0 %2213, %v49
    %v2215 = vpop.permute.xlu0 %2214
    %2217 = vset.pattern.permute.xlu0 7
    %2218 = vperm.xlu0 %2217, %v50
    %v2219 = vpop.permute.xlu0 %2218
    %2221 = vset.pattern.permute.xlu0 7
    %2222 = vperm.xlu0 %2221, %v51
    %v2223 = vpop.permute.xlu0 %2222
    %2225 = vset.pattern.permute.xlu0 7
    %2226 = vperm.xlu0 %2225, %v52
    %v2227 = vpop.permute.xlu0 %2226
    %2229 = vset.pattern.permute.xlu0 7
    %2230 = vperm.xlu0 %2229, %v53
    %v2231 = vpop.permute.xlu0 %2230
    %2233 = vset.pattern.permute.xlu0 7
    %2234 = vperm.xlu0 %2233, %v54
    %v2235 = vpop.permute.xlu0 %2234
    %2237 = vset.pattern.permute.xlu0 7
    %2238 = vperm.xlu0 %2237, %v55
    %v2239 = vpop.permute.xlu0 %2238
    %2241 = vset.pattern.permute.xlu0 7
    %2242 = vperm.xlu0 %2241, %v56
    %v2243 = vpop.permute.xlu0 %2242
    %2245 = vset.pattern.permute.xlu0 7
    %2246 = vperm.xlu0 %2245, %v57
    %v2247 = vpop.permute.xlu0 %2246
    %2249 = vset.pattern.permute.xlu0 7
    %2250 = vperm.xlu0 %2249, %v58
    %v2251 = vpop.permute.xlu0 %2250
    %2253 = vset.pattern.permute.xlu0 7
    %2254 = vperm.xlu0 %2253, %v59
    %v2255 = vpop.permute.xlu0 %2254
    %2257 = vset.pattern.permute.xlu0 7
    %2258 = vperm.xlu0 %2257, %v60
    %v2259 = vpop.permute.xlu0 %2258
    %2261 = vset.pattern.permute.xlu0 7
    %2262 = vperm.xlu0 %2261, %v61
    %v2263 = vpop.permute.xlu0 %2262
    %2265 = vset.pattern.permute.xlu0 7
    %2266 = vperm.xlu0 %2265, %v62
    %v2267 = vpop.permute.xlu0 %2266
    %2269 = vset.pattern.permute.xlu0 7
    %2270 = vperm.xlu0 %2269, %v63
    %v2271 = vpop.permute.xlu0 %2270
    %2273 = vset.pattern.permute.xlu0 7
    %2274 = vperm.xlu0 %2273, %v64
    %v2275 = vpop.permute.xlu0 %2274
    %2277 = vset.pattern.permute.xlu0 7
    %2278 = vperm.xlu0 %2277, %v65
    %v2279 = vpop.permute.xlu0 %2278
    %2281 = vset.pattern.permute.xlu0 7
    %2282 = vperm.xlu0 %2281, %v66
    %v2283 = vpop.permute.xlu0 %2282
    %2285 = vset.pattern.permute.xlu0 7
    %2286 = vperm.xlu0 %2285, %v67
    %v2287 = vpop.permute.xlu0 %2286
    %2289 = vset.pattern.permute.xlu0 7
    %2290 = vperm.xlu0 %2289, %v68
    %v2291 = vpop.permute.xlu0 %2290
    %2293 = vset.pattern.permute.xlu0 7
    %2294 = vperm.xlu0 %2293, %v69
    %v2295 = vpop.permute.xlu0 %2294
    %2297 = vset.pattern.permute.xlu0 7
    %2298 = vperm.xlu0 %2297, %v70
    %v2299 = vpop.permute.xlu0 %2298
    %2301 = vset.pattern.permute.xlu0 7
    %2302 = vperm.xlu0 %2301, %v71
    %v2303 = vpop.permute.xlu0 %2302
    %2305 = vset.pattern.permute.xlu0 7
    %2306 = vperm.xlu0 %2305, %v72
    %v2307 = vpop.permute.xlu0 %2306
    %2309 = vset.pattern.permute.xlu0 7
    %2310 = vperm.xlu0 %2309, %v73
    %v2311 = vpop.permute.xlu0 %2310
    %2313 = vset.pattern.permute.xlu0 7
    %2314 = vperm.xlu0 %2313, %v74
    %v2315 = vpop.permute.xlu0 %2314
    %2317 = vset.pattern.permute.xlu0 7
    %2318 = vperm.xlu0 %2317, %v75
    %v2319 = vpop.permute.xlu0 %2318
    %2321 = vset.pattern.permute.xlu0 7
    %2322 = vperm.xlu0 %2321, %v76
    %v2323 = vpop.permute.xlu0 %2322
    %2325 = vset.pattern.permute.xlu0 7
    %2326 = vperm.xlu0 %2325, %v77
    %v2327 = vpop.permute.xlu0 %2326
    %2329 = vset.pattern.permute.xlu0 7
    %2330 = vperm.xlu0 %2329, %v78
    %v2331 = vpop.permute.xlu0 %2330
    %2333 = vset.pattern.permute.xlu0 7
    %2334 = vperm.xlu0 %2333, %v79
    %v2335 = vpop.permute.xlu0 %2334
    %2337 = vset.pattern.permute.xlu0 7
    %2338 = vperm.xlu0 %2337, %v80
    %v2339 = vpop.permute.xlu0 %2338
    %2341 = vset.pattern.permute.xlu0 7
    %2342 = vperm.xlu0 %2341, %v81
    %v2343 = vpop.permute.xlu0 %2342
    %2345 = vset.pattern.permute.xlu0 7
    %2346 = vperm.xlu0 %2345, %v82
    %v2347 = vpop.permute.xlu0 %2346
    %2349 = vset.pattern.permute.xlu0 7
    %2350 = vperm.xlu0 %2349, %v83
    %v2351 = vpop.permute.xlu0 %2350
    %2353 = vset.pattern.permute.xlu0 7
    %2354 = vperm.xlu0 %2353, %v84
    %v2355 = vpop.permute.xlu0 %2354
    %2357 = vset.pattern.permute.xlu0 7
    %2358 = vperm.xlu0 %2357, %v85
    %v2359 = vpop.permute.xlu0 %2358
    %2361 = vset.pattern.permute.xlu0 7
    %2362 = vperm.xlu0 %2361, %v86
    %v2363 = vpop.permute.xlu0 %2362
    %2365 = vset.pattern.permute.xlu0 7
    %2366 = vperm.xlu0 %2365, %v87
    %v2367 = vpop.permute.xlu0 %2366
    %2369 = vset.pattern.permute.xlu0 7
    %2370 = vperm.xlu0 %2369, %v88
    %v2371 = vpop.permute.xlu0 %2370
    %v2373 = vlaneseq
    %v2374 = vshrl.u32 %v2373, 7
    %v2375 = vsub.s32 7, %v2374
    %v2376 = vrot.slane %v89, %v2375
    %v2377 = vmul.f32 %v2179, %v2376
    %v2378 = vmul.f32 %v2183, %v2376
    %v2379 = vmul.f32 %v2187, %v2376
    %v2380 = vmul.f32 %v2191, %v2376
    %v2381 = vmul.f32 %v2195, %v2376
    %v2382 = vmul.f32 %v2199, %v2376
    %v2383 = vmul.f32 %v2203, %v2376
    %v2384 = vmul.f32 %v2207, %v2376
    %v2385 = vmul.f32 %v2211, %v2376
    %v2386 = vmul.f32 %v2215, %v2376
    %v2387 = vmul.f32 %v2219, %v2376
    %v2388 = vmul.f32 %v2223, %v2376
    %v2389 = vmul.f32 %v2227, %v2376
    %v2390 = vmul.f32 %v2231, %v2376
    %v2391 = vmul.f32 %v2235, %v2376
    %v2392 = vmul.f32 %v2239, %v2376
    %v2393 = vmul.f32 %v2243, %v2376
    %v2394 = vmul.f32 %v2247, %v2376
    %v2395 = vmul.f32 %v2251, %v2376
    %v2396 = vmul.f32 %v2255, %v2376
    %v2397 = vmul.f32 %v2259, %v2376
    %v2398 = vmul.f32 %v2263, %v2376
    %v2399 = vmul.f32 %v2267, %v2376
    %v2400 = vmul.f32 %v2271, %v2376
    %v2401 = vmul.f32 %v2275, %v2376
    %v2402 = vmul.f32 %v2279, %v2376
    %v2403 = vmul.f32 %v2283, %v2376
    %v2404 = vmul.f32 %v2287, %v2376
    %v2405 = vmul.f32 %v2291, %v2376
    %v2406 = vmul.f32 %v2295, %v2376
    %v2407 = vmul.f32 %v2299, %v2376
    %v2408 = vmul.f32 %v2303, %v2376
    %v2409 = vmul.f32 %v2307, %v2376
    %v2410 = vmul.f32 %v2311, %v2376
    %v2411 = vmul.f32 %v2315, %v2376
    %v2412 = vmul.f32 %v2319, %v2376
    %v2413 = vmul.f32 %v2323, %v2376
    %v2414 = vmul.f32 %v2327, %v2376
    %v2415 = vmul.f32 %v2331, %v2376
    %v2416 = vmul.f32 %v2335, %v2376
    %v2417 = vmul.f32 %v2339, %v2376
    %v2418 = vmul.f32 %v2343, %v2376
    %v2419 = vmul.f32 %v2347, %v2376
    %v2420 = vmul.f32 %v2351, %v2376
    %v2421 = vmul.f32 %v2355, %v2376
    %v2422 = vmul.f32 %v2359, %v2376
    %v2423 = vmul.f32 %v2363, %v2376
    %v2424 = vmul.f32 %v2367, %v2376
    %v2425 = vmul.f32 %v2371, %v2376
    %v2426 = vadd.f32 %v2128, %v2377
    %v2427 = vadd.f32 %v2129, %v2378
    %v2428 = vadd.f32 %v2130, %v2379
    %v2429 = vadd.f32 %v2131, %v2380
    %v2430 = vadd.f32 %v2132, %v2381
    %v2431 = vadd.f32 %v2133, %v2382
    %v2432 = vadd.f32 %v2134, %v2383
    %v2433 = vadd.f32 %v2135, %v2384
    %v2434 = vadd.f32 %v2136, %v2385
    %v2435 = vadd.f32 %v2137, %v2386
    %v2436 = vadd.f32 %v2138, %v2387
    %v2437 = vadd.f32 %v2139, %v2388
    %v2438 = vadd.f32 %v2140, %v2389
    %v2439 = vadd.f32 %v2141, %v2390
    %v2440 = vadd.f32 %v2142, %v2391
    %v2441 = vadd.f32 %v2143, %v2392
    %v2442 = vadd.f32 %v2144, %v2393
    %v2443 = vadd.f32 %v2145, %v2394
    %v2444 = vadd.f32 %v2146, %v2395
    %v2445 = vadd.f32 %v2147, %v2396
    %v2446 = vadd.f32 %v2148, %v2397
    %v2447 = vadd.f32 %v2149, %v2398
    %v2448 = vadd.f32 %v2150, %v2399
    %v2449 = vadd.f32 %v2151, %v2400
    %v2450 = vadd.f32 %v2152, %v2401
    %v2451 = vadd.f32 %v2153, %v2402
    %v2452 = vadd.f32 %v2154, %v2403
    %v2453 = vadd.f32 %v2155, %v2404
    %v2454 = vadd.f32 %v2156, %v2405
    %v2455 = vadd.f32 %v2157, %v2406
    %v2456 = vadd.f32 %v2158, %v2407
    %v2457 = vadd.f32 %v2159, %v2408
    %v2458 = vadd.f32 %v2160, %v2409
    %v2459 = vadd.f32 %v2161, %v2410
    %v2460 = vadd.f32 %v2162, %v2411
    %v2461 = vadd.f32 %v2163, %v2412
    %v2462 = vadd.f32 %v2164, %v2413
    %v2463 = vadd.f32 %v2165, %v2414
    %v2464 = vadd.f32 %v2166, %v2415
    %v2465 = vadd.f32 %v2167, %v2416
    %v2466 = vadd.f32 %v2168, %v2417
    %v2467 = vadd.f32 %v2169, %v2418
    %v2468 = vadd.f32 %v2170, %v2419
    %v2469 = vadd.f32 %v2171, %v2420
    %v2470 = vadd.f32 %v2172, %v2421
    %v2471 = vadd.f32 %v2173, %v2422
    %v2472 = vadd.f32 %v2174, %v2423
    %v2473 = vadd.f32 %v2175, %v2424
    %v2474 = vadd.f32 %v2176, %v2425
    %2475 = vset.pattern.permute.xlu0 8
    %2476 = vperm.xlu0 %2475, %v40
    %v2477 = vpop.permute.xlu0 %2476
    %2479 = vset.pattern.permute.xlu0 8
    %2480 = vperm.xlu0 %2479, %v41
    %v2481 = vpop.permute.xlu0 %2480
    %2483 = vset.pattern.permute.xlu0 8
    %2484 = vperm.xlu0 %2483, %v42
    %v2485 = vpop.permute.xlu0 %2484
    %2487 = vset.pattern.permute.xlu0 8
    %2488 = vperm.xlu0 %2487, %v43
    %v2489 = vpop.permute.xlu0 %2488
    %2491 = vset.pattern.permute.xlu0 8
    %2492 = vperm.xlu0 %2491, %v44
    %v2493 = vpop.permute.xlu0 %2492
    %2495 = vset.pattern.permute.xlu0 8
    %2496 = vperm.xlu0 %2495, %v45
    %v2497 = vpop.permute.xlu0 %2496
    %2499 = vset.pattern.permute.xlu0 8
    %2500 = vperm.xlu0 %2499, %v46
    %v2501 = vpop.permute.xlu0 %2500
    %2503 = vset.pattern.permute.xlu0 8
    %2504 = vperm.xlu0 %2503, %v47
    %v2505 = vpop.permute.xlu0 %2504
    %2507 = vset.pattern.permute.xlu0 8
    %2508 = vperm.xlu0 %2507, %v48
    %v2509 = vpop.permute.xlu0 %2508
    %2511 = vset.pattern.permute.xlu0 8
    %2512 = vperm.xlu0 %2511, %v49
    %v2513 = vpop.permute.xlu0 %2512
    %2515 = vset.pattern.permute.xlu0 8
    %2516 = vperm.xlu0 %2515, %v50
    %v2517 = vpop.permute.xlu0 %2516
    %2519 = vset.pattern.permute.xlu0 8
    %2520 = vperm.xlu0 %2519, %v51
    %v2521 = vpop.permute.xlu0 %2520
    %2523 = vset.pattern.permute.xlu0 8
    %2524 = vperm.xlu0 %2523, %v52
    %v2525 = vpop.permute.xlu0 %2524
    %2527 = vset.pattern.permute.xlu0 8
    %2528 = vperm.xlu0 %2527, %v53
    %v2529 = vpop.permute.xlu0 %2528
    %2531 = vset.pattern.permute.xlu0 8
    %2532 = vperm.xlu0 %2531, %v54
    %v2533 = vpop.permute.xlu0 %2532
    %2535 = vset.pattern.permute.xlu0 8
    %2536 = vperm.xlu0 %2535, %v55
    %v2537 = vpop.permute.xlu0 %2536
    %2539 = vset.pattern.permute.xlu0 8
    %2540 = vperm.xlu0 %2539, %v56
    %v2541 = vpop.permute.xlu0 %2540
    %2543 = vset.pattern.permute.xlu0 8
    %2544 = vperm.xlu0 %2543, %v57
    %v2545 = vpop.permute.xlu0 %2544
    %2547 = vset.pattern.permute.xlu0 8
    %2548 = vperm.xlu0 %2547, %v58
    %v2549 = vpop.permute.xlu0 %2548
    %2551 = vset.pattern.permute.xlu0 8
    %2552 = vperm.xlu0 %2551, %v59
    %v2553 = vpop.permute.xlu0 %2552
    %2555 = vset.pattern.permute.xlu0 8
    %2556 = vperm.xlu0 %2555, %v60
    %v2557 = vpop.permute.xlu0 %2556
    %2559 = vset.pattern.permute.xlu0 8
    %2560 = vperm.xlu0 %2559, %v61
    %v2561 = vpop.permute.xlu0 %2560
    %2563 = vset.pattern.permute.xlu0 8
    %2564 = vperm.xlu0 %2563, %v62
    %v2565 = vpop.permute.xlu0 %2564
    %2567 = vset.pattern.permute.xlu0 8
    %2568 = vperm.xlu0 %2567, %v63
    %v2569 = vpop.permute.xlu0 %2568
    %2571 = vset.pattern.permute.xlu0 8
    %2572 = vperm.xlu0 %2571, %v64
    %v2573 = vpop.permute.xlu0 %2572
    %2575 = vset.pattern.permute.xlu0 8
    %2576 = vperm.xlu0 %2575, %v65
    %v2577 = vpop.permute.xlu0 %2576
    %2579 = vset.pattern.permute.xlu0 8
    %2580 = vperm.xlu0 %2579, %v66
    %v2581 = vpop.permute.xlu0 %2580
    %2583 = vset.pattern.permute.xlu0 8
    %2584 = vperm.xlu0 %2583, %v67
    %v2585 = vpop.permute.xlu0 %2584
    %2587 = vset.pattern.permute.xlu0 8
    %2588 = vperm.xlu0 %2587, %v68
    %v2589 = vpop.permute.xlu0 %2588
    %2591 = vset.pattern.permute.xlu0 8
    %2592 = vperm.xlu0 %2591, %v69
    %v2593 = vpop.permute.xlu0 %2592
    %2595 = vset.pattern.permute.xlu0 8
    %2596 = vperm.xlu0 %2595, %v70
    %v2597 = vpop.permute.xlu0 %2596
    %2599 = vset.pattern.permute.xlu0 8
    %2600 = vperm.xlu0 %2599, %v71
    %v2601 = vpop.permute.xlu0 %2600
    %2603 = vset.pattern.permute.xlu0 8
    %2604 = vperm.xlu0 %2603, %v72
    %v2605 = vpop.permute.xlu0 %2604
    %2607 = vset.pattern.permute.xlu0 8
    %2608 = vperm.xlu0 %2607, %v73
    %v2609 = vpop.permute.xlu0 %2608
    %2611 = vset.pattern.permute.xlu0 8
    %2612 = vperm.xlu0 %2611, %v74
    %v2613 = vpop.permute.xlu0 %2612
    %2615 = vset.pattern.permute.xlu0 8
    %2616 = vperm.xlu0 %2615, %v75
    %v2617 = vpop.permute.xlu0 %2616
    %2619 = vset.pattern.permute.xlu0 8
    %2620 = vperm.xlu0 %2619, %v76
    %v2621 = vpop.permute.xlu0 %2620
    %2623 = vset.pattern.permute.xlu0 8
    %2624 = vperm.xlu0 %2623, %v77
    %v2625 = vpop.permute.xlu0 %2624
    %2627 = vset.pattern.permute.xlu0 8
    %2628 = vperm.xlu0 %2627, %v78
    %v2629 = vpop.permute.xlu0 %2628
    %2631 = vset.pattern.permute.xlu0 8
    %2632 = vperm.xlu0 %2631, %v79
    %v2633 = vpop.permute.xlu0 %2632
    %2635 = vset.pattern.permute.xlu0 8
    %2636 = vperm.xlu0 %2635, %v80
    %v2637 = vpop.permute.xlu0 %2636
    %2639 = vset.pattern.permute.xlu0 8
    %2640 = vperm.xlu0 %2639, %v81
    %v2641 = vpop.permute.xlu0 %2640
    %2643 = vset.pattern.permute.xlu0 8
    %2644 = vperm.xlu0 %2643, %v82
    %v2645 = vpop.permute.xlu0 %2644
    %2647 = vset.pattern.permute.xlu0 8
    %2648 = vperm.xlu0 %2647, %v83
    %v2649 = vpop.permute.xlu0 %2648
    %2651 = vset.pattern.permute.xlu0 8
    %2652 = vperm.xlu0 %2651, %v84
    %v2653 = vpop.permute.xlu0 %2652
    %2655 = vset.pattern.permute.xlu0 8
    %2656 = vperm.xlu0 %2655, %v85
    %v2657 = vpop.permute.xlu0 %2656
    %2659 = vset.pattern.permute.xlu0 8
    %2660 = vperm.xlu0 %2659, %v86
    %v2661 = vpop.permute.xlu0 %2660
    %2663 = vset.pattern.permute.xlu0 8
    %2664 = vperm.xlu0 %2663, %v87
    %v2665 = vpop.permute.xlu0 %2664
    %2667 = vset.pattern.permute.xlu0 8
    %2668 = vperm.xlu0 %2667, %v88
    %v2669 = vpop.permute.xlu0 %2668
    %v2671 = vlaneseq
    %v2672 = vshrl.u32 %v2671, 7
    %v2673 = vsub.s32 0, %v2672
    %v2674 = vrot.slane %v90, %v2673
    %v2675 = vmul.f32 %v2477, %v2674
    %v2676 = vmul.f32 %v2481, %v2674
    %v2677 = vmul.f32 %v2485, %v2674
    %v2678 = vmul.f32 %v2489, %v2674
    %v2679 = vmul.f32 %v2493, %v2674
    %v2680 = vmul.f32 %v2497, %v2674
    %v2681 = vmul.f32 %v2501, %v2674
    %v2682 = vmul.f32 %v2505, %v2674
    %v2683 = vmul.f32 %v2509, %v2674
    %v2684 = vmul.f32 %v2513, %v2674
    %v2685 = vmul.f32 %v2517, %v2674
    %v2686 = vmul.f32 %v2521, %v2674
    %v2687 = vmul.f32 %v2525, %v2674
    %v2688 = vmul.f32 %v2529, %v2674
    %v2689 = vmul.f32 %v2533, %v2674
    %v2690 = vmul.f32 %v2537, %v2674
    %v2691 = vmul.f32 %v2541, %v2674
    %v2692 = vmul.f32 %v2545, %v2674
    %v2693 = vmul.f32 %v2549, %v2674
    %v2694 = vmul.f32 %v2553, %v2674
    %v2695 = vmul.f32 %v2557, %v2674
    %v2696 = vmul.f32 %v2561, %v2674
    %v2697 = vmul.f32 %v2565, %v2674
    %v2698 = vmul.f32 %v2569, %v2674
    %v2699 = vmul.f32 %v2573, %v2674
    %v2700 = vmul.f32 %v2577, %v2674
    %v2701 = vmul.f32 %v2581, %v2674
    %v2702 = vmul.f32 %v2585, %v2674
    %v2703 = vmul.f32 %v2589, %v2674
    %v2704 = vmul.f32 %v2593, %v2674
    %v2705 = vmul.f32 %v2597, %v2674
    %v2706 = vmul.f32 %v2601, %v2674
    %v2707 = vmul.f32 %v2605, %v2674
    %v2708 = vmul.f32 %v2609, %v2674
    %v2709 = vmul.f32 %v2613, %v2674
    %v2710 = vmul.f32 %v2617, %v2674
    %v2711 = vmul.f32 %v2621, %v2674
    %v2712 = vmul.f32 %v2625, %v2674
    %v2713 = vmul.f32 %v2629, %v2674
    %v2714 = vmul.f32 %v2633, %v2674
    %v2715 = vmul.f32 %v2637, %v2674
    %v2716 = vmul.f32 %v2641, %v2674
    %v2717 = vmul.f32 %v2645, %v2674
    %v2718 = vmul.f32 %v2649, %v2674
    %v2719 = vmul.f32 %v2653, %v2674
    %v2720 = vmul.f32 %v2657, %v2674
    %v2721 = vmul.f32 %v2661, %v2674
    %v2722 = vmul.f32 %v2665, %v2674
    %v2723 = vmul.f32 %v2669, %v2674
    %v2724 = vadd.f32 %v2426, %v2675
    %v2725 = vadd.f32 %v2427, %v2676
    %v2726 = vadd.f32 %v2428, %v2677
    %v2727 = vadd.f32 %v2429, %v2678
    %v2728 = vadd.f32 %v2430, %v2679
    %v2729 = vadd.f32 %v2431, %v2680
    %v2730 = vadd.f32 %v2432, %v2681
    %v2731 = vadd.f32 %v2433, %v2682
    %v2732 = vadd.f32 %v2434, %v2683
    %v2733 = vadd.f32 %v2435, %v2684
    %v2734 = vadd.f32 %v2436, %v2685
    %v2735 = vadd.f32 %v2437, %v2686
    %v2736 = vadd.f32 %v2438, %v2687
    %v2737 = vadd.f32 %v2439, %v2688
    %v2738 = vadd.f32 %v2440, %v2689
    %v2739 = vadd.f32 %v2441, %v2690
    %v2740 = vadd.f32 %v2442, %v2691
    %v2741 = vadd.f32 %v2443, %v2692
    %v2742 = vadd.f32 %v2444, %v2693
    %v2743 = vadd.f32 %v2445, %v2694
    %v2744 = vadd.f32 %v2446, %v2695
    %v2745 = vadd.f32 %v2447, %v2696
    %v2746 = vadd.f32 %v2448, %v2697
    %v2747 = vadd.f32 %v2449, %v2698
    %v2748 = vadd.f32 %v2450, %v2699
    %v2749 = vadd.f32 %v2451, %v2700
    %v2750 = vadd.f32 %v2452, %v2701
    %v2751 = vadd.f32 %v2453, %v2702
    %v2752 = vadd.f32 %v2454, %v2703
    %v2753 = vadd.f32 %v2455, %v2704
    %v2754 = vadd.f32 %v2456, %v2705
    %v2755 = vadd.f32 %v2457, %v2706
    %v2756 = vadd.f32 %v2458, %v2707
    %v2757 = vadd.f32 %v2459, %v2708
    %v2758 = vadd.f32 %v2460, %v2709
    %v2759 = vadd.f32 %v2461, %v2710
    %v2760 = vadd.f32 %v2462, %v2711
    %v2761 = vadd.f32 %v2463, %v2712
    %v2762 = vadd.f32 %v2464, %v2713
    %v2763 = vadd.f32 %v2465, %v2714
    %v2764 = vadd.f32 %v2466, %v2715
    %v2765 = vadd.f32 %v2467, %v2716
    %v2766 = vadd.f32 %v2468, %v2717
    %v2767 = vadd.f32 %v2469, %v2718
    %v2768 = vadd.f32 %v2470, %v2719
    %v2769 = vadd.f32 %v2471, %v2720
    %v2770 = vadd.f32 %v2472, %v2721
    %v2771 = vadd.f32 %v2473, %v2722
    %v2772 = vadd.f32 %v2474, %v2723
    %v2773 = vld [vmem:[#allocation4] sm:$0x1]
    %v2775 = vlaneseq
    %v2776 = vshrl.u32 %v2775, 7
    %v2777 = vsub.s32 0, %v2776
    %v2778 = vrot.slane %v2773, %v2777
    %v2780 = vadd.f32 %v2724, %v2778
    %v2781 = vadd.f32 %v2725, %v2778
    %v2782 = vadd.f32 %v2726, %v2778
    %v2783 = vadd.f32 %v2727, %v2778
    %v2784 = vadd.f32 %v2728, %v2778
    %v2785 = vadd.f32 %v2729, %v2778
    %v2786 = vadd.f32 %v2730, %v2778
    %v2787 = vadd.f32 %v2731, %v2778
    %v2788 = vadd.f32 %v2732, %v2778
    %v2789 = vadd.f32 %v2733, %v2778
    %v2790 = vadd.f32 %v2734, %v2778
    %v2791 = vadd.f32 %v2735, %v2778
    %v2792 = vadd.f32 %v2736, %v2778
    %v2793 = vadd.f32 %v2737, %v2778
    %v2794 = vadd.f32 %v2738, %v2778
    %v2795 = vadd.f32 %v2739, %v2778
    %v2796 = vadd.f32 %v2740, %v2778
    %v2797 = vadd.f32 %v2741, %v2778
    %v2798 = vadd.f32 %v2742, %v2778
    %v2799 = vadd.f32 %v2743, %v2778
    %v2800 = vadd.f32 %v2744, %v2778
    %v2801 = vadd.f32 %v2745, %v2778
    %v2802 = vadd.f32 %v2746, %v2778
    %v2803 = vadd.f32 %v2747, %v2778
    %v2804 = vadd.f32 %v2748, %v2778
    %v2805 = vadd.f32 %v2749, %v2778
    %v2806 = vadd.f32 %v2750, %v2778
    %v2807 = vadd.f32 %v2751, %v2778
    %v2808 = vadd.f32 %v2752, %v2778
    %v2809 = vadd.f32 %v2753, %v2778
    %v2810 = vadd.f32 %v2754, %v2778
    %v2811 = vadd.f32 %v2755, %v2778
    %v2812 = vadd.f32 %v2756, %v2778
    %v2813 = vadd.f32 %v2757, %v2778
    %v2814 = vadd.f32 %v2758, %v2778
    %v2815 = vadd.f32 %v2759, %v2778
    %v2816 = vadd.f32 %v2760, %v2778
    %v2817 = vadd.f32 %v2761, %v2778
    %v2818 = vadd.f32 %v2762, %v2778
    %v2819 = vadd.f32 %v2763, %v2778
    %v2820 = vadd.f32 %v2764, %v2778
    %v2821 = vadd.f32 %v2765, %v2778
    %v2822 = vadd.f32 %v2766, %v2778
    %v2823 = vadd.f32 %v2767, %v2778
    %v2824 = vadd.f32 %v2768, %v2778
    %v2825 = vadd.f32 %v2769, %v2778
    %v2826 = vadd.f32 %v2770, %v2778
    %v2827 = vadd.f32 %v2771, %v2778
    %v2828 = vadd.f32 %v2772, %v2778
    %vm2829 = vcmp.ge.f32.partialorder %v2780, 0.0
    %vm2830 = vcmp.ge.f32.partialorder %v2781, 0.0
    %vm2831 = vcmp.ge.f32.partialorder %v2782, 0.0
    %vm2832 = vcmp.ge.f32.partialorder %v2783, 0.0
    %vm2833 = vcmp.ge.f32.partialorder %v2784, 0.0
    %vm2834 = vcmp.ge.f32.partialorder %v2785, 0.0
    %vm2835 = vcmp.ge.f32.partialorder %v2786, 0.0
    %vm2836 = vcmp.ge.f32.partialorder %v2787, 0.0
    %vm2837 = vcmp.ge.f32.partialorder %v2788, 0.0
    %vm2838 = vcmp.ge.f32.partialorder %v2789, 0.0
    %vm2839 = vcmp.ge.f32.partialorder %v2790, 0.0
    %vm2840 = vcmp.ge.f32.partialorder %v2791, 0.0
    %vm2841 = vcmp.ge.f32.partialorder %v2792, 0.0
    %vm2842 = vcmp.ge.f32.partialorder %v2793, 0.0
    %vm2843 = vcmp.ge.f32.partialorder %v2794, 0.0
    %vm2844 = vcmp.ge.f32.partialorder %v2795, 0.0
    %vm2845 = vcmp.ge.f32.partialorder %v2796, 0.0
    %vm2846 = vcmp.ge.f32.partialorder %v2797, 0.0
    %vm2847 = vcmp.ge.f32.partialorder %v2798, 0.0
    %vm2848 = vcmp.ge.f32.partialorder %v2799, 0.0
    %vm2849 = vcmp.ge.f32.partialorder %v2800, 0.0
    %vm2850 = vcmp.ge.f32.partialorder %v2801, 0.0
    %vm2851 = vcmp.ge.f32.partialorder %v2802, 0.0
    %vm2852 = vcmp.ge.f32.partialorder %v2803, 0.0
    %vm2853 = vcmp.ge.f32.partialorder %v2804, 0.0
    %vm2854 = vcmp.ge.f32.partialorder %v2805, 0.0
    %vm2855 = vcmp.ge.f32.partialorder %v2806, 0.0
    %vm2856 = vcmp.ge.f32.partialorder %v2807, 0.0
    %vm2857 = vcmp.ge.f32.partialorder %v2808, 0.0
    %vm2858 = vcmp.ge.f32.partialorder %v2809, 0.0
    %vm2859 = vcmp.ge.f32.partialorder %v2810, 0.0
    %vm2860 = vcmp.ge.f32.partialorder %v2811, 0.0
    %vm2861 = vcmp.ge.f32.partialorder %v2812, 0.0
    %vm2862 = vcmp.ge.f32.partialorder %v2813, 0.0
    %vm2863 = vcmp.ge.f32.partialorder %v2814, 0.0
    %vm2864 = vcmp.ge.f32.partialorder %v2815, 0.0
    %vm2865 = vcmp.ge.f32.partialorder %v2816, 0.0
    %vm2866 = vcmp.ge.f32.partialorder %v2817, 0.0
    %vm2867 = vcmp.ge.f32.partialorder %v2818, 0.0
    %vm2868 = vcmp.ge.f32.partialorder %v2819, 0.0
    %vm2869 = vcmp.ge.f32.partialorder %v2820, 0.0
    %vm2870 = vcmp.ge.f32.partialorder %v2821, 0.0
    %vm2871 = vcmp.ge.f32.partialorder %v2822, 0.0
    %vm2872 = vcmp.ge.f32.partialorder %v2823, 0.0
    %vm2873 = vcmp.ge.f32.partialorder %v2824, 0.0
    %vm2874 = vcmp.ge.f32.partialorder %v2825, 0.0
    %vm2875 = vcmp.ge.f32.partialorder %v2826, 0.0
    %vm2876 = vcmp.ge.f32.partialorder %v2827, 0.0
    %vm2877 = vcmp.ge.f32.partialorder %v2828, 0.0
    %v2878 = vmul.f32 %v2780, 0.01
    %v2879 = vmul.f32 %v2781, 0.01
    %v2880 = vmul.f32 %v2782, 0.01
    %v2881 = vmul.f32 %v2783, 0.01
    %v2882 = vmul.f32 %v2784, 0.01
    %v2883 = vmul.f32 %v2785, 0.01
    %v2884 = vmul.f32 %v2786, 0.01
    %v2885 = vmul.f32 %v2787, 0.01
    %v2886 = vmul.f32 %v2788, 0.01
    %v2887 = vmul.f32 %v2789, 0.01
    %v2888 = vmul.f32 %v2790, 0.01
    %v2889 = vmul.f32 %v2791, 0.01
    %v2890 = vmul.f32 %v2792, 0.01
    %v2891 = vmul.f32 %v2793, 0.01
    %v2892 = vmul.f32 %v2794, 0.01
    %v2893 = vmul.f32 %v2795, 0.01
    %v2894 = vmul.f32 %v2796, 0.01
    %v2895 = vmul.f32 %v2797, 0.01
    %v2896 = vmul.f32 %v2798, 0.01
    %v2897 = vmul.f32 %v2799, 0.01
    %v2898 = vmul.f32 %v2800, 0.01
    %v2899 = vmul.f32 %v2801, 0.01
    %v2900 = vmul.f32 %v2802, 0.01
    %v2901 = vmul.f32 %v2803, 0.01
    %v2902 = vmul.f32 %v2804, 0.01
    %v2903 = vmul.f32 %v2805, 0.01
    %v2904 = vmul.f32 %v2806, 0.01
    %v2905 = vmul.f32 %v2807, 0.01
    %v2906 = vmul.f32 %v2808, 0.01
    %v2907 = vmul.f32 %v2809, 0.01
    %v2908 = vmul.f32 %v2810, 0.01
    %v2909 = vmul.f32 %v2811, 0.01
    %v2910 = vmul.f32 %v2812, 0.01
    %v2911 = vmul.f32 %v2813, 0.01
    %v2912 = vmul.f32 %v2814, 0.01
    %v2913 = vmul.f32 %v2815, 0.01
    %v2914 = vmul.f32 %v2816, 0.01
    %v2915 = vmul.f32 %v2817, 0.01
    %v2916 = vmul.f32 %v2818, 0.01
    %v2917 = vmul.f32 %v2819, 0.01
    %v2918 = vmul.f32 %v2820, 0.01
    %v2919 = vmul.f32 %v2821, 0.01
    %v2920 = vmul.f32 %v2822, 0.01
    %v2921 = vmul.f32 %v2823, 0.01
    %v2922 = vmul.f32 %v2824, 0.01
    %v2923 = vmul.f32 %v2825, 0.01
    %v2924 = vmul.f32 %v2826, 0.01
    %v2925 = vmul.f32 %v2827, 0.01
    %v2926 = vmul.f32 %v2828, 0.01
    %v2927 = vsel %vm2829, %v2780, %v2878
    %v2928 = vsel %vm2830, %v2781, %v2879
    %v2929 = vsel %vm2831, %v2782, %v2880
    %v2930 = vsel %vm2832, %v2783, %v2881
    %v2931 = vsel %vm2833, %v2784, %v2882
    %v2932 = vsel %vm2834, %v2785, %v2883
    %v2933 = vsel %vm2835, %v2786, %v2884
    %v2934 = vsel %vm2836, %v2787, %v2885
    %v2935 = vsel %vm2837, %v2788, %v2886
    %v2936 = vsel %vm2838, %v2789, %v2887
    %v2937 = vsel %vm2839, %v2790, %v2888
    %v2938 = vsel %vm2840, %v2791, %v2889
    %v2939 = vsel %vm2841, %v2792, %v2890
    %v2940 = vsel %vm2842, %v2793, %v2891
    %v2941 = vsel %vm2843, %v2794, %v2892
    %v2942 = vsel %vm2844, %v2795, %v2893
    %v2943 = vsel %vm2845, %v2796, %v2894
    %v2944 = vsel %vm2846, %v2797, %v2895
    %v2945 = vsel %vm2847, %v2798, %v2896
    %v2946 = vsel %vm2848, %v2799, %v2897
    %v2947 = vsel %vm2849, %v2800, %v2898
    %v2948 = vsel %vm2850, %v2801, %v2899
    %v2949 = vsel %vm2851, %v2802, %v2900
    %v2950 = vsel %vm2852, %v2803, %v2901
    %v2951 = vsel %vm2853, %v2804, %v2902
    %v2952 = vsel %vm2854, %v2805, %v2903
    %v2953 = vsel %vm2855, %v2806, %v2904
    %v2954 = vsel %vm2856, %v2807, %v2905
    %v2955 = vsel %vm2857, %v2808, %v2906
    %v2956 = vsel %vm2858, %v2809, %v2907
    %v2957 = vsel %vm2859, %v2810, %v2908
    %v2958 = vsel %vm2860, %v2811, %v2909
    %v2959 = vsel %vm2861, %v2812, %v2910
    %v2960 = vsel %vm2862, %v2813, %v2911
    %v2961 = vsel %vm2863, %v2814, %v2912
    %v2962 = vsel %vm2864, %v2815, %v2913
    %v2963 = vsel %vm2865, %v2816, %v2914
    %v2964 = vsel %vm2866, %v2817, %v2915
    %v2965 = vsel %vm2867, %v2818, %v2916
    %v2966 = vsel %vm2868, %v2819, %v2917
    %v2967 = vsel %vm2869, %v2820, %v2918
    %v2968 = vsel %vm2870, %v2821, %v2919
    %v2969 = vsel %vm2871, %v2822, %v2920
    %v2970 = vsel %vm2872, %v2823, %v2921
    %v2971 = vsel %vm2873, %v2824, %v2922
    %v2972 = vsel %vm2874, %v2825, %v2923
    %v2973 = vsel %vm2875, %v2826, %v2924
    %v2974 = vsel %vm2876, %v2827, %v2925
    %v2975 = vsel %vm2877, %v2828, %v2926
    %v2976 = vpack.c.bf16 %v2928, %v2927
    %v2977 = vpack.c.bf16 %v2930, %v2929
    %v2978 = vpack.c.bf16 %v2932, %v2931
    %v2979 = vpack.c.bf16 %v2934, %v2933
    %v2980 = vpack.c.bf16 %v2936, %v2935
    %v2981 = vpack.c.bf16 %v2938, %v2937
    %v2982 = vpack.c.bf16 %v2940, %v2939
    %v2983 = vpack.c.bf16 %v2942, %v2941
    %v2984 = vpack.c.bf16 %v2944, %v2943
    %v2985 = vpack.c.bf16 %v2946, %v2945
    %v2986 = vpack.c.bf16 %v2948, %v2947
    %v2987 = vpack.c.bf16 %v2950, %v2949
    %v2988 = vpack.c.bf16 %v2952, %v2951
    %v2989 = vpack.c.bf16 %v2954, %v2953
    %v2990 = vpack.c.bf16 %v2956, %v2955
    %v2991 = vpack.c.bf16 %v2958, %v2957
    %v2992 = vpack.c.bf16 %v2960, %v2959
    %v2993 = vpack.c.bf16 %v2962, %v2961
    %v2994 = vpack.c.bf16 %v2964, %v2963
    %v2995 = vpack.c.bf16 %v2966, %v2965
    %v2996 = vpack.c.bf16 %v2968, %v2967
    %v2997 = vpack.c.bf16 %v2970, %v2969
    %v2998 = vpack.c.bf16 %v2972, %v2971
    %v2999 = vpack.c.bf16 %v2974, %v2973
    %v3000 = vpack.c.bf16 %v2975, %v2975
    %v3026 = vunpack.c.l.b16 %v2976
    %v3027 = vunpack.c.h.b16 %v2976
    %v3028 = vunpack.c.l.b16 %v2977
    %v3029 = vunpack.c.h.b16 %v2977
    %v3030 = vunpack.c.l.b16 %v2978
    %v3031 = vunpack.c.h.b16 %v2978
    %v3032 = vunpack.c.l.b16 %v2979
    %v3033 = vunpack.c.h.b16 %v2979
    %v3034 = vunpack.c.l.b16 %v2980
    %v3035 = vunpack.c.h.b16 %v2980
    %v3036 = vunpack.c.l.b16 %v2981
    %v3037 = vunpack.c.h.b16 %v2981
    %v3038 = vunpack.c.l.b16 %v2982
    %v3039 = vunpack.c.h.b16 %v2982
    %v3040 = vunpack.c.l.b16 %v2983
    %v3041 = vunpack.c.h.b16 %v2983
    %v3042 = vunpack.c.l.b16 %v2984
    %v3043 = vunpack.c.h.b16 %v2984
    %v3044 = vunpack.c.l.b16 %v2985
    %v3045 = vunpack.c.h.b16 %v2985
    %v3046 = vunpack.c.l.b16 %v2986
    %v3047 = vunpack.c.h.b16 %v2986
    %v3048 = vunpack.c.l.b16 %v2987
    %v3049 = vunpack.c.h.b16 %v2987
    %v3050 = vunpack.c.l.b16 %v2988
    %v3051 = vunpack.c.h.b16 %v2988
    %v3052 = vunpack.c.l.b16 %v2989
    %v3053 = vunpack.c.h.b16 %v2989
    %v3054 = vunpack.c.l.b16 %v2990
    %v3055 = vunpack.c.h.b16 %v2990
    %v3056 = vunpack.c.l.b16 %v2991
    %v3057 = vunpack.c.h.b16 %v2991
    %v3058 = vunpack.c.l.b16 %v2992
    %v3059 = vunpack.c.h.b16 %v2992
    %v3060 = vunpack.c.l.b16 %v2993
    %v3061 = vunpack.c.h.b16 %v2993
    %v3062 = vunpack.c.l.b16 %v2994
    %v3063 = vunpack.c.h.b16 %v2994
    %v3064 = vunpack.c.l.b16 %v2995
    %v3065 = vunpack.c.h.b16 %v2995
    %v3066 = vunpack.c.l.b16 %v2996
    %v3067 = vunpack.c.h.b16 %v2996
    %v3068 = vunpack.c.l.b16 %v2997
    %v3069 = vunpack.c.h.b16 %v2997
    %v3070 = vunpack.c.l.b16 %v2998
    %v3071 = vunpack.c.h.b16 %v2998
    %v3072 = vunpack.c.l.b16 %v2999
    %v3073 = vunpack.c.h.b16 %v2999
    %v3074 = vunpack.c.l.b16 %v3000
    %v3075 = vpack.c.b16 %v3026, %v3026
    %v3076 = vpack.c.b16 %v3027, %v3027
    %v3077 = vpack.c.b16 %v3028, %v3028
    %v3078 = vpack.c.b16 %v3029, %v3029
    %v3079 = vpack.c.b16 %v3030, %v3030
    %v3080 = vpack.c.b16 %v3031, %v3031
    %v3081 = vpack.c.b16 %v3032, %v3032
    %v3082 = vpack.c.b16 %v3033, %v3033
    %v3083 = vpack.c.b16 %v3034, %v3034
    %v3084 = vpack.c.b16 %v3035, %v3035
    %v3085 = vpack.c.b16 %v3036, %v3036
    %v3086 = vpack.c.b16 %v3037, %v3037
    %v3087 = vpack.c.b16 %v3038, %v3038
    %v3088 = vpack.c.b16 %v3039, %v3039
    %v3089 = vpack.c.b16 %v3040, %v3040
    %v3090 = vpack.c.b16 %v3041, %v3041
    %v3091 = vpack.c.b16 %v3042, %v3042
    %v3092 = vpack.c.b16 %v3043, %v3043
    %v3093 = vpack.c.b16 %v3044, %v3044
    %v3094 = vpack.c.b16 %v3045, %v3045
    %v3095 = vpack.c.b16 %v3046, %v3046
    %v3096 = vpack.c.b16 %v3047, %v3047
    %v3097 = vpack.c.b16 %v3048, %v3048
    %v3098 = vpack.c.b16 %v3049, %v3049
    %v3099 = vpack.c.b16 %v3050, %v3050
    %v3100 = vpack.c.b16 %v3051, %v3051
    %v3101 = vpack.c.b16 %v3052, %v3052
    %v3102 = vpack.c.b16 %v3053, %v3053
    %v3103 = vpack.c.b16 %v3054, %v3054
    %v3104 = vpack.c.b16 %v3055, %v3055
    %v3105 = vpack.c.b16 %v3056, %v3056
    %v3106 = vpack.c.b16 %v3057, %v3057
    %v3107 = vpack.c.b16 %v3058, %v3058
    %v3108 = vpack.c.b16 %v3059, %v3059
    %v3109 = vpack.c.b16 %v3060, %v3060
    %v3110 = vpack.c.b16 %v3061, %v3061
    %v3111 = vpack.c.b16 %v3062, %v3062
    %v3112 = vpack.c.b16 %v3063, %v3063
    %v3113 = vpack.c.b16 %v3064, %v3064
    %v3114 = vpack.c.b16 %v3065, %v3065
    %v3115 = vpack.c.b16 %v3066, %v3066
    %v3116 = vpack.c.b16 %v3067, %v3067
    %v3117 = vpack.c.b16 %v3068, %v3068
    %v3118 = vpack.c.b16 %v3069, %v3069
    %v3119 = vpack.c.b16 %v3070, %v3070
    %v3120 = vpack.c.b16 %v3071, %v3071
    %v3121 = vpack.c.b16 %v3072, %v3072
    %v3122 = vpack.c.b16 %v3073, %v3073
    %v3123 = vpack.c.b16 %v3074, %v3074
    %vm3173 = vcmask 519168
    %3174 = vst.msk [vmem:[%s3] sm:$0xf] %vm3173, %v3075
    %3175 = vst.msk [vmem:[%s3 + $0x4] sm:$0xf] %vm3173, %v3076
    %3176 = vst.msk [vmem:[%s3 + $0x8] sm:$0xf] %vm3173, %v3077
    %3177 = vst.msk [vmem:[%s3 + $0xc] sm:$0xf] %vm3173, %v3078
    %3178 = vst.msk [vmem:[%s3 + $0x10] sm:$0xf] %vm3173, %v3079
    %3179 = vst.msk [vmem:[%s3 + $0x14] sm:$0xf] %vm3173, %v3080
    %3180 = vst.msk [vmem:[%s3 + $0x18] sm:$0xf] %vm3173, %v3081
    %3181 = vst.msk [vmem:[%s3 + $0x1c] sm:$0xf] %vm3173, %v3082
    %3182 = vst.msk [vmem:[%s3 + $0x20] sm:$0xf] %vm3173, %v3083
    %3183 = vst.msk [vmem:[%s3 + $0x24] sm:$0xf] %vm3173, %v3084
    %3184 = vst.msk [vmem:[%s3 + $0x28] sm:$0xf] %vm3173, %v3085
    %3185 = vst.msk [vmem:[%s3 + $0x2c] sm:$0xf] %vm3173, %v3086
    %3186 = vst.msk [vmem:[%s3 + $0x30] sm:$0xf] %vm3173, %v3087
    %3187 = vst.msk [vmem:[%s3 + $0x34] sm:$0xf] %vm3173, %v3088
    %3188 = vst.msk [vmem:[%s3 + $0x38] sm:$0xf] %vm3173, %v3089
    %3189 = vst.msk [vmem:[%s3 + $0x3c] sm:$0xf] %vm3173, %v3090
    %3190 = vst.msk [vmem:[%s3 + $0x40] sm:$0xf] %vm3173, %v3091
    %3191 = vst.msk [vmem:[%s3 + $0x44] sm:$0xf] %vm3173, %v3092
    %3192 = vst.msk [vmem:[%s3 + $0x48] sm:$0xf] %vm3173, %v3093
    %3193 = vst.msk [vmem:[%s3 + $0x4c] sm:$0xf] %vm3173, %v3094
    %3194 = vst.msk [vmem:[%s3 + $0x50] sm:$0xf] %vm3173, %v3095
    %3195 = vst.msk [vmem:[%s3 + $0x54] sm:$0xf] %vm3173, %v3096
    %3196 = vst.msk [vmem:[%s3 + $0x58] sm:$0xf] %vm3173, %v3097
    %3197 = vst.msk [vmem:[%s3 + $0x5c] sm:$0xf] %vm3173, %v3098
    %3198 = vst.msk [vmem:[%s3 + $0x60] sm:$0xf] %vm3173, %v3099
    %3199 = vst.msk [vmem:[%s3 + $0x64] sm:$0xf] %vm3173, %v3100
    %3200 = vst.msk [vmem:[%s3 + $0x68] sm:$0xf] %vm3173, %v3101
    %3201 = vst.msk [vmem:[%s3 + $0x6c] sm:$0xf] %vm3173, %v3102
    %3202 = vst.msk [vmem:[%s3 + $0x70] sm:$0xf] %vm3173, %v3103
    %3203 = vst.msk [vmem:[%s3 + $0x74] sm:$0xf] %vm3173, %v3104
    %3204 = vst.msk [vmem:[%s3 + $0x78] sm:$0xf] %vm3173, %v3105
    %3205 = vst.msk [vmem:[%s3 + $0x7c] sm:$0xf] %vm3173, %v3106
    %3206 = vst.msk [vmem:[%s3 + $0x80] sm:$0xf] %vm3173, %v3107
    %3207 = vst.msk [vmem:[%s3 + $0x84] sm:$0xf] %vm3173, %v3108
    %3208 = vst.msk [vmem:[%s3 + $0x88] sm:$0xf] %vm3173, %v3109
    %3209 = vst.msk [vmem:[%s3 + $0x8c] sm:$0xf] %vm3173, %v3110
    %3210 = vst.msk [vmem:[%s3 + $0x90] sm:$0xf] %vm3173, %v3111
    %3211 = vst.msk [vmem:[%s3 + $0x94] sm:$0xf] %vm3173, %v3112
    %3212 = vst.msk [vmem:[%s3 + $0x98] sm:$0xf] %vm3173, %v3113
    %3213 = vst.msk [vmem:[%s3 + $0x9c] sm:$0xf] %vm3173, %v3114
    %3214 = vst.msk [vmem:[%s3 + $0xa0] sm:$0xf] %vm3173, %v3115
    %3215 = vst.msk [vmem:[%s3 + $0xa4] sm:$0xf] %vm3173, %v3116
    %3216 = vst.msk [vmem:[%s3 + $0xa8] sm:$0xf] %vm3173, %v3117
    %3217 = vst.msk [vmem:[%s3 + $0xac] sm:$0xf] %vm3173, %v3118
    %3218 = vst.msk [vmem:[%s3 + $0xb0] sm:$0xf] %vm3173, %v3119
    %3219 = vst.msk [vmem:[%s3 + $0xb4] sm:$0xf] %vm3173, %v3120
    %3220 = vst.msk [vmem:[%s3 + $0xb8] sm:$0xf] %vm3173, %v3121
    %3221 = vst.msk [vmem:[%s3 + $0xbc] sm:$0xf] %vm3173, %v3122
    %3222 = vst.msk [vmem:[%s3 + $0xc0] sm:$0xf] %vm3173, %v3123
    // Predicated region
    $region22: #{dnet_forward.4} parent=1 // pred_check
      _
    $region23: #{dnet_forward.4} parent=1 // pred_check_branch
      %3224 = sbr.rel (0) target = $region25
    $region24: #{dnet_forward.4} parent=1 // pred_region
      _
    $region25: #{dnet_forward.4} parent=1 // pred_fallthru
      _
    // Predicated region
    $region26: #{dnet_forward.4} parent=1 // pred_check
      _
    $region27: #{dnet_forward.4} parent=1 // pred_check_branch
      %3226 = sbr.rel (0) target = $region29
    $region28: #{dnet_forward.4} parent=1 // pred_region
      _
    $region29: #{dnet_forward.4} parent=1 // pred_fallthru
      _
    %3227 = vsyncpa [#allocation3], 1
    %3228 = vsyncpa [#allocation5], 1

// kernel: dnet_forward.6
$region0: #{dnet_forward.6}
  #allocation0 [shape = 'u32[]', space=smem, size = 0x4, offset = 0x4, fixed_abs, tag = 'smem constant byte address 0x4 - core index']
  #allocation1 [shape = 'u32[144,128]{1,0:T(1,128)}', space=vmem, size = 0x12000, scoped, tag = 'internal scratch']
  %s0 = inlined_call_operand.vmem [shape: bf16[32,1152], index: 0, kind: input, shape index: {}]
  %s1 = inlined_call_operand.vmem [shape: bf16[1152,256], index: 1, kind: input, shape index: {}]
  %s2 = inlined_call_operand.vmem [shape: f32[1,256], index: 2, kind: input, shape index: {}]
  %s3 = inlined_call_operand.vmem [shape: f32[1,256], index: 3, kind: input, shape index: {}]
  %s4 = inlined_call_operand.vmem [shape: f32[1,256], index: 4, kind: input, shape index: {}]
  %s5 = inlined_call_operand.vmem [shape: bf16[32,256], index: 5, kind: output, shape index: {}]
  %s6 = sld [smem:[#allocation0]]
  $region30: #{dnet_forward.6} parent=0
    _
  %s8 = ssub.s32 1, %s6
  %s9 = scalar_select 0, %s8, %s6
  // Predicated region
  $region2: #{dnet_forward.6} parent=0 // pred_check
    _
  $region3: #{dnet_forward.6} parent=0 // pred_check_branch
    %11 = sbr.rel (0) target = $region5
  $region4: #{dnet_forward.6} parent=0 // pred_region
    _
  $region5: #{dnet_forward.6} parent=0 // pred_fallthru
    _
  // Predicated region
  $region6: #{dnet_forward.6} parent=0 // pred_check
    _
  $region7: #{dnet_forward.6} parent=0 // pred_check_branch
    %13 = sbr.rel (0) target = $region9
  $region8: #{dnet_forward.6} parent=0 // pred_region
    _
  $region9: #{dnet_forward.6} parent=0 // pred_fallthru
    _
  // Predicated region
  $region10: #{dnet_forward.6} parent=0 // pred_check
    _
  $region11: #{dnet_forward.6} parent=0 // pred_check_branch
    %15 = sbr.rel (0) target = $region13
  $region12: #{dnet_forward.6} parent=0 // pred_region
    _
  $region13: #{dnet_forward.6} parent=0 // pred_fallthru
    _
  // Predicated region
  $region14: #{dnet_forward.6} parent=0 // pred_check
    _
  $region15: #{dnet_forward.6} parent=0 // pred_check_branch
    %17 = sbr.rel (0) target = $region17
  $region16: #{dnet_forward.6} parent=0 // pred_region
    _
  $region17: #{dnet_forward.6} parent=0 // pred_fallthru
    _
  // Predicated region
  $region18: #{dnet_forward.6} parent=0 // pred_check
    _
  $region19: #{dnet_forward.6} parent=0 // pred_check_branch
    %19 = sbr.rel (0) target = $region21
  $region20: #{dnet_forward.6} parent=0 // pred_region
    _
  $region21: #{dnet_forward.6} parent=0 // pred_fallthru
    _
  %v21 = vld [vmem:[%s0] sm:$0xff]
  %v22 = vld [vmem:[%s0 + $0x8] sm:$0xff]
  %v23 = vld [vmem:[%s0 + $0x10] sm:$0xff]
  %v24 = vld [vmem:[%s0 + $0x18] sm:$0xff]
  %v25 = vld [vmem:[%s0 + $0x20] sm:$0xf]
  %v26 = vld [vmem:[%s0 + $0x24] sm:$0xff]
  %v27 = vld [vmem:[%s0 + $0x2c] sm:$0xff]
  %v28 = vld [vmem:[%s0 + $0x34] sm:$0xff]
  %v29 = vld [vmem:[%s0 + $0x3c] sm:$0xff]
  %v30 = vld [vmem:[%s0 + $0x44] sm:$0xf]
  %v31 = vld [vmem:[%s0 + $0x48] sm:$0xff]
  %v32 = vld [vmem:[%s0 + $0x50] sm:$0xff]
  %v33 = vld [vmem:[%s0 + $0x58] sm:$0xff]
  %v34 = vld [vmem:[%s0 + $0x60] sm:$0xff]
  %v35 = vld [vmem:[%s0 + $0x68] sm:$0xf]
  %v36 = vld [vmem:[%s0 + $0x6c] sm:$0xff]
  %v37 = vld [vmem:[%s0 + $0x74] sm:$0xff]
  %v38 = vld [vmem:[%s0 + $0x7c] sm:$0xff]
  %v39 = vld [vmem:[%s0 + $0x84] sm:$0xff]
  %v40 = vld [vmem:[%s0 + $0x8c] sm:$0xf]
  %v41 = vld [vmem:[%s1] sm:$0xff]
  %v42 = vld [vmem:[%s1 + $0x8] sm:$0xff]
  %v43 = vld [vmem:[%s1 + $0x10] sm:$0xff]
  %v44 = vld [vmem:[%s1 + $0x18] sm:$0xff]
  %v45 = vld [vmem:[%s1 + $0x20] sm:$0xff]
  %v46 = vld [vmem:[%s1 + $0x28] sm:$0xff]
  %v47 = vld [vmem:[%s1 + $0x30] sm:$0xff]
  %v48 = vld [vmem:[%s1 + $0x38] sm:$0xff]
  %v49 = vld [vmem:[%s1 + $0x40] sm:$0xff]
  %v50 = vld [vmem:[%s1 + $0x48] sm:$0xff]
  %v51 = vld [vmem:[%s1 + $0x50] sm:$0xff]
  %v52 = vld [vmem:[%s1 + $0x58] sm:$0xff]
  %v53 = vld [vmem:[%s1 + $0x60] sm:$0xff]
  %v54 = vld [vmem:[%s1 + $0x68] sm:$0xff]
  %v55 = vld [vmem:[%s1 + $0x70] sm:$0xff]
  %v56 = vld [vmem:[%s1 + $0x78] sm:$0xff]
  %v57 = vld [vmem:[%s1 + $0x80] sm:$0xff]
  %v58 = vld [vmem:[%s1 + $0x88] sm:$0xff]
  %v59 = vld [vmem:[%s1 + $0x90] sm:$0xff]
  %v60 = vld [vmem:[%s1 + $0x98] sm:$0xff]
  %v61 = vld [vmem:[%s1 + $0xa0] sm:$0xff]
  %v62 = vld [vmem:[%s1 + $0xa8] sm:$0xff]
  %v63 = vld [vmem:[%s1 + $0xb0] sm:$0xff]
  %v64 = vld [vmem:[%s1 + $0xb8] sm:$0xff]
  %v65 = vld [vmem:[%s1 + $0xc0] sm:$0xff]
  %v66 = vld [vmem:[%s1 + $0xc8] sm:$0xff]
  %v67 = vld [vmem:[%s1 + $0xd0] sm:$0xff]
  %v68 = vld [vmem:[%s1 + $0xd8] sm:$0xff]
  %v69 = vld [vmem:[%s1 + $0xe0] sm:$0xff]
  %v70 = vld [vmem:[%s1 + $0xe8] sm:$0xff]
  %v71 = vld [vmem:[%s1 + $0xf0] sm:$0xff]
  %v72 = vld [vmem:[%s1 + $0xf8] sm:$0xff]
  %v73 = vld [vmem:[%s1 + $0x100] sm:$0xff]
  %v74 = vld [vmem:[%s1 + $0x108] sm:$0xff]
  %v75 = vld [vmem:[%s1 + $0x110] sm:$0xff]
  %v76 = vld [vmem:[%s1 + $0x118] sm:$0xff]
  %v77 = vld [vmem:[%s1 + $0x120] sm:$0xff]
  %v78 = vld [vmem:[%s1 + $0x128] sm:$0xff]
  %v79 = vld [vmem:[%s1 + $0x130] sm:$0xff]
  %v80 = vld [vmem:[%s1 + $0x138] sm:$0xff]
  %v81 = vld [vmem:[%s1 + $0x140] sm:$0xff]
  %v82 = vld [vmem:[%s1 + $0x148] sm:$0xff]
  %v83 = vld [vmem:[%s1 + $0x150] sm:$0xff]
  %v84 = vld [vmem:[%s1 + $0x158] sm:$0xff]
  %v85 = vld [vmem:[%s1 + $0x160] sm:$0xff]
  %v86 = vld [vmem:[%s1 + $0x168] sm:$0xff]
  %v87 = vld [vmem:[%s1 + $0x170] sm:$0xff]
  %v88 = vld [vmem:[%s1 + $0x178] sm:$0xff]
  %v89 = vld [vmem:[%s1 + $0x180] sm:$0xff]
  %v90 = vld [vmem:[%s1 + $0x188] sm:$0xff]
  %v91 = vld [vmem:[%s1 + $0x190] sm:$0xff]
  %v92 = vld [vmem:[%s1 + $0x198] sm:$0xff]
  %v93 = vld [vmem:[%s1 + $0x1a0] sm:$0xff]
  %v94 = vld [vmem:[%s1 + $0x1a8] sm:$0xff]
  %v95 = vld [vmem:[%s1 + $0x1b0] sm:$0xff]
  %v96 = vld [vmem:[%s1 + $0x1b8] sm:$0xff]
  %v97 = vld [vmem:[%s1 + $0x1c0] sm:$0xff]
  %v98 = vld [vmem:[%s1 + $0x1c8] sm:$0xff]
  %v99 = vld [vmem:[%s1 + $0x1d0] sm:$0xff]
  %v100 = vld [vmem:[%s1 + $0x1d8] sm:$0xff]
  %v101 = vld [vmem:[%s1 + $0x1e0] sm:$0xff]
  %v102 = vld [vmem:[%s1 + $0x1e8] sm:$0xff]
  %v103 = vld [vmem:[%s1 + $0x1f0] sm:$0xff]
  %v104 = vld [vmem:[%s1 + $0x1f8] sm:$0xff]
  %v105 = vld [vmem:[%s1 + $0x200] sm:$0xff]
  %v106 = vld [vmem:[%s1 + $0x208] sm:$0xff]
  %v107 = vld [vmem:[%s1 + $0x210] sm:$0xff]
  %v108 = vld [vmem:[%s1 + $0x218] sm:$0xff]
  %v109 = vld [vmem:[%s1 + $0x220] sm:$0xff]
  %v110 = vld [vmem:[%s1 + $0x228] sm:$0xff]
  %v111 = vld [vmem:[%s1 + $0x230] sm:$0xff]
  %v112 = vld [vmem:[%s1 + $0x238] sm:$0xff]
  %v113 = vld [vmem:[%s1 + $0x240] sm:$0xff]
  %v114 = vld [vmem:[%s1 + $0x248] sm:$0xff]
  %v115 = vld [vmem:[%s1 + $0x250] sm:$0xff]
  %v116 = vld [vmem:[%s1 + $0x258] sm:$0xff]
  %v117 = vld [vmem:[%s1 + $0x260] sm:$0xff]
  %v118 = vld [vmem:[%s1 + $0x268] sm:$0xff]
  %v119 = vld [vmem:[%s1 + $0x270] sm:$0xff]
  %v120 = vld [vmem:[%s1 + $0x278] sm:$0xff]
  %v121 = vld [vmem:[%s1 + $0x280] sm:$0xff]
  %v122 = vld [vmem:[%s1 + $0x288] sm:$0xff]
  %v123 = vld [vmem:[%s1 + $0x290] sm:$0xff]
  %v124 = vld [vmem:[%s1 + $0x298] sm:$0xff]
  %v125 = vld [vmem:[%s1 + $0x2a0] sm:$0xff]
  %v126 = vld [vmem:[%s1 + $0x2a8] sm:$0xff]
  %v127 = vld [vmem:[%s1 + $0x2b0] sm:$0xff]
  %v128 = vld [vmem:[%s1 + $0x2b8] sm:$0xff]
  %v129 = vld [vmem:[%s1 + $0x2c0] sm:$0xff]
  %v130 = vld [vmem:[%s1 + $0x2c8] sm:$0xff]
  %v131 = vld [vmem:[%s1 + $0x2d0] sm:$0xff]
  %v132 = vld [vmem:[%s1 + $0x2d8] sm:$0xff]
  %v133 = vld [vmem:[%s1 + $0x2e0] sm:$0xff]
  %v134 = vld [vmem:[%s1 + $0x2e8] sm:$0xff]
  %v135 = vld [vmem:[%s1 + $0x2f0] sm:$0xff]
  %v136 = vld [vmem:[%s1 + $0x2f8] sm:$0xff]
  %v137 = vld [vmem:[%s1 + $0x300] sm:$0xff]
  %v138 = vld [vmem:[%s1 + $0x308] sm:$0xff]
  %v139 = vld [vmem:[%s1 + $0x310] sm:$0xff]
  %v140 = vld [vmem:[%s1 + $0x318] sm:$0xff]
  %v141 = vld [vmem:[%s1 + $0x320] sm:$0xff]
  %v142 = vld [vmem:[%s1 + $0x328] sm:$0xff]
  %v143 = vld [vmem:[%s1 + $0x330] sm:$0xff]
  %v144 = vld [vmem:[%s1 + $0x338] sm:$0xff]
  %v145 = vld [vmem:[%s1 + $0x340] sm:$0xff]
  %v146 = vld [vmem:[%s1 + $0x348] sm:$0xff]
  %v147 = vld [vmem:[%s1 + $0x350] sm:$0xff]
  %v148 = vld [vmem:[%s1 + $0x358] sm:$0xff]
  %v149 = vld [vmem:[%s1 + $0x360] sm:$0xff]
  %v150 = vld [vmem:[%s1 + $0x368] sm:$0xff]
  %v151 = vld [vmem:[%s1 + $0x370] sm:$0xff]
  %v152 = vld [vmem:[%s1 + $0x378] sm:$0xff]
  %v153 = vld [vmem:[%s1 + $0x380] sm:$0xff]
  %v154 = vld [vmem:[%s1 + $0x388] sm:$0xff]
  %v155 = vld [vmem:[%s1 + $0x390] sm:$0xff]
  %v156 = vld [vmem:[%s1 + $0x398] sm:$0xff]
  %v157 = vld [vmem:[%s1 + $0x3a0] sm:$0xff]
  %v158 = vld [vmem:[%s1 + $0x3a8] sm:$0xff]
  %v159 = vld [vmem:[%s1 + $0x3b0] sm:$0xff]
  %v160 = vld [vmem:[%s1 + $0x3b8] sm:$0xff]
  %v161 = vld [vmem:[%s1 + $0x3c0] sm:$0xff]
  %v162 = vld [vmem:[%s1 + $0x3c8] sm:$0xff]
  %v163 = vld [vmem:[%s1 + $0x3d0] sm:$0xff]
  %v164 = vld [vmem:[%s1 + $0x3d8] sm:$0xff]
  %v165 = vld [vmem:[%s1 + $0x3e0] sm:$0xff]
  %v166 = vld [vmem:[%s1 + $0x3e8] sm:$0xff]
  %v167 = vld [vmem:[%s1 + $0x3f0] sm:$0xff]
  %v168 = vld [vmem:[%s1 + $0x3f8] sm:$0xff]
  %v169 = vld [vmem:[%s1 + $0x400] sm:$0xff]
  %v170 = vld [vmem:[%s1 + $0x408] sm:$0xff]
  %v171 = vld [vmem:[%s1 + $0x410] sm:$0xff]
  %v172 = vld [vmem:[%s1 + $0x418] sm:$0xff]
  %v173 = vld [vmem:[%s1 + $0x420] sm:$0xff]
  %v174 = vld [vmem:[%s1 + $0x428] sm:$0xff]
  %v175 = vld [vmem:[%s1 + $0x430] sm:$0xff]
  %v176 = vld [vmem:[%s1 + $0x438] sm:$0xff]
  %v177 = vld [vmem:[%s1 + $0x440] sm:$0xff]
  %v178 = vld [vmem:[%s1 + $0x448] sm:$0xff]
  %v179 = vld [vmem:[%s1 + $0x450] sm:$0xff]
  %v180 = vld [vmem:[%s1 + $0x458] sm:$0xff]
  %v181 = vld [vmem:[%s1 + $0x460] sm:$0xff]
  %v182 = vld [vmem:[%s1 + $0x468] sm:$0xff]
  %v183 = vld [vmem:[%s1 + $0x470] sm:$0xff]
  %v184 = vld [vmem:[%s1 + $0x478] sm:$0xff]
  %v185 = vld [vmem:[%s2] sm:$0x3]
  %v187 = vlaneseq
  %v188 = vshrl.u32 %v187, 7
  %v189 = vsub.s32 0, %v188
  %v190 = vrot.slane %v185, %v189
  %v191 = vlaneseq
  %v192 = vshrl.u32 %v191, 7
  %v193 = vsub.s32 1, %v192
  %v194 = vrot.slane %v185, %v193
  %v217 = vunpack.c.l.b16 %v21
  %v218 = vunpack.c.h.b16 %v21
  %v219 = vunpack.c.l.b16 %v22
  %v220 = vunpack.c.h.b16 %v22
  %v221 = vunpack.c.l.b16 %v23
  %v222 = vunpack.c.h.b16 %v23
  %v223 = vunpack.c.l.b16 %v24
  %v224 = vunpack.c.h.b16 %v24
  %v225 = vunpack.c.l.b16 %v25
  %v226 = vunpack.c.l.b16 %v26
  %v227 = vunpack.c.h.b16 %v26
  %v228 = vunpack.c.l.b16 %v27
  %v229 = vunpack.c.h.b16 %v27
  %v230 = vunpack.c.l.b16 %v28
  %v231 = vunpack.c.h.b16 %v28
  %v232 = vunpack.c.l.b16 %v29
  %v233 = vunpack.c.h.b16 %v29
  %v234 = vunpack.c.l.b16 %v30
  %v235 = vunpack.c.l.b16 %v31
  %v236 = vunpack.c.h.b16 %v31
  %v237 = vunpack.c.l.b16 %v32
  %v238 = vunpack.c.h.b16 %v32
  %v239 = vunpack.c.l.b16 %v33
  %v240 = vunpack.c.h.b16 %v33
  %v241 = vunpack.c.l.b16 %v34
  %v242 = vunpack.c.h.b16 %v34
  %v243 = vunpack.c.l.b16 %v35
  %v244 = vunpack.c.l.b16 %v36
  %v245 = vunpack.c.h.b16 %v36
  %v246 = vunpack.c.l.b16 %v37
  %v247 = vunpack.c.h.b16 %v37
  %v248 = vunpack.c.l.b16 %v38
  %v249 = vunpack.c.h.b16 %v38
  %v250 = vunpack.c.l.b16 %v39
  %v251 = vunpack.c.h.b16 %v39
  %v252 = vunpack.c.l.b16 %v40
  %v253 = vpack.c.b16 %v226, %v217
  %v254 = vpack.c.b16 %v227, %v218
  %v255 = vpack.c.b16 %v228, %v219
  %v256 = vpack.c.b16 %v229, %v220
  %v257 = vpack.c.b16 %v230, %v221
  %v258 = vpack.c.b16 %v231, %v222
  %v259 = vpack.c.b16 %v232, %v223
  %v260 = vpack.c.b16 %v233, %v224
  %v261 = vpack.c.b16 %v234, %v225
  %v262 = vpack.c.b16 %v244, %v235
  %v263 = vpack.c.b16 %v245, %v236
  %v264 = vpack.c.b16 %v246, %v237
  %v265 = vpack.c.b16 %v247, %v238
  %v266 = vpack.c.b16 %v248, %v239
  %v267 = vpack.c.b16 %v249, %v240
  %v268 = vpack.c.b16 %v250, %v241
  %v269 = vpack.c.b16 %v251, %v242
  %v270 = vpack.c.b16 %v252, %v243
  %v433 = vunpack.c.l.b16 %v41
  %v434 = vunpack.c.h.b16 %v41
  %v435 = vunpack.c.l.b16 %v42
  %v436 = vunpack.c.h.b16 %v42
  %v437 = vunpack.c.l.b16 %v43
  %v438 = vunpack.c.h.b16 %v43
  %v439 = vunpack.c.l.b16 %v44
  %v440 = vunpack.c.h.b16 %v44
  %v441 = vunpack.c.l.b16 %v45
  %v442 = vunpack.c.h.b16 %v45
  %v443 = vunpack.c.l.b16 %v46
  %v444 = vunpack.c.h.b16 %v46
  %v445 = vunpack.c.l.b16 %v47
  %v446 = vunpack.c.h.b16 %v47
  %v447 = vunpack.c.l.b16 %v48
  %v448 = vunpack.c.h.b16 %v48
  %v449 = vunpack.c.l.b16 %v49
  %v450 = vunpack.c.h.b16 %v49
  %v451 = vunpack.c.l.b16 %v50
  %v452 = vunpack.c.h.b16 %v50
  %v453 = vunpack.c.l.b16 %v51
  %v454 = vunpack.c.h.b16 %v51
  %v455 = vunpack.c.l.b16 %v52
  %v456 = vunpack.c.h.b16 %v52
  %v457 = vunpack.c.l.b16 %v53
  %v458 = vunpack.c.h.b16 %v53
  %v459 = vunpack.c.l.b16 %v54
  %v460 = vunpack.c.h.b16 %v54
  %v461 = vunpack.c.l.b16 %v55
  %v462 = vunpack.c.h.b16 %v55
  %v463 = vunpack.c.l.b16 %v56
  %v464 = vunpack.c.h.b16 %v56
  %v465 = vunpack.c.l.b16 %v57
  %v466 = vunpack.c.h.b16 %v57
  %v467 = vunpack.c.l.b16 %v58
  %v468 = vunpack.c.h.b16 %v58
  %v469 = vunpack.c.l.b16 %v59
  %v470 = vunpack.c.h.b16 %v59
  %v471 = vunpack.c.l.b16 %v60
  %v472 = vunpack.c.h.b16 %v60
  %v473 = vunpack.c.l.b16 %v61
  %v474 = vunpack.c.h.b16 %v61
  %v475 = vunpack.c.l.b16 %v62
  %v476 = vunpack.c.h.b16 %v62
  %v477 = vunpack.c.l.b16 %v63
  %v478 = vunpack.c.h.b16 %v63
  %v479 = vunpack.c.l.b16 %v64
  %v480 = vunpack.c.h.b16 %v64
  %v481 = vunpack.c.l.b16 %v65
  %v482 = vunpack.c.h.b16 %v65
  %v483 = vunpack.c.l.b16 %v66
  %v484 = vunpack.c.h.b16 %v66
  %v485 = vunpack.c.l.b16 %v67
  %v486 = vunpack.c.h.b16 %v67
  %v487 = vunpack.c.l.b16 %v68
  %v488 = vunpack.c.h.b16 %v68
  %v489 = vunpack.c.l.b16 %v69
  %v490 = vunpack.c.h.b16 %v69
  %v491 = vunpack.c.l.b16 %v70
  %v492 = vunpack.c.h.b16 %v70
  %v493 = vunpack.c.l.b16 %v71
  %v494 = vunpack.c.h.b16 %v71
  %v495 = vunpack.c.l.b16 %v72
  %v496 = vunpack.c.h.b16 %v72
  %v497 = vunpack.c.l.b16 %v73
  %v498 = vunpack.c.h.b16 %v73
  %v499 = vunpack.c.l.b16 %v74
  %v500 = vunpack.c.h.b16 %v74
  %v501 = vunpack.c.l.b16 %v75
  %v502 = vunpack.c.h.b16 %v75
  %v503 = vunpack.c.l.b16 %v76
  %v504 = vunpack.c.h.b16 %v76
  %v505 = vunpack.c.l.b16 %v77
  %v506 = vunpack.c.h.b16 %v77
  %v507 = vunpack.c.l.b16 %v78
  %v508 = vunpack.c.h.b16 %v78
  %v509 = vunpack.c.l.b16 %v79
  %v510 = vunpack.c.h.b16 %v79
  %v511 = vunpack.c.l.b16 %v80
  %v512 = vunpack.c.h.b16 %v80
  %v513 = vunpack.c.l.b16 %v81
  %v514 = vunpack.c.h.b16 %v81
  %v515 = vunpack.c.l.b16 %v82
  %v516 = vunpack.c.h.b16 %v82
  %v517 = vunpack.c.l.b16 %v83
  %v518 = vunpack.c.h.b16 %v83
  %v519 = vunpack.c.l.b16 %v84
  %v520 = vunpack.c.h.b16 %v84
  %v521 = vunpack.c.l.b16 %v85
  %v522 = vunpack.c.h.b16 %v85
  %v523 = vunpack.c.l.b16 %v86
  %v524 = vunpack.c.h.b16 %v86
  %v525 = vunpack.c.l.b16 %v87
  %v526 = vunpack.c.h.b16 %v87
  %v527 = vunpack.c.l.b16 %v88
  %v528 = vunpack.c.h.b16 %v88
  %v529 = vunpack.c.l.b16 %v89
  %v530 = vunpack.c.h.b16 %v89
  %v531 = vunpack.c.l.b16 %v90
  %v532 = vunpack.c.h.b16 %v90
  %v533 = vunpack.c.l.b16 %v91
  %v534 = vunpack.c.h.b16 %v91
  %v535 = vunpack.c.l.b16 %v92
  %v536 = vunpack.c.h.b16 %v92
  %v537 = vunpack.c.l.b16 %v93
  %v538 = vunpack.c.h.b16 %v93
  %v539 = vunpack.c.l.b16 %v94
  %v540 = vunpack.c.h.b16 %v94
  %v541 = vunpack.c.l.b16 %v95
  %v542 = vunpack.c.h.b16 %v95
  %v543 = vunpack.c.l.b16 %v96
  %v544 = vunpack.c.h.b16 %v96
  %v545 = vunpack.c.l.b16 %v97
  %v546 = vunpack.c.h.b16 %v97
  %v547 = vunpack.c.l.b16 %v98
  %v548 = vunpack.c.h.b16 %v98
  %v549 = vunpack.c.l.b16 %v99
  %v550 = vunpack.c.h.b16 %v99
  %v551 = vunpack.c.l.b16 %v100
  %v552 = vunpack.c.h.b16 %v100
  %v553 = vunpack.c.l.b16 %v101
  %v554 = vunpack.c.h.b16 %v101
  %v555 = vunpack.c.l.b16 %v102
  %v556 = vunpack.c.h.b16 %v102
  %v557 = vunpack.c.l.b16 %v103
  %v558 = vunpack.c.h.b16 %v103
  %v559 = vunpack.c.l.b16 %v104
  %v560 = vunpack.c.h.b16 %v104
  %v561 = vunpack.c.l.b16 %v105
  %v562 = vunpack.c.h.b16 %v105
  %v563 = vunpack.c.l.b16 %v106
  %v564 = vunpack.c.h.b16 %v106
  %v565 = vunpack.c.l.b16 %v107
  %v566 = vunpack.c.h.b16 %v107
  %v567 = vunpack.c.l.b16 %v108
  %v568 = vunpack.c.h.b16 %v108
  %v569 = vunpack.c.l.b16 %v109
  %v570 = vunpack.c.h.b16 %v109
  %v571 = vunpack.c.l.b16 %v110
  %v572 = vunpack.c.h.b16 %v110
  %v573 = vunpack.c.l.b16 %v111
  %v574 = vunpack.c.h.b16 %v111
  %v575 = vunpack.c.l.b16 %v112
  %v576 = vunpack.c.h.b16 %v112
  %v577 = vunpack.c.l.b16 %v113
  %v578 = vunpack.c.h.b16 %v113
  %v579 = vunpack.c.l.b16 %v114
  %v580 = vunpack.c.h.b16 %v114
  %v581 = vunpack.c.l.b16 %v115
  %v582 = vunpack.c.h.b16 %v115
  %v583 = vunpack.c.l.b16 %v116
  %v584 = vunpack.c.h.b16 %v116
  %v585 = vunpack.c.l.b16 %v117
  %v586 = vunpack.c.h.b16 %v117
  %v587 = vunpack.c.l.b16 %v118
  %v588 = vunpack.c.h.b16 %v118
  %v589 = vunpack.c.l.b16 %v119
  %v590 = vunpack.c.h.b16 %v119
  %v591 = vunpack.c.l.b16 %v120
  %v592 = vunpack.c.h.b16 %v120
  %v593 = vunpack.c.l.b16 %v121
  %v594 = vunpack.c.h.b16 %v121
  %v595 = vunpack.c.l.b16 %v122
  %v596 = vunpack.c.h.b16 %v122
  %v597 = vunpack.c.l.b16 %v123
  %v598 = vunpack.c.h.b16 %v123
  %v599 = vunpack.c.l.b16 %v124
  %v600 = vunpack.c.h.b16 %v124
  %v601 = vunpack.c.l.b16 %v125
  %v602 = vunpack.c.h.b16 %v125
  %v603 = vunpack.c.l.b16 %v126
  %v604 = vunpack.c.h.b16 %v126
  %v605 = vunpack.c.l.b16 %v127
  %v606 = vunpack.c.h.b16 %v127
  %v607 = vunpack.c.l.b16 %v128
  %v608 = vunpack.c.h.b16 %v128
  %v609 = vunpack.c.l.b16 %v129
  %v610 = vunpack.c.h.b16 %v129
  %v611 = vunpack.c.l.b16 %v130
  %v612 = vunpack.c.h.b16 %v130
  %v613 = vunpack.c.l.b16 %v131
  %v614 = vunpack.c.h.b16 %v131
  %v615 = vunpack.c.l.b16 %v132
  %v616 = vunpack.c.h.b16 %v132
  %v617 = vunpack.c.l.b16 %v133
  %v618 = vunpack.c.h.b16 %v133
  %v619 = vunpack.c.l.b16 %v134
  %v620 = vunpack.c.h.b16 %v134
  %v621 = vunpack.c.l.b16 %v135
  %v622 = vunpack.c.h.b16 %v135
  %v623 = vunpack.c.l.b16 %v136
  %v624 = vunpack.c.h.b16 %v136
  %v625 = vunpack.c.l.b16 %v137
  %v626 = vunpack.c.h.b16 %v137
  %v627 = vunpack.c.l.b16 %v138
  %v628 = vunpack.c.h.b16 %v138
  %v629 = vunpack.c.l.b16 %v139
  %v630 = vunpack.c.h.b16 %v139
  %v631 = vunpack.c.l.b16 %v140
  %v632 = vunpack.c.h.b16 %v140
  %v633 = vunpack.c.l.b16 %v141
  %v634 = vunpack.c.h.b16 %v141
  %v635 = vunpack.c.l.b16 %v142
  %v636 = vunpack.c.h.b16 %v142
  %v637 = vunpack.c.l.b16 %v143
  %v638 = vunpack.c.h.b16 %v143
  %v639 = vunpack.c.l.b16 %v144
  %v640 = vunpack.c.h.b16 %v144
  %v641 = vunpack.c.l.b16 %v145
  %v642 = vunpack.c.h.b16 %v145
  %v643 = vunpack.c.l.b16 %v146
  %v644 = vunpack.c.h.b16 %v146
  %v645 = vunpack.c.l.b16 %v147
  %v646 = vunpack.c.h.b16 %v147
  %v647 = vunpack.c.l.b16 %v148
  %v648 = vunpack.c.h.b16 %v148
  %v649 = vunpack.c.l.b16 %v149
  %v650 = vunpack.c.h.b16 %v149
  %v651 = vunpack.c.l.b16 %v150
  %v652 = vunpack.c.h.b16 %v150
  %v653 = vunpack.c.l.b16 %v151
  %v654 = vunpack.c.h.b16 %v151
  %v655 = vunpack.c.l.b16 %v152
  %v656 = vunpack.c.h.b16 %v152
  %v657 = vunpack.c.l.b16 %v153
  %v658 = vunpack.c.h.b16 %v153
  %v659 = vunpack.c.l.b16 %v154
  %v660 = vunpack.c.h.b16 %v154
  %v661 = vunpack.c.l.b16 %v155
  %v662 = vunpack.c.h.b16 %v155
  %v663 = vunpack.c.l.b16 %v156
  %v664 = vunpack.c.h.b16 %v156
  %v665 = vunpack.c.l.b16 %v157
  %v666 = vunpack.c.h.b16 %v157
  %v667 = vunpack.c.l.b16 %v158
  %v668 = vunpack.c.h.b16 %v158
  %v669 = vunpack.c.l.b16 %v159
  %v670 = vunpack.c.h.b16 %v159
  %v671 = vunpack.c.l.b16 %v160
  %v672 = vunpack.c.h.b16 %v160
  %v673 = vunpack.c.l.b16 %v161
  %v674 = vunpack.c.h.b16 %v161
  %v675 = vunpack.c.l.b16 %v162
  %v676 = vunpack.c.h.b16 %v162
  %v677 = vunpack.c.l.b16 %v163
  %v678 = vunpack.c.h.b16 %v163
  %v679 = vunpack.c.l.b16 %v164
  %v680 = vunpack.c.h.b16 %v164
  %v681 = vunpack.c.l.b16 %v165
  %v682 = vunpack.c.h.b16 %v165
  %v683 = vunpack.c.l.b16 %v166
  %v684 = vunpack.c.h.b16 %v166
  %v685 = vunpack.c.l.b16 %v167
  %v686 = vunpack.c.h.b16 %v167
  %v687 = vunpack.c.l.b16 %v168
  %v688 = vunpack.c.h.b16 %v168
  %v689 = vunpack.c.l.b16 %v169
  %v690 = vunpack.c.h.b16 %v169
  %v691 = vunpack.c.l.b16 %v170
  %v692 = vunpack.c.h.b16 %v170
  %v693 = vunpack.c.l.b16 %v171
  %v694 = vunpack.c.h.b16 %v171
  %v695 = vunpack.c.l.b16 %v172
  %v696 = vunpack.c.h.b16 %v172
  %v697 = vunpack.c.l.b16 %v173
  %v698 = vunpack.c.h.b16 %v173
  %v699 = vunpack.c.l.b16 %v174
  %v700 = vunpack.c.h.b16 %v174
  %v701 = vunpack.c.l.b16 %v175
  %v702 = vunpack.c.h.b16 %v175
  %v703 = vunpack.c.l.b16 %v176
  %v704 = vunpack.c.h.b16 %v176
  %v705 = vunpack.c.l.b16 %v177
  %v706 = vunpack.c.h.b16 %v177
  %v707 = vunpack.c.l.b16 %v178
  %v708 = vunpack.c.h.b16 %v178
  %v709 = vunpack.c.l.b16 %v179
  %v710 = vunpack.c.h.b16 %v179
  %v711 = vunpack.c.l.b16 %v180
  %v712 = vunpack.c.h.b16 %v180
  %v713 = vunpack.c.l.b16 %v181
  %v714 = vunpack.c.h.b16 %v181
  %v715 = vunpack.c.l.b16 %v182
  %v716 = vunpack.c.h.b16 %v182
  %v717 = vunpack.c.l.b16 %v183
  %v718 = vunpack.c.h.b16 %v183
  %v719 = vunpack.c.l.b16 %v184
  %v720 = vunpack.c.h.b16 %v184
  %v721 = vpack.c.b16 %v435, %v433
  %v722 = vpack.c.b16 %v436, %v434
  %v723 = vpack.c.b16 %v439, %v437
  %v724 = vpack.c.b16 %v440, %v438
  %v725 = vpack.c.b16 %v443, %v441
  %v726 = vpack.c.b16 %v444, %v442
  %v727 = vpack.c.b16 %v447, %v445
  %v728 = vpack.c.b16 %v448, %v446
  %v729 = vpack.c.b16 %v451, %v449
  %v730 = vpack.c.b16 %v452, %v450
  %v731 = vpack.c.b16 %v455, %v453
  %v732 = vpack.c.b16 %v456, %v454
  %v733 = vpack.c.b16 %v459, %v457
  %v734 = vpack.c.b16 %v460, %v458
  %v735 = vpack.c.b16 %v463, %v461
  %v736 = vpack.c.b16 %v464, %v462
  %v737 = vpack.c.b16 %v467, %v465
  %v738 = vpack.c.b16 %v468, %v466
  %v739 = vpack.c.b16 %v471, %v469
  %v740 = vpack.c.b16 %v472, %v470
  %v741 = vpack.c.b16 %v475, %v473
  %v742 = vpack.c.b16 %v476, %v474
  %v743 = vpack.c.b16 %v479, %v477
  %v744 = vpack.c.b16 %v480, %v478
  %v745 = vpack.c.b16 %v483, %v481
  %v746 = vpack.c.b16 %v484, %v482
  %v747 = vpack.c.b16 %v487, %v485
  %v748 = vpack.c.b16 %v488, %v486
  %v749 = vpack.c.b16 %v491, %v489
  %v750 = vpack.c.b16 %v492, %v490
  %v751 = vpack.c.b16 %v495, %v493
  %v752 = vpack.c.b16 %v496, %v494
  %v753 = vpack.c.b16 %v499, %v497
  %v754 = vpack.c.b16 %v500, %v498
  %v755 = vpack.c.b16 %v503, %v501
  %v756 = vpack.c.b16 %v504, %v502
  %v757 = vpack.c.b16 %v507, %v505
  %v758 = vpack.c.b16 %v508, %v506
  %v759 = vpack.c.b16 %v511, %v509
  %v760 = vpack.c.b16 %v512, %v510
  %v761 = vpack.c.b16 %v515, %v513
  %v762 = vpack.c.b16 %v516, %v514
  %v763 = vpack.c.b16 %v519, %v517
  %v764 = vpack.c.b16 %v520, %v518
  %v765 = vpack.c.b16 %v523, %v521
  %v766 = vpack.c.b16 %v524, %v522
  %v767 = vpack.c.b16 %v527, %v525
  %v768 = vpack.c.b16 %v528, %v526
  %v769 = vpack.c.b16 %v531, %v529
  %v770 = vpack.c.b16 %v532, %v530
  %v771 = vpack.c.b16 %v535, %v533
  %v772 = vpack.c.b16 %v536, %v534
  %v773 = vpack.c.b16 %v539, %v537
  %v774 = vpack.c.b16 %v540, %v538
  %v775 = vpack.c.b16 %v543, %v541
  %v776 = vpack.c.b16 %v544, %v542
  %v777 = vpack.c.b16 %v547, %v545
  %v778 = vpack.c.b16 %v548, %v546
  %v779 = vpack.c.b16 %v551, %v549
  %v780 = vpack.c.b16 %v552, %v550
  %v781 = vpack.c.b16 %v555, %v553
  %v782 = vpack.c.b16 %v556, %v554
  %v783 = vpack.c.b16 %v559, %v557
  %v784 = vpack.c.b16 %v560, %v558
  %v785 = vpack.c.b16 %v563, %v561
  %v786 = vpack.c.b16 %v564, %v562
  %v787 = vpack.c.b16 %v567, %v565
  %v788 = vpack.c.b16 %v568, %v566
  %v789 = vpack.c.b16 %v571, %v569
  %v790 = vpack.c.b16 %v572, %v570
  %v791 = vpack.c.b16 %v575, %v573
  %v792 = vpack.c.b16 %v576, %v574
  %v793 = vpack.c.b16 %v579, %v577
  %v794 = vpack.c.b16 %v580, %v578
  %v795 = vpack.c.b16 %v583, %v581
  %v796 = vpack.c.b16 %v584, %v582
  %v797 = vpack.c.b16 %v587, %v585
  %v798 = vpack.c.b16 %v588, %v586
  %v799 = vpack.c.b16 %v591, %v589
  %v800 = vpack.c.b16 %v592, %v590
  %v801 = vpack.c.b16 %v595, %v593
  %v802 = vpack.c.b16 %v596, %v594
  %v803 = vpack.c.b16 %v599, %v597
  %v804 = vpack.c.b16 %v600, %v598
  %v805 = vpack.c.b16 %v603, %v601
  %v806 = vpack.c.b16 %v604, %v602
  %v807 = vpack.c.b16 %v607, %v605
  %v808 = vpack.c.b16 %v608, %v606
  %v809 = vpack.c.b16 %v611, %v609
  %v810 = vpack.c.b16 %v612, %v610
  %v811 = vpack.c.b16 %v615, %v613
  %v812 = vpack.c.b16 %v616, %v614
  %v813 = vpack.c.b16 %v619, %v617
  %v814 = vpack.c.b16 %v620, %v618
  %v815 = vpack.c.b16 %v623, %v621
  %v816 = vpack.c.b16 %v624, %v622
  %v817 = vpack.c.b16 %v627, %v625
  %v818 = vpack.c.b16 %v628, %v626
  %v819 = vpack.c.b16 %v631, %v629
  %v820 = vpack.c.b16 %v632, %v630
  %v821 = vpack.c.b16 %v635, %v633
  %v822 = vpack.c.b16 %v636, %v634
  %v823 = vpack.c.b16 %v639, %v637
  %v824 = vpack.c.b16 %v640, %v638
  %v825 = vpack.c.b16 %v643, %v641
  %v826 = vpack.c.b16 %v644, %v642
  %v827 = vpack.c.b16 %v647, %v645
  %v828 = vpack.c.b16 %v648, %v646
  %v829 = vpack.c.b16 %v651, %v649
  %v830 = vpack.c.b16 %v652, %v650
  %v831 = vpack.c.b16 %v655, %v653
  %v832 = vpack.c.b16 %v656, %v654
  %v833 = vpack.c.b16 %v659, %v657
  %v834 = vpack.c.b16 %v660, %v658
  %v835 = vpack.c.b16 %v663, %v661
  %v836 = vpack.c.b16 %v664, %v662
  %v837 = vpack.c.b16 %v667, %v665
  %v838 = vpack.c.b16 %v668, %v666
  %v839 = vpack.c.b16 %v671, %v669
  %v840 = vpack.c.b16 %v672, %v670
  %v841 = vpack.c.b16 %v675, %v673
  %v842 = vpack.c.b16 %v676, %v674
  %v843 = vpack.c.b16 %v679, %v677
  %v844 = vpack.c.b16 %v680, %v678
  %v845 = vpack.c.b16 %v683, %v681
  %v846 = vpack.c.b16 %v684, %v682
  %v847 = vpack.c.b16 %v687, %v685
  %v848 = vpack.c.b16 %v688, %v686
  %v849 = vpack.c.b16 %v691, %v689
  %v850 = vpack.c.b16 %v692, %v690
  %v851 = vpack.c.b16 %v695, %v693
  %v852 = vpack.c.b16 %v696, %v694
  %v853 = vpack.c.b16 %v699, %v697
  %v854 = vpack.c.b16 %v700, %v698
  %v855 = vpack.c.b16 %v703, %v701
  %v856 = vpack.c.b16 %v704, %v702
  %v857 = vpack.c.b16 %v707, %v705
  %v858 = vpack.c.b16 %v708, %v706
  %v859 = vpack.c.b16 %v711, %v709
  %v860 = vpack.c.b16 %v712, %v710
  %v861 = vpack.c.b16 %v715, %v713
  %v862 = vpack.c.b16 %v716, %v714
  %v863 = vpack.c.b16 %v719, %v717
  %v864 = vpack.c.b16 %v720, %v718
  %1009 = vmatprep.subr.bf16.mxu0 %v722
  %1010 = vmatpush1.bf16.msra.mxu0 %v721
  %1011 = vmatprep.subr.bf16.mxu0 %v724
  %1012 = vmatpush1.bf16.msra.mxu0 %v723
  %1013 = vmatprep.subr.bf16.mxu0 %v726
  %1014 = vmatpush1.bf16.msra.mxu0 %v725
  %1015 = vmatprep.subr.bf16.mxu0 %v728
  %1016 = vmatpush1.bf16.msra.mxu0 %v727
  %1017 = vmatprep.subr.bf16.mxu0 %v730
  %1018 = vmatpush1.bf16.msra.mxu0 %v729
  %1019 = vmatprep.subr.bf16.mxu0 %v732
  %1020 = vmatpush1.bf16.msra.mxu0 %v731
  %1021 = vmatprep.subr.bf16.mxu0 %v734
  %1022 = vmatpush1.bf16.msra.mxu0 %v733
  %1023 = vmatprep.subr.bf16.mxu0 %v736
  %1024 = vmatpush1.bf16.msra.mxu0 %v735
  %1025 = vmatprep.subr.bf16.mxu0 %v738
  %1026 = vmatpush1.bf16.msra.mxu0 %v737
  %1027 = vmatprep.subr.bf16.mxu0 %v740
  %1028 = vmatpush1.bf16.msra.mxu0 %v739
  %1029 = vmatprep.subr.bf16.mxu0 %v742
  %1030 = vmatpush1.bf16.msra.mxu0 %v741
  %1031 = vmatprep.subr.bf16.mxu0 %v744
  %1032 = vmatpush1.bf16.msra.mxu0 %v743
  %1033 = vmatprep.subr.bf16.mxu0 %v746
  %1034 = vmatpush1.bf16.msra.mxu0 %v745
  %1035 = vmatprep.subr.bf16.mxu0 %v748
  %1036 = vmatpush1.bf16.msra.mxu0 %v747
  %1037 = vmatprep.subr.bf16.mxu0 %v750
  %1038 = vmatpush1.bf16.msra.mxu0 %v749
  %1039 = vmatprep.subr.bf16.mxu0 %v752
  %1040 = vmatpush1.bf16.msra.mxu0 %v751
  %1041 = vmatprep.mubr.bf16.mxu0 %v254
  %1042 = vmatmul.mubr.bf16.gmra.mrb[0].mxu0 %v253
  %v1043 = vpop.f32.mrb[0].mxu0
  %v1044 = vadd.f32 %v190, %v1043
  %v1045 = vpop.f32.mrb[0].mxu0
  %v1046 = vadd.f32 %v194, %v1045
  %v1047 = vpop.f32.mrb[0].mxu0
  %v1048 = vadd.f32 %v190, %v1047
  %v1049 = vpop.f32.mrb[0].mxu0
  %v1050 = vadd.f32 %v194, %v1049
  %1051 = vmatprep.mubr.bf16.mxu0 %v263
  %1052 = vmatmul.mubr.bf16.gmra.mrb[0].mxu0 %v262
  %v1053 = vpop.f32.mrb[0].mxu0
  %v1054 = vadd.f32 %v190, %v1053
  %v1055 = vpop.f32.mrb[0].mxu0
  %v1056 = vadd.f32 %v194, %v1055
  %v1057 = vpop.f32.mrb[0].mxu0
  %v1058 = vadd.f32 %v190, %v1057
  %v1059 = vpop.f32.mrb[0].mxu0
  %v1060 = vadd.f32 %v194, %v1059
  %1061 = vdwg.mxu0
  %1062 = vmatprep.subr.bf16.mxu0 %v754
  %1063 = vmatpush1.bf16.msra.mxu0 %v753
  %1064 = vmatprep.subr.bf16.mxu0 %v756
  %1065 = vmatpush1.bf16.msra.mxu0 %v755
  %1066 = vmatprep.subr.bf16.mxu0 %v758
  %1067 = vmatpush1.bf16.msra.mxu0 %v757
  %1068 = vmatprep.subr.bf16.mxu0 %v760
  %1069 = vmatpush1.bf16.msra.mxu0 %v759
  %1070 = vmatprep.subr.bf16.mxu0 %v762
  %1071 = vmatpush1.bf16.msra.mxu0 %v761
  %1072 = vmatprep.subr.bf16.mxu0 %v764
  %1073 = vmatpush1.bf16.msra.mxu0 %v763
  %1074 = vmatprep.subr.bf16.mxu0 %v766
  %1075 = vmatpush1.bf16.msra.mxu0 %v765
  %1076 = vmatprep.subr.bf16.mxu0 %v768
  %1077 = vmatpush1.bf16.msra.mxu0 %v767
  %1078 = vmatprep.subr.bf16.mxu0 %v770
  %1079 = vmatpush1.bf16.msra.mxu0 %v769
  %1080 = vmatprep.subr.bf16.mxu0 %v772
  %1081 = vmatpush1.bf16.msra.mxu0 %v771
  %1082 = vmatprep.subr.bf16.mxu0 %v774
  %1083 = vmatpush1.bf16.msra.mxu0 %v773
  %1084 = vmatprep.subr.bf16.mxu0 %v776
  %1085 = vmatpush1.bf16.msra.mxu0 %v775
  %1086 = vmatprep.subr.bf16.mxu0 %v778
  %1087 = vmatpush1.bf16.msra.mxu0 %v777
  %1088 = vmatprep.subr.bf16.mxu0 %v780
  %1089 = vmatpush1.bf16.msra.mxu0 %v779
  %1090 = vmatprep.subr.bf16.mxu0 %v782
  %1091 = vmatpush1.bf16.msra.mxu0 %v781
  %1092 = vmatprep.subr.bf16.mxu0 %v784
  %1093 = vmatpush1.bf16.msra.mxu0 %v783
  %1094 = vmatprep.mubr.bf16.mxu0 %v256
  %1095 = vmatmul.mubr.bf16.gmra.mrb[0].mxu0 %v255
  %v1096 = vpop.f32.mrb[0].mxu0
  %v1097 = vadd.f32 %v1044, %v1096
  %v1098 = vpop.f32.mrb[0].mxu0
  %v1099 = vadd.f32 %v1046, %v1098
  %v1100 = vpop.f32.mrb[0].mxu0
  %v1101 = vadd.f32 %v1048, %v1100
  %v1102 = vpop.f32.mrb[0].mxu0
  %v1103 = vadd.f32 %v1050, %v1102
  %1104 = vmatprep.mubr.bf16.mxu0 %v265
  %1105 = vmatmul.mubr.bf16.gmra.mrb[0].mxu0 %v264
  %v1106 = vpop.f32.mrb[0].mxu0
  %v1107 = vadd.f32 %v1054, %v1106
  %v1108 = vpop.f32.mrb[0].mxu0
  %v1109 = vadd.f32 %v1056, %v1108
  %v1110 = vpop.f32.mrb[0].mxu0
  %v1111 = vadd.f32 %v1058, %v1110
  %v1112 = vpop.f32.mrb[0].mxu0
  %v1113 = vadd.f32 %v1060, %v1112
  %1114 = vdwg.mxu0
  %1115 = vmatprep.subr.bf16.mxu0 %v786
  %1116 = vmatpush1.bf16.msra.mxu0 %v785
  %1117 = vmatprep.subr.bf16.mxu0 %v788
  %1118 = vmatpush1.bf16.msra.mxu0 %v787
  %1119 = vmatprep.subr.bf16.mxu0 %v790
  %1120 = vmatpush1.bf16.msra.mxu0 %v789
  %1121 = vmatprep.subr.bf16.mxu0 %v792
  %1122 = vmatpush1.bf16.msra.mxu0 %v791
  %1123 = vmatprep.subr.bf16.mxu0 %v794
  %1124 = vmatpush1.bf16.msra.mxu0 %v793
  %1125 = vmatprep.subr.bf16.mxu0 %v796
  %1126 = vmatpush1.bf16.msra.mxu0 %v795
  %1127 = vmatprep.subr.bf16.mxu0 %v798
  %1128 = vmatpush1.bf16.msra.mxu0 %v797
  %1129 = vmatprep.subr.bf16.mxu0 %v800
  %1130 = vmatpush1.bf16.msra.mxu0 %v799
  %1131 = vmatprep.subr.bf16.mxu0 %v802
  %1132 = vmatpush1.bf16.msra.mxu0 %v801
  %1133 = vmatprep.subr.bf16.mxu0 %v804
  %1134 = vmatpush1.bf16.msra.mxu0 %v803
  %1135 = vmatprep.subr.bf16.mxu0 %v806
  %1136 = vmatpush1.bf16.msra.mxu0 %v805
  %1137 = vmatprep.subr.bf16.mxu0 %v808
  %1138 = vmatpush1.bf16.msra.mxu0 %v807
  %1139 = vmatprep.subr.bf16.mxu0 %v810
  %1140 = vmatpush1.bf16.msra.mxu0 %v809
  %1141 = vmatprep.subr.bf16.mxu0 %v812
  %1142 = vmatpush1.bf16.msra.mxu0 %v811
  %1143 = vmatprep.subr.bf16.mxu0 %v814
  %1144 = vmatpush1.bf16.msra.mxu0 %v813
  %1145 = vmatprep.subr.bf16.mxu0 %v816
  %1146 = vmatpush1.bf16.msra.mxu0 %v815
  %1147 = vmatprep.mubr.bf16.mxu0 %v258
  %1148 = vmatmul.mubr.bf16.gmra.mrb[0].mxu0 %v257
  %v1149 = vpop.f32.mrb[0].mxu0
  %v1150 = vadd.f32 %v1097, %v1149
  %v1151 = vpop.f32.mrb[0].mxu0
  %v1152 = vadd.f32 %v1099, %v1151
  %v1153 = vpop.f32.mrb[0].mxu0
  %v1154 = vadd.f32 %v1101, %v1153
  %v1155 = vpop.f32.mrb[0].mxu0
  %v1156 = vadd.f32 %v1103, %v1155
  %1157 = vmatprep.mubr.bf16.mxu0 %v267
  %1158 = vmatmul.mubr.bf16.gmra.mrb[0].mxu0 %v266
  %v1159 = vpop.f32.mrb[0].mxu0
  %v1160 = vadd.f32 %v1107, %v1159
  %v1161 = vpop.f32.mrb[0].mxu0
  %v1162 = vadd.f32 %v1109, %v1161
  %v1163 = vpop.f32.mrb[0].mxu0
  %v1164 = vadd.f32 %v1111, %v1163
  %v1165 = vpop.f32.mrb[0].mxu0
  %v1166 = vadd.f32 %v1113, %v1165
  %1167 = vdwg.mxu0
  %1168 = vmatprep.subr.bf16.mxu0 %v818
  %1169 = vmatpush1.bf16.msra.mxu0 %v817
  %1170 = vmatprep.subr.bf16.mxu0 %v820
  %1171 = vmatpush1.bf16.msra.mxu0 %v819
  %1172 = vmatprep.subr.bf16.mxu0 %v822
  %1173 = vmatpush1.bf16.msra.mxu0 %v821
  %1174 = vmatprep.subr.bf16.mxu0 %v824
  %1175 = vmatpush1.bf16.msra.mxu0 %v823
  %1176 = vmatprep.subr.bf16.mxu0 %v826
  %1177 = vmatpush1.bf16.msra.mxu0 %v825
  %1178 = vmatprep.subr.bf16.mxu0 %v828
  %1179 = vmatpush1.bf16.msra.mxu0 %v827
  %1180 = vmatprep.subr.bf16.mxu0 %v830
  %1181 = vmatpush1.bf16.msra.mxu0 %v829
  %1182 = vmatprep.subr.bf16.mxu0 %v832
  %1183 = vmatpush1.bf16.msra.mxu0 %v831
  %1184 = vmatprep.subr.bf16.mxu0 %v834
  %1185 = vmatpush1.bf16.msra.mxu0 %v833
  %1186 = vmatprep.subr.bf16.mxu0 %v836
  %1187 = vmatpush1.bf16.msra.mxu0 %v835
  %1188 = vmatprep.subr.bf16.mxu0 %v838
  %1189 = vmatpush1.bf16.msra.mxu0 %v837
  %1190 = vmatprep.subr.bf16.mxu0 %v840
  %1191 = vmatpush1.bf16.msra.mxu0 %v839
  %1192 = vmatprep.subr.bf16.mxu0 %v842
  %1193 = vmatpush1.bf16.msra.mxu0 %v841
  %1194 = vmatprep.subr.bf16.mxu0 %v844
  %1195 = vmatpush1.bf16.msra.mxu0 %v843
  %1196 = vmatprep.subr.bf16.mxu0 %v846
  %1197 = vmatpush1.bf16.msra.mxu0 %v845
  %1198 = vmatprep.subr.bf16.mxu0 %v848
  %1199 = vmatpush1.bf16.msra.mxu0 %v847
  %1200 = vmatprep.mubr.bf16.mxu0 %v260
  %1201 = vmatmul.mubr.bf16.gmra.mrb[0].mxu0 %v259
  %v1202 = vpop.f32.mrb[0].mxu0
  %v1203 = vadd.f32 %v1150, %v1202
  %v1204 = vpop.f32.mrb[0].mxu0
  %v1205 = vadd.f32 %v1152, %v1204
  %v1206 = vpop.f32.mrb[0].mxu0
  %v1207 = vadd.f32 %v1154, %v1206
  %v1208 = vpop.f32.mrb[0].mxu0
  %v1209 = vadd.f32 %v1156, %v1208
  %1210 = vmatprep.mubr.bf16.mxu0 %v269
  %1211 = vmatmul.mubr.bf16.gmra.mrb[0].mxu0 %v268
  %v1212 = vpop.f32.mrb[0].mxu0
  %v1213 = vadd.f32 %v1160, %v1212
  %v1214 = vpop.f32.mrb[0].mxu0
  %v1215 = vadd.f32 %v1162, %v1214
  %v1216 = vpop.f32.mrb[0].mxu0
  %v1217 = vadd.f32 %v1164, %v1216
  %v1218 = vpop.f32.mrb[0].mxu0
  %v1219 = vadd.f32 %v1166, %v1218
  %1220 = vdwg.mxu0
  %1221 = vmatprep.subr.bf16.mxu0 %v850
  %1222 = vmatpush1.bf16.msra.mxu0 %v849
  %1223 = vmatprep.subr.bf16.mxu0 %v852
  %1224 = vmatpush1.bf16.msra.mxu0 %v851
  %1225 = vmatprep.subr.bf16.mxu0 %v854
  %1226 = vmatpush1.bf16.msra.mxu0 %v853
  %1227 = vmatprep.subr.bf16.mxu0 %v856
  %1228 = vmatpush1.bf16.msra.mxu0 %v855
  %1229 = vmatprep.subr.bf16.mxu0 %v858
  %1230 = vmatpush1.bf16.msra.mxu0 %v857
  %1231 = vmatprep.subr.bf16.mxu0 %v860
  %1232 = vmatpush1.bf16.msra.mxu0 %v859
  %1233 = vmatprep.subr.bf16.mxu0 %v862
  %1234 = vmatpush1.bf16.msra.mxu0 %v861
  %1235 = vmatprep.subr.bf16.mxu0 %v864
  %1236 = vmatpush1.bf16.msra.mxu0 %v863
  %1237 = vmatprep.subr.bf16.mxu0 0
  %1238 = vmatpush1.bf16.msra.mxu0 0
  %1239 = vmatprep.subr.bf16.mxu0 0
  %1240 = vmatpush1.bf16.msra.mxu0 0
  %1241 = vmatprep.subr.bf16.mxu0 0
  %1242 = vmatpush1.bf16.msra.mxu0 0
  %1243 = vmatprep.subr.bf16.mxu0 0
  %1244 = vmatpush1.bf16.msra.mxu0 0
  %1245 = vmatprep.subr.bf16.mxu0 0
  %1246 = vmatpush1.bf16.msra.mxu0 0
  %1247 = vmatprep.subr.bf16.mxu0 0
  %1248 = vmatpush1.bf16.msra.mxu0 0
  %1249 = vmatprep.subr.bf16.mxu0 0
  %1250 = vmatpush1.bf16.msra.mxu0 0
  %1251 = vmatprep.subr.bf16.mxu0 0
  %1252 = vmatpush1.bf16.msra.mxu0 0
  %1253 = vmatprep.mubr.bf16.mxu0 0
  %1254 = vmatmul.mubr.bf16.gmra.mrb[0].mxu0 %v261
  %v1255 = vpop.f32.mrb[0].mxu0
  %v1256 = vadd.f32 %v1203, %v1255
  %v1257 = vpop.f32.mrb[0].mxu0
  %v1258 = vadd.f32 %v1205, %v1257
  %v1259 = vpop.f32.mrb[0].mxu0
  %v1260 = vadd.f32 %v1207, %v1259
  %v1261 = vpop.f32.mrb[0].mxu0
  %v1262 = vadd.f32 %v1209, %v1261
  %1263 = vmatprep.mubr.bf16.mxu0 0
  %1264 = vmatmul.mubr.bf16.gmra.mrb[0].mxu0 %v270
  %v1265 = vpop.f32.mrb[0].mxu0
  %v1266 = vadd.f32 %v1213, %v1265
  %v1267 = vpop.f32.mrb[0].mxu0
  %v1268 = vadd.f32 %v1215, %v1267
  %v1269 = vpop.f32.mrb[0].mxu0
  %v1270 = vadd.f32 %v1217, %v1269
  %v1271 = vpop.f32.mrb[0].mxu0
  %v1272 = vadd.f32 %v1219, %v1271
  %1273 = vdwg.mxu0
  %v1274 = vadd.f32 %v1256, %v1260
  %v1275 = vadd.f32 %v1274, %v1266
  %v1276 = vadd.f32 %v1275, %v1270
  %v1277 = vrot.slane %v1276, 4
  %v1278 = vadd.f32 %v1276, %v1277
  %v1279 = vrot.slane %v1278, 2
  %v1280 = vadd.f32 %v1278, %v1279
  %v1281 = vrot.slane %v1280, 1
  %v1282 = vadd.f32 %v1280, %v1281
  %v1283 = vadd.f32 %v1258, %v1262
  %v1284 = vadd.f32 %v1283, %v1268
  %v1285 = vadd.f32 %v1284, %v1272
  %v1286 = vrot.slane %v1285, 4
  %v1287 = vadd.f32 %v1285, %v1286
  %v1288 = vrot.slane %v1287, 2
  %v1289 = vadd.f32 %v1287, %v1288
  %v1290 = vrot.slane %v1289, 1
  %v1291 = vadd.f32 %v1289, %v1290
  %v1292 = vmul.f32 %v1282, 0.03125
  %v1293 = vmul.f32 %v1291, 0.03125
  %v1294 = vmul.f32 %v1256, %v1256
  %v1295 = vmul.f32 %v1258, %v1258
  %v1296 = vmul.f32 %v1260, %v1260
  %v1297 = vmul.f32 %v1262, %v1262
  %v1298 = vmul.f32 %v1266, %v1266
  %v1299 = vmul.f32 %v1268, %v1268
  %v1300 = vmul.f32 %v1270, %v1270
  %v1301 = vmul.f32 %v1272, %v1272
  %v1302 = vadd.f32 %v1294, %v1296
  %v1303 = vadd.f32 %v1302, %v1298
  %v1304 = vadd.f32 %v1303, %v1300
  %v1305 = vrot.slane %v1304, 4
  %v1306 = vadd.f32 %v1304, %v1305
  %v1307 = vrot.slane %v1306, 2
  %v1308 = vadd.f32 %v1306, %v1307
  %v1309 = vrot.slane %v1308, 1
  %v1310 = vadd.f32 %v1308, %v1309
  %v1311 = vadd.f32 %v1295, %v1297
  %v1312 = vadd.f32 %v1311, %v1299
  %v1313 = vadd.f32 %v1312, %v1301
  %v1314 = vrot.slane %v1313, 4
  %v1315 = vadd.f32 %v1313, %v1314
  %v1316 = vrot.slane %v1315, 2
  %v1317 = vadd.f32 %v1315, %v1316
  %v1318 = vrot.slane %v1317, 1
  %v1319 = vadd.f32 %v1317, %v1318
  %v1320 = vmul.f32 %v1310, 0.03125
  %v1321 = vmul.f32 %v1319, 0.03125
  %v1322 = vmul.f32 %v1292, %v1292
  %v1323 = vmul.f32 %v1293, %v1293
  %v1324 = vsub.f32 %v1320, %v1322
  %v1325 = vsub.f32 %v1321, %v1323
  %v1326 = vld [vmem:[%s3] sm:$0x3]
  %v1327 = vadd.f32 %v1324, 1e-05
  %v1328 = vadd.f32 %v1325, 1e-05
  %v1329 = vrsqrt.pop %v1327
  %v1330 = vrsqrt.pop %v1328
  %v1333 = vcombine.low %v1329, %v1330
  %v1335 = vunpack.c.l.s4 1966171168
  %v1336 = vunpack.c.0.s8 %v1335
  %v1337 = vlaneseq
  %v1338 = vshrl.u32 %v1337, 7
  %v1339 = vsub.s32 %v1336, %v1338
  %v1340 = vrot.slane %v1333, %v1339
  %v1342 = vunpack.c.l.s4 1966171168
  %v1343 = vunpack.c.0.s8 %v1342
  %v1344 = vlaneseq
  %v1345 = vshrl.u32 %v1344, 7
  %v1346 = vsub.s32 %v1343, %v1345
  %v1347 = vrot.slane %v1340, %v1346
  %v1349 = vmul.f32 %v1326, %v1347
  %v1350 = vld [vmem:[%s4] sm:$0x3]
  %v1352 = vlaneseq
  %v1353 = vshrl.u32 %v1352, 7
  %v1354 = vsub.s32 0, %v1353
  %v1355 = vrot.slane %v1349, %v1354
  %v1356 = vlaneseq
  %v1357 = vshrl.u32 %v1356, 7
  %v1358 = vsub.s32 1, %v1357
  %v1359 = vrot.slane %v1349, %v1358
  %v1362 = vmul.f32 %v1292, %v1355
  %v1363 = vmul.f32 %v1293, %v1359
  %v1366 = vcombine.low %v1362, %v1363
  %v1368 = vunpack.c.l.s4 1966171168
  %v1369 = vunpack.c.0.s8 %v1368
  %v1370 = vlaneseq
  %v1371 = vshrl.u32 %v1370, 7
  %v1372 = vsub.s32 %v1369, %v1371
  %v1373 = vrot.slane %v1366, %v1372
  %v1375 = vunpack.c.l.s4 1966171168
  %v1376 = vunpack.c.0.s8 %v1375
  %v1377 = vlaneseq
  %v1378 = vshrl.u32 %v1377, 7
  %v1379 = vsub.s32 %v1376, %v1378
  %v1380 = vrot.slane %v1373, %v1379
  %v1382 = vsub.f32 %v1350, %v1380
  %v1383 = vmul.f32 %v1256, %v1355
  %v1384 = vmul.f32 %v1258, %v1359
  %v1385 = vmul.f32 %v1260, %v1355
  %v1386 = vmul.f32 %v1262, %v1359
  %v1387 = vmul.f32 %v1266, %v1355
  %v1388 = vmul.f32 %v1268, %v1359
  %v1389 = vmul.f32 %v1270, %v1355
  %v1390 = vmul.f32 %v1272, %v1359
  %v1392 = vlaneseq
  %v1393 = vshrl.u32 %v1392, 7
  %v1394 = vsub.s32 0, %v1393
  %v1395 = vrot.slane %v1382, %v1394
  %v1396 = vlaneseq
  %v1397 = vshrl.u32 %v1396, 7
  %v1398 = vsub.s32 1, %v1397
  %v1399 = vrot.slane %v1382, %v1398
  %v1402 = vadd.f32 %v1383, %v1395
  %v1403 = vadd.f32 %v1384, %v1399
  %v1404 = vadd.f32 %v1385, %v1395
  %v1405 = vadd.f32 %v1386, %v1399
  %v1406 = vadd.f32 %v1387, %v1395
  %v1407 = vadd.f32 %v1388, %v1399
  %v1408 = vadd.f32 %v1389, %v1395
  %v1409 = vadd.f32 %v1390, %v1399
  %vm1410 = vcmp.ge.f32.partialorder %v1402, 0.0
  %vm1411 = vcmp.ge.f32.partialorder %v1403, 0.0
  %vm1412 = vcmp.ge.f32.partialorder %v1404, 0.0
  %vm1413 = vcmp.ge.f32.partialorder %v1405, 0.0
  %vm1414 = vcmp.ge.f32.partialorder %v1406, 0.0
  %vm1415 = vcmp.ge.f32.partialorder %v1407, 0.0
  %vm1416 = vcmp.ge.f32.partialorder %v1408, 0.0
  %vm1417 = vcmp.ge.f32.partialorder %v1409, 0.0
  %v1418 = vmul.f32 %v1402, 0.01
  %v1419 = vmul.f32 %v1403, 0.01
  %v1420 = vmul.f32 %v1404, 0.01
  %v1421 = vmul.f32 %v1405, 0.01
  %v1422 = vmul.f32 %v1406, 0.01
  %v1423 = vmul.f32 %v1407, 0.01
  %v1424 = vmul.f32 %v1408, 0.01
  %v1425 = vmul.f32 %v1409, 0.01
  %v1426 = vsel %vm1410, %v1402, %v1418
  %v1427 = vsel %vm1411, %v1403, %v1419
  %v1428 = vsel %vm1412, %v1404, %v1420
  %v1429 = vsel %vm1413, %v1405, %v1421
  %v1430 = vsel %vm1414, %v1406, %v1422
  %v1431 = vsel %vm1415, %v1407, %v1423
  %v1432 = vsel %vm1416, %v1408, %v1424
  %v1433 = vsel %vm1417, %v1409, %v1425
  %v1434 = vpack.c.bf16 %v1428, %v1426
  %v1435 = vpack.c.bf16 %v1429, %v1427
  %v1436 = vpack.c.bf16 %v1432, %v1430
  %v1437 = vpack.c.bf16 %v1433, %v1431
  %v1442 = vunpack.c.l.b16 %v1434
  %v1443 = vunpack.c.l.b16 %v1435
  %v1444 = vunpack.c.h.b16 %v1434
  %v1445 = vunpack.c.h.b16 %v1435
  %v1446 = vunpack.c.l.b16 %v1436
  %v1447 = vunpack.c.l.b16 %v1437
  %v1448 = vunpack.c.h.b16 %v1436
  %v1449 = vunpack.c.h.b16 %v1437
  %v1450 = vpack.c.b16 %v1443, %v1442
  %v1451 = vpack.c.b16 %v1445, %v1444
  %v1452 = vpack.c.b16 %v1447, %v1446
  %v1453 = vpack.c.b16 %v1449, %v1448
  %1458 = vst [vmem:[%s5] sm:$0xff] %v1450
  %1459 = vst [vmem:[%s5 + $0x8] sm:$0xff] %v1451
  %1460 = vst [vmem:[%s5 + $0x10] sm:$0xff] %v1452
  %1461 = vst [vmem:[%s5 + $0x18] sm:$0xff] %v1453
  // Predicated region
  $region22: #{dnet_forward.6} parent=0 // pred_check
    _
  $region23: #{dnet_forward.6} parent=0 // pred_check_branch
    %1463 = sbr.rel (0) target = $region25
  $region24: #{dnet_forward.6} parent=0 // pred_region
    _
  $region25: #{dnet_forward.6} parent=0 // pred_fallthru
    _
  // Predicated region
  $region26: #{dnet_forward.6} parent=0 // pred_check
    _
  $region27: #{dnet_forward.6} parent=0 // pred_check_branch
    %1465 = sbr.rel (0) target = $region29
  $region28: #{dnet_forward.6} parent=0 // pred_region
    _
  $region29: #{dnet_forward.6} parent=0 // pred_fallthru
    _

// kernel: dnet_forward.7
$region0: #{dnet_forward.7}
  #allocation0 [shape = 'u32[]', space=smem, size = 0x4, offset = 0x4, fixed_abs, tag = 'smem constant byte address 0x4 - core index']
  #allocation1 [shape = 'u32[144,128]{1,0:T(1,128)}', space=vmem, size = 0x12000, scoped, tag = 'internal scratch']
  #allocation2 [shape = 'f32[1,1]{1,0:T(1,128)S(1)}', space=vmem, size = 0x200, scoped, tag = 'scoped memory for dnet_forward.7']
  %s0 = inlined_call_operand.vmem [shape: bf16[32,2304], index: 0, kind: input, shape index: {}]
  %s1 = inlined_call_operand.vmem [shape: bf16[2304,512], index: 1, kind: input, shape index: {}]
  %s2 = inlined_call_operand.vmem [shape: f32[1,512], index: 2, kind: input, shape index: {}]
  %s3 = inlined_call_operand.vmem [shape: f32[1,512], index: 3, kind: input, shape index: {}]
  %s4 = inlined_call_operand.vmem [shape: f32[1,512], index: 4, kind: input, shape index: {}]
  %s5 = inlined_call_operand.vmem [shape: f32[32,512], index: 5, kind: input, shape index: {}]
  %s6 = inlined_call_operand.vmem [shape: f32[2,32], index: 6, kind: input, shape index: {}]
  %s7 = inlined_call_operand.<no memory space> [shape: f32[1,1], index: 7, kind: input, shape index: {}]
  %s8 = inlined_call_operand.vmem [shape: f32[2,1], index: 8, kind: output, shape index: {}]
  %s9 = sld [smem:[#allocation0]]
  $region42: #{dnet_forward.7} parent=0
    _
  %s11 = ssub.s32 1, %s9
  %s12 = scalar_select 0, %s11, %s9
  %v13 = vstv %s7
  %14 = vst [vmem:[#allocation2] sm:$0x1] %v13
  // Predicated region
  $region2: #{dnet_forward.7} parent=0 // pred_check
    _
  $region3: #{dnet_forward.7} parent=0 // pred_check_branch
    %16 = sbr.rel (0) target = $region5
  $region4: #{dnet_forward.7} parent=0 // pred_region
    _
  $region5: #{dnet_forward.7} parent=0 // pred_fallthru
    _
  // Predicated region
  $region6: #{dnet_forward.7} parent=0 // pred_check
    _
  $region7: #{dnet_forward.7} parent=0 // pred_check_branch
    %18 = sbr.rel (0) target = $region9
  $region8: #{dnet_forward.7} parent=0 // pred_region
    _
  $region9: #{dnet_forward.7} parent=0 // pred_fallthru
    _
  // Predicated region
  $region10: #{dnet_forward.7} parent=0 // pred_check
    _
  $region11: #{dnet_forward.7} parent=0 // pred_check_branch
    %20 = sbr.rel (0) target = $region13
  $region12: #{dnet_forward.7} parent=0 // pred_region
    _
  $region13: #{dnet_forward.7} parent=0 // pred_fallthru
    _
  // Predicated region
  $region14: #{dnet_forward.7} parent=0 // pred_check
    _
  $region15: #{dnet_forward.7} parent=0 // pred_check_branch
    %22 = sbr.rel (0) target = $region17
  $region16: #{dnet_forward.7} parent=0 // pred_region
    _
  $region17: #{dnet_forward.7} parent=0 // pred_fallthru
    _
  // Predicated region
  $region18: #{dnet_forward.7} parent=0 // pred_check
    _
  $region19: #{dnet_forward.7} parent=0 // pred_check_branch
    %24 = sbr.rel (0) target = $region21
  $region20: #{dnet_forward.7} parent=0 // pred_region
    _
  $region21: #{dnet_forward.7} parent=0 // pred_fallthru
    _
  // Predicated region
  $region22: #{dnet_forward.7} parent=0 // pred_check
    _
  $region23: #{dnet_forward.7} parent=0 // pred_check_branch
    %26 = sbr.rel (0) target = $region25
  $region24: #{dnet_forward.7} parent=0 // pred_region
    _
  $region25: #{dnet_forward.7} parent=0 // pred_fallthru
    _
  // Predicated region
  $region26: #{dnet_forward.7} parent=0 // pred_check
    _
  $region27: #{dnet_forward.7} parent=0 // pred_check_branch
    %28 = sbr.rel (0) target = $region29
  $region28: #{dnet_forward.7} parent=0 // pred_region
    _
  $region29: #{dnet_forward.7} parent=0 // pred_fallthru
    _
  // Predicated region
  $region30: #{dnet_forward.7} parent=0 // pred_check
    _
  $region31: #{dnet_forward.7} parent=0 // pred_check_branch
    %30 = sbr.rel (0) target = $region33
  $region32: #{dnet_forward.7} parent=0 // pred_region
    _
  $region33: #{dnet_forward.7} parent=0 // pred_fallthru
    _
  %v31 = vld [vmem:[%s0] sm:$0xff]
  %v32 = vld [vmem:[%s0 + $0x8] sm:$0xff]
  %v33 = vld [vmem:[%s0 + $0x10] sm:$0xff]
  %v34 = vld [vmem:[%s0 + $0x18] sm:$0xff]
  %v35 = vld [vmem:[%s0 + $0x20] sm:$0xff]
  %v36 = vld [vmem:[%s0 + $0x28] sm:$0xff]
  %v37 = vld [vmem:[%s0 + $0x30] sm:$0xff]
  %v38 = vld [vmem:[%s0 + $0x38] sm:$0xff]
  %v39 = vld [vmem:[%s0 + $0x40] sm:$0xff]
  %v40 = vld [vmem:[%s0 + $0x48] sm:$0xff]
  %v41 = vld [vmem:[%s0 + $0x50] sm:$0xff]
  %v42 = vld [vmem:[%s0 + $0x58] sm:$0xff]
  %v43 = vld [vmem:[%s0 + $0x60] sm:$0xff]
  %v44 = vld [vmem:[%s0 + $0x68] sm:$0xff]
  %v45 = vld [vmem:[%s0 + $0x70] sm:$0xff]
  %v46 = vld [vmem:[%s0 + $0x78] sm:$0xff]
  %v47 = vld [vmem:[%s0 + $0x80] sm:$0xff]
  %v48 = vld [vmem:[%s0 + $0x88] sm:$0xff]
  %v49 = vld [vmem:[%s0 + $0x90] sm:$0xff]
  %v50 = vld [vmem:[%s0 + $0x98] sm:$0xff]
  %v51 = vld [vmem:[%s0 + $0xa0] sm:$0xff]
  %v52 = vld [vmem:[%s0 + $0xa8] sm:$0xff]
  %v53 = vld [vmem:[%s0 + $0xb0] sm:$0xff]
  %v54 = vld [vmem:[%s0 + $0xb8] sm:$0xff]
  %v55 = vld [vmem:[%s0 + $0xc0] sm:$0xff]
  %v56 = vld [vmem:[%s0 + $0xc8] sm:$0xff]
  %v57 = vld [vmem:[%s0 + $0xd0] sm:$0xff]
  %v58 = vld [vmem:[%s0 + $0xd8] sm:$0xff]
  %v59 = vld [vmem:[%s0 + $0xe0] sm:$0xff]
  %v60 = vld [vmem:[%s0 + $0xe8] sm:$0xff]
  %v61 = vld [vmem:[%s0 + $0xf0] sm:$0xff]
  %v62 = vld [vmem:[%s0 + $0xf8] sm:$0xff]
  %v63 = vld [vmem:[%s0 + $0x100] sm:$0xff]
  %v64 = vld [vmem:[%s0 + $0x108] sm:$0xff]
  %v65 = vld [vmem:[%s0 + $0x110] sm:$0xff]
  %v66 = vld [vmem:[%s0 + $0x118] sm:$0xff]
  %v67 = vld [vmem:[%s1] sm:$0xff]
  %v68 = vld [vmem:[%s1 + $0x8] sm:$0xff]
  %v69 = vld [vmem:[%s1 + $0x10] sm:$0xff]
  %v70 = vld [vmem:[%s1 + $0x18] sm:$0xff]
  %v71 = vld [vmem:[%s1 + $0x20] sm:$0xff]
  %v72 = vld [vmem:[%s1 + $0x28] sm:$0xff]
  %v73 = vld [vmem:[%s1 + $0x30] sm:$0xff]
  %v74 = vld [vmem:[%s1 + $0x38] sm:$0xff]
  %v75 = vld [vmem:[%s1 + $0x40] sm:$0xff]
  %v76 = vld [vmem:[%s1 + $0x48] sm:$0xff]
  %v77 = vld [vmem:[%s1 + $0x50] sm:$0xff]
  %v78 = vld [vmem:[%s1 + $0x58] sm:$0xff]
  %v79 = vld [vmem:[%s1 + $0x60] sm:$0xff]
  %v80 = vld [vmem:[%s1 + $0x68] sm:$0xff]
  %v81 = vld [vmem:[%s1 + $0x70] sm:$0xff]
  %v82 = vld [vmem:[%s1 + $0x78] sm:$0xff]
  %v83 = vld [vmem:[%s1 + $0x80] sm:$0xff]
  %v84 = vld [vmem:[%s1 + $0x88] sm:$0xff]
  %v85 = vld [vmem:[%s1 + $0x90] sm:$0xff]
  %v86 = vld [vmem:[%s1 + $0x98] sm:$0xff]
  %v87 = vld [vmem:[%s1 + $0xa0] sm:$0xff]
  %v88 = vld [vmem:[%s1 + $0xa8] sm:$0xff]
  %v89 = vld [vmem:[%s1 + $0xb0] sm:$0xff]
  %v90 = vld [vmem:[%s1 + $0xb8] sm:$0xff]
  %v91 = vld [vmem:[%s1 + $0xc0] sm:$0xff]
  %v92 = vld [vmem:[%s1 + $0xc8] sm:$0xff]
  %v93 = vld [vmem:[%s1 + $0xd0] sm:$0xff]
  %v94 = vld [vmem:[%s1 + $0xd8] sm:$0xff]
  %v95 = vld [vmem:[%s1 + $0xe0] sm:$0xff]
  %v96 = vld [vmem:[%s1 + $0xe8] sm:$0xff]
  %v97 = vld [vmem:[%s1 + $0xf0] sm:$0xff]
  %v98 = vld [vmem:[%s1 + $0xf8] sm:$0xff]
  %v99 = vld [vmem:[%s1 + $0x100] sm:$0xff]
  %v100 = vld [vmem:[%s1 + $0x108] sm:$0xff]
  %v101 = vld [vmem:[%s1 + $0x110] sm:$0xff]
  %v102 = vld [vmem:[%s1 + $0x118] sm:$0xff]
  %v103 = vld [vmem:[%s1 + $0x120] sm:$0xff]
  %v104 = vld [vmem:[%s1 + $0x128] sm:$0xff]
  %v105 = vld [vmem:[%s1 + $0x130] sm:$0xff]
  %v106 = vld [vmem:[%s1 + $0x138] sm:$0xff]
  %v107 = vld [vmem:[%s1 + $0x140] sm:$0xff]
  %v108 = vld [vmem:[%s1 + $0x148] sm:$0xff]
  %v109 = vld [vmem:[%s1 + $0x150] sm:$0xff]
  %v110 = vld [vmem:[%s1 + $0x158] sm:$0xff]
  %v111 = vld [vmem:[%s1 + $0x160] sm:$0xff]
  %v112 = vld [vmem:[%s1 + $0x168] sm:$0xff]
  %v113 = vld [vmem:[%s1 + $0x170] sm:$0xff]
  %v114 = vld [vmem:[%s1 + $0x178] sm:$0xff]
  %v115 = vld [vmem:[%s1 + $0x180] sm:$0xff]
  %v116 = vld [vmem:[%s1 + $0x188] sm:$0xff]
  %v117 = vld [vmem:[%s1 + $0x190] sm:$0xff]
  %v118 = vld [vmem:[%s1 + $0x198] sm:$0xff]
  %v119 = vld [vmem:[%s1 + $0x1a0] sm:$0xff]
  %v120 = vld [vmem:[%s1 + $0x1a8] sm:$0xff]
  %v121 = vld [vmem:[%s1 + $0x1b0] sm:$0xff]
  %v122 = vld [vmem:[%s1 + $0x1b8] sm:$0xff]
  %v123 = vld [vmem:[%s1 + $0x1c0] sm:$0xff]
  %v124 = vld [vmem:[%s1 + $0x1c8] sm:$0xff]
  %v125 = vld [vmem:[%s1 + $0x1d0] sm:$0xff]
  %v126 = vld [vmem:[%s1 + $0x1d8] sm:$0xff]
  %v127 = vld [vmem:[%s1 + $0x1e0] sm:$0xff]
  %v128 = vld [vmem:[%s1 + $0x1e8] sm:$0xff]
  %v129 = vld [vmem:[%s1 + $0x1f0] sm:$0xff]
  %v130 = vld [vmem:[%s1 + $0x1f8] sm:$0xff]
  %v131 = vld [vmem:[%s1 + $0x200] sm:$0xff]
  %v132 = vld [vmem:[%s1 + $0x208] sm:$0xff]
  %v133 = vld [vmem:[%s1 + $0x210] sm:$0xff]
  %v134 = vld [vmem:[%s1 + $0x218] sm:$0xff]
  %v135 = vld [vmem:[%s1 + $0x220] sm:$0xff]
  %v136 = vld [vmem:[%s1 + $0x228] sm:$0xff]
  %v137 = vld [vmem:[%s1 + $0x230] sm:$0xff]
  %v138 = vld [vmem:[%s1 + $0x238] sm:$0xff]
  %v139 = vld [vmem:[%s1 + $0x240] sm:$0xff]
  %v140 = vld [vmem:[%s1 + $0x248] sm:$0xff]
  %v141 = vld [vmem:[%s1 + $0x250] sm:$0xff]
  %v142 = vld [vmem:[%s1 + $0x258] sm:$0xff]
  %v143 = vld [vmem:[%s1 + $0x260] sm:$0xff]
  %v144 = vld [vmem:[%s1 + $0x268] sm:$0xff]
  %v145 = vld [vmem:[%s1 + $0x270] sm:$0xff]
  %v146 = vld [vmem:[%s1 + $0x278] sm:$0xff]
  %v147 = vld [vmem:[%s1 + $0x280] sm:$0xff]
  %v148 = vld [vmem:[%s1 + $0x288] sm:$0xff]
  %v149 = vld [vmem:[%s1 + $0x290] sm:$0xff]
  %v150 = vld [vmem:[%s1 + $0x298] sm:$0xff]
  %v151 = vld [vmem:[%s1 + $0x2a0] sm:$0xff]
  %v152 = vld [vmem:[%s1 + $0x2a8] sm:$0xff]
  %v153 = vld [vmem:[%s1 + $0x2b0] sm:$0xff]
  %v154 = vld [vmem:[%s1 + $0x2b8] sm:$0xff]
  %v155 = vld [vmem:[%s1 + $0x2c0] sm:$0xff]
  %v156 = vld [vmem:[%s1 + $0x2c8] sm:$0xff]
  %v157 = vld [vmem:[%s1 + $0x2d0] sm:$0xff]
  %v158 = vld [vmem:[%s1 + $0x2d8] sm:$0xff]
  %v159 = vld [vmem:[%s1 + $0x2e0] sm:$0xff]
  %v160 = vld [vmem:[%s1 + $0x2e8] sm:$0xff]
  %v161 = vld [vmem:[%s1 + $0x2f0] sm:$0xff]
  %v162 = vld [vmem:[%s1 + $0x2f8] sm:$0xff]
  %v163 = vld [vmem:[%s1 + $0x300] sm:$0xff]
  %v164 = vld [vmem:[%s1 + $0x308] sm:$0xff]
  %v165 = vld [vmem:[%s1 + $0x310] sm:$0xff]
  %v166 = vld [vmem:[%s1 + $0x318] sm:$0xff]
  %v167 = vld [vmem:[%s1 + $0x320] sm:$0xff]
  %v168 = vld [vmem:[%s1 + $0x328] sm:$0xff]
  %v169 = vld [vmem:[%s1 + $0x330] sm:$0xff]
  %v170 = vld [vmem:[%s1 + $0x338] sm:$0xff]
  %v171 = vld [vmem:[%s1 + $0x340] sm:$0xff]
  %v172 = vld [vmem:[%s1 + $0x348] sm:$0xff]
  %v173 = vld [vmem:[%s1 + $0x350] sm:$0xff]
  %v174 = vld [vmem:[%s1 + $0x358] sm:$0xff]
  %v175 = vld [vmem:[%s1 + $0x360] sm:$0xff]
  %v176 = vld [vmem:[%s1 + $0x368] sm:$0xff]
  %v177 = vld [vmem:[%s1 + $0x370] sm:$0xff]
  %v178 = vld [vmem:[%s1 + $0x378] sm:$0xff]
  %v179 = vld [vmem:[%s1 + $0x380] sm:$0xff]
  %v180 = vld [vmem:[%s1 + $0x388] sm:$0xff]
  %v181 = vld [vmem:[%s1 + $0x390] sm:$0xff]
  %v182 = vld [vmem:[%s1 + $0x398] sm:$0xff]
  %v183 = vld [vmem:[%s1 + $0x3a0] sm:$0xff]
  %v184 = vld [vmem:[%s1 + $0x3a8] sm:$0xff]
  %v185 = vld [vmem:[%s1 + $0x3b0] sm:$0xff]
  %v186 = vld [vmem:[%s1 + $0x3b8] sm:$0xff]
  %v187 = vld [vmem:[%s1 + $0x3c0] sm:$0xff]
  %v188 = vld [vmem:[%s1 + $0x3c8] sm:$0xff]
  %v189 = vld [vmem:[%s1 + $0x3d0] sm:$0xff]
  %v190 = vld [vmem:[%s1 + $0x3d8] sm:$0xff]
  %v191 = vld [vmem:[%s1 + $0x3e0] sm:$0xff]
  %v192 = vld [vmem:[%s1 + $0x3e8] sm:$0xff]
  %v193 = vld [vmem:[%s1 + $0x3f0] sm:$0xff]
  %v194 = vld [vmem:[%s1 + $0x3f8] sm:$0xff]
  %v195 = vld [vmem:[%s1 + $0x400] sm:$0xff]
  %v196 = vld [vmem:[%s1 + $0x408] sm:$0xff]
  %v197 = vld [vmem:[%s1 + $0x410] sm:$0xff]
  %v198 = vld [vmem:[%s1 + $0x418] sm:$0xff]
  %v199 = vld [vmem:[%s1 + $0x420] sm:$0xff]
  %v200 = vld [vmem:[%s1 + $0x428] sm:$0xff]
  %v201 = vld [vmem:[%s1 + $0x430] sm:$0xff]
  %v202 = vld [vmem:[%s1 + $0x438] sm:$0xff]
  %v203 = vld [vmem:[%s1 + $0x440] sm:$0xff]
  %v204 = vld [vmem:[%s1 + $0x448] sm:$0xff]
  %v205 = vld [vmem:[%s1 + $0x450] sm:$0xff]
  %v206 = vld [vmem:[%s1 + $0x458] sm:$0xff]
  %v207 = vld [vmem:[%s1 + $0x460] sm:$0xff]
  %v208 = vld [vmem:[%s1 + $0x468] sm:$0xff]
  %v209 = vld [vmem:[%s1 + $0x470] sm:$0xff]
  %v210 = vld [vmem:[%s1 + $0x478] sm:$0xff]
  %v211 = vld [vmem:[%s1 + $0x480] sm:$0xff]
  %v212 = vld [vmem:[%s1 + $0x488] sm:$0xff]
  %v213 = vld [vmem:[%s1 + $0x490] sm:$0xff]
  %v214 = vld [vmem:[%s1 + $0x498] sm:$0xff]
  %v215 = vld [vmem:[%s1 + $0x4a0] sm:$0xff]
  %v216 = vld [vmem:[%s1 + $0x4a8] sm:$0xff]
  %v217 = vld [vmem:[%s1 + $0x4b0] sm:$0xff]
  %v218 = vld [vmem:[%s1 + $0x4b8] sm:$0xff]
  %v219 = vld [vmem:[%s1 + $0x4c0] sm:$0xff]
  %v220 = vld [vmem:[%s1 + $0x4c8] sm:$0xff]
  %v221 = vld [vmem:[%s1 + $0x4d0] sm:$0xff]
  %v222 = vld [vmem:[%s1 + $0x4d8] sm:$0xff]
  %v223 = vld [vmem:[%s1 + $0x4e0] sm:$0xff]
  %v224 = vld [vmem:[%s1 + $0x4e8] sm:$0xff]
  %v225 = vld [vmem:[%s1 + $0x4f0] sm:$0xff]
  %v226 = vld [vmem:[%s1 + $0x4f8] sm:$0xff]
  %v227 = vld [vmem:[%s1 + $0x500] sm:$0xff]
  %v228 = vld [vmem:[%s1 + $0x508] sm:$0xff]
  %v229 = vld [vmem:[%s1 + $0x510] sm:$0xff]
  %v230 = vld [vmem:[%s1 + $0x518] sm:$0xff]
  %v231 = vld [vmem:[%s1 + $0x520] sm:$0xff]
  %v232 = vld [vmem:[%s1 + $0x528] sm:$0xff]
  %v233 = vld [vmem:[%s1 + $0x530] sm:$0xff]
  %v234 = vld [vmem:[%s1 + $0x538] sm:$0xff]
  %v235 = vld [vmem:[%s1 + $0x540] sm:$0xff]
  %v236 = vld [vmem:[%s1 + $0x548] sm:$0xff]
  %v237 = vld [vmem:[%s1 + $0x550] sm:$0xff]
  %v238 = vld [vmem:[%s1 + $0x558] sm:$0xff]
  %v239 = vld [vmem:[%s1 + $0x560] sm:$0xff]
  %v240 = vld [vmem:[%s1 + $0x568] sm:$0xff]
  %v241 = vld [vmem:[%s1 + $0x570] sm:$0xff]
  %v242 = vld [vmem:[%s1 + $0x578] sm:$0xff]
  %v243 = vld [vmem:[%s1 + $0x580] sm:$0xff]
  %v244 = vld [vmem:[%s1 + $0x588] sm:$0xff]
  %v245 = vld [vmem:[%s1 + $0x590] sm:$0xff]
  %v246 = vld [vmem:[%s1 + $0x598] sm:$0xff]
  %v247 = vld [vmem:[%s1 + $0x5a0] sm:$0xff]
  %v248 = vld [vmem:[%s1 + $0x5a8] sm:$0xff]
  %v249 = vld [vmem:[%s1 + $0x5b0] sm:$0xff]
  %v250 = vld [vmem:[%s1 + $0x5b8] sm:$0xff]
  %v251 = vld [vmem:[%s1 + $0x5c0] sm:$0xff]
  %v252 = vld [vmem:[%s1 + $0x5c8] sm:$0xff]
  %v253 = vld [vmem:[%s1 + $0x5d0] sm:$0xff]
  %v254 = vld [vmem:[%s1 + $0x5d8] sm:$0xff]
  %v255 = vld [vmem:[%s1 + $0x5e0] sm:$0xff]
  %v256 = vld [vmem:[%s1 + $0x5e8] sm:$0xff]
  %v257 = vld [vmem:[%s1 + $0x5f0] sm:$0xff]
  %v258 = vld [vmem:[%s1 + $0x5f8] sm:$0xff]
  %v259 = vld [vmem:[%s1 + $0x600] sm:$0xff]
  %v260 = vld [vmem:[%s1 + $0x608] sm:$0xff]
  %v261 = vld [vmem:[%s1 + $0x610] sm:$0xff]
  %v262 = vld [vmem:[%s1 + $0x618] sm:$0xff]
  %v263 = vld [vmem:[%s1 + $0x620] sm:$0xff]
  %v264 = vld [vmem:[%s1 + $0x628] sm:$0xff]
  %v265 = vld [vmem:[%s1 + $0x630] sm:$0xff]
  %v266 = vld [vmem:[%s1 + $0x638] sm:$0xff]
  %v267 = vld [vmem:[%s1 + $0x640] sm:$0xff]
  %v268 = vld [vmem:[%s1 + $0x648] sm:$0xff]
  %v269 = vld [vmem:[%s1 + $0x650] sm:$0xff]
  %v270 = vld [vmem:[%s1 + $0x658] sm:$0xff]
  %v271 = vld [vmem:[%s1 + $0x660] sm:$0xff]
  %v272 = vld [vmem:[%s1 + $0x668] sm:$0xff]
  %v273 = vld [vmem:[%s1 + $0x670] sm:$0xff]
  %v274 = vld [vmem:[%s1 + $0x678] sm:$0xff]
  %v275 = vld [vmem:[%s1 + $0x680] sm:$0xff]
  %v276 = vld [vmem:[%s1 + $0x688] sm:$0xff]
  %v277 = vld [vmem:[%s1 + $0x690] sm:$0xff]
  %v278 = vld [vmem:[%s1 + $0x698] sm:$0xff]
  %v279 = vld [vmem:[%s1 + $0x6a0] sm:$0xff]
  %v280 = vld [vmem:[%s1 + $0x6a8] sm:$0xff]
  %v281 = vld [vmem:[%s1 + $0x6b0] sm:$0xff]
  %v282 = vld [vmem:[%s1 + $0x6b8] sm:$0xff]
  %v283 = vld [vmem:[%s1 + $0x6c0] sm:$0xff]
  %v284 = vld [vmem:[%s1 + $0x6c8] sm:$0xff]
  %v285 = vld [vmem:[%s1 + $0x6d0] sm:$0xff]
  %v286 = vld [vmem:[%s1 + $0x6d8] sm:$0xff]
  %v287 = vld [vmem:[%s1 + $0x6e0] sm:$0xff]
  %v288 = vld [vmem:[%s1 + $0x6e8] sm:$0xff]
  %v289 = vld [vmem:[%s1 + $0x6f0] sm:$0xff]
  %v290 = vld [vmem:[%s1 + $0x6f8] sm:$0xff]
  %v291 = vld [vmem:[%s1 + $0x700] sm:$0xff]
  %v292 = vld [vmem:[%s1 + $0x708] sm:$0xff]
  %v293 = vld [vmem:[%s1 + $0x710] sm:$0xff]
  %v294 = vld [vmem:[%s1 + $0x718] sm:$0xff]
  %v295 = vld [vmem:[%s1 + $0x720] sm:$0xff]
  %v296 = vld [vmem:[%s1 + $0x728] sm:$0xff]
  %v297 = vld [vmem:[%s1 + $0x730] sm:$0xff]
  %v298 = vld [vmem:[%s1 + $0x738] sm:$0xff]
  %v299 = vld [vmem:[%s1 + $0x740] sm:$0xff]
  %v300 = vld [vmem:[%s1 + $0x748] sm:$0xff]
  %v301 = vld [vmem:[%s1 + $0x750] sm:$0xff]
  %v302 = vld [vmem:[%s1 + $0x758] sm:$0xff]
  %v303 = vld [vmem:[%s1 + $0x760] sm:$0xff]
  %v304 = vld [vmem:[%s1 + $0x768] sm:$0xff]
  %v305 = vld [vmem:[%s1 + $0x770] sm:$0xff]
  %v306 = vld [vmem:[%s1 + $0x778] sm:$0xff]
  %v307 = vld [vmem:[%s1 + $0x780] sm:$0xff]
  %v308 = vld [vmem:[%s1 + $0x788] sm:$0xff]
  %v309 = vld [vmem:[%s1 + $0x790] sm:$0xff]
  %v310 = vld [vmem:[%s1 + $0x798] sm:$0xff]
  %v311 = vld [vmem:[%s1 + $0x7a0] sm:$0xff]
  %v312 = vld [vmem:[%s1 + $0x7a8] sm:$0xff]
  %v313 = vld [vmem:[%s1 + $0x7b0] sm:$0xff]
  %v314 = vld [vmem:[%s1 + $0x7b8] sm:$0xff]
  %v315 = vld [vmem:[%s1 + $0x7c0] sm:$0xff]
  %v316 = vld [vmem:[%s1 + $0x7c8] sm:$0xff]
  %v317 = vld [vmem:[%s1 + $0x7d0] sm:$0xff]
  %v318 = vld [vmem:[%s1 + $0x7d8] sm:$0xff]
  %v319 = vld [vmem:[%s1 + $0x7e0] sm:$0xff]
  %v320 = vld [vmem:[%s1 + $0x7e8] sm:$0xff]
  %v321 = vld [vmem:[%s1 + $0x7f0] sm:$0xff]
  %v322 = vld [vmem:[%s1 + $0x7f8] sm:$0xff]
  %v323 = vld [vmem:[%s1 + $0x800] sm:$0xff]
  %v324 = vld [vmem:[%s1 + $0x808] sm:$0xff]
  %v325 = vld [vmem:[%s1 + $0x810] sm:$0xff]
  %v326 = vld [vmem:[%s1 + $0x818] sm:$0xff]
  %v327 = vld [vmem:[%s1 + $0x820] sm:$0xff]
  %v328 = vld [vmem:[%s1 + $0x828] sm:$0xff]
  %v329 = vld [vmem:[%s1 + $0x830] sm:$0xff]
  %v330 = vld [vmem:[%s1 + $0x838] sm:$0xff]
  %v331 = vld [vmem:[%s1 + $0x840] sm:$0xff]
  %v332 = vld [vmem:[%s1 + $0x848] sm:$0xff]
  %v333 = vld [vmem:[%s1 + $0x850] sm:$0xff]
  %v334 = vld [vmem:[%s1 + $0x858] sm:$0xff]
  %v335 = vld [vmem:[%s1 + $0x860] sm:$0xff]
  %v336 = vld [vmem:[%s1 + $0x868] sm:$0xff]
  %v337 = vld [vmem:[%s1 + $0x870] sm:$0xff]
  %v338 = vld [vmem:[%s1 + $0x878] sm:$0xff]
  %v339 = vld [vmem:[%s1 + $0x880] sm:$0xff]
  %v340 = vld [vmem:[%s1 + $0x888] sm:$0xff]
  %v341 = vld [vmem:[%s1 + $0x890] sm:$0xff]
  %v342 = vld [vmem:[%s1 + $0x898] sm:$0xff]
  %v343 = vld [vmem:[%s1 + $0x8a0] sm:$0xff]
  %v344 = vld [vmem:[%s1 + $0x8a8] sm:$0xff]
  %v345 = vld [vmem:[%s1 + $0x8b0] sm:$0xff]
  %v346 = vld [vmem:[%s1 + $0x8b8] sm:$0xff]
  %v347 = vld [vmem:[%s1 + $0x8c0] sm:$0xff]
  %v348 = vld [vmem:[%s1 + $0x8c8] sm:$0xff]
  %v349 = vld [vmem:[%s1 + $0x8d0] sm:$0xff]
  %v350 = vld [vmem:[%s1 + $0x8d8] sm:$0xff]
  %v351 = vld [vmem:[%s1 + $0x8e0] sm:$0xff]
  %v352 = vld [vmem:[%s1 + $0x8e8] sm:$0xff]
  %v353 = vld [vmem:[%s1 + $0x8f0] sm:$0xff]
  %v354 = vld [vmem:[%s1 + $0x8f8] sm:$0xff]
  %v355 = vld [vmem:[%s1 + $0x900] sm:$0xff]
  %v356 = vld [vmem:[%s1 + $0x908] sm:$0xff]
  %v357 = vld [vmem:[%s1 + $0x910] sm:$0xff]
  %v358 = vld [vmem:[%s1 + $0x918] sm:$0xff]
  %v359 = vld [vmem:[%s1 + $0x920] sm:$0xff]
  %v360 = vld [vmem:[%s1 + $0x928] sm:$0xff]
  %v361 = vld [vmem:[%s1 + $0x930] sm:$0xff]
  %v362 = vld [vmem:[%s1 + $0x938] sm:$0xff]
  %v363 = vld [vmem:[%s1 + $0x940] sm:$0xff]
  %v364 = vld [vmem:[%s1 + $0x948] sm:$0xff]
  %v365 = vld [vmem:[%s1 + $0x950] sm:$0xff]
  %v366 = vld [vmem:[%s1 + $0x958] sm:$0xff]
  %v367 = vld [vmem:[%s1 + $0x960] sm:$0xff]
  %v368 = vld [vmem:[%s1 + $0x968] sm:$0xff]
  %v369 = vld [vmem:[%s1 + $0x970] sm:$0xff]
  %v370 = vld [vmem:[%s1 + $0x978] sm:$0xff]
  %v371 = vld [vmem:[%s1 + $0x980] sm:$0xff]
  %v372 = vld [vmem:[%s1 + $0x988] sm:$0xff]
  %v373 = vld [vmem:[%s1 + $0x990] sm:$0xff]
  %v374 = vld [vmem:[%s1 + $0x998] sm:$0xff]
  %v375 = vld [vmem:[%s1 + $0x9a0] sm:$0xff]
  %v376 = vld [vmem:[%s1 + $0x9a8] sm:$0xff]
  %v377 = vld [vmem:[%s1 + $0x9b0] sm:$0xff]
  %v378 = vld [vmem:[%s1 + $0x9b8] sm:$0xff]
  %v379 = vld [vmem:[%s1 + $0x9c0] sm:$0xff]
  %v380 = vld [vmem:[%s1 + $0x9c8] sm:$0xff]
  %v381 = vld [vmem:[%s1 + $0x9d0] sm:$0xff]
  %v382 = vld [vmem:[%s1 + $0x9d8] sm:$0xff]
  %v383 = vld [vmem:[%s1 + $0x9e0] sm:$0xff]
  %v384 = vld [vmem:[%s1 + $0x9e8] sm:$0xff]
  %v385 = vld [vmem:[%s1 + $0x9f0] sm:$0xff]
  %v386 = vld [vmem:[%s1 + $0x9f8] sm:$0xff]
  %v387 = vld [vmem:[%s1 + $0xa00] sm:$0xff]
  %v388 = vld [vmem:[%s1 + $0xa08] sm:$0xff]
  %v389 = vld [vmem:[%s1 + $0xa10] sm:$0xff]
  %v390 = vld [vmem:[%s1 + $0xa18] sm:$0xff]
  %v391 = vld [vmem:[%s1 + $0xa20] sm:$0xff]
  %v392 = vld [vmem:[%s1 + $0xa28] sm:$0xff]
  %v393 = vld [vmem:[%s1 + $0xa30] sm:$0xff]
  %v394 = vld [vmem:[%s1 + $0xa38] sm:$0xff]
  %v395 = vld [vmem:[%s1 + $0xa40] sm:$0xff]
  %v396 = vld [vmem:[%s1 + $0xa48] sm:$0xff]
  %v397 = vld [vmem:[%s1 + $0xa50] sm:$0xff]
  %v398 = vld [vmem:[%s1 + $0xa58] sm:$0xff]
  %v399 = vld [vmem:[%s1 + $0xa60] sm:$0xff]
  %v400 = vld [vmem:[%s1 + $0xa68] sm:$0xff]
  %v401 = vld [vmem:[%s1 + $0xa70] sm:$0xff]
  %v402 = vld [vmem:[%s1 + $0xa78] sm:$0xff]
  %v403 = vld [vmem:[%s1 + $0xa80] sm:$0xff]
  %v404 = vld [vmem:[%s1 + $0xa88] sm:$0xff]
  %v405 = vld [vmem:[%s1 + $0xa90] sm:$0xff]
  %v406 = vld [vmem:[%s1 + $0xa98] sm:$0xff]
  %v407 = vld [vmem:[%s1 + $0xaa0] sm:$0xff]
  %v408 = vld [vmem:[%s1 + $0xaa8] sm:$0xff]
  %v409 = vld [vmem:[%s1 + $0xab0] sm:$0xff]
  %v410 = vld [vmem:[%s1 + $0xab8] sm:$0xff]
  %v411 = vld [vmem:[%s1 + $0xac0] sm:$0xff]
  %v412 = vld [vmem:[%s1 + $0xac8] sm:$0xff]
  %v413 = vld [vmem:[%s1 + $0xad0] sm:$0xff]
  %v414 = vld [vmem:[%s1 + $0xad8] sm:$0xff]
  %v415 = vld [vmem:[%s1 + $0xae0] sm:$0xff]
  %v416 = vld [vmem:[%s1 + $0xae8] sm:$0xff]
  %v417 = vld [vmem:[%s1 + $0xaf0] sm:$0xff]
  %v418 = vld [vmem:[%s1 + $0xaf8] sm:$0xff]
  %v419 = vld [vmem:[%s1 + $0xb00] sm:$0xff]
  %v420 = vld [vmem:[%s1 + $0xb08] sm:$0xff]
  %v421 = vld [vmem:[%s1 + $0xb10] sm:$0xff]
  %v422 = vld [vmem:[%s1 + $0xb18] sm:$0xff]
  %v423 = vld [vmem:[%s1 + $0xb20] sm:$0xff]
  %v424 = vld [vmem:[%s1 + $0xb28] sm:$0xff]
  %v425 = vld [vmem:[%s1 + $0xb30] sm:$0xff]
  %v426 = vld [vmem:[%s1 + $0xb38] sm:$0xff]
  %v427 = vld [vmem:[%s1 + $0xb40] sm:$0xff]
  %v428 = vld [vmem:[%s1 + $0xb48] sm:$0xff]
  %v429 = vld [vmem:[%s1 + $0xb50] sm:$0xff]
  %v430 = vld [vmem:[%s1 + $0xb58] sm:$0xff]
  %v431 = vld [vmem:[%s1 + $0xb60] sm:$0xff]
  %v432 = vld [vmem:[%s1 + $0xb68] sm:$0xff]
  %v433 = vld [vmem:[%s1 + $0xb70] sm:$0xff]
  %v434 = vld [vmem:[%s1 + $0xb78] sm:$0xff]
  %v435 = vld [vmem:[%s1 + $0xb80] sm:$0xff]
  %v436 = vld [vmem:[%s1 + $0xb88] sm:$0xff]
  %v437 = vld [vmem:[%s1 + $0xb90] sm:$0xff]
  %v438 = vld [vmem:[%s1 + $0xb98] sm:$0xff]
  %v439 = vld [vmem:[%s1 + $0xba0] sm:$0xff]
  %v440 = vld [vmem:[%s1 + $0xba8] sm:$0xff]
  %v441 = vld [vmem:[%s1 + $0xbb0] sm:$0xff]
  %v442 = vld [vmem:[%s1 + $0xbb8] sm:$0xff]
  %v443 = vld [vmem:[%s1 + $0xbc0] sm:$0xff]
  %v444 = vld [vmem:[%s1 + $0xbc8] sm:$0xff]
  %v445 = vld [vmem:[%s1 + $0xbd0] sm:$0xff]
  %v446 = vld [vmem:[%s1 + $0xbd8] sm:$0xff]
  %v447 = vld [vmem:[%s1 + $0xbe0] sm:$0xff]
  %v448 = vld [vmem:[%s1 + $0xbe8] sm:$0xff]
  %v449 = vld [vmem:[%s1 + $0xbf0] sm:$0xff]
  %v450 = vld [vmem:[%s1 + $0xbf8] sm:$0xff]
  %v451 = vld [vmem:[%s1 + $0xc00] sm:$0xff]
  %v452 = vld [vmem:[%s1 + $0xc08] sm:$0xff]
  %v453 = vld [vmem:[%s1 + $0xc10] sm:$0xff]
  %v454 = vld [vmem:[%s1 + $0xc18] sm:$0xff]
  %v455 = vld [vmem:[%s1 + $0xc20] sm:$0xff]
  %v456 = vld [vmem:[%s1 + $0xc28] sm:$0xff]
  %v457 = vld [vmem:[%s1 + $0xc30] sm:$0xff]
  %v458 = vld [vmem:[%s1 + $0xc38] sm:$0xff]
  %v459 = vld [vmem:[%s1 + $0xc40] sm:$0xff]
  %v460 = vld [vmem:[%s1 + $0xc48] sm:$0xff]
  %v461 = vld [vmem:[%s1 + $0xc50] sm:$0xff]
  %v462 = vld [vmem:[%s1 + $0xc58] sm:$0xff]
  %v463 = vld [vmem:[%s1 + $0xc60] sm:$0xff]
  %v464 = vld [vmem:[%s1 + $0xc68] sm:$0xff]
  %v465 = vld [vmem:[%s1 + $0xc70] sm:$0xff]
  %v466 = vld [vmem:[%s1 + $0xc78] sm:$0xff]
  %v467 = vld [vmem:[%s1 + $0xc80] sm:$0xff]
  %v468 = vld [vmem:[%s1 + $0xc88] sm:$0xff]
  %v469 = vld [vmem:[%s1 + $0xc90] sm:$0xff]
  %v470 = vld [vmem:[%s1 + $0xc98] sm:$0xff]
  %v471 = vld [vmem:[%s1 + $0xca0] sm:$0xff]
  %v472 = vld [vmem:[%s1 + $0xca8] sm:$0xff]
  %v473 = vld [vmem:[%s1 + $0xcb0] sm:$0xff]
  %v474 = vld [vmem:[%s1 + $0xcb8] sm:$0xff]
  %v475 = vld [vmem:[%s1 + $0xcc0] sm:$0xff]
  %v476 = vld [vmem:[%s1 + $0xcc8] sm:$0xff]
  %v477 = vld [vmem:[%s1 + $0xcd0] sm:$0xff]
  %v478 = vld [vmem:[%s1 + $0xcd8] sm:$0xff]
  %v479 = vld [vmem:[%s1 + $0xce0] sm:$0xff]
  %v480 = vld [vmem:[%s1 + $0xce8] sm:$0xff]
  %v481 = vld [vmem:[%s1 + $0xcf0] sm:$0xff]
  %v482 = vld [vmem:[%s1 + $0xcf8] sm:$0xff]
  %v483 = vld [vmem:[%s1 + $0xd00] sm:$0xff]
  %v484 = vld [vmem:[%s1 + $0xd08] sm:$0xff]
  %v485 = vld [vmem:[%s1 + $0xd10] sm:$0xff]
  %v486 = vld [vmem:[%s1 + $0xd18] sm:$0xff]
  %v487 = vld [vmem:[%s1 + $0xd20] sm:$0xff]
  %v488 = vld [vmem:[%s1 + $0xd28] sm:$0xff]
  %v489 = vld [vmem:[%s1 + $0xd30] sm:$0xff]
  %v490 = vld [vmem:[%s1 + $0xd38] sm:$0xff]
  %v491 = vld [vmem:[%s1 + $0xd40] sm:$0xff]
  %v492 = vld [vmem:[%s1 + $0xd48] sm:$0xff]
  %v493 = vld [vmem:[%s1 + $0xd50] sm:$0xff]
  %v494 = vld [vmem:[%s1 + $0xd58] sm:$0xff]
  %v495 = vld [vmem:[%s1 + $0xd60] sm:$0xff]
  %v496 = vld [vmem:[%s1 + $0xd68] sm:$0xff]
  %v497 = vld [vmem:[%s1 + $0xd70] sm:$0xff]
  %v498 = vld [vmem:[%s1 + $0xd78] sm:$0xff]
  %v499 = vld [vmem:[%s1 + $0xd80] sm:$0xff]
  %v500 = vld [vmem:[%s1 + $0xd88] sm:$0xff]
  %v501 = vld [vmem:[%s1 + $0xd90] sm:$0xff]
  %v502 = vld [vmem:[%s1 + $0xd98] sm:$0xff]
  %v503 = vld [vmem:[%s1 + $0xda0] sm:$0xff]
  %v504 = vld [vmem:[%s1 + $0xda8] sm:$0xff]
  %v505 = vld [vmem:[%s1 + $0xdb0] sm:$0xff]
  %v506 = vld [vmem:[%s1 + $0xdb8] sm:$0xff]
  %v507 = vld [vmem:[%s1 + $0xdc0] sm:$0xff]
  %v508 = vld [vmem:[%s1 + $0xdc8] sm:$0xff]
  %v509 = vld [vmem:[%s1 + $0xdd0] sm:$0xff]
  %v510 = vld [vmem:[%s1 + $0xdd8] sm:$0xff]
  %v511 = vld [vmem:[%s1 + $0xde0] sm:$0xff]
  %v512 = vld [vmem:[%s1 + $0xde8] sm:$0xff]
  %v513 = vld [vmem:[%s1 + $0xdf0] sm:$0xff]
  %v514 = vld [vmem:[%s1 + $0xdf8] sm:$0xff]
  %v515 = vld [vmem:[%s1 + $0xe00] sm:$0xff]
  %v516 = vld [vmem:[%s1 + $0xe08] sm:$0xff]
  %v517 = vld [vmem:[%s1 + $0xe10] sm:$0xff]
  %v518 = vld [vmem:[%s1 + $0xe18] sm:$0xff]
  %v519 = vld [vmem:[%s1 + $0xe20] sm:$0xff]
  %v520 = vld [vmem:[%s1 + $0xe28] sm:$0xff]
  %v521 = vld [vmem:[%s1 + $0xe30] sm:$0xff]
  %v522 = vld [vmem:[%s1 + $0xe38] sm:$0xff]
  %v523 = vld [vmem:[%s1 + $0xe40] sm:$0xff]
  %v524 = vld [vmem:[%s1 + $0xe48] sm:$0xff]
  %v525 = vld [vmem:[%s1 + $0xe50] sm:$0xff]
  %v526 = vld [vmem:[%s1 + $0xe58] sm:$0xff]
  %v527 = vld [vmem:[%s1 + $0xe60] sm:$0xff]
  %v528 = vld [vmem:[%s1 + $0xe68] sm:$0xff]
  %v529 = vld [vmem:[%s1 + $0xe70] sm:$0xff]
  %v530 = vld [vmem:[%s1 + $0xe78] sm:$0xff]
  %v531 = vld [vmem:[%s1 + $0xe80] sm:$0xff]
  %v532 = vld [vmem:[%s1 + $0xe88] sm:$0xff]
  %v533 = vld [vmem:[%s1 + $0xe90] sm:$0xff]
  %v534 = vld [vmem:[%s1 + $0xe98] sm:$0xff]
  %v535 = vld [vmem:[%s1 + $0xea0] sm:$0xff]
  %v536 = vld [vmem:[%s1 + $0xea8] sm:$0xff]
  %v537 = vld [vmem:[%s1 + $0xeb0] sm:$0xff]
  %v538 = vld [vmem:[%s1 + $0xeb8] sm:$0xff]
  %v539 = vld [vmem:[%s1 + $0xec0] sm:$0xff]
  %v540 = vld [vmem:[%s1 + $0xec8] sm:$0xff]
  %v541 = vld [vmem:[%s1 + $0xed0] sm:$0xff]
  %v542 = vld [vmem:[%s1 + $0xed8] sm:$0xff]
  %v543 = vld [vmem:[%s1 + $0xee0] sm:$0xff]
  %v544 = vld [vmem:[%s1 + $0xee8] sm:$0xff]
  %v545 = vld [vmem:[%s1 + $0xef0] sm:$0xff]
  %v546 = vld [vmem:[%s1 + $0xef8] sm:$0xff]
  %v547 = vld [vmem:[%s1 + $0xf00] sm:$0xff]
  %v548 = vld [vmem:[%s1 + $0xf08] sm:$0xff]
  %v549 = vld [vmem:[%s1 + $0xf10] sm:$0xff]
  %v550 = vld [vmem:[%s1 + $0xf18] sm:$0xff]
  %v551 = vld [vmem:[%s1 + $0xf20] sm:$0xff]
  %v552 = vld [vmem:[%s1 + $0xf28] sm:$0xff]
  %v553 = vld [vmem:[%s1 + $0xf30] sm:$0xff]
  %v554 = vld [vmem:[%s1 + $0xf38] sm:$0xff]
  %v555 = vld [vmem:[%s1 + $0xf40] sm:$0xff]
  %v556 = vld [vmem:[%s1 + $0xf48] sm:$0xff]
  %v557 = vld [vmem:[%s1 + $0xf50] sm:$0xff]
  %v558 = vld [vmem:[%s1 + $0xf58] sm:$0xff]
  %v559 = vld [vmem:[%s1 + $0xf60] sm:$0xff]
  %v560 = vld [vmem:[%s1 + $0xf68] sm:$0xff]
  %v561 = vld [vmem:[%s1 + $0xf70] sm:$0xff]
  %v562 = vld [vmem:[%s1 + $0xf78] sm:$0xff]
  %v563 = vld [vmem:[%s1 + $0xf80] sm:$0xff]
  %v564 = vld [vmem:[%s1 + $0xf88] sm:$0xff]
  %v565 = vld [vmem:[%s1 + $0xf90] sm:$0xff]
  %v566 = vld [vmem:[%s1 + $0xf98] sm:$0xff]
  %v567 = vld [vmem:[%s1 + $0xfa0] sm:$0xff]
  %v568 = vld [vmem:[%s1 + $0xfa8] sm:$0xff]
  %v569 = vld [vmem:[%s1 + $0xfb0] sm:$0xff]
  %v570 = vld [vmem:[%s1 + $0xfb8] sm:$0xff]
  %v571 = vld [vmem:[%s1 + $0xfc0] sm:$0xff]
  %v572 = vld [vmem:[%s1 + $0xfc8] sm:$0xff]
  %v573 = vld [vmem:[%s1 + $0xfd0] sm:$0xff]
  %v574 = vld [vmem:[%s1 + $0xfd8] sm:$0xff]
  %v575 = vld [vmem:[%s1 + $0xfe0] sm:$0xff]
  %v576 = vld [vmem:[%s1 + $0xfe8] sm:$0xff]
  %v577 = vld [vmem:[%s1 + $0xff0] sm:$0xff]
  %v578 = vld [vmem:[%s1 + $0xff8] sm:$0xff]
  %v579 = vld [vmem:[%s1 + $0x1000] sm:$0xff]
  %v580 = vld [vmem:[%s1 + $0x1008] sm:$0xff]
  %v581 = vld [vmem:[%s1 + $0x1010] sm:$0xff]
  %v582 = vld [vmem:[%s1 + $0x1018] sm:$0xff]
  %v583 = vld [vmem:[%s1 + $0x1020] sm:$0xff]
  %v584 = vld [vmem:[%s1 + $0x1028] sm:$0xff]
  %v585 = vld [vmem:[%s1 + $0x1030] sm:$0xff]
  %v586 = vld [vmem:[%s1 + $0x1038] sm:$0xff]
  %v587 = vld [vmem:[%s1 + $0x1040] sm:$0xff]
  %v588 = vld [vmem:[%s1 + $0x1048] sm:$0xff]
  %v589 = vld [vmem:[%s1 + $0x1050] sm:$0xff]
  %v590 = vld [vmem:[%s1 + $0x1058] sm:$0xff]
  %v591 = vld [vmem:[%s1 + $0x1060] sm:$0xff]
  %v592 = vld [vmem:[%s1 + $0x1068] sm:$0xff]
  %v593 = vld [vmem:[%s1 + $0x1070] sm:$0xff]
  %v594 = vld [vmem:[%s1 + $0x1078] sm:$0xff]
  %v595 = vld [vmem:[%s1 + $0x1080] sm:$0xff]
  %v596 = vld [vmem:[%s1 + $0x1088] sm:$0xff]
  %v597 = vld [vmem:[%s1 + $0x1090] sm:$0xff]
  %v598 = vld [vmem:[%s1 + $0x1098] sm:$0xff]
  %v599 = vld [vmem:[%s1 + $0x10a0] sm:$0xff]
  %v600 = vld [vmem:[%s1 + $0x10a8] sm:$0xff]
  %v601 = vld [vmem:[%s1 + $0x10b0] sm:$0xff]
  %v602 = vld [vmem:[%s1 + $0x10b8] sm:$0xff]
  %v603 = vld [vmem:[%s1 + $0x10c0] sm:$0xff]
  %v604 = vld [vmem:[%s1 + $0x10c8] sm:$0xff]
  %v605 = vld [vmem:[%s1 + $0x10d0] sm:$0xff]
  %v606 = vld [vmem:[%s1 + $0x10d8] sm:$0xff]
  %v607 = vld [vmem:[%s1 + $0x10e0] sm:$0xff]
  %v608 = vld [vmem:[%s1 + $0x10e8] sm:$0xff]
  %v609 = vld [vmem:[%s1 + $0x10f0] sm:$0xff]
  %v610 = vld [vmem:[%s1 + $0x10f8] sm:$0xff]
  %v611 = vld [vmem:[%s1 + $0x1100] sm:$0xff]
  %v612 = vld [vmem:[%s1 + $0x1108] sm:$0xff]
  %v613 = vld [vmem:[%s1 + $0x1110] sm:$0xff]
  %v614 = vld [vmem:[%s1 + $0x1118] sm:$0xff]
  %v615 = vld [vmem:[%s1 + $0x1120] sm:$0xff]
  %v616 = vld [vmem:[%s1 + $0x1128] sm:$0xff]
  %v617 = vld [vmem:[%s1 + $0x1130] sm:$0xff]
  %v618 = vld [vmem:[%s1 + $0x1138] sm:$0xff]
  %v619 = vld [vmem:[%s1 + $0x1140] sm:$0xff]
  %v620 = vld [vmem:[%s1 + $0x1148] sm:$0xff]
  %v621 = vld [vmem:[%s1 + $0x1150] sm:$0xff]
  %v622 = vld [vmem:[%s1 + $0x1158] sm:$0xff]
  %v623 = vld [vmem:[%s1 + $0x1160] sm:$0xff]
  %v624 = vld [vmem:[%s1 + $0x1168] sm:$0xff]
  %v625 = vld [vmem:[%s1 + $0x1170] sm:$0xff]
  %v626 = vld [vmem:[%s1 + $0x1178] sm:$0xff]
  %v627 = vld [vmem:[%s1 + $0x1180] sm:$0xff]
  %v628 = vld [vmem:[%s1 + $0x1188] sm:$0xff]
  %v629 = vld [vmem:[%s1 + $0x1190] sm:$0xff]
  %v630 = vld [vmem:[%s1 + $0x1198] sm:$0xff]
  %v631 = vld [vmem:[%s1 + $0x11a0] sm:$0xff]
  %v632 = vld [vmem:[%s1 + $0x11a8] sm:$0xff]
  %v633 = vld [vmem:[%s1 + $0x11b0] sm:$0xff]
  %v634 = vld [vmem:[%s1 + $0x11b8] sm:$0xff]
  %v635 = vld [vmem:[%s1 + $0x11c0] sm:$0xff]
  %v636 = vld [vmem:[%s1 + $0x11c8] sm:$0xff]
  %v637 = vld [vmem:[%s1 + $0x11d0] sm:$0xff]
  %v638 = vld [vmem:[%s1 + $0x11d8] sm:$0xff]
  %v639 = vld [vmem:[%s1 + $0x11e0] sm:$0xff]
  %v640 = vld [vmem:[%s1 + $0x11e8] sm:$0xff]
  %v641 = vld [vmem:[%s1 + $0x11f0] sm:$0xff]
  %v642 = vld [vmem:[%s1 + $0x11f8] sm:$0xff]
  %v643 = vld [vmem:[%s2] sm:$0xf]
  %v645 = vlaneseq
  %v646 = vshrl.u32 %v645, 7
  %v647 = vsub.s32 0, %v646
  %v648 = vrot.slane %v643, %v647
  %v649 = vlaneseq
  %v650 = vshrl.u32 %v649, 7
  %v651 = vsub.s32 1, %v650
  %v652 = vrot.slane %v643, %v651
  %v653 = vlaneseq
  %v654 = vshrl.u32 %v653, 7
  %v655 = vsub.s32 2, %v654
  %v656 = vrot.slane %v643, %v655
  %v657 = vlaneseq
  %v658 = vshrl.u32 %v657, 7
  %v659 = vsub.s32 3, %v658
  %v660 = vrot.slane %v643, %v659
  %v701 = vunpack.c.l.b16 %v31
  %v702 = vunpack.c.h.b16 %v31
  %v703 = vunpack.c.l.b16 %v32
  %v704 = vunpack.c.h.b16 %v32
  %v705 = vunpack.c.l.b16 %v33
  %v706 = vunpack.c.h.b16 %v33
  %v707 = vunpack.c.l.b16 %v34
  %v708 = vunpack.c.h.b16 %v34
  %v709 = vunpack.c.l.b16 %v35
  %v710 = vunpack.c.h.b16 %v35
  %v711 = vunpack.c.l.b16 %v36
  %v712 = vunpack.c.h.b16 %v36
  %v713 = vunpack.c.l.b16 %v37
  %v714 = vunpack.c.h.b16 %v37
  %v715 = vunpack.c.l.b16 %v38
  %v716 = vunpack.c.h.b16 %v38
  %v717 = vunpack.c.l.b16 %v39
  %v718 = vunpack.c.h.b16 %v39
  %v719 = vunpack.c.l.b16 %v40
  %v720 = vunpack.c.h.b16 %v40
  %v721 = vunpack.c.l.b16 %v41
  %v722 = vunpack.c.h.b16 %v41
  %v723 = vunpack.c.l.b16 %v42
  %v724 = vunpack.c.h.b16 %v42
  %v725 = vunpack.c.l.b16 %v43
  %v726 = vunpack.c.h.b16 %v43
  %v727 = vunpack.c.l.b16 %v44
  %v728 = vunpack.c.h.b16 %v44
  %v729 = vunpack.c.l.b16 %v45
  %v730 = vunpack.c.h.b16 %v45
  %v731 = vunpack.c.l.b16 %v46
  %v732 = vunpack.c.h.b16 %v46
  %v733 = vunpack.c.l.b16 %v47
  %v734 = vunpack.c.h.b16 %v47
  %v735 = vunpack.c.l.b16 %v48
  %v736 = vunpack.c.h.b16 %v48
  %v737 = vunpack.c.l.b16 %v49
  %v738 = vunpack.c.h.b16 %v49
  %v739 = vunpack.c.l.b16 %v50
  %v740 = vunpack.c.h.b16 %v50
  %v741 = vunpack.c.l.b16 %v51
  %v742 = vunpack.c.h.b16 %v51
  %v743 = vunpack.c.l.b16 %v52
  %v744 = vunpack.c.h.b16 %v52
  %v745 = vunpack.c.l.b16 %v53
  %v746 = vunpack.c.h.b16 %v53
  %v747 = vunpack.c.l.b16 %v54
  %v748 = vunpack.c.h.b16 %v54
  %v749 = vunpack.c.l.b16 %v55
  %v750 = vunpack.c.h.b16 %v55
  %v751 = vunpack.c.l.b16 %v56
  %v752 = vunpack.c.h.b16 %v56
  %v753 = vunpack.c.l.b16 %v57
  %v754 = vunpack.c.h.b16 %v57
  %v755 = vunpack.c.l.b16 %v58
  %v756 = vunpack.c.h.b16 %v58
  %v757 = vunpack.c.l.b16 %v59
  %v758 = vunpack.c.h.b16 %v59
  %v759 = vunpack.c.l.b16 %v60
  %v760 = vunpack.c.h.b16 %v60
  %v761 = vunpack.c.l.b16 %v61
  %v762 = vunpack.c.h.b16 %v61
  %v763 = vunpack.c.l.b16 %v62
  %v764 = vunpack.c.h.b16 %v62
  %v765 = vunpack.c.l.b16 %v63
  %v766 = vunpack.c.h.b16 %v63
  %v767 = vunpack.c.l.b16 %v64
  %v768 = vunpack.c.h.b16 %v64
  %v769 = vunpack.c.l.b16 %v65
  %v770 = vunpack.c.h.b16 %v65
  %v771 = vunpack.c.l.b16 %v66
  %v772 = vunpack.c.h.b16 %v66
  %v773 = vpack.c.b16 %v719, %v701
  %v774 = vpack.c.b16 %v720, %v702
  %v775 = vpack.c.b16 %v721, %v703
  %v776 = vpack.c.b16 %v722, %v704
  %v777 = vpack.c.b16 %v723, %v705
  %v778 = vpack.c.b16 %v724, %v706
  %v779 = vpack.c.b16 %v725, %v707
  %v780 = vpack.c.b16 %v726, %v708
  %v781 = vpack.c.b16 %v727, %v709
  %v782 = vpack.c.b16 %v728, %v710
  %v783 = vpack.c.b16 %v729, %v711
  %v784 = vpack.c.b16 %v730, %v712
  %v785 = vpack.c.b16 %v731, %v713
  %v786 = vpack.c.b16 %v732, %v714
  %v787 = vpack.c.b16 %v733, %v715
  %v788 = vpack.c.b16 %v734, %v716
  %v789 = vpack.c.b16 %v735, %v717
  %v790 = vpack.c.b16 %v736, %v718
  %v791 = vpack.c.b16 %v755, %v737
  %v792 = vpack.c.b16 %v756, %v738
  %v793 = vpack.c.b16 %v757, %v739
  %v794 = vpack.c.b16 %v758, %v740
  %v795 = vpack.c.b16 %v759, %v741
  %v796 = vpack.c.b16 %v760, %v742
  %v797 = vpack.c.b16 %v761, %v743
  %v798 = vpack.c.b16 %v762, %v744
  %v799 = vpack.c.b16 %v763, %v745
  %v800 = vpack.c.b16 %v764, %v746
  %v801 = vpack.c.b16 %v765, %v747
  %v802 = vpack.c.b16 %v766, %v748
  %v803 = vpack.c.b16 %v767, %v749
  %v804 = vpack.c.b16 %v768, %v750
  %v805 = vpack.c.b16 %v769, %v751
  %v806 = vpack.c.b16 %v770, %v752
  %v807 = vpack.c.b16 %v771, %v753
  %v808 = vpack.c.b16 %v772, %v754
  %v1421 = vunpack.c.l.b16 %v67
  %v1422 = vunpack.c.h.b16 %v67
  %v1423 = vunpack.c.l.b16 %v68
  %v1424 = vunpack.c.h.b16 %v68
  %v1425 = vunpack.c.l.b16 %v69
  %v1426 = vunpack.c.h.b16 %v69
  %v1427 = vunpack.c.l.b16 %v70
  %v1428 = vunpack.c.h.b16 %v70
  %v1429 = vunpack.c.l.b16 %v71
  %v1430 = vunpack.c.h.b16 %v71
  %v1431 = vunpack.c.l.b16 %v72
  %v1432 = vunpack.c.h.b16 %v72
  %v1433 = vunpack.c.l.b16 %v73
  %v1434 = vunpack.c.h.b16 %v73
  %v1435 = vunpack.c.l.b16 %v74
  %v1436 = vunpack.c.h.b16 %v74
  %v1437 = vunpack.c.l.b16 %v75
  %v1438 = vunpack.c.h.b16 %v75
  %v1439 = vunpack.c.l.b16 %v76
  %v1440 = vunpack.c.h.b16 %v76
  %v1441 = vunpack.c.l.b16 %v77
  %v1442 = vunpack.c.h.b16 %v77
  %v1443 = vunpack.c.l.b16 %v78
  %v1444 = vunpack.c.h.b16 %v78
  %v1445 = vunpack.c.l.b16 %v79
  %v1446 = vunpack.c.h.b16 %v79
  %v1447 = vunpack.c.l.b16 %v80
  %v1448 = vunpack.c.h.b16 %v80
  %v1449 = vunpack.c.l.b16 %v81
  %v1450 = vunpack.c.h.b16 %v81
  %v1451 = vunpack.c.l.b16 %v82
  %v1452 = vunpack.c.h.b16 %v82
  %v1453 = vunpack.c.l.b16 %v83
  %v1454 = vunpack.c.h.b16 %v83
  %v1455 = vunpack.c.l.b16 %v84
  %v1456 = vunpack.c.h.b16 %v84
  %v1457 = vunpack.c.l.b16 %v85
  %v1458 = vunpack.c.h.b16 %v85
  %v1459 = vunpack.c.l.b16 %v86
  %v1460 = vunpack.c.h.b16 %v86
  %v1461 = vunpack.c.l.b16 %v87
  %v1462 = vunpack.c.h.b16 %v87
  %v1463 = vunpack.c.l.b16 %v88
  %v1464 = vunpack.c.h.b16 %v88
  %v1465 = vunpack.c.l.b16 %v89
  %v1466 = vunpack.c.h.b16 %v89
  %v1467 = vunpack.c.l.b16 %v90
  %v1468 = vunpack.c.h.b16 %v90
  %v1469 = vunpack.c.l.b16 %v91
  %v1470 = vunpack.c.h.b16 %v91
  %v1471 = vunpack.c.l.b16 %v92
  %v1472 = vunpack.c.h.b16 %v92
  %v1473 = vunpack.c.l.b16 %v93
  %v1474 = vunpack.c.h.b16 %v93
  %v1475 = vunpack.c.l.b16 %v94
  %v1476 = vunpack.c.h.b16 %v94
  %v1477 = vunpack.c.l.b16 %v95
  %v1478 = vunpack.c.h.b16 %v95
  %v1479 = vunpack.c.l.b16 %v96
  %v1480 = vunpack.c.h.b16 %v96
  %v1481 = vunpack.c.l.b16 %v97
  %v1482 = vunpack.c.h.b16 %v97
  %v1483 = vunpack.c.l.b16 %v98
  %v1484 = vunpack.c.h.b16 %v98
  %v1485 = vunpack.c.l.b16 %v99
  %v1486 = vunpack.c.h.b16 %v99
  %v1487 = vunpack.c.l.b16 %v100
  %v1488 = vunpack.c.h.b16 %v100
  %v1489 = vunpack.c.l.b16 %v101
  %v1490 = vunpack.c.h.b16 %v101
  %v1491 = vunpack.c.l.b16 %v102
  %v1492 = vunpack.c.h.b16 %v102
  %v1493 = vunpack.c.l.b16 %v103
  %v1494 = vunpack.c.h.b16 %v103
  %v1495 = vunpack.c.l.b16 %v104
  %v1496 = vunpack.c.h.b16 %v104
  %v1497 = vunpack.c.l.b16 %v105
  %v1498 = vunpack.c.h.b16 %v105
  %v1499 = vunpack.c.l.b16 %v106
  %v1500 = vunpack.c.h.b16 %v106
  %v1501 = vunpack.c.l.b16 %v107
  %v1502 = vunpack.c.h.b16 %v107
  %v1503 = vunpack.c.l.b16 %v108
  %v1504 = vunpack.c.h.b16 %v108
  %v1505 = vunpack.c.l.b16 %v109
  %v1506 = vunpack.c.h.b16 %v109
  %v1507 = vunpack.c.l.b16 %v110
  %v1508 = vunpack.c.h.b16 %v110
  %v1509 = vunpack.c.l.b16 %v111
  %v1510 = vunpack.c.h.b16 %v111
  %v1511 = vunpack.c.l.b16 %v112
  %v1512 = vunpack.c.h.b16 %v112
  %v1513 = vunpack.c.l.b16 %v113
  %v1514 = vunpack.c.h.b16 %v113
  %v1515 = vunpack.c.l.b16 %v114
  %v1516 = vunpack.c.h.b16 %v114
  %v1517 = vunpack.c.l.b16 %v115
  %v1518 = vunpack.c.h.b16 %v115
  %v1519 = vunpack.c.l.b16 %v116
  %v1520 = vunpack.c.h.b16 %v116
  %v1521 = vunpack.c.l.b16 %v117
  %v1522 = vunpack.c.h.b16 %v117
  %v1523 = vunpack.c.l.b16 %v118
  %v1524 = vunpack.c.h.b16 %v118
  %v1525 = vunpack.c.l.b16 %v119
  %v1526 = vunpack.c.h.b16 %v119
  %v1527 = vunpack.c.l.b16 %v120
  %v1528 = vunpack.c.h.b16 %v120
  %v1529 = vunpack.c.l.b16 %v121
  %v1530 = vunpack.c.h.b16 %v121
  %v1531 = vunpack.c.l.b16 %v122
  %v1532 = vunpack.c.h.b16 %v122
  %v1533 = vunpack.c.l.b16 %v123
  %v1534 = vunpack.c.h.b16 %v123
  %v1535 = vunpack.c.l.b16 %v124
  %v1536 = vunpack.c.h.b16 %v124
  %v1537 = vunpack.c.l.b16 %v125
  %v1538 = vunpack.c.h.b16 %v125
  %v1539 = vunpack.c.l.b16 %v126
  %v1540 = vunpack.c.h.b16 %v126
  %v1541 = vunpack.c.l.b16 %v127
  %v1542 = vunpack.c.h.b16 %v127
  %v1543 = vunpack.c.l.b16 %v128
  %v1544 = vunpack.c.h.b16 %v128
  %v1545 = vunpack.c.l.b16 %v129
  %v1546 = vunpack.c.h.b16 %v129
  %v1547 = vunpack.c.l.b16 %v130
  %v1548 = vunpack.c.h.b16 %v130
  %v1549 = vunpack.c.l.b16 %v131
  %v1550 = vunpack.c.h.b16 %v131
  %v1551 = vunpack.c.l.b16 %v132
  %v1552 = vunpack.c.h.b16 %v132
  %v1553 = vunpack.c.l.b16 %v133
  %v1554 = vunpack.c.h.b16 %v133
  %v1555 = vunpack.c.l.b16 %v134
  %v1556 = vunpack.c.h.b16 %v134
  %v1557 = vunpack.c.l.b16 %v135
  %v1558 = vunpack.c.h.b16 %v135
  %v1559 = vunpack.c.l.b16 %v136
  %v1560 = vunpack.c.h.b16 %v136
  %v1561 = vunpack.c.l.b16 %v137
  %v1562 = vunpack.c.h.b16 %v137
  %v1563 = vunpack.c.l.b16 %v138
  %v1564 = vunpack.c.h.b16 %v138
  %v1565 = vunpack.c.l.b16 %v139
  %v1566 = vunpack.c.h.b16 %v139
  %v1567 = vunpack.c.l.b16 %v140
  %v1568 = vunpack.c.h.b16 %v140
  %v1569 = vunpack.c.l.b16 %v141
  %v1570 = vunpack.c.h.b16 %v141
  %v1571 = vunpack.c.l.b16 %v142
  %v1572 = vunpack.c.h.b16 %v142
  %v1573 = vunpack.c.l.b16 %v143
  %v1574 = vunpack.c.h.b16 %v143
  %v1575 = vunpack.c.l.b16 %v144
  %v1576 = vunpack.c.h.b16 %v144
  %v1577 = vunpack.c.l.b16 %v145
  %v1578 = vunpack.c.h.b16 %v145
  %v1579 = vunpack.c.l.b16 %v146
  %v1580 = vunpack.c.h.b16 %v146
  %v1581 = vunpack.c.l.b16 %v147
  %v1582 = vunpack.c.h.b16 %v147
  %v1583 = vunpack.c.l.b16 %v148
  %v1584 = vunpack.c.h.b16 %v148
  %v1585 = vunpack.c.l.b16 %v149
  %v1586 = vunpack.c.h.b16 %v149
  %v1587 = vunpack.c.l.b16 %v150
  %v1588 = vunpack.c.h.b16 %v150
  %v1589 = vunpack.c.l.b16 %v151
  %v1590 = vunpack.c.h.b16 %v151
  %v1591 = vunpack.c.l.b16 %v152
  %v1592 = vunpack.c.h.b16 %v152
  %v1593 = vunpack.c.l.b16 %v153
  %v1594 = vunpack.c.h.b16 %v153
  %v1595 = vunpack.c.l.b16 %v154
  %v1596 = vunpack.c.h.b16 %v154
  %v1597 = vunpack.c.l.b16 %v155
  %v1598 = vunpack.c.h.b16 %v155
  %v1599 = vunpack.c.l.b16 %v156
  %v1600 = vunpack.c.h.b16 %v156
  %v1601 = vunpack.c.l.b16 %v157
  %v1602 = vunpack.c.h.b16 %v157
  %v1603 = vunpack.c.l.b16 %v158
  %v1604 = vunpack.c.h.b16 %v158
  %v1605 = vunpack.c.l.b16 %v159
  %v1606 = vunpack.c.h.b16 %v159
  %v1607 = vunpack.c.l.b16 %v160
  %v1608 = vunpack.c.h.b16 %v160
  %v1609 = vunpack.c.l.b16 %v161
  %v1610 = vunpack.c.h.b16 %v161
  %v1611 = vunpack.c.l.b16 %v162
  %v1612 = vunpack.c.h.b16 %v162
  %v1613 = vunpack.c.l.b16 %v163
  %v1614 = vunpack.c.h.b16 %v163
  %v1615 = vunpack.c.l.b16 %v164
  %v1616 = vunpack.c.h.b16 %v164
  %v1617 = vunpack.c.l.b16 %v165
  %v1618 = vunpack.c.h.b16 %v165
  %v1619 = vunpack.c.l.b16 %v166
  %v1620 = vunpack.c.h.b16 %v166
  %v1621 = vunpack.c.l.b16 %v167
  %v1622 = vunpack.c.h.b16 %v167
  %v1623 = vunpack.c.l.b16 %v168
  %v1624 = vunpack.c.h.b16 %v168
  %v1625 = vunpack.c.l.b16 %v169
  %v1626 = vunpack.c.h.b16 %v169
  %v1627 = vunpack.c.l.b16 %v170
  %v1628 = vunpack.c.h.b16 %v170
  %v1629 = vunpack.c.l.b16 %v171
  %v1630 = vunpack.c.h.b16 %v171
  %v1631 = vunpack.c.l.b16 %v172
  %v1632 = vunpack.c.h.b16 %v172
  %v1633 = vunpack.c.l.b16 %v173
  %v1634 = vunpack.c.h.b16 %v173
  %v1635 = vunpack.c.l.b16 %v174
  %v1636 = vunpack.c.h.b16 %v174
  %v1637 = vunpack.c.l.b16 %v175
  %v1638 = vunpack.c.h.b16 %v175
  %v1639 = vunpack.c.l.b16 %v176
  %v1640 = vunpack.c.h.b16 %v176
  %v1641 = vunpack.c.l.b16 %v177
  %v1642 = vunpack.c.h.b16 %v177
  %v1643 = vunpack.c.l.b16 %v178
  %v1644 = vunpack.c.h.b16 %v178
  %v1645 = vunpack.c.l.b16 %v179
  %v1646 = vunpack.c.h.b16 %v179
  %v1647 = vunpack.c.l.b16 %v180
  %v1648 = vunpack.c.h.b16 %v180
  %v1649 = vunpack.c.l.b16 %v181
  %v1650 = vunpack.c.h.b16 %v181
  %v1651 = vunpack.c.l.b16 %v182
  %v1652 = vunpack.c.h.b16 %v182
  %v1653 = vunpack.c.l.b16 %v183
  %v1654 = vunpack.c.h.b16 %v183
  %v1655 = vunpack.c.l.b16 %v184
  %v1656 = vunpack.c.h.b16 %v184
  %v1657 = vunpack.c.l.b16 %v185
  %v1658 = vunpack.c.h.b16 %v185
  %v1659 = vunpack.c.l.b16 %v186
  %v1660 = vunpack.c.h.b16 %v186
  %v1661 = vunpack.c.l.b16 %v187
  %v1662 = vunpack.c.h.b16 %v187
  %v1663 = vunpack.c.l.b16 %v188
  %v1664 = vunpack.c.h.b16 %v188
  %v1665 = vunpack.c.l.b16 %v189
  %v1666 = vunpack.c.h.b16 %v189
  %v1667 = vunpack.c.l.b16 %v190
  %v1668 = vunpack.c.h.b16 %v190
  %v1669 = vunpack.c.l.b16 %v191
  %v1670 = vunpack.c.h.b16 %v191
  %v1671 = vunpack.c.l.b16 %v192
  %v1672 = vunpack.c.h.b16 %v192
  %v1673 = vunpack.c.l.b16 %v193
  %v1674 = vunpack.c.h.b16 %v193
  %v1675 = vunpack.c.l.b16 %v194
  %v1676 = vunpack.c.h.b16 %v194
  %v1677 = vunpack.c.l.b16 %v195
  %v1678 = vunpack.c.h.b16 %v195
  %v1679 = vunpack.c.l.b16 %v196
  %v1680 = vunpack.c.h.b16 %v196
  %v1681 = vunpack.c.l.b16 %v197
  %v1682 = vunpack.c.h.b16 %v197
  %v1683 = vunpack.c.l.b16 %v198
  %v1684 = vunpack.c.h.b16 %v198
  %v1685 = vunpack.c.l.b16 %v199
  %v1686 = vunpack.c.h.b16 %v199
  %v1687 = vunpack.c.l.b16 %v200
  %v1688 = vunpack.c.h.b16 %v200
  %v1689 = vunpack.c.l.b16 %v201
  %v1690 = vunpack.c.h.b16 %v201
  %v1691 = vunpack.c.l.b16 %v202
  %v1692 = vunpack.c.h.b16 %v202
  %v1693 = vunpack.c.l.b16 %v203
  %v1694 = vunpack.c.h.b16 %v203
  %v1695 = vunpack.c.l.b16 %v204
  %v1696 = vunpack.c.h.b16 %v204
  %v1697 = vunpack.c.l.b16 %v205
  %v1698 = vunpack.c.h.b16 %v205
  %v1699 = vunpack.c.l.b16 %v206
  %v1700 = vunpack.c.h.b16 %v206
  %v1701 = vunpack.c.l.b16 %v207
  %v1702 = vunpack.c.h.b16 %v207
  %v1703 = vunpack.c.l.b16 %v208
  %v1704 = vunpack.c.h.b16 %v208
  %v1705 = vunpack.c.l.b16 %v209
  %v1706 = vunpack.c.h.b16 %v209
  %v1707 = vunpack.c.l.b16 %v210
  %v1708 = vunpack.c.h.b16 %v210
  %v1709 = vunpack.c.l.b16 %v211
  %v1710 = vunpack.c.h.b16 %v211
  %v1711 = vunpack.c.l.b16 %v212
  %v1712 = vunpack.c.h.b16 %v212
  %v1713 = vunpack.c.l.b16 %v213
  %v1714 = vunpack.c.h.b16 %v213
  %v1715 = vunpack.c.l.b16 %v214
  %v1716 = vunpack.c.h.b16 %v214
  %v1717 = vunpack.c.l.b16 %v215
  %v1718 = vunpack.c.h.b16 %v215
  %v1719 = vunpack.c.l.b16 %v216
  %v1720 = vunpack.c.h.b16 %v216
  %v1721 = vunpack.c.l.b16 %v217
  %v1722 = vunpack.c.h.b16 %v217
  %v1723 = vunpack.c.l.b16 %v218
  %v1724 = vunpack.c.h.b16 %v218
  %v1725 = vunpack.c.l.b16 %v219
  %v1726 = vunpack.c.h.b16 %v219
  %v1727 = vunpack.c.l.b16 %v220
  %v1728 = vunpack.c.h.b16 %v220
  %v1729 = vunpack.c.l.b16 %v221
  %v1730 = vunpack.c.h.b16 %v221
  %v1731 = vunpack.c.l.b16 %v222
  %v1732 = vunpack.c.h.b16 %v222
  %v1733 = vunpack.c.l.b16 %v223
  %v1734 = vunpack.c.h.b16 %v223
  %v1735 = vunpack.c.l.b16 %v224
  %v1736 = vunpack.c.h.b16 %v224
  %v1737 = vunpack.c.l.b16 %v225
  %v1738 = vunpack.c.h.b16 %v225
  %v1739 = vunpack.c.l.b16 %v226
  %v1740 = vunpack.c.h.b16 %v226
  %v1741 = vunpack.c.l.b16 %v227
  %v1742 = vunpack.c.h.b16 %v227
  %v1743 = vunpack.c.l.b16 %v228
  %v1744 = vunpack.c.h.b16 %v228
  %v1745 = vunpack.c.l.b16 %v229
  %v1746 = vunpack.c.h.b16 %v229
  %v1747 = vunpack.c.l.b16 %v230
  %v1748 = vunpack.c.h.b16 %v230
  %v1749 = vunpack.c.l.b16 %v231
  %v1750 = vunpack.c.h.b16 %v231
  %v1751 = vunpack.c.l.b16 %v232
  %v1752 = vunpack.c.h.b16 %v232
  %v1753 = vunpack.c.l.b16 %v233
  %v1754 = vunpack.c.h.b16 %v233
  %v1755 = vunpack.c.l.b16 %v234
  %v1756 = vunpack.c.h.b16 %v234
  %v1757 = vunpack.c.l.b16 %v235
  %v1758 = vunpack.c.h.b16 %v235
  %v1759 = vunpack.c.l.b16 %v236
  %v1760 = vunpack.c.h.b16 %v236
  %v1761 = vunpack.c.l.b16 %v237
  %v1762 = vunpack.c.h.b16 %v237
  %v1763 = vunpack.c.l.b16 %v238
  %v1764 = vunpack.c.h.b16 %v238
  %v1765 = vunpack.c.l.b16 %v239
  %v1766 = vunpack.c.h.b16 %v239
  %v1767 = vunpack.c.l.b16 %v240
  %v1768 = vunpack.c.h.b16 %v240
  %v1769 = vunpack.c.l.b16 %v241
  %v1770 = vunpack.c.h.b16 %v241
  %v1771 = vunpack.c.l.b16 %v242
  %v1772 = vunpack.c.h.b16 %v242
  %v1773 = vunpack.c.l.b16 %v243
  %v1774 = vunpack.c.h.b16 %v243
  %v1775 = vunpack.c.l.b16 %v244
  %v1776 = vunpack.c.h.b16 %v244
  %v1777 = vunpack.c.l.b16 %v245
  %v1778 = vunpack.c.h.b16 %v245
  %v1779 = vunpack.c.l.b16 %v246
  %v1780 = vunpack.c.h.b16 %v246
  %v1781 = vunpack.c.l.b16 %v247
  %v1782 = vunpack.c.h.b16 %v247
  %v1783 = vunpack.c.l.b16 %v248
  %v1784 = vunpack.c.h.b16 %v248
  %v1785 = vunpack.c.l.b16 %v249
  %v1786 = vunpack.c.h.b16 %v249
  %v1787 = vunpack.c.l.b16 %v250
  %v1788 = vunpack.c.h.b16 %v250
  %v1789 = vunpack.c.l.b16 %v251
  %v1790 = vunpack.c.h.b16 %v251
  %v1791 = vunpack.c.l.b16 %v252
  %v1792 = vunpack.c.h.b16 %v252
  %v1793 = vunpack.c.l.b16 %v253
  %v1794 = vunpack.c.h.b16 %v253
  %v1795 = vunpack.c.l.b16 %v254
  %v1796 = vunpack.c.h.b16 %v254
  %v1797 = vunpack.c.l.b16 %v255
  %v1798 = vunpack.c.h.b16 %v255
  %v1799 = vunpack.c.l.b16 %v256
  %v1800 = vunpack.c.h.b16 %v256
  %v1801 = vunpack.c.l.b16 %v257
  %v1802 = vunpack.c.h.b16 %v257
  %v1803 = vunpack.c.l.b16 %v258
  %v1804 = vunpack.c.h.b16 %v258
  %v1805 = vunpack.c.l.b16 %v259
  %v1806 = vunpack.c.h.b16 %v259
  %v1807 = vunpack.c.l.b16 %v260
  %v1808 = vunpack.c.h.b16 %v260
  %v1809 = vunpack.c.l.b16 %v261
  %v1810 = vunpack.c.h.b16 %v261
  %v1811 = vunpack.c.l.b16 %v262
  %v1812 = vunpack.c.h.b16 %v262
  %v1813 = vunpack.c.l.b16 %v263
  %v1814 = vunpack.c.h.b16 %v263
  %v1815 = vunpack.c.l.b16 %v264
  %v1816 = vunpack.c.h.b16 %v264
  %v1817 = vunpack.c.l.b16 %v265
  %v1818 = vunpack.c.h.b16 %v265
  %v1819 = vunpack.c.l.b16 %v266
  %v1820 = vunpack.c.h.b16 %v266
  %v1821 = vunpack.c.l.b16 %v267
  %v1822 = vunpack.c.h.b16 %v267
  %v1823 = vunpack.c.l.b16 %v268
  %v1824 = vunpack.c.h.b16 %v268
  %v1825 = vunpack.c.l.b16 %v269
  %v1826 = vunpack.c.h.b16 %v269
  %v1827 = vunpack.c.l.b16 %v270
  %v1828 = vunpack.c.h.b16 %v270
  %v1829 = vunpack.c.l.b16 %v271
  %v1830 = vunpack.c.h.b16 %v271
  %v1831 = vunpack.c.l.b16 %v272
  %v1832 = vunpack.c.h.b16 %v272
  %v1833 = vunpack.c.l.b16 %v273
  %v1834 = vunpack.c.h.b16 %v273
  %v1835 = vunpack.c.l.b16 %v274
  %v1836 = vunpack.c.h.b16 %v274
  %v1837 = vunpack.c.l.b16 %v275
  %v1838 = vunpack.c.h.b16 %v275
  %v1839 = vunpack.c.l.b16 %v276
  %v1840 = vunpack.c.h.b16 %v276
  %v1841 = vunpack.c.l.b16 %v277
  %v1842 = vunpack.c.h.b16 %v277
  %v1843 = vunpack.c.l.b16 %v278
  %v1844 = vunpack.c.h.b16 %v278
  %v1845 = vunpack.c.l.b16 %v279
  %v1846 = vunpack.c.h.b16 %v279
  %v1847 = vunpack.c.l.b16 %v280
  %v1848 = vunpack.c.h.b16 %v280
  %v1849 = vunpack.c.l.b16 %v281
  %v1850 = vunpack.c.h.b16 %v281
  %v1851 = vunpack.c.l.b16 %v282
  %v1852 = vunpack.c.h.b16 %v282
  %v1853 = vunpack.c.l.b16 %v283
  %v1854 = vunpack.c.h.b16 %v283
  %v1855 = vunpack.c.l.b16 %v284
  %v1856 = vunpack.c.h.b16 %v284
  %v1857 = vunpack.c.l.b16 %v285
  %v1858 = vunpack.c.h.b16 %v285
  %v1859 = vunpack.c.l.b16 %v286
  %v1860 = vunpack.c.h.b16 %v286
  %v1861 = vunpack.c.l.b16 %v287
  %v1862 = vunpack.c.h.b16 %v287
  %v1863 = vunpack.c.l.b16 %v288
  %v1864 = vunpack.c.h.b16 %v288
  %v1865 = vunpack.c.l.b16 %v289
  %v1866 = vunpack.c.h.b16 %v289
  %v1867 = vunpack.c.l.b16 %v290
  %v1868 = vunpack.c.h.b16 %v290
  %v1869 = vunpack.c.l.b16 %v291
  %v1870 = vunpack.c.h.b16 %v291
  %v1871 = vunpack.c.l.b16 %v292
  %v1872 = vunpack.c.h.b16 %v292
  %v1873 = vunpack.c.l.b16 %v293
  %v1874 = vunpack.c.h.b16 %v293
  %v1875 = vunpack.c.l.b16 %v294
  %v1876 = vunpack.c.h.b16 %v294
  %v1877 = vunpack.c.l.b16 %v295
  %v1878 = vunpack.c.h.b16 %v295
  %v1879 = vunpack.c.l.b16 %v296
  %v1880 = vunpack.c.h.b16 %v296
  %v1881 = vunpack.c.l.b16 %v297
  %v1882 = vunpack.c.h.b16 %v297
  %v1883 = vunpack.c.l.b16 %v298
  %v1884 = vunpack.c.h.b16 %v298
  %v1885 = vunpack.c.l.b16 %v299
  %v1886 = vunpack.c.h.b16 %v299
  %v1887 = vunpack.c.l.b16 %v300
  %v1888 = vunpack.c.h.b16 %v300
  %v1889 = vunpack.c.l.b16 %v301
  %v1890 = vunpack.c.h.b16 %v301
  %v1891 = vunpack.c.l.b16 %v302
  %v1892 = vunpack.c.h.b16 %v302
  %v1893 = vunpack.c.l.b16 %v303
  %v1894 = vunpack.c.h.b16 %v303
  %v1895 = vunpack.c.l.b16 %v304
  %v1896 = vunpack.c.h.b16 %v304
  %v1897 = vunpack.c.l.b16 %v305
  %v1898 = vunpack.c.h.b16 %v305
  %v1899 = vunpack.c.l.b16 %v306
  %v1900 = vunpack.c.h.b16 %v306
  %v1901 = vunpack.c.l.b16 %v307
  %v1902 = vunpack.c.h.b16 %v307
  %v1903 = vunpack.c.l.b16 %v308
  %v1904 = vunpack.c.h.b16 %v308
  %v1905 = vunpack.c.l.b16 %v309
  %v1906 = vunpack.c.h.b16 %v309
  %v1907 = vunpack.c.l.b16 %v310
  %v1908 = vunpack.c.h.b16 %v310
  %v1909 = vunpack.c.l.b16 %v311
  %v1910 = vunpack.c.h.b16 %v311
  %v1911 = vunpack.c.l.b16 %v312
  %v1912 = vunpack.c.h.b16 %v312
  %v1913 = vunpack.c.l.b16 %v313
  %v1914 = vunpack.c.h.b16 %v313
  %v1915 = vunpack.c.l.b16 %v314
  %v1916 = vunpack.c.h.b16 %v314
  %v1917 = vunpack.c.l.b16 %v315
  %v1918 = vunpack.c.h.b16 %v315
  %v1919 = vunpack.c.l.b16 %v316
  %v1920 = vunpack.c.h.b16 %v316
  %v1921 = vunpack.c.l.b16 %v317
  %v1922 = vunpack.c.h.b16 %v317
  %v1923 = vunpack.c.l.b16 %v318
  %v1924 = vunpack.c.h.b16 %v318
  %v1925 = vunpack.c.l.b16 %v319
  %v1926 = vunpack.c.h.b16 %v319
  %v1927 = vunpack.c.l.b16 %v320
  %v1928 = vunpack.c.h.b16 %v320
  %v1929 = vunpack.c.l.b16 %v321
  %v1930 = vunpack.c.h.b16 %v321
  %v1931 = vunpack.c.l.b16 %v322
  %v1932 = vunpack.c.h.b16 %v322
  %v1933 = vunpack.c.l.b16 %v323
  %v1934 = vunpack.c.h.b16 %v323
  %v1935 = vunpack.c.l.b16 %v324
  %v1936 = vunpack.c.h.b16 %v324
  %v1937 = vunpack.c.l.b16 %v325
  %v1938 = vunpack.c.h.b16 %v325
  %v1939 = vunpack.c.l.b16 %v326
  %v1940 = vunpack.c.h.b16 %v326
  %v1941 = vunpack.c.l.b16 %v327
  %v1942 = vunpack.c.h.b16 %v327
  %v1943 = vunpack.c.l.b16 %v328
  %v1944 = vunpack.c.h.b16 %v328
  %v1945 = vunpack.c.l.b16 %v329
  %v1946 = vunpack.c.h.b16 %v329
  %v1947 = vunpack.c.l.b16 %v330
  %v1948 = vunpack.c.h.b16 %v330
  %v1949 = vunpack.c.l.b16 %v331
  %v1950 = vunpack.c.h.b16 %v331
  %v1951 = vunpack.c.l.b16 %v332
  %v1952 = vunpack.c.h.b16 %v332
  %v1953 = vunpack.c.l.b16 %v333
  %v1954 = vunpack.c.h.b16 %v333
  %v1955 = vunpack.c.l.b16 %v334
  %v1956 = vunpack.c.h.b16 %v334
  %v1957 = vunpack.c.l.b16 %v335
  %v1958 = vunpack.c.h.b16 %v335
  %v1959 = vunpack.c.l.b16 %v336
  %v1960 = vunpack.c.h.b16 %v336
  %v1961 = vunpack.c.l.b16 %v337
  %v1962 = vunpack.c.h.b16 %v337
  %v1963 = vunpack.c.l.b16 %v338
  %v1964 = vunpack.c.h.b16 %v338
  %v1965 = vunpack.c.l.b16 %v339
  %v1966 = vunpack.c.h.b16 %v339
  %v1967 = vunpack.c.l.b16 %v340
  %v1968 = vunpack.c.h.b16 %v340
  %v1969 = vunpack.c.l.b16 %v341
  %v1970 = vunpack.c.h.b16 %v341
  %v1971 = vunpack.c.l.b16 %v342
  %v1972 = vunpack.c.h.b16 %v342
  %v1973 = vunpack.c.l.b16 %v343
  %v1974 = vunpack.c.h.b16 %v343
  %v1975 = vunpack.c.l.b16 %v344
  %v1976 = vunpack.c.h.b16 %v344
  %v1977 = vunpack.c.l.b16 %v345
  %v1978 = vunpack.c.h.b16 %v345
  %v1979 = vunpack.c.l.b16 %v346
  %v1980 = vunpack.c.h.b16 %v346
  %v1981 = vunpack.c.l.b16 %v347
  %v1982 = vunpack.c.h.b16 %v347
  %v1983 = vunpack.c.l.b16 %v348
  %v1984 = vunpack.c.h.b16 %v348
  %v1985 = vunpack.c.l.b16 %v349
  %v1986 = vunpack.c.h.b16 %v349
  %v1987 = vunpack.c.l.b16 %v350
  %v1988 = vunpack.c.h.b16 %v350
  %v1989 = vunpack.c.l.b16 %v351
  %v1990 = vunpack.c.h.b16 %v351
  %v1991 = vunpack.c.l.b16 %v352
  %v1992 = vunpack.c.h.b16 %v352
  %v1993 = vunpack.c.l.b16 %v353
  %v1994 = vunpack.c.h.b16 %v353
  %v1995 = vunpack.c.l.b16 %v354
  %v1996 = vunpack.c.h.b16 %v354
  %v1997 = vunpack.c.l.b16 %v355
  %v1998 = vunpack.c.h.b16 %v355
  %v1999 = vunpack.c.l.b16 %v356
  %v2000 = vunpack.c.h.b16 %v356
  %v2001 = vunpack.c.l.b16 %v357
  %v2002 = vunpack.c.h.b16 %v357
  %v2003 = vunpack.c.l.b16 %v358
  %v2004 = vunpack.c.h.b16 %v358
  %v2005 = vunpack.c.l.b16 %v359
  %v2006 = vunpack.c.h.b16 %v359
  %v2007 = vunpack.c.l.b16 %v360
  %v2008 = vunpack.c.h.b16 %v360
  %v2009 = vunpack.c.l.b16 %v361
  %v2010 = vunpack.c.h.b16 %v361
  %v2011 = vunpack.c.l.b16 %v362
  %v2012 = vunpack.c.h.b16 %v362
  %v2013 = vunpack.c.l.b16 %v363
  %v2014 = vunpack.c.h.b16 %v363
  %v2015 = vunpack.c.l.b16 %v364
  %v2016 = vunpack.c.h.b16 %v364
  %v2017 = vunpack.c.l.b16 %v365
  %v2018 = vunpack.c.h.b16 %v365
  %v2019 = vunpack.c.l.b16 %v366
  %v2020 = vunpack.c.h.b16 %v366
  %v2021 = vunpack.c.l.b16 %v367
  %v2022 = vunpack.c.h.b16 %v367
  %v2023 = vunpack.c.l.b16 %v368
  %v2024 = vunpack.c.h.b16 %v368
  %v2025 = vunpack.c.l.b16 %v369
  %v2026 = vunpack.c.h.b16 %v369
  %v2027 = vunpack.c.l.b16 %v370
  %v2028 = vunpack.c.h.b16 %v370
  %v2029 = vunpack.c.l.b16 %v371
  %v2030 = vunpack.c.h.b16 %v371
  %v2031 = vunpack.c.l.b16 %v372
  %v2032 = vunpack.c.h.b16 %v372
  %v2033 = vunpack.c.l.b16 %v373
  %v2034 = vunpack.c.h.b16 %v373
  %v2035 = vunpack.c.l.b16 %v374
  %v2036 = vunpack.c.h.b16 %v374
  %v2037 = vunpack.c.l.b16 %v375
  %v2038 = vunpack.c.h.b16 %v375
  %v2039 = vunpack.c.l.b16 %v376
  %v2040 = vunpack.c.h.b16 %v376
  %v2041 = vunpack.c.l.b16 %v377
  %v2042 = vunpack.c.h.b16 %v377
  %v2043 = vunpack.c.l.b16 %v378
  %v2044 = vunpack.c.h.b16 %v378
  %v2045 = vunpack.c.l.b16 %v379
  %v2046 = vunpack.c.h.b16 %v379
  %v2047 = vunpack.c.l.b16 %v380
  %v2048 = vunpack.c.h.b16 %v380
  %v2049 = vunpack.c.l.b16 %v381
  %v2050 = vunpack.c.h.b16 %v381
  %v2051 = vunpack.c.l.b16 %v382
  %v2052 = vunpack.c.h.b16 %v382
  %v2053 = vunpack.c.l.b16 %v383
  %v2054 = vunpack.c.h.b16 %v383
  %v2055 = vunpack.c.l.b16 %v384
  %v2056 = vunpack.c.h.b16 %v384
  %v2057 = vunpack.c.l.b16 %v385
  %v2058 = vunpack.c.h.b16 %v385
  %v2059 = vunpack.c.l.b16 %v386
  %v2060 = vunpack.c.h.b16 %v386
  %v2061 = vunpack.c.l.b16 %v387
  %v2062 = vunpack.c.h.b16 %v387
  %v2063 = vunpack.c.l.b16 %v388
  %v2064 = vunpack.c.h.b16 %v388
  %v2065 = vunpack.c.l.b16 %v389
  %v2066 = vunpack.c.h.b16 %v389
  %v2067 = vunpack.c.l.b16 %v390
  %v2068 = vunpack.c.h.b16 %v390
  %v2069 = vunpack.c.l.b16 %v391
  %v2070 = vunpack.c.h.b16 %v391
  %v2071 = vunpack.c.l.b16 %v392
  %v2072 = vunpack.c.h.b16 %v392
  %v2073 = vunpack.c.l.b16 %v393
  %v2074 = vunpack.c.h.b16 %v393
  %v2075 = vunpack.c.l.b16 %v394
  %v2076 = vunpack.c.h.b16 %v394
  %v2077 = vunpack.c.l.b16 %v395
  %v2078 = vunpack.c.h.b16 %v395
  %v2079 = vunpack.c.l.b16 %v396
  %v2080 = vunpack.c.h.b16 %v396
  %v2081 = vunpack.c.l.b16 %v397
  %v2082 = vunpack.c.h.b16 %v397
  %v2083 = vunpack.c.l.b16 %v398
  %v2084 = vunpack.c.h.b16 %v398
  %v2085 = vunpack.c.l.b16 %v399
  %v2086 = vunpack.c.h.b16 %v399
  %v2087 = vunpack.c.l.b16 %v400
  %v2088 = vunpack.c.h.b16 %v400
  %v2089 = vunpack.c.l.b16 %v401
  %v2090 = vunpack.c.h.b16 %v401
  %v2091 = vunpack.c.l.b16 %v402
  %v2092 = vunpack.c.h.b16 %v402
  %v2093 = vunpack.c.l.b16 %v403
  %v2094 = vunpack.c.h.b16 %v403
  %v2095 = vunpack.c.l.b16 %v404
  %v2096 = vunpack.c.h.b16 %v404
  %v2097 = vunpack.c.l.b16 %v405
  %v2098 = vunpack.c.h.b16 %v405
  %v2099 = vunpack.c.l.b16 %v406
  %v2100 = vunpack.c.h.b16 %v406
  %v2101 = vunpack.c.l.b16 %v407
  %v2102 = vunpack.c.h.b16 %v407
  %v2103 = vunpack.c.l.b16 %v408
  %v2104 = vunpack.c.h.b16 %v408
  %v2105 = vunpack.c.l.b16 %v409
  %v2106 = vunpack.c.h.b16 %v409
  %v2107 = vunpack.c.l.b16 %v410
  %v2108 = vunpack.c.h.b16 %v410
  %v2109 = vunpack.c.l.b16 %v411
  %v2110 = vunpack.c.h.b16 %v411
  %v2111 = vunpack.c.l.b16 %v412
  %v2112 = vunpack.c.h.b16 %v412
  %v2113 = vunpack.c.l.b16 %v413
  %v2114 = vunpack.c.h.b16 %v413
  %v2115 = vunpack.c.l.b16 %v414
  %v2116 = vunpack.c.h.b16 %v414
  %v2117 = vunpack.c.l.b16 %v415
  %v2118 = vunpack.c.h.b16 %v415
  %v2119 = vunpack.c.l.b16 %v416
  %v2120 = vunpack.c.h.b16 %v416
  %v2121 = vunpack.c.l.b16 %v417
  %v2122 = vunpack.c.h.b16 %v417
  %v2123 = vunpack.c.l.b16 %v418
  %v2124 = vunpack.c.h.b16 %v418
  %v2125 = vunpack.c.l.b16 %v419
  %v2126 = vunpack.c.h.b16 %v419
  %v2127 = vunpack.c.l.b16 %v420
  %v2128 = vunpack.c.h.b16 %v420
  %v2129 = vunpack.c.l.b16 %v421
  %v2130 = vunpack.c.h.b16 %v421
  %v2131 = vunpack.c.l.b16 %v422
  %v2132 = vunpack.c.h.b16 %v422
  %v2133 = vunpack.c.l.b16 %v423
  %v2134 = vunpack.c.h.b16 %v423
  %v2135 = vunpack.c.l.b16 %v424
  %v2136 = vunpack.c.h.b16 %v424
  %v2137 = vunpack.c.l.b16 %v425
  %v2138 = vunpack.c.h.b16 %v425
  %v2139 = vunpack.c.l.b16 %v426
  %v2140 = vunpack.c.h.b16 %v426
  %v2141 = vunpack.c.l.b16 %v427
  %v2142 = vunpack.c.h.b16 %v427
  %v2143 = vunpack.c.l.b16 %v428
  %v2144 = vunpack.c.h.b16 %v428
  %v2145 = vunpack.c.l.b16 %v429
  %v2146 = vunpack.c.h.b16 %v429
  %v2147 = vunpack.c.l.b16 %v430
  %v2148 = vunpack.c.h.b16 %v430
  %v2149 = vunpack.c.l.b16 %v431
  %v2150 = vunpack.c.h.b16 %v431
  %v2151 = vunpack.c.l.b16 %v432
  %v2152 = vunpack.c.h.b16 %v432
  %v2153 = vunpack.c.l.b16 %v433
  %v2154 = vunpack.c.h.b16 %v433
  %v2155 = vunpack.c.l.b16 %v434
  %v2156 = vunpack.c.h.b16 %v434
  %v2157 = vunpack.c.l.b16 %v435
  %v2158 = vunpack.c.h.b16 %v435
  %v2159 = vunpack.c.l.b16 %v436
  %v2160 = vunpack.c.h.b16 %v436
  %v2161 = vunpack.c.l.b16 %v437
  %v2162 = vunpack.c.h.b16 %v437
  %v2163 = vunpack.c.l.b16 %v438
  %v2164 = vunpack.c.h.b16 %v438
  %v2165 = vunpack.c.l.b16 %v439
  %v2166 = vunpack.c.h.b16 %v439
  %v2167 = vunpack.c.l.b16 %v440
  %v2168 = vunpack.c.h.b16 %v440
  %v2169 = vunpack.c.l.b16 %v441
  %v2170 = vunpack.c.h.b16 %v441
  %v2171 = vunpack.c.l.b16 %v442
  %v2172 = vunpack.c.h.b16 %v442
  %v2173 = vunpack.c.l.b16 %v443
  %v2174 = vunpack.c.h.b16 %v443
  %v2175 = vunpack.c.l.b16 %v444
  %v2176 = vunpack.c.h.b16 %v444
  %v2177 = vunpack.c.l.b16 %v445
  %v2178 = vunpack.c.h.b16 %v445
  %v2179 = vunpack.c.l.b16 %v446
  %v2180 = vunpack.c.h.b16 %v446
  %v2181 = vunpack.c.l.b16 %v447
  %v2182 = vunpack.c.h.b16 %v447
  %v2183 = vunpack.c.l.b16 %v448
  %v2184 = vunpack.c.h.b16 %v448
  %v2185 = vunpack.c.l.b16 %v449
  %v2186 = vunpack.c.h.b16 %v449
  %v2187 = vunpack.c.l.b16 %v450
  %v2188 = vunpack.c.h.b16 %v450
  %v2189 = vunpack.c.l.b16 %v451
  %v2190 = vunpack.c.h.b16 %v451
  %v2191 = vunpack.c.l.b16 %v452
  %v2192 = vunpack.c.h.b16 %v452
  %v2193 = vunpack.c.l.b16 %v453
  %v2194 = vunpack.c.h.b16 %v453
  %v2195 = vunpack.c.l.b16 %v454
  %v2196 = vunpack.c.h.b16 %v454
  %v2197 = vunpack.c.l.b16 %v455
  %v2198 = vunpack.c.h.b16 %v455
  %v2199 = vunpack.c.l.b16 %v456
  %v2200 = vunpack.c.h.b16 %v456
  %v2201 = vunpack.c.l.b16 %v457
  %v2202 = vunpack.c.h.b16 %v457
  %v2203 = vunpack.c.l.b16 %v458
  %v2204 = vunpack.c.h.b16 %v458
  %v2205 = vunpack.c.l.b16 %v459
  %v2206 = vunpack.c.h.b16 %v459
  %v2207 = vunpack.c.l.b16 %v460
  %v2208 = vunpack.c.h.b16 %v460
  %v2209 = vunpack.c.l.b16 %v461
  %v2210 = vunpack.c.h.b16 %v461
  %v2211 = vunpack.c.l.b16 %v462
  %v2212 = vunpack.c.h.b16 %v462
  %v2213 = vunpack.c.l.b16 %v463
  %v2214 = vunpack.c.h.b16 %v463
  %v2215 = vunpack.c.l.b16 %v464
  %v2216 = vunpack.c.h.b16 %v464
  %v2217 = vunpack.c.l.b16 %v465
  %v2218 = vunpack.c.h.b16 %v465
  %v2219 = vunpack.c.l.b16 %v466
  %v2220 = vunpack.c.h.b16 %v466
  %v2221 = vunpack.c.l.b16 %v467
  %v2222 = vunpack.c.h.b16 %v467
  %v2223 = vunpack.c.l.b16 %v468
  %v2224 = vunpack.c.h.b16 %v468
  %v2225 = vunpack.c.l.b16 %v469
  %v2226 = vunpack.c.h.b16 %v469
  %v2227 = vunpack.c.l.b16 %v470
  %v2228 = vunpack.c.h.b16 %v470
  %v2229 = vunpack.c.l.b16 %v471
  %v2230 = vunpack.c.h.b16 %v471
  %v2231 = vunpack.c.l.b16 %v472
  %v2232 = vunpack.c.h.b16 %v472
  %v2233 = vunpack.c.l.b16 %v473
  %v2234 = vunpack.c.h.b16 %v473
  %v2235 = vunpack.c.l.b16 %v474
  %v2236 = vunpack.c.h.b16 %v474
  %v2237 = vunpack.c.l.b16 %v475
  %v2238 = vunpack.c.h.b16 %v475
  %v2239 = vunpack.c.l.b16 %v476
  %v2240 = vunpack.c.h.b16 %v476
  %v2241 = vunpack.c.l.b16 %v477
  %v2242 = vunpack.c.h.b16 %v477
  %v2243 = vunpack.c.l.b16 %v478
  %v2244 = vunpack.c.h.b16 %v478
  %v2245 = vunpack.c.l.b16 %v479
  %v2246 = vunpack.c.h.b16 %v479
  %v2247 = vunpack.c.l.b16 %v480
  %v2248 = vunpack.c.h.b16 %v480
  %v2249 = vunpack.c.l.b16 %v481
  %v2250 = vunpack.c.h.b16 %v481
  %v2251 = vunpack.c.l.b16 %v482
  %v2252 = vunpack.c.h.b16 %v482
  %v2253 = vunpack.c.l.b16 %v483
  %v2254 = vunpack.c.h.b16 %v483
  %v2255 = vunpack.c.l.b16 %v484
  %v2256 = vunpack.c.h.b16 %v484
  %v2257 = vunpack.c.l.b16 %v485
  %v2258 = vunpack.c.h.b16 %v485
  %v2259 = vunpack.c.l.b16 %v486
  %v2260 = vunpack.c.h.b16 %v486
  %v2261 = vunpack.c.l.b16 %v487
  %v2262 = vunpack.c.h.b16 %v487
  %v2263 = vunpack.c.l.b16 %v488
  %v2264 = vunpack.c.h.b16 %v488
  %v2265 = vunpack.c.l.b16 %v489
  %v2266 = vunpack.c.h.b16 %v489
  %v2267 = vunpack.c.l.b16 %v490
  %v2268 = vunpack.c.h.b16 %v490
  %v2269 = vunpack.c.l.b16 %v491
  %v2270 = vunpack.c.h.b16 %v491
  %v2271 = vunpack.c.l.b16 %v492
  %v2272 = vunpack.c.h.b16 %v492
  %v2273 = vunpack.c.l.b16 %v493
  %v2274 = vunpack.c.h.b16 %v493
  %v2275 = vunpack.c.l.b16 %v494
  %v2276 = vunpack.c.h.b16 %v494
  %v2277 = vunpack.c.l.b16 %v495
  %v2278 = vunpack.c.h.b16 %v495
  %v2279 = vunpack.c.l.b16 %v496
  %v2280 = vunpack.c.h.b16 %v496
  %v2281 = vunpack.c.l.b16 %v497
  %v2282 = vunpack.c.h.b16 %v497
  %v2283 = vunpack.c.l.b16 %v498
  %v2284 = vunpack.c.h.b16 %v498
  %v2285 = vunpack.c.l.b16 %v499
  %v2286 = vunpack.c.h.b16 %v499
  %v2287 = vunpack.c.l.b16 %v500
  %v2288 = vunpack.c.h.b16 %v500
  %v2289 = vunpack.c.l.b16 %v501
  %v2290 = vunpack.c.h.b16 %v501
  %v2291 = vunpack.c.l.b16 %v502
  %v2292 = vunpack.c.h.b16 %v502
  %v2293 = vunpack.c.l.b16 %v503
  %v2294 = vunpack.c.h.b16 %v503
  %v2295 = vunpack.c.l.b16 %v504
  %v2296 = vunpack.c.h.b16 %v504
  %v2297 = vunpack.c.l.b16 %v505
  %v2298 = vunpack.c.h.b16 %v505
  %v2299 = vunpack.c.l.b16 %v506
  %v2300 = vunpack.c.h.b16 %v506
  %v2301 = vunpack.c.l.b16 %v507
  %v2302 = vunpack.c.h.b16 %v507
  %v2303 = vunpack.c.l.b16 %v508
  %v2304 = vunpack.c.h.b16 %v508
  %v2305 = vunpack.c.l.b16 %v509
  %v2306 = vunpack.c.h.b16 %v509
  %v2307 = vunpack.c.l.b16 %v510
  %v2308 = vunpack.c.h.b16 %v510
  %v2309 = vunpack.c.l.b16 %v511
  %v2310 = vunpack.c.h.b16 %v511
  %v2311 = vunpack.c.l.b16 %v512
  %v2312 = vunpack.c.h.b16 %v512
  %v2313 = vunpack.c.l.b16 %v513
  %v2314 = vunpack.c.h.b16 %v513
  %v2315 = vunpack.c.l.b16 %v514
  %v2316 = vunpack.c.h.b16 %v514
  %v2317 = vunpack.c.l.b16 %v515
  %v2318 = vunpack.c.h.b16 %v515
  %v2319 = vunpack.c.l.b16 %v516
  %v2320 = vunpack.c.h.b16 %v516
  %v2321 = vunpack.c.l.b16 %v517
  %v2322 = vunpack.c.h.b16 %v517
  %v2323 = vunpack.c.l.b16 %v518
  %v2324 = vunpack.c.h.b16 %v518
  %v2325 = vunpack.c.l.b16 %v519
  %v2326 = vunpack.c.h.b16 %v519
  %v2327 = vunpack.c.l.b16 %v520
  %v2328 = vunpack.c.h.b16 %v520
  %v2329 = vunpack.c.l.b16 %v521
  %v2330 = vunpack.c.h.b16 %v521
  %v2331 = vunpack.c.l.b16 %v522
  %v2332 = vunpack.c.h.b16 %v522
  %v2333 = vunpack.c.l.b16 %v523
  %v2334 = vunpack.c.h.b16 %v523
  %v2335 = vunpack.c.l.b16 %v524
  %v2336 = vunpack.c.h.b16 %v524
  %v2337 = vunpack.c.l.b16 %v525
  %v2338 = vunpack.c.h.b16 %v525
  %v2339 = vunpack.c.l.b16 %v526
  %v2340 = vunpack.c.h.b16 %v526
  %v2341 = vunpack.c.l.b16 %v527
  %v2342 = vunpack.c.h.b16 %v527
  %v2343 = vunpack.c.l.b16 %v528
  %v2344 = vunpack.c.h.b16 %v528
  %v2345 = vunpack.c.l.b16 %v529
  %v2346 = vunpack.c.h.b16 %v529
  %v2347 = vunpack.c.l.b16 %v530
  %v2348 = vunpack.c.h.b16 %v530
  %v2349 = vunpack.c.l.b16 %v531
  %v2350 = vunpack.c.h.b16 %v531
  %v2351 = vunpack.c.l.b16 %v532
  %v2352 = vunpack.c.h.b16 %v532
  %v2353 = vunpack.c.l.b16 %v533
  %v2354 = vunpack.c.h.b16 %v533
  %v2355 = vunpack.c.l.b16 %v534
  %v2356 = vunpack.c.h.b16 %v534
  %v2357 = vunpack.c.l.b16 %v535
  %v2358 = vunpack.c.h.b16 %v535
  %v2359 = vunpack.c.l.b16 %v536
  %v2360 = vunpack.c.h.b16 %v536
  %v2361 = vunpack.c.l.b16 %v537
  %v2362 = vunpack.c.h.b16 %v537
  %v2363 = vunpack.c.l.b16 %v538
  %v2364 = vunpack.c.h.b16 %v538
  %v2365 = vunpack.c.l.b16 %v539
  %v2366 = vunpack.c.h.b16 %v539
  %v2367 = vunpack.c.l.b16 %v540
  %v2368 = vunpack.c.h.b16 %v540
  %v2369 = vunpack.c.l.b16 %v541
  %v2370 = vunpack.c.h.b16 %v541
  %v2371 = vunpack.c.l.b16 %v542
  %v2372 = vunpack.c.h.b16 %v542
  %v2373 = vunpack.c.l.b16 %v543
  %v2374 = vunpack.c.h.b16 %v543
  %v2375 = vunpack.c.l.b16 %v544
  %v2376 = vunpack.c.h.b16 %v544
  %v2377 = vunpack.c.l.b16 %v545
  %v2378 = vunpack.c.h.b16 %v545
  %v2379 = vunpack.c.l.b16 %v546
  %v2380 = vunpack.c.h.b16 %v546
  %v2381 = vunpack.c.l.b16 %v547
  %v2382 = vunpack.c.h.b16 %v547
  %v2383 = vunpack.c.l.b16 %v548
  %v2384 = vunpack.c.h.b16 %v548
  %v2385 = vunpack.c.l.b16 %v549
  %v2386 = vunpack.c.h.b16 %v549
  %v2387 = vunpack.c.l.b16 %v550
  %v2388 = vunpack.c.h.b16 %v550
  %v2389 = vunpack.c.l.b16 %v551
  %v2390 = vunpack.c.h.b16 %v551
  %v2391 = vunpack.c.l.b16 %v552
  %v2392 = vunpack.c.h.b16 %v552
  %v2393 = vunpack.c.l.b16 %v553
  %v2394 = vunpack.c.h.b16 %v553
  %v2395 = vunpack.c.l.b16 %v554
  %v2396 = vunpack.c.h.b16 %v554
  %v2397 = vunpack.c.l.b16 %v555
  %v2398 = vunpack.c.h.b16 %v555
  %v2399 = vunpack.c.l.b16 %v556
  %v2400 = vunpack.c.h.b16 %v556
  %v2401 = vunpack.c.l.b16 %v557
  %v2402 = vunpack.c.h.b16 %v557
  %v2403 = vunpack.c.l.b16 %v558
  %v2404 = vunpack.c.h.b16 %v558
  %v2405 = vunpack.c.l.b16 %v559
  %v2406 = vunpack.c.h.b16 %v559
  %v2407 = vunpack.c.l.b16 %v560
  %v2408 = vunpack.c.h.b16 %v560
  %v2409 = vunpack.c.l.b16 %v561
  %v2410 = vunpack.c.h.b16 %v561
  %v2411 = vunpack.c.l.b16 %v562
  %v2412 = vunpack.c.h.b16 %v562
  %v2413 = vunpack.c.l.b16 %v563
  %v2414 = vunpack.c.h.b16 %v563
  %v2415 = vunpack.c.l.b16 %v564
  %v2416 = vunpack.c.h.b16 %v564
  %v2417 = vunpack.c.l.b16 %v565
  %v2418 = vunpack.c.h.b16 %v565
  %v2419 = vunpack.c.l.b16 %v566
  %v2420 = vunpack.c.h.b16 %v566
  %v2421 = vunpack.c.l.b16 %v567
  %v2422 = vunpack.c.h.b16 %v567
  %v2423 = vunpack.c.l.b16 %v568
  %v2424 = vunpack.c.h.b16 %v568
  %v2425 = vunpack.c.l.b16 %v569
  %v2426 = vunpack.c.h.b16 %v569
  %v2427 = vunpack.c.l.b16 %v570
  %v2428 = vunpack.c.h.b16 %v570
  %v2429 = vunpack.c.l.b16 %v571
  %v2430 = vunpack.c.h.b16 %v571
  %v2431 = vunpack.c.l.b16 %v572
  %v2432 = vunpack.c.h.b16 %v572
  %v2433 = vunpack.c.l.b16 %v573
  %v2434 = vunpack.c.h.b16 %v573
  %v2435 = vunpack.c.l.b16 %v574
  %v2436 = vunpack.c.h.b16 %v574
  %v2437 = vunpack.c.l.b16 %v575
  %v2438 = vunpack.c.h.b16 %v575
  %v2439 = vunpack.c.l.b16 %v576
  %v2440 = vunpack.c.h.b16 %v576
  %v2441 = vunpack.c.l.b16 %v577
  %v2442 = vunpack.c.h.b16 %v577
  %v2443 = vunpack.c.l.b16 %v578
  %v2444 = vunpack.c.h.b16 %v578
  %v2445 = vunpack.c.l.b16 %v579
  %v2446 = vunpack.c.h.b16 %v579
  %v2447 = vunpack.c.l.b16 %v580
  %v2448 = vunpack.c.h.b16 %v580
  %v2449 = vunpack.c.l.b16 %v581
  %v2450 = vunpack.c.h.b16 %v581
  %v2451 = vunpack.c.l.b16 %v582
  %v2452 = vunpack.c.h.b16 %v582
  %v2453 = vunpack.c.l.b16 %v583
  %v2454 = vunpack.c.h.b16 %v583
  %v2455 = vunpack.c.l.b16 %v584
  %v2456 = vunpack.c.h.b16 %v584
  %v2457 = vunpack.c.l.b16 %v585
  %v2458 = vunpack.c.h.b16 %v585
  %v2459 = vunpack.c.l.b16 %v586
  %v2460 = vunpack.c.h.b16 %v586
  %v2461 = vunpack.c.l.b16 %v587
  %v2462 = vunpack.c.h.b16 %v587
  %v2463 = vunpack.c.l.b16 %v588
  %v2464 = vunpack.c.h.b16 %v588
  %v2465 = vunpack.c.l.b16 %v589
  %v2466 = vunpack.c.h.b16 %v589
  %v2467 = vunpack.c.l.b16 %v590
  %v2468 = vunpack.c.h.b16 %v590
  %v2469 = vunpack.c.l.b16 %v591
  %v2470 = vunpack.c.h.b16 %v591
  %v2471 = vunpack.c.l.b16 %v592
  %v2472 = vunpack.c.h.b16 %v592
  %v2473 = vunpack.c.l.b16 %v593
  %v2474 = vunpack.c.h.b16 %v593
  %v2475 = vunpack.c.l.b16 %v594
  %v2476 = vunpack.c.h.b16 %v594
  %v2477 = vunpack.c.l.b16 %v595
  %v2478 = vunpack.c.h.b16 %v595
  %v2479 = vunpack.c.l.b16 %v596
  %v2480 = vunpack.c.h.b16 %v596
  %v2481 = vunpack.c.l.b16 %v597
  %v2482 = vunpack.c.h.b16 %v597
  %v2483 = vunpack.c.l.b16 %v598
  %v2484 = vunpack.c.h.b16 %v598
  %v2485 = vunpack.c.l.b16 %v599
  %v2486 = vunpack.c.h.b16 %v599
  %v2487 = vunpack.c.l.b16 %v600
  %v2488 = vunpack.c.h.b16 %v600
  %v2489 = vunpack.c.l.b16 %v601
  %v2490 = vunpack.c.h.b16 %v601
  %v2491 = vunpack.c.l.b16 %v602
  %v2492 = vunpack.c.h.b16 %v602
  %v2493 = vunpack.c.l.b16 %v603
  %v2494 = vunpack.c.h.b16 %v603
  %v2495 = vunpack.c.l.b16 %v604
  %v2496 = vunpack.c.h.b16 %v604
  %v2497 = vunpack.c.l.b16 %v605
  %v2498 = vunpack.c.h.b16 %v605
  %v2499 = vunpack.c.l.b16 %v606
  %v2500 = vunpack.c.h.b16 %v606
  %v2501 = vunpack.c.l.b16 %v607
  %v2502 = vunpack.c.h.b16 %v607
  %v2503 = vunpack.c.l.b16 %v608
  %v2504 = vunpack.c.h.b16 %v608
  %v2505 = vunpack.c.l.b16 %v609
  %v2506 = vunpack.c.h.b16 %v609
  %v2507 = vunpack.c.l.b16 %v610
  %v2508 = vunpack.c.h.b16 %v610
  %v2509 = vunpack.c.l.b16 %v611
  %v2510 = vunpack.c.h.b16 %v611
  %v2511 = vunpack.c.l.b16 %v612
  %v2512 = vunpack.c.h.b16 %v612
  %v2513 = vunpack.c.l.b16 %v613
  %v2514 = vunpack.c.h.b16 %v613
  %v2515 = vunpack.c.l.b16 %v614
  %v2516 = vunpack.c.h.b16 %v614
  %v2517 = vunpack.c.l.b16 %v615
  %v2518 = vunpack.c.h.b16 %v615
  %v2519 = vunpack.c.l.b16 %v616
  %v2520 = vunpack.c.h.b16 %v616
  %v2521 = vunpack.c.l.b16 %v617
  %v2522 = vunpack.c.h.b16 %v617
  %v2523 = vunpack.c.l.b16 %v618
  %v2524 = vunpack.c.h.b16 %v618
  %v2525 = vunpack.c.l.b16 %v619
  %v2526 = vunpack.c.h.b16 %v619
  %v2527 = vunpack.c.l.b16 %v620
  %v2528 = vunpack.c.h.b16 %v620
  %v2529 = vunpack.c.l.b16 %v621
  %v2530 = vunpack.c.h.b16 %v621
  %v2531 = vunpack.c.l.b16 %v622
  %v2532 = vunpack.c.h.b16 %v622
  %v2533 = vunpack.c.l.b16 %v623
  %v2534 = vunpack.c.h.b16 %v623
  %v2535 = vunpack.c.l.b16 %v624
  %v2536 = vunpack.c.h.b16 %v624
  %v2537 = vunpack.c.l.b16 %v625
  %v2538 = vunpack.c.h.b16 %v625
  %v2539 = vunpack.c.l.b16 %v626
  %v2540 = vunpack.c.h.b16 %v626
  %v2541 = vunpack.c.l.b16 %v627
  %v2542 = vunpack.c.h.b16 %v627
  %v2543 = vunpack.c.l.b16 %v628
  %v2544 = vunpack.c.h.b16 %v628
  %v2545 = vunpack.c.l.b16 %v629
  %v2546 = vunpack.c.h.b16 %v629
  %v2547 = vunpack.c.l.b16 %v630
  %v2548 = vunpack.c.h.b16 %v630
  %v2549 = vunpack.c.l.b16 %v631
  %v2550 = vunpack.c.h.b16 %v631
  %v2551 = vunpack.c.l.b16 %v632
  %v2552 = vunpack.c.h.b16 %v632
  %v2553 = vunpack.c.l.b16 %v633
  %v2554 = vunpack.c.h.b16 %v633
  %v2555 = vunpack.c.l.b16 %v634
  %v2556 = vunpack.c.h.b16 %v634
  %v2557 = vunpack.c.l.b16 %v635
  %v2558 = vunpack.c.h.b16 %v635
  %v2559 = vunpack.c.l.b16 %v636
  %v2560 = vunpack.c.h.b16 %v636
  %v2561 = vunpack.c.l.b16 %v637
  %v2562 = vunpack.c.h.b16 %v637
  %v2563 = vunpack.c.l.b16 %v638
  %v2564 = vunpack.c.h.b16 %v638
  %v2565 = vunpack.c.l.b16 %v639
  %v2566 = vunpack.c.h.b16 %v639
  %v2567 = vunpack.c.l.b16 %v640
  %v2568 = vunpack.c.h.b16 %v640
  %v2569 = vunpack.c.l.b16 %v641
  %v2570 = vunpack.c.h.b16 %v641
  %v2571 = vunpack.c.l.b16 %v642
  %v2572 = vunpack.c.h.b16 %v642
  %v2573 = vpack.c.b16 %v1425, %v1421
  %v2574 = vpack.c.b16 %v1426, %v1422
  %v2575 = vpack.c.b16 %v1427, %v1423
  %v2576 = vpack.c.b16 %v1428, %v1424
  %v2577 = vpack.c.b16 %v1433, %v1429
  %v2578 = vpack.c.b16 %v1434, %v1430
  %v2579 = vpack.c.b16 %v1435, %v1431
  %v2580 = vpack.c.b16 %v1436, %v1432
  %v2581 = vpack.c.b16 %v1441, %v1437
  %v2582 = vpack.c.b16 %v1442, %v1438
  %v2583 = vpack.c.b16 %v1443, %v1439
  %v2584 = vpack.c.b16 %v1444, %v1440
  %v2585 = vpack.c.b16 %v1449, %v1445
  %v2586 = vpack.c.b16 %v1450, %v1446
  %v2587 = vpack.c.b16 %v1451, %v1447
  %v2588 = vpack.c.b16 %v1452, %v1448
  %v2589 = vpack.c.b16 %v1457, %v1453
  %v2590 = vpack.c.b16 %v1458, %v1454
  %v2591 = vpack.c.b16 %v1459, %v1455
  %v2592 = vpack.c.b16 %v1460, %v1456
  %v2593 = vpack.c.b16 %v1465, %v1461
  %v2594 = vpack.c.b16 %v1466, %v1462
  %v2595 = vpack.c.b16 %v1467, %v1463
  %v2596 = vpack.c.b16 %v1468, %v1464
  %v2597 = vpack.c.b16 %v1473, %v1469
  %v2598 = vpack.c.b16 %v1474, %v1470
  %v2599 = vpack.c.b16 %v1475, %v1471
  %v2600 = vpack.c.b16 %v1476, %v1472
  %v2601 = vpack.c.b16 %v1481, %v1477
  %v2602 = vpack.c.b16 %v1482, %v1478
  %v2603 = vpack.c.b16 %v1483, %v1479
  %v2604 = vpack.c.b16 %v1484, %v1480
  %v2605 = vpack.c.b16 %v1489, %v1485
  %v2606 = vpack.c.b16 %v1490, %v1486
  %v2607 = vpack.c.b16 %v1491, %v1487
  %v2608 = vpack.c.b16 %v1492, %v1488
  %v2609 = vpack.c.b16 %v1497, %v1493
  %v2610 = vpack.c.b16 %v1498, %v1494
  %v2611 = vpack.c.b16 %v1499, %v1495
  %v2612 = vpack.c.b16 %v1500, %v1496
  %v2613 = vpack.c.b16 %v1505, %v1501
  %v2614 = vpack.c.b16 %v1506, %v1502
  %v2615 = vpack.c.b16 %v1507, %v1503
  %v2616 = vpack.c.b16 %v1508, %v1504
  %v2617 = vpack.c.b16 %v1513, %v1509
  %v2618 = vpack.c.b16 %v1514, %v1510
  %v2619 = vpack.c.b16 %v1515, %v1511
  %v2620 = vpack.c.b16 %v1516, %v1512
  %v2621 = vpack.c.b16 %v1521, %v1517
  %v2622 = vpack.c.b16 %v1522, %v1518
  %v2623 = vpack.c.b16 %v1523, %v1519
  %v2624 = vpack.c.b16 %v1524, %v1520
  %v2625 = vpack.c.b16 %v1529, %v1525
  %v2626 = vpack.c.b16 %v1530, %v1526
  %v2627 = vpack.c.b16 %v1531, %v1527
  %v2628 = vpack.c.b16 %v1532, %v1528
  %v2629 = vpack.c.b16 %v1537, %v1533
  %v2630 = vpack.c.b16 %v1538, %v1534
  %v2631 = vpack.c.b16 %v1539, %v1535
  %v2632 = vpack.c.b16 %v1540, %v1536
  %v2633 = vpack.c.b16 %v1545, %v1541
  %v2634 = vpack.c.b16 %v1546, %v1542
  %v2635 = vpack.c.b16 %v1547, %v1543
  %v2636 = vpack.c.b16 %v1548, %v1544
  %v2637 = vpack.c.b16 %v1553, %v1549
  %v2638 = vpack.c.b16 %v1554, %v1550
  %v2639 = vpack.c.b16 %v1555, %v1551
  %v2640 = vpack.c.b16 %v1556, %v1552
  %v2641 = vpack.c.b16 %v1561, %v1557
  %v2642 = vpack.c.b16 %v1562, %v1558
  %v2643 = vpack.c.b16 %v1563, %v1559
  %v2644 = vpack.c.b16 %v1564, %v1560
  %v2645 = vpack.c.b16 %v1569, %v1565
  %v2646 = vpack.c.b16 %v1570, %v1566
  %v2647 = vpack.c.b16 %v1571, %v1567
  %v2648 = vpack.c.b16 %v1572, %v1568
  %v2649 = vpack.c.b16 %v1577, %v1573
  %v2650 = vpack.c.b16 %v1578, %v1574
  %v2651 = vpack.c.b16 %v1579, %v1575
  %v2652 = vpack.c.b16 %v1580, %v1576
  %v2653 = vpack.c.b16 %v1585, %v1581
  %v2654 = vpack.c.b16 %v1586, %v1582
  %v2655 = vpack.c.b16 %v1587, %v1583
  %v2656 = vpack.c.b16 %v1588, %v1584
  %v2657 = vpack.c.b16 %v1593, %v1589
  %v2658 = vpack.c.b16 %v1594, %v1590
  %v2659 = vpack.c.b16 %v1595, %v1591
  %v2660 = vpack.c.b16 %v1596, %v1592
  %v2661 = vpack.c.b16 %v1601, %v1597
  %v2662 = vpack.c.b16 %v1602, %v1598
  %v2663 = vpack.c.b16 %v1603, %v1599
  %v2664 = vpack.c.b16 %v1604, %v1600
  %v2665 = vpack.c.b16 %v1609, %v1605
  %v2666 = vpack.c.b16 %v1610, %v1606
  %v2667 = vpack.c.b16 %v1611, %v1607
  %v2668 = vpack.c.b16 %v1612, %v1608
  %v2669 = vpack.c.b16 %v1617, %v1613
  %v2670 = vpack.c.b16 %v1618, %v1614
  %v2671 = vpack.c.b16 %v1619, %v1615
  %v2672 = vpack.c.b16 %v1620, %v1616
  %v2673 = vpack.c.b16 %v1625, %v1621
  %v2674 = vpack.c.b16 %v1626, %v1622
  %v2675 = vpack.c.b16 %v1627, %v1623
  %v2676 = vpack.c.b16 %v1628, %v1624
  %v2677 = vpack.c.b16 %v1633, %v1629
  %v2678 = vpack.c.b16 %v1634, %v1630
  %v2679 = vpack.c.b16 %v1635, %v1631
  %v2680 = vpack.c.b16 %v1636, %v1632
  %v2681 = vpack.c.b16 %v1641, %v1637
  %v2682 = vpack.c.b16 %v1642, %v1638
  %v2683 = vpack.c.b16 %v1643, %v1639
  %v2684 = vpack.c.b16 %v1644, %v1640
  %v2685 = vpack.c.b16 %v1649, %v1645
  %v2686 = vpack.c.b16 %v1650, %v1646
  %v2687 = vpack.c.b16 %v1651, %v1647
  %v2688 = vpack.c.b16 %v1652, %v1648
  %v2689 = vpack.c.b16 %v1657, %v1653
  %v2690 = vpack.c.b16 %v1658, %v1654
  %v2691 = vpack.c.b16 %v1659, %v1655
  %v2692 = vpack.c.b16 %v1660, %v1656
  %v2693 = vpack.c.b16 %v1665, %v1661
  %v2694 = vpack.c.b16 %v1666, %v1662
  %v2695 = vpack.c.b16 %v1667, %v1663
  %v2696 = vpack.c.b16 %v1668, %v1664
  %v2697 = vpack.c.b16 %v1673, %v1669
  %v2698 = vpack.c.b16 %v1674, %v1670
  %v2699 = vpack.c.b16 %v1675, %v1671
  %v2700 = vpack.c.b16 %v1676, %v1672
  %v2701 = vpack.c.b16 %v1681, %v1677
  %v2702 = vpack.c.b16 %v1682, %v1678
  %v2703 = vpack.c.b16 %v1683, %v1679
  %v2704 = vpack.c.b16 %v1684, %v1680
  %v2705 = vpack.c.b16 %v1689, %v1685
  %v2706 = vpack.c.b16 %v1690, %v1686
  %v2707 = vpack.c.b16 %v1691, %v1687
  %v2708 = vpack.c.b16 %v1692, %v1688
  %v2709 = vpack.c.b16 %v1697, %v1693
  %v2710 = vpack.c.b16 %v1698, %v1694
  %v2711 = vpack.c.b16 %v1699, %v1695
  %v2712 = vpack.c.b16 %v1700, %v1696
  %v2713 = vpack.c.b16 %v1705, %v1701
  %v2714 = vpack.c.b16 %v1706, %v1702
  %v2715 = vpack.c.b16 %v1707, %v1703
  %v2716 = vpack.c.b16 %v1708, %v1704
  %v2717 = vpack.c.b16 %v1713, %v1709
  %v2718 = vpack.c.b16 %v1714, %v1710
  %v2719 = vpack.c.b16 %v1715, %v1711
  %v2720 = vpack.c.b16 %v1716, %v1712
  %v2721 = vpack.c.b16 %v1721, %v1717
  %v2722 = vpack.c.b16 %v1722, %v1718
  %v2723 = vpack.c.b16 %v1723, %v1719
  %v2724 = vpack.c.b16 %v1724, %v1720
  %v2725 = vpack.c.b16 %v1729, %v1725
  %v2726 = vpack.c.b16 %v1730, %v1726
  %v2727 = vpack.c.b16 %v1731, %v1727
  %v2728 = vpack.c.b16 %v1732, %v1728
  %v2729 = vpack.c.b16 %v1737, %v1733
  %v2730 = vpack.c.b16 %v1738, %v1734
  %v2731 = vpack.c.b16 %v1739, %v1735
  %v2732 = vpack.c.b16 %v1740, %v1736
  %v2733 = vpack.c.b16 %v1745, %v1741
  %v2734 = vpack.c.b16 %v1746, %v1742
  %v2735 = vpack.c.b16 %v1747, %v1743
  %v2736 = vpack.c.b16 %v1748, %v1744
  %v2737 = vpack.c.b16 %v1753, %v1749
  %v2738 = vpack.c.b16 %v1754, %v1750
  %v2739 = vpack.c.b16 %v1755, %v1751
  %v2740 = vpack.c.b16 %v1756, %v1752
  %v2741 = vpack.c.b16 %v1761, %v1757
  %v2742 = vpack.c.b16 %v1762, %v1758
  %v2743 = vpack.c.b16 %v1763, %v1759
  %v2744 = vpack.c.b16 %v1764, %v1760
  %v2745 = vpack.c.b16 %v1769, %v1765
  %v2746 = vpack.c.b16 %v1770, %v1766
  %v2747 = vpack.c.b16 %v1771, %v1767
  %v2748 = vpack.c.b16 %v1772, %v1768
  %v2749 = vpack.c.b16 %v1777, %v1773
  %v2750 = vpack.c.b16 %v1778, %v1774
  %v2751 = vpack.c.b16 %v1779, %v1775
  %v2752 = vpack.c.b16 %v1780, %v1776
  %v2753 = vpack.c.b16 %v1785, %v1781
  %v2754 = vpack.c.b16 %v1786, %v1782
  %v2755 = vpack.c.b16 %v1787, %v1783
  %v2756 = vpack.c.b16 %v1788, %v1784
  %v2757 = vpack.c.b16 %v1793, %v1789
  %v2758 = vpack.c.b16 %v1794, %v1790
  %v2759 = vpack.c.b16 %v1795, %v1791
  %v2760 = vpack.c.b16 %v1796, %v1792
  %v2761 = vpack.c.b16 %v1801, %v1797
  %v2762 = vpack.c.b16 %v1802, %v1798
  %v2763 = vpack.c.b16 %v1803, %v1799
  %v2764 = vpack.c.b16 %v1804, %v1800
  %v2765 = vpack.c.b16 %v1809, %v1805
  %v2766 = vpack.c.b16 %v1810, %v1806
  %v2767 = vpack.c.b16 %v1811, %v1807
  %v2768 = vpack.c.b16 %v1812, %v1808
  %v2769 = vpack.c.b16 %v1817, %v1813
  %v2770 = vpack.c.b16 %v1818, %v1814
  %v2771 = vpack.c.b16 %v1819, %v1815
  %v2772 = vpack.c.b16 %v1820, %v1816
  %v2773 = vpack.c.b16 %v1825, %v1821
  %v2774 = vpack.c.b16 %v1826, %v1822
  %v2775 = vpack.c.b16 %v1827, %v1823
  %v2776 = vpack.c.b16 %v1828, %v1824
  %v2777 = vpack.c.b16 %v1833, %v1829
  %v2778 = vpack.c.b16 %v1834, %v1830
  %v2779 = vpack.c.b16 %v1835, %v1831
  %v2780 = vpack.c.b16 %v1836, %v1832
  %v2781 = vpack.c.b16 %v1841, %v1837
  %v2782 = vpack.c.b16 %v1842, %v1838
  %v2783 = vpack.c.b16 %v1843, %v1839
  %v2784 = vpack.c.b16 %v1844, %v1840
  %v2785 = vpack.c.b16 %v1849, %v1845
  %v2786 = vpack.c.b16 %v1850, %v1846
  %v2787 = vpack.c.b16 %v1851, %v1847
  %v2788 = vpack.c.b16 %v1852, %v1848
  %v2789 = vpack.c.b16 %v1857, %v1853
  %v2790 = vpack.c.b16 %v1858, %v1854
  %v2791 = vpack.c.b16 %v1859, %v1855
  %v2792 = vpack.c.b16 %v1860, %v1856
  %v2793 = vpack.c.b16 %v1865, %v1861
  %v2794 = vpack.c.b16 %v1866, %v1862
  %v2795 = vpack.c.b16 %v1867, %v1863
  %v2796 = vpack.c.b16 %v1868, %v1864
  %v2797 = vpack.c.b16 %v1873, %v1869
  %v2798 = vpack.c.b16 %v1874, %v1870
  %v2799 = vpack.c.b16 %v1875, %v1871
  %v2800 = vpack.c.b16 %v1876, %v1872
  %v2801 = vpack.c.b16 %v1881, %v1877
  %v2802 = vpack.c.b16 %v1882, %v1878
  %v2803 = vpack.c.b16 %v1883, %v1879
  %v2804 = vpack.c.b16 %v1884, %v1880
  %v2805 = vpack.c.b16 %v1889, %v1885
  %v2806 = vpack.c.b16 %v1890, %v1886
  %v2807 = vpack.c.b16 %v1891, %v1887
  %v2808 = vpack.c.b16 %v1892, %v1888
  %v2809 = vpack.c.b16 %v1897, %v1893
  %v2810 = vpack.c.b16 %v1898, %v1894
  %v2811 = vpack.c.b16 %v1899, %v1895
  %v2812 = vpack.c.b16 %v1900, %v1896
  %v2813 = vpack.c.b16 %v1905, %v1901
  %v2814 = vpack.c.b16 %v1906, %v1902
  %v2815 = vpack.c.b16 %v1907, %v1903
  %v2816 = vpack.c.b16 %v1908, %v1904
  %v2817 = vpack.c.b16 %v1913, %v1909
  %v2818 = vpack.c.b16 %v1914, %v1910
  %v2819 = vpack.c.b16 %v1915, %v1911
  %v2820 = vpack.c.b16 %v1916, %v1912
  %v2821 = vpack.c.b16 %v1921, %v1917
  %v2822 = vpack.c.b16 %v1922, %v1918
  %v2823 = vpack.c.b16 %v1923, %v1919
  %v2824 = vpack.c.b16 %v1924, %v1920
  %v2825 = vpack.c.b16 %v1929, %v1925
  %v2826 = vpack.c.b16 %v1930, %v1926
  %v2827 = vpack.c.b16 %v1931, %v1927
  %v2828 = vpack.c.b16 %v1932, %v1928
  %v2829 = vpack.c.b16 %v1937, %v1933
  %v2830 = vpack.c.b16 %v1938, %v1934
  %v2831 = vpack.c.b16 %v1939, %v1935
  %v2832 = vpack.c.b16 %v1940, %v1936
  %v2833 = vpack.c.b16 %v1945, %v1941
  %v2834 = vpack.c.b16 %v1946, %v1942
  %v2835 = vpack.c.b16 %v1947, %v1943
  %v2836 = vpack.c.b16 %v1948, %v1944
  %v2837 = vpack.c.b16 %v1953, %v1949
  %v2838 = vpack.c.b16 %v1954, %v1950
  %v2839 = vpack.c.b16 %v1955, %v1951
  %v2840 = vpack.c.b16 %v1956, %v1952
  %v2841 = vpack.c.b16 %v1961, %v1957
  %v2842 = vpack.c.b16 %v1962, %v1958
  %v2843 = vpack.c.b16 %v1963, %v1959
  %v2844 = vpack.c.b16 %v1964, %v1960
  %v2845 = vpack.c.b16 %v1969, %v1965
  %v2846 = vpack.c.b16 %v1970, %v1966
  %v2847 = vpack.c.b16 %v1971, %v1967
  %v2848 = vpack.c.b16 %v1972, %v1968
  %v2849 = vpack.c.b16 %v1977, %v1973
  %v2850 = vpack.c.b16 %v1978, %v1974
  %v2851 = vpack.c.b16 %v1979, %v1975
  %v2852 = vpack.c.b16 %v1980, %v1976
  %v2853 = vpack.c.b16 %v1985, %v1981
  %v2854 = vpack.c.b16 %v1986, %v1982
  %v2855 = vpack.c.b16 %v1987, %v1983
  %v2856 = vpack.c.b16 %v1988, %v1984
  %v2857 = vpack.c.b16 %v1993, %v1989
  %v2858 = vpack.c.b16 %v1994, %v1990
  %v2859 = vpack.c.b16 %v1995, %v1991
  %v2860 = vpack.c.b16 %v1996, %v1992
  %v2861 = vpack.c.b16 %v2001, %v1997
  %v2862 = vpack.c.b16 %v2002, %v1998
  %v2863 = vpack.c.b16 %v2003, %v1999
  %v2864 = vpack.c.b16 %v2004, %v2000
  %v2865 = vpack.c.b16 %v2009, %v2005
  %v2866 = vpack.c.b16 %v2010, %v2006
  %v2867 = vpack.c.b16 %v2011, %v2007
  %v2868 = vpack.c.b16 %v2012, %v2008
  %v2869 = vpack.c.b16 %v2017, %v2013
  %v2870 = vpack.c.b16 %v2018, %v2014
  %v2871 = vpack.c.b16 %v2019, %v2015
  %v2872 = vpack.c.b16 %v2020, %v2016
  %v2873 = vpack.c.b16 %v2025, %v2021
  %v2874 = vpack.c.b16 %v2026, %v2022
  %v2875 = vpack.c.b16 %v2027, %v2023
  %v2876 = vpack.c.b16 %v2028, %v2024
  %v2877 = vpack.c.b16 %v2033, %v2029
  %v2878 = vpack.c.b16 %v2034, %v2030
  %v2879 = vpack.c.b16 %v2035, %v2031
  %v2880 = vpack.c.b16 %v2036, %v2032
  %v2881 = vpack.c.b16 %v2041, %v2037
  %v2882 = vpack.c.b16 %v2042, %v2038
  %v2883 = vpack.c.b16 %v2043, %v2039
  %v2884 = vpack.c.b16 %v2044, %v2040
  %v2885 = vpack.c.b16 %v2049, %v2045
  %v2886 = vpack.c.b16 %v2050, %v2046
  %v2887 = vpack.c.b16 %v2051, %v2047
  %v2888 = vpack.c.b16 %v2052, %v2048
  %v2889 = vpack.c.b16 %v2057, %v2053
  %v2890 = vpack.c.b16 %v2058, %v2054
  %v2891 = vpack.c.b16 %v2059, %v2055
  %v2892 = vpack.c.b16 %v2060, %v2056
  %v2893 = vpack.c.b16 %v2065, %v2061
  %v2894 = vpack.c.b16 %v2066, %v2062
  %v2895 = vpack.c.b16 %v2067, %v2063
  %v2896 = vpack.c.b16 %v2068, %v2064
  %v2897 = vpack.c.b16 %v2073, %v2069
  %v2898 = vpack.c.b16 %v2074, %v2070
  %v2899 = vpack.c.b16 %v2075, %v2071
  %v2900 = vpack.c.b16 %v2076, %v2072
  %v2901 = vpack.c.b16 %v2081, %v2077
  %v2902 = vpack.c.b16 %v2082, %v2078
  %v2903 = vpack.c.b16 %v2083, %v2079
  %v2904 = vpack.c.b16 %v2084, %v2080
  %v2905 = vpack.c.b16 %v2089, %v2085
  %v2906 = vpack.c.b16 %v2090, %v2086
  %v2907 = vpack.c.b16 %v2091, %v2087
  %v2908 = vpack.c.b16 %v2092, %v2088
  %v2909 = vpack.c.b16 %v2097, %v2093
  %v2910 = vpack.c.b16 %v2098, %v2094
  %v2911 = vpack.c.b16 %v2099, %v2095
  %v2912 = vpack.c.b16 %v2100, %v2096
  %v2913 = vpack.c.b16 %v2105, %v2101
  %v2914 = vpack.c.b16 %v2106, %v2102
  %v2915 = vpack.c.b16 %v2107, %v2103
  %v2916 = vpack.c.b16 %v2108, %v2104
  %v2917 = vpack.c.b16 %v2113, %v2109
  %v2918 = vpack.c.b16 %v2114, %v2110
  %v2919 = vpack.c.b16 %v2115, %v2111
  %v2920 = vpack.c.b16 %v2116, %v2112
  %v2921 = vpack.c.b16 %v2121, %v2117
  %v2922 = vpack.c.b16 %v2122, %v2118
  %v2923 = vpack.c.b16 %v2123, %v2119
  %v2924 = vpack.c.b16 %v2124, %v2120
  %v2925 = vpack.c.b16 %v2129, %v2125
  %v2926 = vpack.c.b16 %v2130, %v2126
  %v2927 = vpack.c.b16 %v2131, %v2127
  %v2928 = vpack.c.b16 %v2132, %v2128
  %v2929 = vpack.c.b16 %v2137, %v2133
  %v2930 = vpack.c.b16 %v2138, %v2134
  %v2931 = vpack.c.b16 %v2139, %v2135
  %v2932 = vpack.c.b16 %v2140, %v2136
  %v2933 = vpack.c.b16 %v2145, %v2141
  %v2934 = vpack.c.b16 %v2146, %v2142
  %v2935 = vpack.c.b16 %v2147, %v2143
  %v2936 = vpack.c.b16 %v2148, %v2144
  %v2937 = vpack.c.b16 %v2153, %v2149
  %v2938 = vpack.c.b16 %v2154, %v2150
  %v2939 = vpack.c.b16 %v2155, %v2151
  %v2940 = vpack.c.b16 %v2156, %v2152
  %v2941 = vpack.c.b16 %v2161, %v2157
  %v2942 = vpack.c.b16 %v2162, %v2158
  %v2943 = vpack.c.b16 %v2163, %v2159
  %v2944 = vpack.c.b16 %v2164, %v2160
  %v2945 = vpack.c.b16 %v2169, %v2165
  %v2946 = vpack.c.b16 %v2170, %v2166
  %v2947 = vpack.c.b16 %v2171, %v2167
  %v2948 = vpack.c.b16 %v2172, %v2168
  %v2949 = vpack.c.b16 %v2177, %v2173
  %v2950 = vpack.c.b16 %v2178, %v2174
  %v2951 = vpack.c.b16 %v2179, %v2175
  %v2952 = vpack.c.b16 %v2180, %v2176
  %v2953 = vpack.c.b16 %v2185, %v2181
  %v2954 = vpack.c.b16 %v2186, %v2182
  %v2955 = vpack.c.b16 %v2187, %v2183
  %v2956 = vpack.c.b16 %v2188, %v2184
  %v2957 = vpack.c.b16 %v2193, %v2189
  %v2958 = vpack.c.b16 %v2194, %v2190
  %v2959 = vpack.c.b16 %v2195, %v2191
  %v2960 = vpack.c.b16 %v2196, %v2192
  %v2961 = vpack.c.b16 %v2201, %v2197
  %v2962 = vpack.c.b16 %v2202, %v2198
  %v2963 = vpack.c.b16 %v2203, %v2199
  %v2964 = vpack.c.b16 %v2204, %v2200
  %v2965 = vpack.c.b16 %v2209, %v2205
  %v2966 = vpack.c.b16 %v2210, %v2206
  %v2967 = vpack.c.b16 %v2211, %v2207
  %v2968 = vpack.c.b16 %v2212, %v2208
  %v2969 = vpack.c.b16 %v2217, %v2213
  %v2970 = vpack.c.b16 %v2218, %v2214
  %v2971 = vpack.c.b16 %v2219, %v2215
  %v2972 = vpack.c.b16 %v2220, %v2216
  %v2973 = vpack.c.b16 %v2225, %v2221
  %v2974 = vpack.c.b16 %v2226, %v2222
  %v2975 = vpack.c.b16 %v2227, %v2223
  %v2976 = vpack.c.b16 %v2228, %v2224
  %v2977 = vpack.c.b16 %v2233, %v2229
  %v2978 = vpack.c.b16 %v2234, %v2230
  %v2979 = vpack.c.b16 %v2235, %v2231
  %v2980 = vpack.c.b16 %v2236, %v2232
  %v2981 = vpack.c.b16 %v2241, %v2237
  %v2982 = vpack.c.b16 %v2242, %v2238
  %v2983 = vpack.c.b16 %v2243, %v2239
  %v2984 = vpack.c.b16 %v2244, %v2240
  %v2985 = vpack.c.b16 %v2249, %v2245
  %v2986 = vpack.c.b16 %v2250, %v2246
  %v2987 = vpack.c.b16 %v2251, %v2247
  %v2988 = vpack.c.b16 %v2252, %v2248
  %v2989 = vpack.c.b16 %v2257, %v2253
  %v2990 = vpack.c.b16 %v2258, %v2254
  %v2991 = vpack.c.b16 %v2259, %v2255
  %v2992 = vpack.c.b16 %v2260, %v2256
  %v2993 = vpack.c.b16 %v2265, %v2261
  %v2994 = vpack.c.b16 %v2266, %v2262
  %v2995 = vpack.c.b16 %v2267, %v2263
  %v2996 = vpack.c.b16 %v2268, %v2264
  %v2997 = vpack.c.b16 %v2273, %v2269
  %v2998 = vpack.c.b16 %v2274, %v2270
  %v2999 = vpack.c.b16 %v2275, %v2271
  %v3000 = vpack.c.b16 %v2276, %v2272
  %v3001 = vpack.c.b16 %v2281, %v2277
  %v3002 = vpack.c.b16 %v2282, %v2278
  %v3003 = vpack.c.b16 %v2283, %v2279
  %v3004 = vpack.c.b16 %v2284, %v2280
  %v3005 = vpack.c.b16 %v2289, %v2285
  %v3006 = vpack.c.b16 %v2290, %v2286
  %v3007 = vpack.c.b16 %v2291, %v2287
  %v3008 = vpack.c.b16 %v2292, %v2288
  %v3009 = vpack.c.b16 %v2297, %v2293
  %v3010 = vpack.c.b16 %v2298, %v2294
  %v3011 = vpack.c.b16 %v2299, %v2295
  %v3012 = vpack.c.b16 %v2300, %v2296
  %v3013 = vpack.c.b16 %v2305, %v2301
  %v3014 = vpack.c.b16 %v2306, %v2302
  %v3015 = vpack.c.b16 %v2307, %v2303
  %v3016 = vpack.c.b16 %v2308, %v2304
  %v3017 = vpack.c.b16 %v2313, %v2309
  %v3018 = vpack.c.b16 %v2314, %v2310
  %v3019 = vpack.c.b16 %v2315, %v2311
  %v3020 = vpack.c.b16 %v2316, %v2312
  %v3021 = vpack.c.b16 %v2321, %v2317
  %v3022 = vpack.c.b16 %v2322, %v2318
  %v3023 = vpack.c.b16 %v2323, %v2319
  %v3024 = vpack.c.b16 %v2324, %v2320
  %v3025 = vpack.c.b16 %v2329, %v2325
  %v3026 = vpack.c.b16 %v2330, %v2326
  %v3027 = vpack.c.b16 %v2331, %v2327
  %v3028 = vpack.c.b16 %v2332, %v2328
  %v3029 = vpack.c.b16 %v2337, %v2333
  %v3030 = vpack.c.b16 %v2338, %v2334
  %v3031 = vpack.c.b16 %v2339, %v2335
  %v3032 = vpack.c.b16 %v2340, %v2336
  %v3033 = vpack.c.b16 %v2345, %v2341
  %v3034 = vpack.c.b16 %v2346, %v2342
  %v3035 = vpack.c.b16 %v2347, %v2343
  %v3036 = vpack.c.b16 %v2348, %v2344
  %v3037 = vpack.c.b16 %v2353, %v2349
  %v3038 = vpack.c.b16 %v2354, %v2350
  %v3039 = vpack.c.b16 %v2355, %v2351
  %v3040 = vpack.c.b16 %v2356, %v2352
  %v3041 = vpack.c.b16 %v2361, %v2357
  %v3042 = vpack.c.b16 %v2362, %v2358
  %v3043 = vpack.c.b16 %v2363, %v2359
  %v3044 = vpack.c.b16 %v2364, %v2360
  %v3045 = vpack.c.b16 %v2369, %v2365
  %v3046 = vpack.c.b16 %v2370, %v2366
  %v3047 = vpack.c.b16 %v2371, %v2367
  %v3048 = vpack.c.b16 %v2372, %v2368
  %v3049 = vpack.c.b16 %v2377, %v2373
  %v3050 = vpack.c.b16 %v2378, %v2374
  %v3051 = vpack.c.b16 %v2379, %v2375
  %v3052 = vpack.c.b16 %v2380, %v2376
  %v3053 = vpack.c.b16 %v2385, %v2381
  %v3054 = vpack.c.b16 %v2386, %v2382
  %v3055 = vpack.c.b16 %v2387, %v2383
  %v3056 = vpack.c.b16 %v2388, %v2384
  %v3057 = vpack.c.b16 %v2393, %v2389
  %v3058 = vpack.c.b16 %v2394, %v2390
  %v3059 = vpack.c.b16 %v2395, %v2391
  %v3060 = vpack.c.b16 %v2396, %v2392
  %v3061 = vpack.c.b16 %v2401, %v2397
  %v3062 = vpack.c.b16 %v2402, %v2398
  %v3063 = vpack.c.b16 %v2403, %v2399
  %v3064 = vpack.c.b16 %v2404, %v2400
  %v3065 = vpack.c.b16 %v2409, %v2405
  %v3066 = vpack.c.b16 %v2410, %v2406
  %v3067 = vpack.c.b16 %v2411, %v2407
  %v3068 = vpack.c.b16 %v2412, %v2408
  %v3069 = vpack.c.b16 %v2417, %v2413
  %v3070 = vpack.c.b16 %v2418, %v2414
  %v3071 = vpack.c.b16 %v2419, %v2415
  %v3072 = vpack.c.b16 %v2420, %v2416
  %v3073 = vpack.c.b16 %v2425, %v2421
  %v3074 = vpack.c.b16 %v2426, %v2422
  %v3075 = vpack.c.b16 %v2427, %v2423
  %v3076 = vpack.c.b16 %v2428, %v2424
  %v3077 = vpack.c.b16 %v2433, %v2429
  %v3078 = vpack.c.b16 %v2434, %v2430
  %v3079 = vpack.c.b16 %v2435, %v2431
  %v3080 = vpack.c.b16 %v2436, %v2432
  %v3081 = vpack.c.b16 %v2441, %v2437
  %v3082 = vpack.c.b16 %v2442, %v2438
  %v3083 = vpack.c.b16 %v2443, %v2439
  %v3084 = vpack.c.b16 %v2444, %v2440
  %v3085 = vpack.c.b16 %v2449, %v2445
  %v3086 = vpack.c.b16 %v2450, %v2446
  %v3087 = vpack.c.b16 %v2451, %v2447
  %v3088 = vpack.c.b16 %v2452, %v2448
  %v3089 = vpack.c.b16 %v2457, %v2453
  %v3090 = vpack.c.b16 %v2458, %v2454
  %v3091 = vpack.c.b16 %v2459, %v2455
  %v3092 = vpack.c.b16 %v2460, %v2456
  %v3093 = vpack.c.b16 %v2465, %v2461
  %v3094 = vpack.c.b16 %v2466, %v2462
  %v3095 = vpack.c.b16 %v2467, %v2463
  %v3096 = vpack.c.b16 %v2468, %v2464
  %v3097 = vpack.c.b16 %v2473, %v2469
  %v3098 = vpack.c.b16 %v2474, %v2470
  %v3099 = vpack.c.b16 %v2475, %v2471
  %v3100 = vpack.c.b16 %v2476, %v2472
  %v3101 = vpack.c.b16 %v2481, %v2477
  %v3102 = vpack.c.b16 %v2482, %v2478
  %v3103 = vpack.c.b16 %v2483, %v2479
  %v3104 = vpack.c.b16 %v2484, %v2480
  %v3105 = vpack.c.b16 %v2489, %v2485
  %v3106 = vpack.c.b16 %v2490, %v2486
  %v3107 = vpack.c.b16 %v2491, %v2487
  %v3108 = vpack.c.b16 %v2492, %v2488
  %v3109 = vpack.c.b16 %v2497, %v2493
  %v3110 = vpack.c.b16 %v2498, %v2494
  %v3111 = vpack.c.b16 %v2499, %v2495
  %v3112 = vpack.c.b16 %v2500, %v2496
  %v3113 = vpack.c.b16 %v2505, %v2501
  %v3114 = vpack.c.b16 %v2506, %v2502
  %v3115 = vpack.c.b16 %v2507, %v2503
  %v3116 = vpack.c.b16 %v2508, %v2504
  %v3117 = vpack.c.b16 %v2513, %v2509
  %v3118 = vpack.c.b16 %v2514, %v2510
  %v3119 = vpack.c.b16 %v2515, %v2511
  %v3120 = vpack.c.b16 %v2516, %v2512
  %v3121 = vpack.c.b16 %v2521, %v2517
  %v3122 = vpack.c.b16 %v2522, %v2518
  %v3123 = vpack.c.b16 %v2523, %v2519
  %v3124 = vpack.c.b16 %v2524, %v2520
  %v3125 = vpack.c.b16 %v2529, %v2525
  %v3126 = vpack.c.b16 %v2530, %v2526
  %v3127 = vpack.c.b16 %v2531, %v2527
  %v3128 = vpack.c.b16 %v2532, %v2528
  %v3129 = vpack.c.b16 %v2537, %v2533
  %v3130 = vpack.c.b16 %v2538, %v2534
  %v3131 = vpack.c.b16 %v2539, %v2535
  %v3132 = vpack.c.b16 %v2540, %v2536
  %v3133 = vpack.c.b16 %v2545, %v2541
  %v3134 = vpack.c.b16 %v2546, %v2542
  %v3135 = vpack.c.b16 %v2547, %v2543
  %v3136 = vpack.c.b16 %v2548, %v2544
  %v3137 = vpack.c.b16 %v2553, %v2549
  %v3138 = vpack.c.b16 %v2554, %v2550
  %v3139 = vpack.c.b16 %v2555, %v2551
  %v3140 = vpack.c.b16 %v2556, %v2552
  %v3141 = vpack.c.b16 %v2561, %v2557
  %v3142 = vpack.c.b16 %v2562, %v2558
  %v3143 = vpack.c.b16 %v2563, %v2559
  %v3144 = vpack.c.b16 %v2564, %v2560
  %v3145 = vpack.c.b16 %v2569, %v2565
  %v3146 = vpack.c.b16 %v2570, %v2566
  %v3147 = vpack.c.b16 %v2571, %v2567
  %v3148 = vpack.c.b16 %v2572, %v2568
  %3725 = vmatprep.subr.bf16.mxu0 %v2574
  %3726 = vmatpush1.bf16.msra.mxu0 %v2573
  %3727 = vmatprep.subr.bf16.mxu0 %v2578
  %3728 = vmatpush1.bf16.msra.mxu0 %v2577
  %3729 = vmatprep.subr.bf16.mxu0 %v2582
  %3730 = vmatpush1.bf16.msra.mxu0 %v2581
  %3731 = vmatprep.subr.bf16.mxu0 %v2586
  %3732 = vmatpush1.bf16.msra.mxu0 %v2585
  %3733 = vmatprep.subr.bf16.mxu0 %v2590
  %3734 = vmatpush1.bf16.msra.mxu0 %v2589
  %3735 = vmatprep.subr.bf16.mxu0 %v2594
  %3736 = vmatpush1.bf16.msra.mxu0 %v2593
  %3737 = vmatprep.subr.bf16.mxu0 %v2598
  %3738 = vmatpush1.bf16.msra.mxu0 %v2597
  %3739 = vmatprep.subr.bf16.mxu0 %v2602
  %3740 = vmatpush1.bf16.msra.mxu0 %v2601
  %3741 = vmatprep.subr.bf16.mxu0 %v2606
  %3742 = vmatpush1.bf16.msra.mxu0 %v2605
  %3743 = vmatprep.subr.bf16.mxu0 %v2610
  %3744 = vmatpush1.bf16.msra.mxu0 %v2609
  %3745 = vmatprep.subr.bf16.mxu0 %v2614
  %3746 = vmatpush1.bf16.msra.mxu0 %v2613
  %3747 = vmatprep.subr.bf16.mxu0 %v2618
  %3748 = vmatpush1.bf16.msra.mxu0 %v2617
  %3749 = vmatprep.subr.bf16.mxu0 %v2622
  %3750 = vmatpush1.bf16.msra.mxu0 %v2621
  %3751 = vmatprep.subr.bf16.mxu0 %v2626
  %3752 = vmatpush1.bf16.msra.mxu0 %v2625
  %3753 = vmatprep.subr.bf16.mxu0 %v2630
  %3754 = vmatpush1.bf16.msra.mxu0 %v2629
  %3755 = vmatprep.subr.bf16.mxu0 %v2634
  %3756 = vmatpush1.bf16.msra.mxu0 %v2633
  %3757 = vmatprep.mubr.bf16.mxu0 %v774
  %3758 = vmatmul.mubr.bf16.gmra.mrb[0].mxu0 %v773
  %v3759 = vpop.f32.mrb[0].mxu0
  %v3760 = vadd.f32 %v648, %v3759
  %v3761 = vpop.f32.mrb[0].mxu0
  %v3762 = vadd.f32 %v652, %v3761
  %v3763 = vpop.f32.mrb[0].mxu0
  %v3764 = vadd.f32 %v648, %v3763
  %v3765 = vpop.f32.mrb[0].mxu0
  %v3766 = vadd.f32 %v652, %v3765
  %3767 = vmatprep.mubr.bf16.mxu0 %v792
  %3768 = vmatmul.mubr.bf16.gmra.mrb[0].mxu0 %v791
  %v3769 = vpop.f32.mrb[0].mxu0
  %v3770 = vadd.f32 %v648, %v3769
  %v3771 = vpop.f32.mrb[0].mxu0
  %v3772 = vadd.f32 %v652, %v3771
  %v3773 = vpop.f32.mrb[0].mxu0
  %v3774 = vadd.f32 %v648, %v3773
  %v3775 = vpop.f32.mrb[0].mxu0
  %v3776 = vadd.f32 %v652, %v3775
  %3777 = vdwg.mxu0
  %3778 = vmatprep.subr.bf16.mxu0 %v2638
  %3779 = vmatpush1.bf16.msra.mxu0 %v2637
  %3780 = vmatprep.subr.bf16.mxu0 %v2642
  %3781 = vmatpush1.bf16.msra.mxu0 %v2641
  %3782 = vmatprep.subr.bf16.mxu0 %v2646
  %3783 = vmatpush1.bf16.msra.mxu0 %v2645
  %3784 = vmatprep.subr.bf16.mxu0 %v2650
  %3785 = vmatpush1.bf16.msra.mxu0 %v2649
  %3786 = vmatprep.subr.bf16.mxu0 %v2654
  %3787 = vmatpush1.bf16.msra.mxu0 %v2653
  %3788 = vmatprep.subr.bf16.mxu0 %v2658
  %3789 = vmatpush1.bf16.msra.mxu0 %v2657
  %3790 = vmatprep.subr.bf16.mxu0 %v2662
  %3791 = vmatpush1.bf16.msra.mxu0 %v2661
  %3792 = vmatprep.subr.bf16.mxu0 %v2666
  %3793 = vmatpush1.bf16.msra.mxu0 %v2665
  %3794 = vmatprep.subr.bf16.mxu0 %v2670
  %3795 = vmatpush1.bf16.msra.mxu0 %v2669
  %3796 = vmatprep.subr.bf16.mxu0 %v2674
  %3797 = vmatpush1.bf16.msra.mxu0 %v2673
  %3798 = vmatprep.subr.bf16.mxu0 %v2678
  %3799 = vmatpush1.bf16.msra.mxu0 %v2677
  %3800 = vmatprep.subr.bf16.mxu0 %v2682
  %3801 = vmatpush1.bf16.msra.mxu0 %v2681
  %3802 = vmatprep.subr.bf16.mxu0 %v2686
  %3803 = vmatpush1.bf16.msra.mxu0 %v2685
  %3804 = vmatprep.subr.bf16.mxu0 %v2690
  %3805 = vmatpush1.bf16.msra.mxu0 %v2689
  %3806 = vmatprep.subr.bf16.mxu0 %v2694
  %3807 = vmatpush1.bf16.msra.mxu0 %v2693
  %3808 = vmatprep.subr.bf16.mxu0 %v2698
  %3809 = vmatpush1.bf16.msra.mxu0 %v2697
  %3810 = vmatprep.mubr.bf16.mxu0 %v776
  %3811 = vmatmul.mubr.bf16.gmra.mrb[0].mxu0 %v775
  %v3812 = vpop.f32.mrb[0].mxu0
  %v3813 = vadd.f32 %v3760, %v3812
  %v3814 = vpop.f32.mrb[0].mxu0
  %v3815 = vadd.f32 %v3762, %v3814
  %v3816 = vpop.f32.mrb[0].mxu0
  %v3817 = vadd.f32 %v3764, %v3816
  %v3818 = vpop.f32.mrb[0].mxu0
  %v3819 = vadd.f32 %v3766, %v3818
  %3820 = vmatprep.mubr.bf16.mxu0 %v794
  %3821 = vmatmul.mubr.bf16.gmra.mrb[0].mxu0 %v793
  %v3822 = vpop.f32.mrb[0].mxu0
  %v3823 = vadd.f32 %v3770, %v3822
  %v3824 = vpop.f32.mrb[0].mxu0
  %v3825 = vadd.f32 %v3772, %v3824
  %v3826 = vpop.f32.mrb[0].mxu0
  %v3827 = vadd.f32 %v3774, %v3826
  %v3828 = vpop.f32.mrb[0].mxu0
  %v3829 = vadd.f32 %v3776, %v3828
  %3830 = vdwg.mxu0
  %3831 = vmatprep.subr.bf16.mxu0 %v2702
  %3832 = vmatpush1.bf16.msra.mxu0 %v2701
  %3833 = vmatprep.subr.bf16.mxu0 %v2706
  %3834 = vmatpush1.bf16.msra.mxu0 %v2705
  %3835 = vmatprep.subr.bf16.mxu0 %v2710
  %3836 = vmatpush1.bf16.msra.mxu0 %v2709
  %3837 = vmatprep.subr.bf16.mxu0 %v2714
  %3838 = vmatpush1.bf16.msra.mxu0 %v2713
  %3839 = vmatprep.subr.bf16.mxu0 %v2718
  %3840 = vmatpush1.bf16.msra.mxu0 %v2717
  %3841 = vmatprep.subr.bf16.mxu0 %v2722
  %3842 = vmatpush1.bf16.msra.mxu0 %v2721
  %3843 = vmatprep.subr.bf16.mxu0 %v2726
  %3844 = vmatpush1.bf16.msra.mxu0 %v2725
  %3845 = vmatprep.subr.bf16.mxu0 %v2730
  %3846 = vmatpush1.bf16.msra.mxu0 %v2729
  %3847 = vmatprep.subr.bf16.mxu0 %v2734
  %3848 = vmatpush1.bf16.msra.mxu0 %v2733
  %3849 = vmatprep.subr.bf16.mxu0 %v2738
  %3850 = vmatpush1.bf16.msra.mxu0 %v2737
  %3851 = vmatprep.subr.bf16.mxu0 %v2742
  %3852 = vmatpush1.bf16.msra.mxu0 %v2741
  %3853 = vmatprep.subr.bf16.mxu0 %v2746
  %3854 = vmatpush1.bf16.msra.mxu0 %v2745
  %3855 = vmatprep.subr.bf16.mxu0 %v2750
  %3856 = vmatpush1.bf16.msra.mxu0 %v2749
  %3857 = vmatprep.subr.bf16.mxu0 %v2754
  %3858 = vmatpush1.bf16.msra.mxu0 %v2753
  %3859 = vmatprep.subr.bf16.mxu0 %v2758
  %3860 = vmatpush1.bf16.msra.mxu0 %v2757
  %3861 = vmatprep.subr.bf16.mxu0 %v2762
  %3862 = vmatpush1.bf16.msra.mxu0 %v2761
  %3863 = vmatprep.mubr.bf16.mxu0 %v778
  %3864 = vmatmul.mubr.bf16.gmra.mrb[0].mxu0 %v777
  %v3865 = vpop.f32.mrb[0].mxu0
  %v3866 = vadd.f32 %v3813, %v3865
  %v3867 = vpop.f32.mrb[0].mxu0
  %v3868 = vadd.f32 %v3815, %v3867
  %v3869 = vpop.f32.mrb[0].mxu0
  %v3870 = vadd.f32 %v3817, %v3869
  %v3871 = vpop.f32.mrb[0].mxu0
  %v3872 = vadd.f32 %v3819, %v3871
  %3873 = vmatprep.mubr.bf16.mxu0 %v796
  %3874 = vmatmul.mubr.bf16.gmra.mrb[0].mxu0 %v795
  %v3875 = vpop.f32.mrb[0].mxu0
  %v3876 = vadd.f32 %v3823, %v3875
  %v3877 = vpop.f32.mrb[0].mxu0
  %v3878 = vadd.f32 %v3825, %v3877
  %v3879 = vpop.f32.mrb[0].mxu0
  %v3880 = vadd.f32 %v3827, %v3879
  %v3881 = vpop.f32.mrb[0].mxu0
  %v3882 = vadd.f32 %v3829, %v3881
  %3883 = vdwg.mxu0
  %3884 = vmatprep.subr.bf16.mxu0 %v2766
  %3885 = vmatpush1.bf16.msra.mxu0 %v2765
  %3886 = vmatprep.subr.bf16.mxu0 %v2770
  %3887 = vmatpush1.bf16.msra.mxu0 %v2769
  %3888 = vmatprep.subr.bf16.mxu0 %v2774
  %3889 = vmatpush1.bf16.msra.mxu0 %v2773
  %3890 = vmatprep.subr.bf16.mxu0 %v2778
  %3891 = vmatpush1.bf16.msra.mxu0 %v2777
  %3892 = vmatprep.subr.bf16.mxu0 %v2782
  %3893 = vmatpush1.bf16.msra.mxu0 %v2781
  %3894 = vmatprep.subr.bf16.mxu0 %v2786
  %3895 = vmatpush1.bf16.msra.mxu0 %v2785
  %3896 = vmatprep.subr.bf16.mxu0 %v2790
  %3897 = vmatpush1.bf16.msra.mxu0 %v2789
  %3898 = vmatprep.subr.bf16.mxu0 %v2794
  %3899 = vmatpush1.bf16.msra.mxu0 %v2793
  %3900 = vmatprep.subr.bf16.mxu0 %v2798
  %3901 = vmatpush1.bf16.msra.mxu0 %v2797
  %3902 = vmatprep.subr.bf16.mxu0 %v2802
  %3903 = vmatpush1.bf16.msra.mxu0 %v2801
  %3904 = vmatprep.subr.bf16.mxu0 %v2806
  %3905 = vmatpush1.bf16.msra.mxu0 %v2805
  %3906 = vmatprep.subr.bf16.mxu0 %v2810
  %3907 = vmatpush1.bf16.msra.mxu0 %v2809
  %3908 = vmatprep.subr.bf16.mxu0 %v2814
  %3909 = vmatpush1.bf16.msra.mxu0 %v2813
  %3910 = vmatprep.subr.bf16.mxu0 %v2818
  %3911 = vmatpush1.bf16.msra.mxu0 %v2817
  %3912 = vmatprep.subr.bf16.mxu0 %v2822
  %3913 = vmatpush1.bf16.msra.mxu0 %v2821
  %3914 = vmatprep.subr.bf16.mxu0 %v2826
  %3915 = vmatpush1.bf16.msra.mxu0 %v2825
  %3916 = vmatprep.mubr.bf16.mxu0 %v780
  %3917 = vmatmul.mubr.bf16.gmra.mrb[0].mxu0 %v779
  %v3918 = vpop.f32.mrb[0].mxu0
  %v3919 = vadd.f32 %v3866, %v3918
  %v3920 = vpop.f32.mrb[0].mxu0
  %v3921 = vadd.f32 %v3868, %v3920
  %v3922 = vpop.f32.mrb[0].mxu0
  %v3923 = vadd.f32 %v3870, %v3922
  %v3924 = vpop.f32.mrb[0].mxu0
  %v3925 = vadd.f32 %v3872, %v3924
  %3926 = vmatprep.mubr.bf16.mxu0 %v798
  %3927 = vmatmul.mubr.bf16.gmra.mrb[0].mxu0 %v797
  %v3928 = vpop.f32.mrb[0].mxu0
  %v3929 = vadd.f32 %v3876, %v3928
  %v3930 = vpop.f32.mrb[0].mxu0
  %v3931 = vadd.f32 %v3878, %v3930
  %v3932 = vpop.f32.mrb[0].mxu0
  %v3933 = vadd.f32 %v3880, %v3932
  %v3934 = vpop.f32.mrb[0].mxu0
  %v3935 = vadd.f32 %v3882, %v3934
  %3936 = vdwg.mxu0
  %3937 = vmatprep.subr.bf16.mxu0 %v2830
  %3938 = vmatpush1.bf16.msra.mxu0 %v2829
  %3939 = vmatprep.subr.bf16.mxu0 %v2834
  %3940 = vmatpush1.bf16.msra.mxu0 %v2833
  %3941 = vmatprep.subr.bf16.mxu0 %v2838
  %3942 = vmatpush1.bf16.msra.mxu0 %v2837
  %3943 = vmatprep.subr.bf16.mxu0 %v2842
  %3944 = vmatpush1.bf16.msra.mxu0 %v2841
  %3945 = vmatprep.subr.bf16.mxu0 %v2846
  %3946 = vmatpush1.bf16.msra.mxu0 %v2845
  %3947 = vmatprep.subr.bf16.mxu0 %v2850
  %3948 = vmatpush1.bf16.msra.mxu0 %v2849
  %3949 = vmatprep.subr.bf16.mxu0 %v2854
  %3950 = vmatpush1.bf16.msra.mxu0 %v2853
  %3951 = vmatprep.subr.bf16.mxu0 %v2858
  %3952 = vmatpush1.bf16.msra.mxu0 %v2857
  %3953 = vmatprep.subr.bf16.mxu0 %v2862
  %3954 = vmatpush1.bf16.msra.mxu0 %v2861
  %3955 = vmatprep.subr.bf16.mxu0 %v2866
  %3956 = vmatpush1.bf16.msra.mxu0 %v2865
  %3957 = vmatprep.subr.bf16.mxu0 %v2870
  %3958 = vmatpush1.bf16.msra.mxu0 %v2869
  %3959 = vmatprep.subr.bf16.mxu0 %v2874
  %3960 = vmatpush1.bf16.msra.mxu0 %v2873
  %3961 = vmatprep.subr.bf16.mxu0 %v2878
  %3962 = vmatpush1.bf16.msra.mxu0 %v2877
  %3963 = vmatprep.subr.bf16.mxu0 %v2882
  %3964 = vmatpush1.bf16.msra.mxu0 %v2881
  %3965 = vmatprep.subr.bf16.mxu0 %v2886
  %3966 = vmatpush1.bf16.msra.mxu0 %v2885
  %3967 = vmatprep.subr.bf16.mxu0 %v2890
  %3968 = vmatpush1.bf16.msra.mxu0 %v2889
  %3969 = vmatprep.mubr.bf16.mxu0 %v782
  %3970 = vmatmul.mubr.bf16.gmra.mrb[0].mxu0 %v781
  %v3971 = vpop.f32.mrb[0].mxu0
  %v3972 = vadd.f32 %v3919, %v3971
  %v3973 = vpop.f32.mrb[0].mxu0
  %v3974 = vadd.f32 %v3921, %v3973
  %v3975 = vpop.f32.mrb[0].mxu0
  %v3976 = vadd.f32 %v3923, %v3975
  %v3977 = vpop.f32.mrb[0].mxu0
  %v3978 = vadd.f32 %v3925, %v3977
  %3979 = vmatprep.mubr.bf16.mxu0 %v800
  %3980 = vmatmul.mubr.bf16.gmra.mrb[0].mxu0 %v799
  %v3981 = vpop.f32.mrb[0].mxu0
  %v3982 = vadd.f32 %v3929, %v3981
  %v3983 = vpop.f32.mrb[0].mxu0
  %v3984 = vadd.f32 %v3931, %v3983
  %v3985 = vpop.f32.mrb[0].mxu0
  %v3986 = vadd.f32 %v3933, %v3985
  %v3987 = vpop.f32.mrb[0].mxu0
  %v3988 = vadd.f32 %v3935, %v3987
  %3989 = vdwg.mxu0
  %3990 = vmatprep.subr.bf16.mxu0 %v2894
  %3991 = vmatpush1.bf16.msra.mxu0 %v2893
  %3992 = vmatprep.subr.bf16.mxu0 %v2898
  %3993 = vmatpush1.bf16.msra.mxu0 %v2897
  %3994 = vmatprep.subr.bf16.mxu0 %v2902
  %3995 = vmatpush1.bf16.msra.mxu0 %v2901
  %3996 = vmatprep.subr.bf16.mxu0 %v2906
  %3997 = vmatpush1.bf16.msra.mxu0 %v2905
  %3998 = vmatprep.subr.bf16.mxu0 %v2910
  %3999 = vmatpush1.bf16.msra.mxu0 %v2909
  %4000 = vmatprep.subr.bf16.mxu0 %v2914
  %4001 = vmatpush1.bf16.msra.mxu0 %v2913
  %4002 = vmatprep.subr.bf16.mxu0 %v2918
  %4003 = vmatpush1.bf16.msra.mxu0 %v2917
  %4004 = vmatprep.subr.bf16.mxu0 %v2922
  %4005 = vmatpush1.bf16.msra.mxu0 %v2921
  %4006 = vmatprep.subr.bf16.mxu0 %v2926
  %4007 = vmatpush1.bf16.msra.mxu0 %v2925
  %4008 = vmatprep.subr.bf16.mxu0 %v2930
  %4009 = vmatpush1.bf16.msra.mxu0 %v2929
  %4010 = vmatprep.subr.bf16.mxu0 %v2934
  %4011 = vmatpush1.bf16.msra.mxu0 %v2933
  %4012 = vmatprep.subr.bf16.mxu0 %v2938
  %4013 = vmatpush1.bf16.msra.mxu0 %v2937
  %4014 = vmatprep.subr.bf16.mxu0 %v2942
  %4015 = vmatpush1.bf16.msra.mxu0 %v2941
  %4016 = vmatprep.subr.bf16.mxu0 %v2946
  %4017 = vmatpush1.bf16.msra.mxu0 %v2945
  %4018 = vmatprep.subr.bf16.mxu0 %v2950
  %4019 = vmatpush1.bf16.msra.mxu0 %v2949
  %4020 = vmatprep.subr.bf16.mxu0 %v2954
  %4021 = vmatpush1.bf16.msra.mxu0 %v2953
  %4022 = vmatprep.mubr.bf16.mxu0 %v784
  %4023 = vmatmul.mubr.bf16.gmra.mrb[0].mxu0 %v783
  %v4024 = vpop.f32.mrb[0].mxu0
  %v4025 = vadd.f32 %v3972, %v4024
  %v4026 = vpop.f32.mrb[0].mxu0
  %v4027 = vadd.f32 %v3974, %v4026
  %v4028 = vpop.f32.mrb[0].mxu0
  %v4029 = vadd.f32 %v3976, %v4028
  %v4030 = vpop.f32.mrb[0].mxu0
  %v4031 = vadd.f32 %v3978, %v4030
  %4032 = vmatprep.mubr.bf16.mxu0 %v802
  %4033 = vmatmul.mubr.bf16.gmra.mrb[0].mxu0 %v801
  %v4034 = vpop.f32.mrb[0].mxu0
  %v4035 = vadd.f32 %v3982, %v4034
  %v4036 = vpop.f32.mrb[0].mxu0
  %v4037 = vadd.f32 %v3984, %v4036
  %v4038 = vpop.f32.mrb[0].mxu0
  %v4039 = vadd.f32 %v3986, %v4038
  %v4040 = vpop.f32.mrb[0].mxu0
  %v4041 = vadd.f32 %v3988, %v4040
  %4042 = vdwg.mxu0
  %4043 = vmatprep.subr.bf16.mxu0 %v2958
  %4044 = vmatpush1.bf16.msra.mxu0 %v2957
  %4045 = vmatprep.subr.bf16.mxu0 %v2962
  %4046 = vmatpush1.bf16.msra.mxu0 %v2961
  %4047 = vmatprep.subr.bf16.mxu0 %v2966
  %4048 = vmatpush1.bf16.msra.mxu0 %v2965
  %4049 = vmatprep.subr.bf16.mxu0 %v2970
  %4050 = vmatpush1.bf16.msra.mxu0 %v2969
  %4051 = vmatprep.subr.bf16.mxu0 %v2974
  %4052 = vmatpush1.bf16.msra.mxu0 %v2973
  %4053 = vmatprep.subr.bf16.mxu0 %v2978
  %4054 = vmatpush1.bf16.msra.mxu0 %v2977
  %4055 = vmatprep.subr.bf16.mxu0 %v2982
  %4056 = vmatpush1.bf16.msra.mxu0 %v2981
  %4057 = vmatprep.subr.bf16.mxu0 %v2986
  %4058 = vmatpush1.bf16.msra.mxu0 %v2985
  %4059 = vmatprep.subr.bf16.mxu0 %v2990
  %4060 = vmatpush1.bf16.msra.mxu0 %v2989
  %4061 = vmatprep.subr.bf16.mxu0 %v2994
  %4062 = vmatpush1.bf16.msra.mxu0 %v2993
  %4063 = vmatprep.subr.bf16.mxu0 %v2998
  %4064 = vmatpush1.bf16.msra.mxu0 %v2997
  %4065 = vmatprep.subr.bf16.mxu0 %v3002
  %4066 = vmatpush1.bf16.msra.mxu0 %v3001
  %4067 = vmatprep.subr.bf16.mxu0 %v3006
  %4068 = vmatpush1.bf16.msra.mxu0 %v3005
  %4069 = vmatprep.subr.bf16.mxu0 %v3010
  %4070 = vmatpush1.bf16.msra.mxu0 %v3009
  %4071 = vmatprep.subr.bf16.mxu0 %v3014
  %4072 = vmatpush1.bf16.msra.mxu0 %v3013
  %4073 = vmatprep.subr.bf16.mxu0 %v3018
  %4074 = vmatpush1.bf16.msra.mxu0 %v3017
  %4075 = vmatprep.mubr.bf16.mxu0 %v786
  %4076 = vmatmul.mubr.bf16.gmra.mrb[0].mxu0 %v785
  %v4077 = vpop.f32.mrb[0].mxu0
  %v4078 = vadd.f32 %v4025, %v4077
  %v4079 = vpop.f32.mrb[0].mxu0
  %v4080 = vadd.f32 %v4027, %v4079
  %v4081 = vpop.f32.mrb[0].mxu0
  %v4082 = vadd.f32 %v4029, %v4081
  %v4083 = vpop.f32.mrb[0].mxu0
  %v4084 = vadd.f32 %v4031, %v4083
  %4085 = vmatprep.mubr.bf16.mxu0 %v804
  %4086 = vmatmul.mubr.bf16.gmra.mrb[0].mxu0 %v803
  %v4087 = vpop.f32.mrb[0].mxu0
  %v4088 = vadd.f32 %v4035, %v4087
  %v4089 = vpop.f32.mrb[0].mxu0
  %v4090 = vadd.f32 %v4037, %v4089
  %v4091 = vpop.f32.mrb[0].mxu0
  %v4092 = vadd.f32 %v4039, %v4091
  %v4093 = vpop.f32.mrb[0].mxu0
  %v4094 = vadd.f32 %v4041, %v4093
  %4095 = vdwg.mxu0
  %4096 = vmatprep.subr.bf16.mxu0 %v3022
  %4097 = vmatpush1.bf16.msra.mxu0 %v3021
  %4098 = vmatprep.subr.bf16.mxu0 %v3026
  %4099 = vmatpush1.bf16.msra.mxu0 %v3025
  %4100 = vmatprep.subr.bf16.mxu0 %v3030
  %4101 = vmatpush1.bf16.msra.mxu0 %v3029
  %4102 = vmatprep.subr.bf16.mxu0 %v3034
  %4103 = vmatpush1.bf16.msra.mxu0 %v3033
  %4104 = vmatprep.subr.bf16.mxu0 %v3038
  %4105 = vmatpush1.bf16.msra.mxu0 %v3037
  %4106 = vmatprep.subr.bf16.mxu0 %v3042
  %4107 = vmatpush1.bf16.msra.mxu0 %v3041
  %4108 = vmatprep.subr.bf16.mxu0 %v3046
  %4109 = vmatpush1.bf16.msra.mxu0 %v3045
  %4110 = vmatprep.subr.bf16.mxu0 %v3050
  %4111 = vmatpush1.bf16.msra.mxu0 %v3049
  %4112 = vmatprep.subr.bf16.mxu0 %v3054
  %4113 = vmatpush1.bf16.msra.mxu0 %v3053
  %4114 = vmatprep.subr.bf16.mxu0 %v3058
  %4115 = vmatpush1.bf16.msra.mxu0 %v3057
  %4116 = vmatprep.subr.bf16.mxu0 %v3062
  %4117 = vmatpush1.bf16.msra.mxu0 %v3061
  %4118 = vmatprep.subr.bf16.mxu0 %v3066
  %4119 = vmatpush1.bf16.msra.mxu0 %v3065
  %4120 = vmatprep.subr.bf16.mxu0 %v3070
  %4121 = vmatpush1.bf16.msra.mxu0 %v3069
  %4122 = vmatprep.subr.bf16.mxu0 %v3074
  %4123 = vmatpush1.bf16.msra.mxu0 %v3073
  %4124 = vmatprep.subr.bf16.mxu0 %v3078
  %4125 = vmatpush1.bf16.msra.mxu0 %v3077
  %4126 = vmatprep.subr.bf16.mxu0 %v3082
  %4127 = vmatpush1.bf16.msra.mxu0 %v3081
  %4128 = vmatprep.mubr.bf16.mxu0 %v788
  %4129 = vmatmul.mubr.bf16.gmra.mrb[0].mxu0 %v787
  %v4130 = vpop.f32.mrb[0].mxu0
  %v4131 = vadd.f32 %v4078, %v4130
  %v4132 = vpop.f32.mrb[0].mxu0
  %v4133 = vadd.f32 %v4080, %v4132
  %v4134 = vpop.f32.mrb[0].mxu0
  %v4135 = vadd.f32 %v4082, %v4134
  %v4136 = vpop.f32.mrb[0].mxu0
  %v4137 = vadd.f32 %v4084, %v4136
  %4138 = vmatprep.mubr.bf16.mxu0 %v806
  %4139 = vmatmul.mubr.bf16.gmra.mrb[0].mxu0 %v805
  %v4140 = vpop.f32.mrb[0].mxu0
  %v4141 = vadd.f32 %v4088, %v4140
  %v4142 = vpop.f32.mrb[0].mxu0
  %v4143 = vadd.f32 %v4090, %v4142
  %v4144 = vpop.f32.mrb[0].mxu0
  %v4145 = vadd.f32 %v4092, %v4144
  %v4146 = vpop.f32.mrb[0].mxu0
  %v4147 = vadd.f32 %v4094, %v4146
  %4148 = vdwg.mxu0
  %4149 = vmatprep.subr.bf16.mxu0 %v3086
  %4150 = vmatpush1.bf16.msra.mxu0 %v3085
  %4151 = vmatprep.subr.bf16.mxu0 %v3090
  %4152 = vmatpush1.bf16.msra.mxu0 %v3089
  %4153 = vmatprep.subr.bf16.mxu0 %v3094
  %4154 = vmatpush1.bf16.msra.mxu0 %v3093
  %4155 = vmatprep.subr.bf16.mxu0 %v3098
  %4156 = vmatpush1.bf16.msra.mxu0 %v3097
  %4157 = vmatprep.subr.bf16.mxu0 %v3102
  %4158 = vmatpush1.bf16.msra.mxu0 %v3101
  %4159 = vmatprep.subr.bf16.mxu0 %v3106
  %4160 = vmatpush1.bf16.msra.mxu0 %v3105
  %4161 = vmatprep.subr.bf16.mxu0 %v3110
  %4162 = vmatpush1.bf16.msra.mxu0 %v3109
  %4163 = vmatprep.subr.bf16.mxu0 %v3114
  %4164 = vmatpush1.bf16.msra.mxu0 %v3113
  %4165 = vmatprep.subr.bf16.mxu0 %v3118
  %4166 = vmatpush1.bf16.msra.mxu0 %v3117
  %4167 = vmatprep.subr.bf16.mxu0 %v3122
  %4168 = vmatpush1.bf16.msra.mxu0 %v3121
  %4169 = vmatprep.subr.bf16.mxu0 %v3126
  %4170 = vmatpush1.bf16.msra.mxu0 %v3125
  %4171 = vmatprep.subr.bf16.mxu0 %v3130
  %4172 = vmatpush1.bf16.msra.mxu0 %v3129
  %4173 = vmatprep.subr.bf16.mxu0 %v3134
  %4174 = vmatpush1.bf16.msra.mxu0 %v3133
  %4175 = vmatprep.subr.bf16.mxu0 %v3138
  %4176 = vmatpush1.bf16.msra.mxu0 %v3137
  %4177 = vmatprep.subr.bf16.mxu0 %v3142
  %4178 = vmatpush1.bf16.msra.mxu0 %v3141
  %4179 = vmatprep.subr.bf16.mxu0 %v3146
  %4180 = vmatpush1.bf16.msra.mxu0 %v3145
  %4181 = vmatprep.mubr.bf16.mxu0 %v790
  %4182 = vmatmul.mubr.bf16.gmra.mrb[0].mxu0 %v789
  %v4183 = vpop.f32.mrb[0].mxu0
  %v4184 = vadd.f32 %v4131, %v4183
  %v4185 = vpop.f32.mrb[0].mxu0
  %v4186 = vadd.f32 %v4133, %v4185
  %v4187 = vpop.f32.mrb[0].mxu0
  %v4188 = vadd.f32 %v4135, %v4187
  %v4189 = vpop.f32.mrb[0].mxu0
  %v4190 = vadd.f32 %v4137, %v4189
  %4191 = vmatprep.mubr.bf16.mxu0 %v808
  %4192 = vmatmul.mubr.bf16.gmra.mrb[0].mxu0 %v807
  %v4193 = vpop.f32.mrb[0].mxu0
  %v4194 = vadd.f32 %v4141, %v4193
  %v4195 = vpop.f32.mrb[0].mxu0
  %v4196 = vadd.f32 %v4143, %v4195
  %v4197 = vpop.f32.mrb[0].mxu0
  %v4198 = vadd.f32 %v4145, %v4197
  %v4199 = vpop.f32.mrb[0].mxu0
  %v4200 = vadd.f32 %v4147, %v4199
  %4201 = vdwg.mxu0
  %4202 = vmatprep.subr.bf16.mxu0 %v2576
  %4203 = vmatpush1.bf16.msra.mxu0 %v2575
  %4204 = vmatprep.subr.bf16.mxu0 %v2580
  %4205 = vmatpush1.bf16.msra.mxu0 %v2579
  %4206 = vmatprep.subr.bf16.mxu0 %v2584
  %4207 = vmatpush1.bf16.msra.mxu0 %v2583
  %4208 = vmatprep.subr.bf16.mxu0 %v2588
  %4209 = vmatpush1.bf16.msra.mxu0 %v2587
  %4210 = vmatprep.subr.bf16.mxu0 %v2592
  %4211 = vmatpush1.bf16.msra.mxu0 %v2591
  %4212 = vmatprep.subr.bf16.mxu0 %v2596
  %4213 = vmatpush1.bf16.msra.mxu0 %v2595
  %4214 = vmatprep.subr.bf16.mxu0 %v2600
  %4215 = vmatpush1.bf16.msra.mxu0 %v2599
  %4216 = vmatprep.subr.bf16.mxu0 %v2604
  %4217 = vmatpush1.bf16.msra.mxu0 %v2603
  %4218 = vmatprep.subr.bf16.mxu0 %v2608
  %4219 = vmatpush1.bf16.msra.mxu0 %v2607
  %4220 = vmatprep.subr.bf16.mxu0 %v2612
  %4221 = vmatpush1.bf16.msra.mxu0 %v2611
  %4222 = vmatprep.subr.bf16.mxu0 %v2616
  %4223 = vmatpush1.bf16.msra.mxu0 %v2615
  %4224 = vmatprep.subr.bf16.mxu0 %v2620
  %4225 = vmatpush1.bf16.msra.mxu0 %v2619
  %4226 = vmatprep.subr.bf16.mxu0 %v2624
  %4227 = vmatpush1.bf16.msra.mxu0 %v2623
  %4228 = vmatprep.subr.bf16.mxu0 %v2628
  %4229 = vmatpush1.bf16.msra.mxu0 %v2627
  %4230 = vmatprep.subr.bf16.mxu0 %v2632
  %4231 = vmatpush1.bf16.msra.mxu0 %v2631
  %4232 = vmatprep.subr.bf16.mxu0 %v2636
  %4233 = vmatpush1.bf16.msra.mxu0 %v2635
  %4234 = vmatprep.mubr.bf16.mxu0 %v774
  %4235 = vmatmul.mubr.bf16.gmra.mrb[0].mxu0 %v773
  %v4236 = vpop.f32.mrb[0].mxu0
  %v4237 = vadd.f32 %v656, %v4236
  %v4238 = vpop.f32.mrb[0].mxu0
  %v4239 = vadd.f32 %v660, %v4238
  %v4240 = vpop.f32.mrb[0].mxu0
  %v4241 = vadd.f32 %v656, %v4240
  %v4242 = vpop.f32.mrb[0].mxu0
  %v4243 = vadd.f32 %v660, %v4242
  %4244 = vmatprep.mubr.bf16.mxu0 %v792
  %4245 = vmatmul.mubr.bf16.gmra.mrb[0].mxu0 %v791
  %v4246 = vpop.f32.mrb[0].mxu0
  %v4247 = vadd.f32 %v656, %v4246
  %v4248 = vpop.f32.mrb[0].mxu0
  %v4249 = vadd.f32 %v660, %v4248
  %v4250 = vpop.f32.mrb[0].mxu0
  %v4251 = vadd.f32 %v656, %v4250
  %v4252 = vpop.f32.mrb[0].mxu0
  %v4253 = vadd.f32 %v660, %v4252
  %4254 = vdwg.mxu0
  %4255 = vmatprep.subr.bf16.mxu0 %v2640
  %4256 = vmatpush1.bf16.msra.mxu0 %v2639
  %4257 = vmatprep.subr.bf16.mxu0 %v2644
  %4258 = vmatpush1.bf16.msra.mxu0 %v2643
  %4259 = vmatprep.subr.bf16.mxu0 %v2648
  %4260 = vmatpush1.bf16.msra.mxu0 %v2647
  %4261 = vmatprep.subr.bf16.mxu0 %v2652
  %4262 = vmatpush1.bf16.msra.mxu0 %v2651
  %4263 = vmatprep.subr.bf16.mxu0 %v2656
  %4264 = vmatpush1.bf16.msra.mxu0 %v2655
  %4265 = vmatprep.subr.bf16.mxu0 %v2660
  %4266 = vmatpush1.bf16.msra.mxu0 %v2659
  %4267 = vmatprep.subr.bf16.mxu0 %v2664
  %4268 = vmatpush1.bf16.msra.mxu0 %v2663
  %4269 = vmatprep.subr.bf16.mxu0 %v2668
  %4270 = vmatpush1.bf16.msra.mxu0 %v2667
  %4271 = vmatprep.subr.bf16.mxu0 %v2672
  %4272 = vmatpush1.bf16.msra.mxu0 %v2671
  %4273 = vmatprep.subr.bf16.mxu0 %v2676
  %4274 = vmatpush1.bf16.msra.mxu0 %v2675
  %4275 = vmatprep.subr.bf16.mxu0 %v2680
  %4276 = vmatpush1.bf16.msra.mxu0 %v2679
  %4277 = vmatprep.subr.bf16.mxu0 %v2684
  %4278 = vmatpush1.bf16.msra.mxu0 %v2683
  %4279 = vmatprep.subr.bf16.mxu0 %v2688
  %4280 = vmatpush1.bf16.msra.mxu0 %v2687
  %4281 = vmatprep.subr.bf16.mxu0 %v2692
  %4282 = vmatpush1.bf16.msra.mxu0 %v2691
  %4283 = vmatprep.subr.bf16.mxu0 %v2696
  %4284 = vmatpush1.bf16.msra.mxu0 %v2695
  %4285 = vmatprep.subr.bf16.mxu0 %v2700
  %4286 = vmatpush1.bf16.msra.mxu0 %v2699
  %4287 = vmatprep.mubr.bf16.mxu0 %v776
  %4288 = vmatmul.mubr.bf16.gmra.mrb[0].mxu0 %v775
  %v4289 = vpop.f32.mrb[0].mxu0
  %v4290 = vadd.f32 %v4237, %v4289
  %v4291 = vpop.f32.mrb[0].mxu0
  %v4292 = vadd.f32 %v4239, %v4291
  %v4293 = vpop.f32.mrb[0].mxu0
  %v4294 = vadd.f32 %v4241, %v4293
  %v4295 = vpop.f32.mrb[0].mxu0
  %v4296 = vadd.f32 %v4243, %v4295
  %4297 = vmatprep.mubr.bf16.mxu0 %v794
  %4298 = vmatmul.mubr.bf16.gmra.mrb[0].mxu0 %v793
  %v4299 = vpop.f32.mrb[0].mxu0
  %v4300 = vadd.f32 %v4247, %v4299
  %v4301 = vpop.f32.mrb[0].mxu0
  %v4302 = vadd.f32 %v4249, %v4301
  %v4303 = vpop.f32.mrb[0].mxu0
  %v4304 = vadd.f32 %v4251, %v4303
  %v4305 = vpop.f32.mrb[0].mxu0
  %v4306 = vadd.f32 %v4253, %v4305
  %4307 = vdwg.mxu0
  %4308 = vmatprep.subr.bf16.mxu0 %v2704
  %4309 = vmatpush1.bf16.msra.mxu0 %v2703
  %4310 = vmatprep.subr.bf16.mxu0 %v2708
  %4311 = vmatpush1.bf16.msra.mxu0 %v2707
  %4312 = vmatprep.subr.bf16.mxu0 %v2712
  %4313 = vmatpush1.bf16.msra.mxu0 %v2711
  %4314 = vmatprep.subr.bf16.mxu0 %v2716
  %4315 = vmatpush1.bf16.msra.mxu0 %v2715
  %4316 = vmatprep.subr.bf16.mxu0 %v2720
  %4317 = vmatpush1.bf16.msra.mxu0 %v2719
  %4318 = vmatprep.subr.bf16.mxu0 %v2724
  %4319 = vmatpush1.bf16.msra.mxu0 %v2723
  %4320 = vmatprep.subr.bf16.mxu0 %v2728
  %4321 = vmatpush1.bf16.msra.mxu0 %v2727
  %4322 = vmatprep.subr.bf16.mxu0 %v2732
  %4323 = vmatpush1.bf16.msra.mxu0 %v2731
  %4324 = vmatprep.subr.bf16.mxu0 %v2736
  %4325 = vmatpush1.bf16.msra.mxu0 %v2735
  %4326 = vmatprep.subr.bf16.mxu0 %v2740
  %4327 = vmatpush1.bf16.msra.mxu0 %v2739
  %4328 = vmatprep.subr.bf16.mxu0 %v2744
  %4329 = vmatpush1.bf16.msra.mxu0 %v2743
  %4330 = vmatprep.subr.bf16.mxu0 %v2748
  %4331 = vmatpush1.bf16.msra.mxu0 %v2747
  %4332 = vmatprep.subr.bf16.mxu0 %v2752
  %4333 = vmatpush1.bf16.msra.mxu0 %v2751
  %4334 = vmatprep.subr.bf16.mxu0 %v2756
  %4335 = vmatpush1.bf16.msra.mxu0 %v2755
  %4336 = vmatprep.subr.bf16.mxu0 %v2760
  %4337 = vmatpush1.bf16.msra.mxu0 %v2759
  %4338 = vmatprep.subr.bf16.mxu0 %v2764
  %4339 = vmatpush1.bf16.msra.mxu0 %v2763
  %4340 = vmatprep.mubr.bf16.mxu0 %v778
  %4341 = vmatmul.mubr.bf16.gmra.mrb[0].mxu0 %v777
  %v4342 = vpop.f32.mrb[0].mxu0
  %v4343 = vadd.f32 %v4290, %v4342
  %v4344 = vpop.f32.mrb[0].mxu0
  %v4345 = vadd.f32 %v4292, %v4344
  %v4346 = vpop.f32.mrb[0].mxu0
  %v4347 = vadd.f32 %v4294, %v4346
  %v4348 = vpop.f32.mrb[0].mxu0
  %v4349 = vadd.f32 %v4296, %v4348
  %4350 = vmatprep.mubr.bf16.mxu0 %v796
  %4351 = vmatmul.mubr.bf16.gmra.mrb[0].mxu0 %v795
  %v4352 = vpop.f32.mrb[0].mxu0
  %v4353 = vadd.f32 %v4300, %v4352
  %v4354 = vpop.f32.mrb[0].mxu0
  %v4355 = vadd.f32 %v4302, %v4354
  %v4356 = vpop.f32.mrb[0].mxu0
  %v4357 = vadd.f32 %v4304, %v4356
  %v4358 = vpop.f32.mrb[0].mxu0
  %v4359 = vadd.f32 %v4306, %v4358
  %4360 = vdwg.mxu0
  %4361 = vmatprep.subr.bf16.mxu0 %v2768
  %4362 = vmatpush1.bf16.msra.mxu0 %v2767
  %4363 = vmatprep.subr.bf16.mxu0 %v2772
  %4364 = vmatpush1.bf16.msra.mxu0 %v2771
  %4365 = vmatprep.subr.bf16.mxu0 %v2776
  %4366 = vmatpush1.bf16.msra.mxu0 %v2775
  %4367 = vmatprep.subr.bf16.mxu0 %v2780
  %4368 = vmatpush1.bf16.msra.mxu0 %v2779
  %4369 = vmatprep.subr.bf16.mxu0 %v2784
  %4370 = vmatpush1.bf16.msra.mxu0 %v2783
  %4371 = vmatprep.subr.bf16.mxu0 %v2788
  %4372 = vmatpush1.bf16.msra.mxu0 %v2787
  %4373 = vmatprep.subr.bf16.mxu0 %v2792
  %4374 = vmatpush1.bf16.msra.mxu0 %v2791
  %4375 = vmatprep.subr.bf16.mxu0 %v2796
  %4376 = vmatpush1.bf16.msra.mxu0 %v2795
  %4377 = vmatprep.subr.bf16.mxu0 %v2800
  %4378 = vmatpush1.bf16.msra.mxu0 %v2799
  %4379 = vmatprep.subr.bf16.mxu0 %v2804
  %4380 = vmatpush1.bf16.msra.mxu0 %v2803
  %4381 = vmatprep.subr.bf16.mxu0 %v2808
  %4382 = vmatpush1.bf16.msra.mxu0 %v2807
  %4383 = vmatprep.subr.bf16.mxu0 %v2812
  %4384 = vmatpush1.bf16.msra.mxu0 %v2811
  %4385 = vmatprep.subr.bf16.mxu0 %v2816
  %4386 = vmatpush1.bf16.msra.mxu0 %v2815
  %4387 = vmatprep.subr.bf16.mxu0 %v2820
  %4388 = vmatpush1.bf16.msra.mxu0 %v2819
  %4389 = vmatprep.subr.bf16.mxu0 %v2824
  %4390 = vmatpush1.bf16.msra.mxu0 %v2823
  %4391 = vmatprep.subr.bf16.mxu0 %v2828
  %4392 = vmatpush1.bf16.msra.mxu0 %v2827
  %4393 = vmatprep.mubr.bf16.mxu0 %v780
  %4394 = vmatmul.mubr.bf16.gmra.mrb[0].mxu0 %v779
  %v4395 = vpop.f32.mrb[0].mxu0
  %v4396 = vadd.f32 %v4343, %v4395
  %v4397 = vpop.f32.mrb[0].mxu0
  %v4398 = vadd.f32 %v4345, %v4397
  %v4399 = vpop.f32.mrb[0].mxu0
  %v4400 = vadd.f32 %v4347, %v4399
  %v4401 = vpop.f32.mrb[0].mxu0
  %v4402 = vadd.f32 %v4349, %v4401
  %4403 = vmatprep.mubr.bf16.mxu0 %v798
  %4404 = vmatmul.mubr.bf16.gmra.mrb[0].mxu0 %v797
  %v4405 = vpop.f32.mrb[0].mxu0
  %v4406 = vadd.f32 %v4353, %v4405
  %v4407 = vpop.f32.mrb[0].mxu0
  %v4408 = vadd.f32 %v4355, %v4407
  %v4409 = vpop.f32.mrb[0].mxu0
  %v4410 = vadd.f32 %v4357, %v4409
  %v4411 = vpop.f32.mrb[0].mxu0
  %v4412 = vadd.f32 %v4359, %v4411
  %4413 = vdwg.mxu0
  %4414 = vmatprep.subr.bf16.mxu0 %v2832
  %4415 = vmatpush1.bf16.msra.mxu0 %v2831
  %4416 = vmatprep.subr.bf16.mxu0 %v2836
  %4417 = vmatpush1.bf16.msra.mxu0 %v2835
  %4418 = vmatprep.subr.bf16.mxu0 %v2840
  %4419 = vmatpush1.bf16.msra.mxu0 %v2839
  %4420 = vmatprep.subr.bf16.mxu0 %v2844
  %4421 = vmatpush1.bf16.msra.mxu0 %v2843
  %4422 = vmatprep.subr.bf16.mxu0 %v2848
  %4423 = vmatpush1.bf16.msra.mxu0 %v2847
  %4424 = vmatprep.subr.bf16.mxu0 %v2852
  %4425 = vmatpush1.bf16.msra.mxu0 %v2851
  %4426 = vmatprep.subr.bf16.mxu0 %v2856
  %4427 = vmatpush1.bf16.msra.mxu0 %v2855
  %4428 = vmatprep.subr.bf16.mxu0 %v2860
  %4429 = vmatpush1.bf16.msra.mxu0 %v2859
  %4430 = vmatprep.subr.bf16.mxu0 %v2864
  %4431 = vmatpush1.bf16.msra.mxu0 %v2863
  %4432 = vmatprep.subr.bf16.mxu0 %v2868
  %4433 = vmatpush1.bf16.msra.mxu0 %v2867
  %4434 = vmatprep.subr.bf16.mxu0 %v2872
  %4435 = vmatpush1.bf16.msra.mxu0 %v2871
  %4436 = vmatprep.subr.bf16.mxu0 %v2876
  %4437 = vmatpush1.bf16.msra.mxu0 %v2875
  %4438 = vmatprep.subr.bf16.mxu0 %v2880
  %4439 = vmatpush1.bf16.msra.mxu0 %v2879
  %4440 = vmatprep.subr.bf16.mxu0 %v2884
  %4441 = vmatpush1.bf16.msra.mxu0 %v2883
  %4442 = vmatprep.subr.bf16.mxu0 %v2888
  %4443 = vmatpush1.bf16.msra.mxu0 %v2887
  %4444 = vmatprep.subr.bf16.mxu0 %v2892
  %4445 = vmatpush1.bf16.msra.mxu0 %v2891
  %4446 = vmatprep.mubr.bf16.mxu0 %v782
  %4447 = vmatmul.mubr.bf16.gmra.mrb[0].mxu0 %v781
  %v4448 = vpop.f32.mrb[0].mxu0
  %v4449 = vadd.f32 %v4396, %v4448
  %v4450 = vpop.f32.mrb[0].mxu0
  %v4451 = vadd.f32 %v4398, %v4450
  %v4452 = vpop.f32.mrb[0].mxu0
  %v4453 = vadd.f32 %v4400, %v4452
  %v4454 = vpop.f32.mrb[0].mxu0
  %v4455 = vadd.f32 %v4402, %v4454
  %4456 = vmatprep.mubr.bf16.mxu0 %v800
  %4457 = vmatmul.mubr.bf16.gmra.mrb[0].mxu0 %v799
  %v4458 = vpop.f32.mrb[0].mxu0
  %v4459 = vadd.f32 %v4406, %v4458
  %v4460 = vpop.f32.mrb[0].mxu0
  %v4461 = vadd.f32 %v4408, %v4460
  %v4462 = vpop.f32.mrb[0].mxu0
  %v4463 = vadd.f32 %v4410, %v4462
  %v4464 = vpop.f32.mrb[0].mxu0
  %v4465 = vadd.f32 %v4412, %v4464
  %4466 = vdwg.mxu0
  %4467 = vmatprep.subr.bf16.mxu0 %v2896
  %4468 = vmatpush1.bf16.msra.mxu0 %v2895
  %4469 = vmatprep.subr.bf16.mxu0 %v2900
  %4470 = vmatpush1.bf16.msra.mxu0 %v2899
  %4471 = vmatprep.subr.bf16.mxu0 %v2904
  %4472 = vmatpush1.bf16.msra.mxu0 %v2903
  %4473 = vmatprep.subr.bf16.mxu0 %v2908
  %4474 = vmatpush1.bf16.msra.mxu0 %v2907
  %4475 = vmatprep.subr.bf16.mxu0 %v2912
  %4476 = vmatpush1.bf16.msra.mxu0 %v2911
  %4477 = vmatprep.subr.bf16.mxu0 %v2916
  %4478 = vmatpush1.bf16.msra.mxu0 %v2915
  %4479 = vmatprep.subr.bf16.mxu0 %v2920
  %4480 = vmatpush1.bf16.msra.mxu0 %v2919
  %4481 = vmatprep.subr.bf16.mxu0 %v2924
  %4482 = vmatpush1.bf16.msra.mxu0 %v2923
  %4483 = vmatprep.subr.bf16.mxu0 %v2928
  %4484 = vmatpush1.bf16.msra.mxu0 %v2927
  %4485 = vmatprep.subr.bf16.mxu0 %v2932
  %4486 = vmatpush1.bf16.msra.mxu0 %v2931
  %4487 = vmatprep.subr.bf16.mxu0 %v2936
  %4488 = vmatpush1.bf16.msra.mxu0 %v2935
  %4489 = vmatprep.subr.bf16.mxu0 %v2940
  %4490 = vmatpush1.bf16.msra.mxu0 %v2939
  %4491 = vmatprep.subr.bf16.mxu0 %v2944
  %4492 = vmatpush1.bf16.msra.mxu0 %v2943
  %4493 = vmatprep.subr.bf16.mxu0 %v2948
  %4494 = vmatpush1.bf16.msra.mxu0 %v2947
  %4495 = vmatprep.subr.bf16.mxu0 %v2952
  %4496 = vmatpush1.bf16.msra.mxu0 %v2951
  %4497 = vmatprep.subr.bf16.mxu0 %v2956
  %4498 = vmatpush1.bf16.msra.mxu0 %v2955
  %4499 = vmatprep.mubr.bf16.mxu0 %v784
  %4500 = vmatmul.mubr.bf16.gmra.mrb[0].mxu0 %v783
  %v4501 = vpop.f32.mrb[0].mxu0
  %v4502 = vadd.f32 %v4449, %v4501
  %v4503 = vpop.f32.mrb[0].mxu0
  %v4504 = vadd.f32 %v4451, %v4503
  %v4505 = vpop.f32.mrb[0].mxu0
  %v4506 = vadd.f32 %v4453, %v4505
  %v4507 = vpop.f32.mrb[0].mxu0
  %v4508 = vadd.f32 %v4455, %v4507
  %4509 = vmatprep.mubr.bf16.mxu0 %v802
  %4510 = vmatmul.mubr.bf16.gmra.mrb[0].mxu0 %v801
  %v4511 = vpop.f32.mrb[0].mxu0
  %v4512 = vadd.f32 %v4459, %v4511
  %v4513 = vpop.f32.mrb[0].mxu0
  %v4514 = vadd.f32 %v4461, %v4513
  %v4515 = vpop.f32.mrb[0].mxu0
  %v4516 = vadd.f32 %v4463, %v4515
  %v4517 = vpop.f32.mrb[0].mxu0
  %v4518 = vadd.f32 %v4465, %v4517
  %4519 = vdwg.mxu0
  %4520 = vmatprep.subr.bf16.mxu0 %v2960
  %4521 = vmatpush1.bf16.msra.mxu0 %v2959
  %4522 = vmatprep.subr.bf16.mxu0 %v2964
  %4523 = vmatpush1.bf16.msra.mxu0 %v2963
  %4524 = vmatprep.subr.bf16.mxu0 %v2968
  %4525 = vmatpush1.bf16.msra.mxu0 %v2967
  %4526 = vmatprep.subr.bf16.mxu0 %v2972
  %4527 = vmatpush1.bf16.msra.mxu0 %v2971
  %4528 = vmatprep.subr.bf16.mxu0 %v2976
  %4529 = vmatpush1.bf16.msra.mxu0 %v2975
  %4530 = vmatprep.subr.bf16.mxu0 %v2980
  %4531 = vmatpush1.bf16.msra.mxu0 %v2979
  %4532 = vmatprep.subr.bf16.mxu0 %v2984
  %4533 = vmatpush1.bf16.msra.mxu0 %v2983
  %4534 = vmatprep.subr.bf16.mxu0 %v2988
  %4535 = vmatpush1.bf16.msra.mxu0 %v2987
  %4536 = vmatprep.subr.bf16.mxu0 %v2992
  %4537 = vmatpush1.bf16.msra.mxu0 %v2991
  %4538 = vmatprep.subr.bf16.mxu0 %v2996
  %4539 = vmatpush1.bf16.msra.mxu0 %v2995
  %4540 = vmatprep.subr.bf16.mxu0 %v3000
  %4541 = vmatpush1.bf16.msra.mxu0 %v2999
  %4542 = vmatprep.subr.bf16.mxu0 %v3004
  %4543 = vmatpush1.bf16.msra.mxu0 %v3003
  %4544 = vmatprep.subr.bf16.mxu0 %v3008
  %4545 = vmatpush1.bf16.msra.mxu0 %v3007
  %4546 = vmatprep.subr.bf16.mxu0 %v3012
  %4547 = vmatpush1.bf16.msra.mxu0 %v3011
  %4548 = vmatprep.subr.bf16.mxu0 %v3016
  %4549 = vmatpush1.bf16.msra.mxu0 %v3015
  %4550 = vmatprep.subr.bf16.mxu0 %v3020
  %4551 = vmatpush1.bf16.msra.mxu0 %v3019
  %4552 = vmatprep.mubr.bf16.mxu0 %v786
  %4553 = vmatmul.mubr.bf16.gmra.mrb[0].mxu0 %v785
  %v4554 = vpop.f32.mrb[0].mxu0
  %v4555 = vadd.f32 %v4502, %v4554
  %v4556 = vpop.f32.mrb[0].mxu0
  %v4557 = vadd.f32 %v4504, %v4556
  %v4558 = vpop.f32.mrb[0].mxu0
  %v4559 = vadd.f32 %v4506, %v4558
  %v4560 = vpop.f32.mrb[0].mxu0
  %v4561 = vadd.f32 %v4508, %v4560
  %4562 = vmatprep.mubr.bf16.mxu0 %v804
  %4563 = vmatmul.mubr.bf16.gmra.mrb[0].mxu0 %v803
  %v4564 = vpop.f32.mrb[0].mxu0
  %v4565 = vadd.f32 %v4512, %v4564
  %v4566 = vpop.f32.mrb[0].mxu0
  %v4567 = vadd.f32 %v4514, %v4566
  %v4568 = vpop.f32.mrb[0].mxu0
  %v4569 = vadd.f32 %v4516, %v4568
  %v4570 = vpop.f32.mrb[0].mxu0
  %v4571 = vadd.f32 %v4518, %v4570
  %4572 = vdwg.mxu0
  %4573 = vmatprep.subr.bf16.mxu0 %v3024
  %4574 = vmatpush1.bf16.msra.mxu0 %v3023
  %4575 = vmatprep.subr.bf16.mxu0 %v3028
  %4576 = vmatpush1.bf16.msra.mxu0 %v3027
  %4577 = vmatprep.subr.bf16.mxu0 %v3032
  %4578 = vmatpush1.bf16.msra.mxu0 %v3031
  %4579 = vmatprep.subr.bf16.mxu0 %v3036
  %4580 = vmatpush1.bf16.msra.mxu0 %v3035
  %4581 = vmatprep.subr.bf16.mxu0 %v3040
  %4582 = vmatpush1.bf16.msra.mxu0 %v3039
  %4583 = vmatprep.subr.bf16.mxu0 %v3044
  %4584 = vmatpush1.bf16.msra.mxu0 %v3043
  %4585 = vmatprep.subr.bf16.mxu0 %v3048
  %4586 = vmatpush1.bf16.msra.mxu0 %v3047
  %4587 = vmatprep.subr.bf16.mxu0 %v3052
  %4588 = vmatpush1.bf16.msra.mxu0 %v3051
  %4589 = vmatprep.subr.bf16.mxu0 %v3056
  %4590 = vmatpush1.bf16.msra.mxu0 %v3055
  %4591 = vmatprep.subr.bf16.mxu0 %v3060
  %4592 = vmatpush1.bf16.msra.mxu0 %v3059
  %4593 = vmatprep.subr.bf16.mxu0 %v3064
  %4594 = vmatpush1.bf16.msra.mxu0 %v3063
  %4595 = vmatprep.subr.bf16.mxu0 %v3068
  %4596 = vmatpush1.bf16.msra.mxu0 %v3067
  %4597 = vmatprep.subr.bf16.mxu0 %v3072
  %4598 = vmatpush1.bf16.msra.mxu0 %v3071
  %4599 = vmatprep.subr.bf16.mxu0 %v3076
  %4600 = vmatpush1.bf16.msra.mxu0 %v3075
  %4601 = vmatprep.subr.bf16.mxu0 %v3080
  %4602 = vmatpush1.bf16.msra.mxu0 %v3079
  %4603 = vmatprep.subr.bf16.mxu0 %v3084
  %4604 = vmatpush1.bf16.msra.mxu0 %v3083
  %4605 = vmatprep.mubr.bf16.mxu0 %v788
  %4606 = vmatmul.mubr.bf16.gmra.mrb[0].mxu0 %v787
  %v4607 = vpop.f32.mrb[0].mxu0
  %v4608 = vadd.f32 %v4555, %v4607
  %v4609 = vpop.f32.mrb[0].mxu0
  %v4610 = vadd.f32 %v4557, %v4609
  %v4611 = vpop.f32.mrb[0].mxu0
  %v4612 = vadd.f32 %v4559, %v4611
  %v4613 = vpop.f32.mrb[0].mxu0
  %v4614 = vadd.f32 %v4561, %v4613
  %4615 = vmatprep.mubr.bf16.mxu0 %v806
  %4616 = vmatmul.mubr.bf16.gmra.mrb[0].mxu0 %v805
  %v4617 = vpop.f32.mrb[0].mxu0
  %v4618 = vadd.f32 %v4565, %v4617
  %v4619 = vpop.f32.mrb[0].mxu0
  %v4620 = vadd.f32 %v4567, %v4619
  %v4621 = vpop.f32.mrb[0].mxu0
  %v4622 = vadd.f32 %v4569, %v4621
  %v4623 = vpop.f32.mrb[0].mxu0
  %v4624 = vadd.f32 %v4571, %v4623
  %4625 = vdwg.mxu0
  %4626 = vmatprep.subr.bf16.mxu0 %v3088
  %4627 = vmatpush1.bf16.msra.mxu0 %v3087
  %4628 = vmatprep.subr.bf16.mxu0 %v3092
  %4629 = vmatpush1.bf16.msra.mxu0 %v3091
  %4630 = vmatprep.subr.bf16.mxu0 %v3096
  %4631 = vmatpush1.bf16.msra.mxu0 %v3095
  %4632 = vmatprep.subr.bf16.mxu0 %v3100
  %4633 = vmatpush1.bf16.msra.mxu0 %v3099
  %4634 = vmatprep.subr.bf16.mxu0 %v3104
  %4635 = vmatpush1.bf16.msra.mxu0 %v3103
  %4636 = vmatprep.subr.bf16.mxu0 %v3108
  %4637 = vmatpush1.bf16.msra.mxu0 %v3107
  %4638 = vmatprep.subr.bf16.mxu0 %v3112
  %4639 = vmatpush1.bf16.msra.mxu0 %v3111
  %4640 = vmatprep.subr.bf16.mxu0 %v3116
  %4641 = vmatpush1.bf16.msra.mxu0 %v3115
  %4642 = vmatprep.subr.bf16.mxu0 %v3120
  %4643 = vmatpush1.bf16.msra.mxu0 %v3119
  %4644 = vmatprep.subr.bf16.mxu0 %v3124
  %4645 = vmatpush1.bf16.msra.mxu0 %v3123
  %4646 = vmatprep.subr.bf16.mxu0 %v3128
  %4647 = vmatpush1.bf16.msra.mxu0 %v3127
  %4648 = vmatprep.subr.bf16.mxu0 %v3132
  %4649 = vmatpush1.bf16.msra.mxu0 %v3131
  %4650 = vmatprep.subr.bf16.mxu0 %v3136
  %4651 = vmatpush1.bf16.msra.mxu0 %v3135
  %4652 = vmatprep.subr.bf16.mxu0 %v3140
  %4653 = vmatpush1.bf16.msra.mxu0 %v3139
  %4654 = vmatprep.subr.bf16.mxu0 %v3144
  %4655 = vmatpush1.bf16.msra.mxu0 %v3143
  %4656 = vmatprep.subr.bf16.mxu0 %v3148
  %4657 = vmatpush1.bf16.msra.mxu0 %v3147
  %4658 = vmatprep.mubr.bf16.mxu0 %v790
  %4659 = vmatmul.mubr.bf16.gmra.mrb[0].mxu0 %v789
  %v4660 = vpop.f32.mrb[0].mxu0
  %v4661 = vadd.f32 %v4608, %v4660
  %v4662 = vpop.f32.mrb[0].mxu0
  %v4663 = vadd.f32 %v4610, %v4662
  %v4664 = vpop.f32.mrb[0].mxu0
  %v4665 = vadd.f32 %v4612, %v4664
  %v4666 = vpop.f32.mrb[0].mxu0
  %v4667 = vadd.f32 %v4614, %v4666
  %4668 = vmatprep.mubr.bf16.mxu0 %v808
  %4669 = vmatmul.mubr.bf16.gmra.mrb[0].mxu0 %v807
  %v4670 = vpop.f32.mrb[0].mxu0
  %v4671 = vadd.f32 %v4618, %v4670
  %v4672 = vpop.f32.mrb[0].mxu0
  %v4673 = vadd.f32 %v4620, %v4672
  %v4674 = vpop.f32.mrb[0].mxu0
  %v4675 = vadd.f32 %v4622, %v4674
  %v4676 = vpop.f32.mrb[0].mxu0
  %v4677 = vadd.f32 %v4624, %v4676
  %4678 = vdwg.mxu0
  %v4679 = vadd.f32 %v4184, %v4188
  %v4680 = vadd.f32 %v4679, %v4194
  %v4681 = vadd.f32 %v4680, %v4198
  %v4682 = vrot.slane %v4681, 4
  %v4683 = vadd.f32 %v4681, %v4682
  %v4684 = vrot.slane %v4683, 2
  %v4685 = vadd.f32 %v4683, %v4684
  %v4686 = vrot.slane %v4685, 1
  %v4687 = vadd.f32 %v4685, %v4686
  %v4688 = vadd.f32 %v4186, %v4190
  %v4689 = vadd.f32 %v4688, %v4196
  %v4690 = vadd.f32 %v4689, %v4200
  %v4691 = vrot.slane %v4690, 4
  %v4692 = vadd.f32 %v4690, %v4691
  %v4693 = vrot.slane %v4692, 2
  %v4694 = vadd.f32 %v4692, %v4693
  %v4695 = vrot.slane %v4694, 1
  %v4696 = vadd.f32 %v4694, %v4695
  %v4697 = vadd.f32 %v4661, %v4665
  %v4698 = vadd.f32 %v4697, %v4671
  %v4699 = vadd.f32 %v4698, %v4675
  %v4700 = vrot.slane %v4699, 4
  %v4701 = vadd.f32 %v4699, %v4700
  %v4702 = vrot.slane %v4701, 2
  %v4703 = vadd.f32 %v4701, %v4702
  %v4704 = vrot.slane %v4703, 1
  %v4705 = vadd.f32 %v4703, %v4704
  %v4706 = vadd.f32 %v4663, %v4667
  %v4707 = vadd.f32 %v4706, %v4673
  %v4708 = vadd.f32 %v4707, %v4677
  %v4709 = vrot.slane %v4708, 4
  %v4710 = vadd.f32 %v4708, %v4709
  %v4711 = vrot.slane %v4710, 2
  %v4712 = vadd.f32 %v4710, %v4711
  %v4713 = vrot.slane %v4712, 1
  %v4714 = vadd.f32 %v4712, %v4713
  %v4715 = vmul.f32 %v4687, 0.03125
  %v4716 = vmul.f32 %v4696, 0.03125
  %v4717 = vmul.f32 %v4705, 0.03125
  %v4718 = vmul.f32 %v4714, 0.03125
  %v4719 = vmul.f32 %v4184, %v4184
  %v4720 = vmul.f32 %v4186, %v4186
  %v4721 = vmul.f32 %v4661, %v4661
  %v4722 = vmul.f32 %v4663, %v4663
  %v4723 = vmul.f32 %v4188, %v4188
  %v4724 = vmul.f32 %v4190, %v4190
  %v4725 = vmul.f32 %v4665, %v4665
  %v4726 = vmul.f32 %v4667, %v4667
  %v4727 = vmul.f32 %v4194, %v4194
  %v4728 = vmul.f32 %v4196, %v4196
  %v4729 = vmul.f32 %v4671, %v4671
  %v4730 = vmul.f32 %v4673, %v4673
  %v4731 = vmul.f32 %v4198, %v4198
  %v4732 = vmul.f32 %v4200, %v4200
  %v4733 = vmul.f32 %v4675, %v4675
  %v4734 = vmul.f32 %v4677, %v4677
  %v4735 = vadd.f32 %v4719, %v4723
  %v4736 = vadd.f32 %v4735, %v4727
  %v4737 = vadd.f32 %v4736, %v4731
  %v4738 = vrot.slane %v4737, 4
  %v4739 = vadd.f32 %v4737, %v4738
  %v4740 = vrot.slane %v4739, 2
  %v4741 = vadd.f32 %v4739, %v4740
  %v4742 = vrot.slane %v4741, 1
  %v4743 = vadd.f32 %v4741, %v4742
  %v4744 = vadd.f32 %v4720, %v4724
  %v4745 = vadd.f32 %v4744, %v4728
  %v4746 = vadd.f32 %v4745, %v4732
  %v4747 = vrot.slane %v4746, 4
  %v4748 = vadd.f32 %v4746, %v4747
  %v4749 = vrot.slane %v4748, 2
  %v4750 = vadd.f32 %v4748, %v4749
  %v4751 = vrot.slane %v4750, 1
  %v4752 = vadd.f32 %v4750, %v4751
  %v4753 = vadd.f32 %v4721, %v4725
  %v4754 = vadd.f32 %v4753, %v4729
  %v4755 = vadd.f32 %v4754, %v4733
  %v4756 = vrot.slane %v4755, 4
  %v4757 = vadd.f32 %v4755, %v4756
  %v4758 = vrot.slane %v4757, 2
  %v4759 = vadd.f32 %v4757, %v4758
  %v4760 = vrot.slane %v4759, 1
  %v4761 = vadd.f32 %v4759, %v4760
  %v4762 = vadd.f32 %v4722, %v4726
  %v4763 = vadd.f32 %v4762, %v4730
  %v4764 = vadd.f32 %v4763, %v4734
  %v4765 = vrot.slane %v4764, 4
  %v4766 = vadd.f32 %v4764, %v4765
  %v4767 = vrot.slane %v4766, 2
  %v4768 = vadd.f32 %v4766, %v4767
  %v4769 = vrot.slane %v4768, 1
  %v4770 = vadd.f32 %v4768, %v4769
  %v4771 = vmul.f32 %v4743, 0.03125
  %v4772 = vmul.f32 %v4752, 0.03125
  %v4773 = vmul.f32 %v4761, 0.03125
  %v4774 = vmul.f32 %v4770, 0.03125
  %v4775 = vmul.f32 %v4715, %v4715
  %v4776 = vmul.f32 %v4716, %v4716
  %v4777 = vmul.f32 %v4717, %v4717
  %v4778 = vmul.f32 %v4718, %v4718
  %v4779 = vsub.f32 %v4771, %v4775
  %v4780 = vsub.f32 %v4772, %v4776
  %v4781 = vsub.f32 %v4773, %v4777
  %v4782 = vsub.f32 %v4774, %v4778
  %v4783 = vld [vmem:[%s3] sm:$0xf]
  %v4784 = vadd.f32 %v4779, 1e-05
  %v4785 = vadd.f32 %v4780, 1e-05
  %v4786 = vadd.f32 %v4781, 1e-05
  %v4787 = vadd.f32 %v4782, 1e-05
  %v4788 = vrsqrt.pop %v4784
  %v4789 = vrsqrt.pop %v4785
  %v4790 = vrsqrt.pop %v4786
  %v4791 = vrsqrt.pop %v4787
  %v4796 = vcombine.low %v4788, %v4789
  %v4797 = vcombine.low %v4790, %v4791
  %v4799 = vunpack.c.l.s4 1966171168
  %v4800 = vunpack.c.0.s8 %v4799
  %v4801 = vlaneseq
  %v4802 = vshrl.u32 %v4801, 7
  %v4803 = vsub.s32 %v4800, %v4802
  %v4804 = vrot.slane %v4796, %v4803
  %v4806 = vunpack.c.l.s4 1966171168
  %v4807 = vunpack.c.0.s8 %v4806
  %v4808 = vlaneseq
  %v4809 = vshrl.u32 %v4808, 7
  %v4810 = vsub.s32 %v4807, %v4809
  %v4811 = vrot.slane %v4797, %v4810
  %v4812 = vcombine.low %v4804, %v4811
  %v4814 = vunpack.c.l.s4 1966171168
  %v4815 = vunpack.c.0.s8 %v4814
  %v4816 = vlaneseq
  %v4817 = vshrl.u32 %v4816, 7
  %v4818 = vsub.s32 %v4815, %v4817
  %v4819 = vrot.slane %v4812, %v4818
  %v4821 = vmul.f32 %v4783, %v4819
  %v4822 = vld [vmem:[%s4] sm:$0xf]
  %v4824 = vlaneseq
  %v4825 = vshrl.u32 %v4824, 7
  %v4826 = vsub.s32 0, %v4825
  %v4827 = vrot.slane %v4821, %v4826
  %v4828 = vlaneseq
  %v4829 = vshrl.u32 %v4828, 7
  %v4830 = vsub.s32 1, %v4829
  %v4831 = vrot.slane %v4821, %v4830
  %v4832 = vlaneseq
  %v4833 = vshrl.u32 %v4832, 7
  %v4834 = vsub.s32 2, %v4833
  %v4835 = vrot.slane %v4821, %v4834
  %v4836 = vlaneseq
  %v4837 = vshrl.u32 %v4836, 7
  %v4838 = vsub.s32 3, %v4837
  %v4839 = vrot.slane %v4821, %v4838
  %v4844 = vmul.f32 %v4715, %v4827
  %v4845 = vmul.f32 %v4716, %v4831
  %v4846 = vmul.f32 %v4717, %v4835
  %v4847 = vmul.f32 %v4718, %v4839
  %v4852 = vcombine.low %v4844, %v4845
  %v4853 = vcombine.low %v4846, %v4847
  %v4855 = vunpack.c.l.s4 1966171168
  %v4856 = vunpack.c.0.s8 %v4855
  %v4857 = vlaneseq
  %v4858 = vshrl.u32 %v4857, 7
  %v4859 = vsub.s32 %v4856, %v4858
  %v4860 = vrot.slane %v4852, %v4859
  %v4862 = vunpack.c.l.s4 1966171168
  %v4863 = vunpack.c.0.s8 %v4862
  %v4864 = vlaneseq
  %v4865 = vshrl.u32 %v4864, 7
  %v4866 = vsub.s32 %v4863, %v4865
  %v4867 = vrot.slane %v4853, %v4866
  %v4868 = vcombine.low %v4860, %v4867
  %v4870 = vunpack.c.l.s4 1966171168
  %v4871 = vunpack.c.0.s8 %v4870
  %v4872 = vlaneseq
  %v4873 = vshrl.u32 %v4872, 7
  %v4874 = vsub.s32 %v4871, %v4873
  %v4875 = vrot.slane %v4868, %v4874
  %v4877 = vsub.f32 %v4822, %v4875
  %v4878 = vmul.f32 %v4184, %v4827
  %v4879 = vmul.f32 %v4186, %v4831
  %v4880 = vmul.f32 %v4661, %v4835
  %v4881 = vmul.f32 %v4663, %v4839
  %v4882 = vmul.f32 %v4188, %v4827
  %v4883 = vmul.f32 %v4190, %v4831
  %v4884 = vmul.f32 %v4665, %v4835
  %v4885 = vmul.f32 %v4667, %v4839
  %v4886 = vmul.f32 %v4194, %v4827
  %v4887 = vmul.f32 %v4196, %v4831
  %v4888 = vmul.f32 %v4671, %v4835
  %v4889 = vmul.f32 %v4673, %v4839
  %v4890 = vmul.f32 %v4198, %v4827
  %v4891 = vmul.f32 %v4200, %v4831
  %v4892 = vmul.f32 %v4675, %v4835
  %v4893 = vmul.f32 %v4677, %v4839
  %v4895 = vlaneseq
  %v4896 = vshrl.u32 %v4895, 7
  %v4897 = vsub.s32 0, %v4896
  %v4898 = vrot.slane %v4877, %v4897
  %v4899 = vlaneseq
  %v4900 = vshrl.u32 %v4899, 7
  %v4901 = vsub.s32 1, %v4900
  %v4902 = vrot.slane %v4877, %v4901
  %v4903 = vlaneseq
  %v4904 = vshrl.u32 %v4903, 7
  %v4905 = vsub.s32 2, %v4904
  %v4906 = vrot.slane %v4877, %v4905
  %v4907 = vlaneseq
  %v4908 = vshrl.u32 %v4907, 7
  %v4909 = vsub.s32 3, %v4908
  %v4910 = vrot.slane %v4877, %v4909
  %v4915 = vadd.f32 %v4878, %v4898
  %v4916 = vadd.f32 %v4879, %v4902
  %v4917 = vadd.f32 %v4880, %v4906
  %v4918 = vadd.f32 %v4881, %v4910
  %v4919 = vadd.f32 %v4882, %v4898
  %v4920 = vadd.f32 %v4883, %v4902
  %v4921 = vadd.f32 %v4884, %v4906
  %v4922 = vadd.f32 %v4885, %v4910
  %v4923 = vadd.f32 %v4886, %v4898
  %v4924 = vadd.f32 %v4887, %v4902
  %v4925 = vadd.f32 %v4888, %v4906
  %v4926 = vadd.f32 %v4889, %v4910
  %v4927 = vadd.f32 %v4890, %v4898
  %v4928 = vadd.f32 %v4891, %v4902
  %v4929 = vadd.f32 %v4892, %v4906
  %v4930 = vadd.f32 %v4893, %v4910
  %vm4931 = vcmp.ge.f32.partialorder %v4915, 0.0
  %vm4932 = vcmp.ge.f32.partialorder %v4916, 0.0
  %vm4933 = vcmp.ge.f32.partialorder %v4917, 0.0
  %vm4934 = vcmp.ge.f32.partialorder %v4918, 0.0
  %vm4935 = vcmp.ge.f32.partialorder %v4919, 0.0
  %vm4936 = vcmp.ge.f32.partialorder %v4920, 0.0
  %vm4937 = vcmp.ge.f32.partialorder %v4921, 0.0
  %vm4938 = vcmp.ge.f32.partialorder %v4922, 0.0
  %vm4939 = vcmp.ge.f32.partialorder %v4923, 0.0
  %vm4940 = vcmp.ge.f32.partialorder %v4924, 0.0
  %vm4941 = vcmp.ge.f32.partialorder %v4925, 0.0
  %vm4942 = vcmp.ge.f32.partialorder %v4926, 0.0
  %vm4943 = vcmp.ge.f32.partialorder %v4927, 0.0
  %vm4944 = vcmp.ge.f32.partialorder %v4928, 0.0
  %vm4945 = vcmp.ge.f32.partialorder %v4929, 0.0
  %vm4946 = vcmp.ge.f32.partialorder %v4930, 0.0
  %v4947 = vmul.f32 %v4915, 0.01
  %v4948 = vmul.f32 %v4916, 0.01
  %v4949 = vmul.f32 %v4917, 0.01
  %v4950 = vmul.f32 %v4918, 0.01
  %v4951 = vmul.f32 %v4919, 0.01
  %v4952 = vmul.f32 %v4920, 0.01
  %v4953 = vmul.f32 %v4921, 0.01
  %v4954 = vmul.f32 %v4922, 0.01
  %v4955 = vmul.f32 %v4923, 0.01
  %v4956 = vmul.f32 %v4924, 0.01
  %v4957 = vmul.f32 %v4925, 0.01
  %v4958 = vmul.f32 %v4926, 0.01
  %v4959 = vmul.f32 %v4927, 0.01
  %v4960 = vmul.f32 %v4928, 0.01
  %v4961 = vmul.f32 %v4929, 0.01
  %v4962 = vmul.f32 %v4930, 0.01
  %v4963 = vsel %vm4931, %v4915, %v4947
  %v4964 = vsel %vm4932, %v4916, %v4948
  %v4965 = vsel %vm4933, %v4917, %v4949
  %v4966 = vsel %vm4934, %v4918, %v4950
  %v4967 = vsel %vm4935, %v4919, %v4951
  %v4968 = vsel %vm4936, %v4920, %v4952
  %v4969 = vsel %vm4937, %v4921, %v4953
  %v4970 = vsel %vm4938, %v4922, %v4954
  %v4971 = vsel %vm4939, %v4923, %v4955
  %v4972 = vsel %vm4940, %v4924, %v4956
  %v4973 = vsel %vm4941, %v4925, %v4957
  %v4974 = vsel %vm4942, %v4926, %v4958
  %v4975 = vsel %vm4943, %v4927, %v4959
  %v4976 = vsel %vm4944, %v4928, %v4960
  %v4977 = vsel %vm4945, %v4929, %v4961
  %v4978 = vsel %vm4946, %v4930, %v4962
  %v4979 = vld [vmem:[%s5] sm:$0xff]
  %v4980 = vld [vmem:[%s5 + $0x8] sm:$0xff]
  %v4981 = vld [vmem:[%s5 + $0x10] sm:$0xff]
  %v4982 = vld [vmem:[%s5 + $0x18] sm:$0xff]
  %v4983 = vld [vmem:[%s5 + $0x20] sm:$0xff]
  %v4984 = vld [vmem:[%s5 + $0x28] sm:$0xff]
  %v4985 = vld [vmem:[%s5 + $0x30] sm:$0xff]
  %v4986 = vld [vmem:[%s5 + $0x38] sm:$0xff]
  %v4987 = vld [vmem:[%s5 + $0x40] sm:$0xff]
  %v4988 = vld [vmem:[%s5 + $0x48] sm:$0xff]
  %v4989 = vld [vmem:[%s5 + $0x50] sm:$0xff]
  %v4990 = vld [vmem:[%s5 + $0x58] sm:$0xff]
  %v4991 = vld [vmem:[%s5 + $0x60] sm:$0xff]
  %v4992 = vld [vmem:[%s5 + $0x68] sm:$0xff]
  %v4993 = vld [vmem:[%s5 + $0x70] sm:$0xff]
  %v4994 = vld [vmem:[%s5 + $0x78] sm:$0xff]
  %v4995 = vmul.f32 %v4963, %v4979
  %v4996 = vmul.f32 %v4964, %v4980
  %v4997 = vmul.f32 %v4965, %v4981
  %v4998 = vmul.f32 %v4966, %v4982
  %v4999 = vmul.f32 %v4967, %v4983
  %v5000 = vmul.f32 %v4968, %v4984
  %v5001 = vmul.f32 %v4969, %v4985
  %v5002 = vmul.f32 %v4970, %v4986
  %v5003 = vmul.f32 %v4971, %v4987
  %v5004 = vmul.f32 %v4972, %v4988
  %v5005 = vmul.f32 %v4973, %v4989
  %v5006 = vmul.f32 %v4974, %v4990
  %v5007 = vmul.f32 %v4975, %v4991
  %v5008 = vmul.f32 %v4976, %v4992
  %v5009 = vmul.f32 %v4977, %v4993
  %v5010 = vmul.f32 %v4978, %v4994
  %v5011 = vld [vmem:[%s6] sm:$0x3]
  %vm5012 = vcmask 261120
  %v5014 = vsel %vm5012, %v5011, 0
  %5016 = vmatprep.subr.mxu0 %v4996
  %5017 = vmatpush1.msra.mxu0 %v4995
  %5018 = vmatprep.subr.mxu0 %v5000
  %5019 = vmatpush1.msra.mxu0 %v4999
  %5020 = vmatprep.subr.mxu0 %v5004
  %5021 = vmatpush1.msra.mxu0 %v5003
  %5022 = vmatprep.subr.mxu0 %v5008
  %5023 = vmatpush1.msra.mxu0 %v5007
  %5024 = vmatprep.subr.mxu0 0.0
  %5025 = vmatpush1.msra.mxu0 0.0
  %5026 = vmatprep.subr.mxu0 0.0
  %5027 = vmatpush1.msra.mxu0 0.0
  %5028 = vmatprep.subr.mxu0 0.0
  %5029 = vmatpush1.msra.mxu0 0.0
  %5030 = vmatprep.subr.mxu0 0.0
  %5031 = vmatpush1.msra.mxu0 0.0
  %5032 = vmatprep.subr.mxu0 0.0
  %5033 = vmatpush1.msra.mxu0 0.0
  %5034 = vmatprep.subr.mxu0 0.0
  %5035 = vmatpush1.msra.mxu0 0.0
  %5036 = vmatprep.subr.mxu0 0.0
  %5037 = vmatpush1.msra.mxu0 0.0
  %5038 = vmatprep.subr.mxu0 0.0
  %5039 = vmatpush1.msra.mxu0 0.0
  %5040 = vmatprep.subr.mxu0 0.0
  %5041 = vmatpush1.msra.mxu0 0.0
  %5042 = vmatprep.subr.mxu0 0.0
  %5043 = vmatpush1.msra.mxu0 0.0
  %5044 = vmatprep.subr.mxu0 0.0
  %5045 = vmatpush1.msra.mxu0 0.0
  %5046 = vmatprep.subr.mxu0 0.0
  %5047 = vmatpush1.msra.mxu0 0.0
  %5048 = vmatprep.subr.mxu0 0.0
  %5049 = vmatpush1.msra.mxu0 0.0
  %5050 = vmatprep.subr.mxu0 0.0
  %5051 = vmatpush1.msra.mxu0 0.0
  %5052 = vmatprep.subr.mxu0 0.0
  %5053 = vmatpush1.msra.mxu0 0.0
  %5054 = vmatprep.subr.mxu0 0.0
  %5055 = vmatpush1.msra.mxu0 0.0
  %5056 = vmatprep.subr.mxu0 0.0
  %5057 = vmatpush1.msra.mxu0 0.0
  %5058 = vmatprep.subr.mxu0 0.0
  %5059 = vmatpush1.msra.mxu0 0.0
  %5060 = vmatprep.subr.mxu0 0.0
  %5061 = vmatpush1.msra.mxu0 0.0
  %5062 = vmatprep.subr.mxu0 0.0
  %5063 = vmatpush1.msra.mxu0 0.0
  %5064 = vmatprep.subr.mxu0 0.0
  %5065 = vmatpush1.msra.mxu0 0.0
  %5066 = vmatprep.subr.mxu0 0.0
  %5067 = vmatpush1.msra.mxu0 0.0
  %5068 = vmatprep.subr.mxu0 0.0
  %5069 = vmatpush1.msra.mxu0 0.0
  %5070 = vmatprep.subr.mxu0 0.0
  %5071 = vmatpush1.msra.mxu0 0.0
  %5072 = vmatprep.subr.mxu0 0.0
  %5073 = vmatpush1.msra.mxu0 0.0
  %5074 = vmatprep.subr.mxu0 0.0
  %5075 = vmatpush1.msra.mxu0 0.0
  %5076 = vmatprep.subr.mxu0 0.0
  %5077 = vmatpush1.msra.mxu0 0.0
  %5078 = vmatprep.subr.mxu0 0.0
  %5079 = vmatpush1.msra.mxu0 0.0
  %5080 = vmatprep.mubr.f32.mxu0 0.0
  %5081 = vmatmul.mubr.f32.gmra.mrb[0].mxu0 %v5014
  %v5082 = vpop.f32.mrb[0].mxu0
  %v5083 = vadd.f32 0.0, %v5082
  %v5084 = vpop.f32.mrb[0].mxu0
  %v5085 = vadd.f32 0.0, %v5084
  %5086 = vdwg.mxu0
  %5087 = vmatprep.subr.mxu0 %v4998
  %5088 = vmatpush1.msra.mxu0 %v4997
  %5089 = vmatprep.subr.mxu0 %v5002
  %5090 = vmatpush1.msra.mxu0 %v5001
  %5091 = vmatprep.subr.mxu0 %v5006
  %5092 = vmatpush1.msra.mxu0 %v5005
  %5093 = vmatprep.subr.mxu0 %v5010
  %5094 = vmatpush1.msra.mxu0 %v5009
  %5095 = vmatprep.subr.mxu0 0.0
  %5096 = vmatpush1.msra.mxu0 0.0
  %5097 = vmatprep.subr.mxu0 0.0
  %5098 = vmatpush1.msra.mxu0 0.0
  %5099 = vmatprep.subr.mxu0 0.0
  %5100 = vmatpush1.msra.mxu0 0.0
  %5101 = vmatprep.subr.mxu0 0.0
  %5102 = vmatpush1.msra.mxu0 0.0
  %5103 = vmatprep.subr.mxu0 0.0
  %5104 = vmatpush1.msra.mxu0 0.0
  %5105 = vmatprep.subr.mxu0 0.0
  %5106 = vmatpush1.msra.mxu0 0.0
  %5107 = vmatprep.subr.mxu0 0.0
  %5108 = vmatpush1.msra.mxu0 0.0
  %5109 = vmatprep.subr.mxu0 0.0
  %5110 = vmatpush1.msra.mxu0 0.0
  %5111 = vmatprep.subr.mxu0 0.0
  %5112 = vmatpush1.msra.mxu0 0.0
  %5113 = vmatprep.subr.mxu0 0.0
  %5114 = vmatpush1.msra.mxu0 0.0
  %5115 = vmatprep.subr.mxu0 0.0
  %5116 = vmatpush1.msra.mxu0 0.0
  %5117 = vmatprep.subr.mxu0 0.0
  %5118 = vmatpush1.msra.mxu0 0.0
  %5119 = vmatprep.subr.mxu0 0.0
  %5120 = vmatpush1.msra.mxu0 0.0
  %5121 = vmatprep.subr.mxu0 0.0
  %5122 = vmatpush1.msra.mxu0 0.0
  %5123 = vmatprep.subr.mxu0 0.0
  %5124 = vmatpush1.msra.mxu0 0.0
  %5125 = vmatprep.subr.mxu0 0.0
  %5126 = vmatpush1.msra.mxu0 0.0
  %5127 = vmatprep.subr.mxu0 0.0
  %5128 = vmatpush1.msra.mxu0 0.0
  %5129 = vmatprep.subr.mxu0 0.0
  %5130 = vmatpush1.msra.mxu0 0.0
  %5131 = vmatprep.subr.mxu0 0.0
  %5132 = vmatpush1.msra.mxu0 0.0
  %5133 = vmatprep.subr.mxu0 0.0
  %5134 = vmatpush1.msra.mxu0 0.0
  %5135 = vmatprep.subr.mxu0 0.0
  %5136 = vmatpush1.msra.mxu0 0.0
  %5137 = vmatprep.subr.mxu0 0.0
  %5138 = vmatpush1.msra.mxu0 0.0
  %5139 = vmatprep.subr.mxu0 0.0
  %5140 = vmatpush1.msra.mxu0 0.0
  %5141 = vmatprep.subr.mxu0 0.0
  %5142 = vmatpush1.msra.mxu0 0.0
  %5143 = vmatprep.subr.mxu0 0.0
  %5144 = vmatpush1.msra.mxu0 0.0
  %5145 = vmatprep.subr.mxu0 0.0
  %5146 = vmatpush1.msra.mxu0 0.0
  %5147 = vmatprep.subr.mxu0 0.0
  %5148 = vmatpush1.msra.mxu0 0.0
  %5149 = vmatprep.subr.mxu0 0.0
  %5150 = vmatpush1.msra.mxu0 0.0
  %5151 = vmatprep.mubr.f32.mxu0 0.0
  %5152 = vmatmul.mubr.f32.gmra.mrb[0].mxu0 %v5014
  %v5153 = vpop.f32.mrb[0].mxu0
  %v5154 = vadd.f32 0.0, %v5153
  %v5155 = vpop.f32.mrb[0].mxu0
  %v5156 = vadd.f32 0.0, %v5155
  %5157 = vdwg.mxu0
  %vm5158 = vcmask 1041408
  %v5159 = vsel %vm5158, %v5083, 0.0
  %v5160 = vsel %vm5158, %v5085, 0.0
  %v5161 = vadd.f32 %v5159, %v5160
  %v5162 = vsel %vm5158, %v5154, 0.0
  %v5163 = vadd.f32 %v5161, %v5162
  %v5164 = vsel %vm5158, %v5156, 0.0
  %v5165 = vadd.f32 %v5163, %v5164
  %5166 = vadd.xlane.f32.xlu0 %v5165
  %v5167 = vpop.xlane.xlu0 %5166
  %v5168 = vld [vmem:[#allocation2] sm:$0x1]
  %v5170 = vlaneseq
  %v5171 = vshrl.u32 %v5170, 7
  %v5172 = vsub.s32 0, %v5171
  %v5173 = vrot.slane %v5168, %v5172
  %v5175 = vadd.f32 %v5167, %v5173
  %v5176 = vsub.f32 0.0, %v5175
  %v5177 = vmul.f32 %v5176, 1.442695
  %v5178 = vpow.pop %v5177
  %v5179 = vadd.f32 %v5178, 1.0
  %v5180 = vrcp.pop %v5179
  %v5181 = vmax.f32 %v5180, 0.0
  %v5182 = vmin.f32 %v5181, 1.0
  %vm5183 = vcmask 1024
  %5184 = vst.msk [vmem:[%s8] sm:$0x3] %vm5183, %v5182
  // Predicated region
  $region34: #{dnet_forward.7} parent=0 // pred_check
    _
  $region35: #{dnet_forward.7} parent=0 // pred_check_branch
    %5186 = sbr.rel (0) target = $region37
  $region36: #{dnet_forward.7} parent=0 // pred_region
    _
  $region37: #{dnet_forward.7} parent=0 // pred_fallthru
    _
  // Predicated region
  $region38: #{dnet_forward.7} parent=0 // pred_check
    _
  $region39: #{dnet_forward.7} parent=0 // pred_check_branch
    %5188 = sbr.rel (0) target = $region41
  $region40: #{dnet_forward.7} parent=0 // pred_region
    _
  $region41: #{dnet_forward.7} parent=0 // pred_fallthru
    _

</llo_original>
